<compile_context>
chip_gen: v7x
topology: tpu7x:2x2x1
jax: 0.10.0
libtpu: 0.0.40
codegen_flags: <defaults>
</compile_context>

<pallas_src>
import numpy as np
import jax
import jax.numpy as jnp
from jax import lax
from jax.experimental import pallas as pl
from jax.experimental.pallas import tpu as pltpu

LEAKY_SLOPE = 0.2
BN_EPS = 1e-5


def _leaky(v):
    return jnp.where(v >= 0.0, v, LEAKY_SLOPE * v)


# ----------------------------- Pallas kernels ------------------------------

def _head_kernel(p_ref, w1_ref, o_ref):
    """conv1 (block-diag matmul, lanes already (whalf, cout)) + MaxPool2d(10,2)
    + LeakyReLU(0.2).

    p_ref : (bb*64, 768) bf16, rows ordered (b, wpar, hpar, hhalf),
            cols ordered (whalf, kh, kw, cin).
    w1_ref: (768, 160) bf16 block-diagonal conv1 weight.
    o_ref : (bb, 12, 120) bf16 = pooled[b, oh, ow*10 + c] after LeakyReLU.
    """
    bb = o_ref.shape[0]
    y = jnp.dot(p_ref[...], w1_ref[...], preferred_element_type=jnp.float32)
    # rows -> (b, wpar, hpar, hhalf); lanes stay (whalf*10 + c) -- free reshape.
    z = y.reshape(bb, 2, 2, 16, 160)

    # MaxPool over W: w = 2*(ow + d) + wpar, d in 0..4.
    zq = jnp.maximum(z[:, 0], z[:, 1])                 # max over W parity
    wm = zq[..., 0:120]
    for d in range(1, 5):
        wm = jnp.maximum(wm, zq[..., 10 * d:10 * d + 120])   # lane-packed shifts

    # MaxPool over H: h = 2*(oh + e) + hpar, e in 0..4.
    wq = jnp.maximum(wm[:, 0], wm[:, 1])               # max over H parity
    hm = wq[:, 0:12, :]
    for e in range(1, 5):
        hm = jnp.maximum(hm, wq[:, e:e + 12, :])       # sublane shifts

    o_ref[...] = _leaky(hm).astype(o_ref.dtype)        # LeakyReLU(0.2)


def _tail_kernel(x_ref, w2_ref, b2_ref, w3_ref, b3_ref,
                 f1_ref, f2_ref, f3_ref, f4_ref, o_ref):
    """conv2+BN2, conv3+BN3 (as dense matrices), Flatten (folded into fc1),
    fc1..fc4, Sigmoid -- one MLP chain, everything resident in VMEM."""
    f32, bf16 = jnp.float32, jnp.bfloat16
    h = jnp.dot(x_ref[...], w2_ref[...], preferred_element_type=f32) + b2_ref[...]
    h = _leaky(h).astype(bf16)                                     # conv2+BN2
    h = jnp.dot(h, w3_ref[...], preferred_element_type=f32) + b3_ref[...]
    h = _leaky(h).astype(bf16)                                     # conv3+BN3
    h = _leaky(jnp.dot(h, f1_ref[...], preferred_element_type=f32)).astype(bf16)
    h = _leaky(jnp.dot(h, f2_ref[...], preferred_element_type=f32)).astype(bf16)
    h = _leaky(jnp.dot(h, f3_ref[...], preferred_element_type=f32)).astype(bf16)
    z = jnp.dot(h, f4_ref[...], preferred_element_type=f32)       # fc4
    o_ref[...] = 1.0 / (1.0 + jnp.exp(-z))                        # exact sigmoid


# ------------------------------ kernel wrappers ------------------------------

def _pick_block(n, cap, multiple=1):
    d = min(n, cap)
    while d >= 1:
        if n % d == 0 and (d % multiple == 0 or d == n):
            return d
        d -= 1
    return n


def head_call(pat, w1diag, batch):
    bb = _pick_block(batch, 16)
    flops = 2 * batch * 64 * 768 * 160
    bytes_acc = int(pat.size * 2 + w1diag.size * 2 + batch * 12 * 120 * 2)
    return pl.pallas_call(
        _head_kernel,
        out_shape=jax.ShapeDtypeStruct((batch, 12, 120), jnp.bfloat16),
        grid=(batch // bb,),
        in_specs=[pl.BlockSpec((bb * 64, 768), lambda i: (i, 0)),
                  pl.BlockSpec((768, 160), lambda i: (0, 0))],
        out_specs=pl.BlockSpec((bb, 12, 120), lambda i: (i, 0, 0)),
        compiler_params=pltpu.CompilerParams(dimension_semantics=("parallel",)),
        cost_estimate=pl.CostEstimate(flops=flops, transcendentals=0,
                                      bytes_accessed=bytes_acc),
    )(pat, w1diag)


def tail_call(feat, p, batch):
    bt = _pick_block(batch, 256, multiple=8)
    flops = 2 * batch * (1440 * 720 + 720 * 360 + 360 * 180
                         + 180 * 90 + 90 * 45 + 45 * 4)
    bytes_acc = int(
        feat.size * 2 + batch * 4 * 4
        + (p["w2big"].size + p["w3big"].size + p["fc1p"].size
           + p["fc2"].size + p["fc3"].size + p["fc4"].size) * 2
        + (p["b2big"].size + p["b3big"].size) * 4)
    return pl.pallas_call(
        _tail_kernel,
        out_shape=jax.ShapeDtypeStruct((batch, 4), jnp.float32),
        grid=(batch // bt,),
        in_specs=[pl.BlockSpec((bt, 1440), lambda i: (i, 0)),
                  pl.BlockSpec((1440, 720), lambda i: (0, 0)),
                  pl.BlockSpec((1, 720), lambda i: (0, 0)),
                  pl.BlockSpec((720, 360), lambda i: (0, 0)),
                  pl.BlockSpec((1, 360), lambda i: (0, 0)),
                  pl.BlockSpec((360, 180), lambda i: (0, 0)),
                  pl.BlockSpec((180, 90), lambda i: (0, 0)),
                  pl.BlockSpec((90, 45), lambda i: (0, 0)),
                  pl.BlockSpec((45, 4), lambda i: (0, 0))],
        out_specs=pl.BlockSpec((bt, 4), lambda i: (i, 0)),
        compiler_params=pltpu.CompilerParams(dimension_semantics=("parallel",)),
        cost_estimate=pl.CostEstimate(flops=flops, transcendentals=batch * 4,
                                      bytes_accessed=bytes_acc),
    )(feat, p["w2big"], p["b2big"], p["w3big"], p["b3big"],
      p["fc1p"], p["fc2"], p["fc3"], p["fc4"])


# ------------------------------- JAX glue -----------------------------------

def _conv1_patches(x_nchw):
    """conv1 im2col with the pool-parity row permutation folded in directly.

    Returns (B*64, 768) bf16: rows = (b, wpar, hpar, hhalf),
    cols = (whalf, kh, kw, cin).
    """
    # TODO(synk): this gather is still a single XLA copy pass over the padded
    # image (24 -> 96 KiB/img); moving it in-kernel needs stride-4 lane gathers.
    B = x_nchw.shape[0]
    x = jnp.transpose(x_nchw, (0, 2, 3, 1)).astype(jnp.bfloat16)   # NHWC
    xp = jnp.pad(x, ((0, 0), (1, 1), (1, 1), (0, 0)))              # (B,66,66,3)
    slabs = []
    for wpar in range(2):
        for hpar in range(2):
            for kh in range(4):
                for kw in range(4):
                    r0 = 2 * hpar + kh
                    c0 = 2 * wpar + kw
                    slabs.append(xp[:, r0:r0 + 61:4, c0:c0 + 61:4, :])
    s = jnp.stack(slabs, axis=0).reshape(2, 2, 4, 4, B, 16, 16, 3)
    pat = jnp.transpose(s, (4, 0, 1, 5, 6, 2, 3, 7))   # (B,wp,hp,hh,wh,kh,kw,c)
    return pat.reshape(B * 64, 768)


# ------------------------------ parameters ----------------------------------

def init_params(key):
    ks = jax.random.split(key, 9)
    f32, bf16 = jnp.float32, jnp.bfloat16

    w1 = 0.05 * jax.random.normal(ks[0], (4, 4, 3, 10), f32)     # HWIO
    w2 = 0.05 * jax.random.normal(ks[1], (4, 4, 10, 20), f32)
    w3 = 0.05 * jax.random.normal(ks[2], (4, 4, 20, 40), f32)

    # TODO(synk): BatchNorm2d implemented in eval mode (running stats folded
    # into the conv weights); training-mode batch statistics are not reproduced.
    def bn(key_, c):
        k1, k2, k3, k4 = jax.random.split(key_, 4)
        gamma = 1.0 + 0.1 * jax.random.normal(k1, (c,), f32)
        beta = 0.1 * jax.random.normal(k2, (c,), f32)
        mean = 0.1 * jax.random.normal(k3, (c,), f32)
        var = 0.5 + jnp.abs(jax.random.normal(k4, (c,), f32))
        scale = gamma / jnp.sqrt(var + BN_EPS)
        shift = beta - mean * scale
        return scale, shift

    s2, sh2 = bn(ks[3], 20)
    s3, sh3 = bn(ks[4], 40)

    # Linear weights as (in, out): y = x @ W (same math as PyTorch x @ W.T).
    fc1 = 0.05 * jax.random.normal(ks[5], (360, 180), f32)   # rows in torch Flatten order
    fc2 = 0.05 * jax.random.normal(ks[6], (180, 90), f32)
    fc3 = 0.05 * jax.random.normal(ks[7], (90, 45), f32)
    fc4 = 0.05 * jax.random.normal(ks[8], (45, 4), f32)

    w1n = np.asarray(w1)
    w2n = np.asarray(w2 * s2[None, None, None, :])           # BN2 scale folded
    w3n = np.asarray(w3 * s3[None, None, None, :])           # BN3 scale folded
    sh2n, sh3n, fc1n = np.asarray(sh2), np.asarray(sh3), np.asarray(fc1)

    # conv1 -> block-diagonal over the 16 whalf positions so the head matmul
    # emits lanes already packed as (whalf*10 + cout) -- no in-kernel relayout.
    w1flat = w1n.reshape(48, 10)
    w1diag = np.zeros((16, 48, 16, 10), np.float32)
    for wh in range(16):
        w1diag[wh, :, wh, :] = w1flat
    w1diag = w1diag.reshape(768, 160)

    # conv2 (pad=1, stride=2) as a dense (1440 -> 720) matrix on the pooled map
    # flattened (oh, ow, cin); zero padding folded away.
    w2big = np.zeros((12, 12, 10, 6, 6, 20), np.float32)
    for oh in range(6):
        for ow in range(6):
            for kh in range(4):
                ih = 2 * oh + kh - 1
                if ih < 0 or ih >= 12:
                    continue
                for kw in range(4):
                    iw = 2 * ow + kw - 1
                    if iw < 0 or iw >= 12:
                        continue
                    w2big[ih, iw, :, oh, ow, :] = w2n[kh, kw]
    w2big = w2big.reshape(1440, 720)
    b2big = np.tile(sh2n, 36)[None, :]                        # (1, 720)

    # conv3 as a dense (720 -> 360) matrix, output order (oh, ow, cout).
    w3big = np.zeros((6, 6, 20, 3, 3, 40), np.float32)
    for oh in range(3):
        for ow in range(3):
            for kh in range(4):
                ih = 2 * oh + kh - 1
                if ih < 0 or ih >= 6:
                    continue
                for kw in range(4):
                    iw = 2 * ow + kw - 1
                    if iw < 0 or iw >= 6:
                        continue
                    w3big[ih, iw, :, oh, ow, :] = w3n[kh, kw]
    w3big = w3big.reshape(720, 360)
    b3big = np.tile(sh3n, 9)[None, :]                         # (1, 360)

    # Fold PyTorch's (c, h, w) Flatten permutation into fc1's row order.
    perm = np.zeros(360, np.int64)
    for oh in range(3):
        for ow in range(3):
            for c in range(40):
                perm[oh * 120 + ow * 40 + c] = c * 9 + oh * 3 + ow
    fc1p = fc1n[perm, :]

    return {
        "w1diag": jnp.asarray(w1diag, bf16),
        "w2big": jnp.asarray(w2big, bf16),
        "b2big": jnp.asarray(b2big, f32),
        "w3big": jnp.asarray(w3big, bf16),
        "b3big": jnp.asarray(b3big, f32),
        "fc1p": jnp.asarray(fc1p, bf16),
        "fc2": fc2.astype(bf16),
        "fc3": fc3.astype(bf16),
        "fc4": fc4.astype(bf16),
        # small-form weights kept only for the pure-JAX reference
        "w1": w1.astype(bf16),
        "w2s": (w2 * s2[None, None, None, :]).astype(bf16),
        "sh2": sh2,
        "w3s": (w3 * s3[None, None, None, :]).astype(bf16),
        "sh3": sh3,
        "fc1": fc1.astype(bf16),
    }


# ------------------------------- forward ------------------------------------

def penne_forward(x_nchw, p):
    B = x_nchw.shape[0]
    pat = _conv1_patches(x_nchw)                       # (B*64, 768) bf16
    pooled = head_call(pat, p["w1diag"], B)            # (B, 12, 120) bf16
    feat = pooled.reshape(B, 1440)                     # free row-major bitcast
    return tail_call(feat, p, B)                       # (B, 4) f32


# --------------------------- pure-JAX reference ------------------------------

def reference_forward(x_nchw, p):
    """lax.conv / reduce_window / matmul reference with matching bf16 operand
    rounding (f32 accumulation)."""
    B = x_nchw.shape[0]
    f32, bf16 = jnp.float32, jnp.bfloat16
    dn = ("NHWC", "HWIO", "NHWC")

    x = jnp.transpose(x_nchw, (0, 2, 3, 1)).astype(bf16)
    h = lax.conv_general_dilated(x, p["w1"], (2, 2), ((1, 1), (1, 1)),
                                 dimension_numbers=dn, preferred_element_type=f32)
    h = lax.reduce_window(h, -jnp.inf, lax.max, (1, 10, 10, 1), (1, 2, 2, 1),
                          "VALID")
    h = _leaky(h).astype(bf16)
    h = lax.conv_general_dilated(h, p["w2s"], (2, 2), ((1, 1), (1, 1)),
                                 dimension_numbers=dn, preferred_element_type=f32)
    h = _leaky(h + p["sh2"].reshape(1, 1, 1, 20)).astype(bf16)
    h = lax.conv_general_dilated(h, p["w3s"], (2, 2), ((1, 1), (1, 1)),
                                 dimension_numbers=dn, preferred_element_type=f32)
    h = _leaky(h + p["sh3"].reshape(1, 1, 1, 40)).astype(bf16)

    flat = jnp.transpose(h, (0, 3, 1, 2)).reshape(B, 360)      # (c,h,w) order
    h = _leaky(jnp.dot(flat, p["fc1"], preferred_element_type=f32)).astype(bf16)
    h = _leaky(jnp.dot(h, p["fc2"], preferred_element_type=f32)).astype(bf16)
    h = _leaky(jnp.dot(h, p["fc3"], preferred_element_type=f32)).astype(bf16)
    z = jnp.dot(h, p["fc4"], preferred_element_type=f32)
    return 1.0 / (1.0 + jnp.exp(-z))


if __name__ == "__main__":
    key = jax.random.PRNGKey(0)
    k_x, k_p = jax.random.split(key)
    # Smallest input consistent with the module: Linear(360,...) implies 3x64x64.
    x = jax.random.normal(k_x, (2, 3, 64, 64), jnp.float32)       # NCHW like PyTorch
    params = init_params(k_p)

    y = jax.block_until_ready(jax.jit(penne_forward)(x, params))
    assert y.shape == (2, 4)
    assert bool(jnp.all(jnp.isfinite(y)))
    assert bool(jnp.all((y >= 0.0) & (y <= 1.0)))                 # sigmoid range

    y_ref = jax.block_until_ready(jax.jit(reference_forward)(x, params))
    assert bool(jnp.allclose(y, y_ref, atol=2e-2)), (y, y_ref)

    print("KERNEL_OK")
</pallas_src>

<mosaic_0001>
module attributes {stable_mosaic.version = 11 : i64} {
  func.func @_head_kernel(%arg0: i32, %arg1: memref<128x768xbf16, #tpu.memory_space<vmem>>, %arg2: memref<768x160xbf16, #tpu.memory_space<vmem>>, %arg3: memref<2x12x120xbf16, #tpu.memory_space<vmem>>) attributes {dimension_semantics = [#tpu.dimension_semantics<parallel>], iteration_bounds = array<i64: 1>, scalar_prefetch = 0 : i64, scratch_operands = 0 : i64, tpu.core_type = #tpu.core_type<tc>, window_params = [{transform_indices = @transform_0, window_bounds = array<i64: 128, 768>}, {pipeline_mode = #tpu.pipeline_mode<synchronous>, transform_indices = @transform_1, window_bounds = array<i64: 768, 160>}, {transform_indices = @transform_2, window_bounds = array<i64: 2, 12, 120>}]} {
    %c0 = arith.constant 0 : index
    %c0_0 = arith.constant 0 : index
    %0 = vector.load %arg1[%c0, %c0_0] : memref<128x768xbf16, #tpu.memory_space<vmem>>, vector<128x768xbf16>
    %c0_1 = arith.constant 0 : index
    %c0_2 = arith.constant 0 : index
    %1 = vector.load %arg2[%c0_1, %c0_2] : memref<768x160xbf16, #tpu.memory_space<vmem>>, vector<768x160xbf16>
    %cst = arith.constant dense<0.000000e+00> : vector<128x160xf32>
    %2 = tpu.matmul %0, %1, %cst {dimension_numbers = #tpu.dot_dimension_numbers<[1], [0], [0], [1], [0, 0, 1, 1], [], []>} : vector<128x768xbf16>, vector<768x160xbf16>, vector<128x160xf32> -> vector<128x160xf32>
    %3 = vector.shape_cast %2 : vector<128x160xf32> to vector<2x2x2x16x160xf32>
    %4 = vector.extract_strided_slice %3 {offsets = [0, 0, 0, 0, 0], sizes = [2, 1, 2, 16, 160], strides = [1, 1, 1, 1, 1]} : vector<2x2x2x16x160xf32> to vector<2x1x2x16x160xf32>
    %5 = vector.shape_cast %4 : vector<2x1x2x16x160xf32> to vector<2x2x16x160xf32>
    %6 = vector.extract_strided_slice %3 {offsets = [0, 1, 0, 0, 0], sizes = [2, 1, 2, 16, 160], strides = [1, 1, 1, 1, 1]} : vector<2x2x2x16x160xf32> to vector<2x1x2x16x160xf32>
    %7 = vector.shape_cast %6 : vector<2x1x2x16x160xf32> to vector<2x2x16x160xf32>
    %8 = arith.maximumf %5, %7 : vector<2x2x16x160xf32>
    %9 = vector.extract_strided_slice %8 {offsets = [0, 0, 0, 0], sizes = [2, 2, 16, 120], strides = [1, 1, 1, 1]} : vector<2x2x16x160xf32> to vector<2x2x16x120xf32>
    %10 = vector.extract_strided_slice %8 {offsets = [0, 0, 0, 10], sizes = [2, 2, 16, 120], strides = [1, 1, 1, 1]} : vector<2x2x16x160xf32> to vector<2x2x16x120xf32>
    %11 = arith.maximumf %9, %10 : vector<2x2x16x120xf32>
    %12 = vector.extract_strided_slice %8 {offsets = [0, 0, 0, 20], sizes = [2, 2, 16, 120], strides = [1, 1, 1, 1]} : vector<2x2x16x160xf32> to vector<2x2x16x120xf32>
    %13 = arith.maximumf %11, %12 : vector<2x2x16x120xf32>
    %14 = vector.extract_strided_slice %8 {offsets = [0, 0, 0, 30], sizes = [2, 2, 16, 120], strides = [1, 1, 1, 1]} : vector<2x2x16x160xf32> to vector<2x2x16x120xf32>
    %15 = arith.maximumf %13, %14 : vector<2x2x16x120xf32>
    %16 = vector.extract_strided_slice %8 {offsets = [0, 0, 0, 40], sizes = [2, 2, 16, 120], strides = [1, 1, 1, 1]} : vector<2x2x16x160xf32> to vector<2x2x16x120xf32>
    %17 = arith.maximumf %15, %16 : vector<2x2x16x120xf32>
    %18 = vector.extract_strided_slice %17 {offsets = [0, 0, 0, 0], sizes = [2, 1, 16, 120], strides = [1, 1, 1, 1]} : vector<2x2x16x120xf32> to vector<2x1x16x120xf32>
    %19 = vector.shape_cast %18 : vector<2x1x16x120xf32> to vector<2x16x120xf32>
    %20 = vector.extract_strided_slice %17 {offsets = [0, 1, 0, 0], sizes = [2, 1, 16, 120], strides = [1, 1, 1, 1]} : vector<2x2x16x120xf32> to vector<2x1x16x120xf32>
    %21 = vector.shape_cast %20 : vector<2x1x16x120xf32> to vector<2x16x120xf32>
    %22 = arith.maximumf %19, %21 : vector<2x16x120xf32>
    %23 = vector.extract_strided_slice %22 {offsets = [0, 0, 0], sizes = [2, 12, 120], strides = [1, 1, 1]} : vector<2x16x120xf32> to vector<2x12x120xf32>
    %24 = vector.extract_strided_slice %22 {offsets = [0, 1, 0], sizes = [2, 12, 120], strides = [1, 1, 1]} : vector<2x16x120xf32> to vector<2x12x120xf32>
    %25 = arith.maximumf %23, %24 : vector<2x12x120xf32>
    %26 = vector.extract_strided_slice %22 {offsets = [0, 2, 0], sizes = [2, 12, 120], strides = [1, 1, 1]} : vector<2x16x120xf32> to vector<2x12x120xf32>
    %27 = arith.maximumf %25, %26 : vector<2x12x120xf32>
    %28 = vector.extract_strided_slice %22 {offsets = [0, 3, 0], sizes = [2, 12, 120], strides = [1, 1, 1]} : vector<2x16x120xf32> to vector<2x12x120xf32>
    %29 = arith.maximumf %27, %28 : vector<2x12x120xf32>
    %30 = vector.extract_strided_slice %22 {offsets = [0, 4, 0], sizes = [2, 12, 120], strides = [1, 1, 1]} : vector<2x16x120xf32> to vector<2x12x120xf32>
    %31 = arith.maximumf %29, %30 : vector<2x12x120xf32>
    %cst_3 = arith.constant 0.000000e+00 : f32
    %32 = vector.broadcast %cst_3 : f32 to vector<2x12x120xf32>
    %33 = arith.cmpf oge, %31, %32 : vector<2x12x120xf32>
    %cst_4 = arith.constant 2.000000e-01 : f32
    %34 = vector.broadcast %cst_4 : f32 to vector<2x12x120xf32>
    %35 = arith.mulf %34, %31 : vector<2x12x120xf32>
    %36 = arith.select %33, %31, %35 : vector<2x12x120xi1>, vector<2x12x120xf32>
    %37 = arith.truncf %36 : vector<2x12x120xf32> to vector<2x12x120xbf16>
    %c0_5 = arith.constant 0 : index
    %c0_6 = arith.constant 0 : index
    %c0_7 = arith.constant 0 : index
    %38 = vector.load %arg3[%c0_5, %c0_6, %c0_7] : memref<2x12x120xbf16, #tpu.memory_space<vmem>>, vector<2x12x120xbf16>
    tpu.vector_store %arg3[%c0_5, %c0_6, %c0_7], %37 {strides = array<i32>} : memref<2x12x120xbf16, #tpu.memory_space<vmem>>, vector<2x12x120xbf16>,
    return
  }
  func.func @transform_0(%arg0: i32) -> (i32, i32) {
    %c0_i32 = arith.constant 0 : i32
    %c0_i32_0 = arith.constant 0 : i32
    return %arg0, %c0_i32 : i32, i32
  }
  func.func @transform_1(%arg0: i32) -> (i32, i32) {
    %c0_i32 = arith.constant 0 : i32
    %c0_i32_0 = arith.constant 0 : i32
    %c0_i32_1 = arith.constant 0 : i32
    return %c0_i32, %c0_i32_0 : i32, i32
  }
  func.func @transform_2(%arg0: i32) -> (i32, i32, i32) {
    %c0_i32 = arith.constant 0 : i32
    %c0_i32_0 = arith.constant 0 : i32
    %c0_i32_1 = arith.constant 0 : i32
    return %arg0, %c0_i32, %c0_i32_0 : i32, i32, i32
  }
}

module attributes {stable_mosaic.version = 11 : i64} {
  func.func @_tail_kernel(%arg0: i32, %arg1: memref<2x1440xbf16, #tpu.memory_space<vmem>>, %arg2: memref<1440x720xbf16, #tpu.memory_space<vmem>>, %arg3: memref<1x720xf32, #tpu.memory_space<vmem>>, %arg4: memref<720x360xbf16, #tpu.memory_space<vmem>>, %arg5: memref<1x360xf32, #tpu.memory_space<vmem>>, %arg6: memref<360x180xbf16, #tpu.memory_space<vmem>>, %arg7: memref<180x90xbf16, #tpu.memory_space<vmem>>, %arg8: memref<90x45xbf16, #tpu.memory_space<vmem>>, %arg9: memref<45x4xbf16, #tpu.memory_space<vmem>>, %arg10: memref<2x4xf32, #tpu.memory_space<vmem>>) attributes {dimension_semantics = [#tpu.dimension_semantics<parallel>], iteration_bounds = array<i64: 1>, scalar_prefetch = 0 : i64, scratch_operands = 0 : i64, tpu.core_type = #tpu.core_type<tc>, window_params = [{transform_indices = @transform_0, window_bounds = array<i64: 2, 1440>}, {pipeline_mode = #tpu.pipeline_mode<synchronous>, transform_indices = @transform_1, window_bounds = array<i64: 1440, 720>}, {pipeline_mode = #tpu.pipeline_mode<synchronous>, transform_indices = @transform_2, window_bounds = array<i64: 1, 720>}, {pipeline_mode = #tpu.pipeline_mode<synchronous>, transform_indices = @transform_3, window_bounds = array<i64: 720, 360>}, {pipeline_mode = #tpu.pipeline_mode<synchronous>, transform_indices = @transform_4, window_bounds = array<i64: 1, 360>}, {pipeline_mode = #tpu.pipeline_mode<synchronous>, transform_indices = @transform_5, window_bounds = array<i64: 360, 180>}, {pipeline_mode = #tpu.pipeline_mode<synchronous>, transform_indices = @transform_6, window_bounds = array<i64: 180, 90>}, {pipeline_mode = #tpu.pipeline_mode<synchronous>, transform_indices = @transform_7, window_bounds = array<i64: 90, 45>}, {pipeline_mode = #tpu.pipeline_mode<synchronous>, transform_indices = @transform_8, window_bounds = array<i64: 45, 4>}, {transform_indices = @transform_9, window_bounds = array<i64: 2, 4>}]} {
    %c0 = arith.constant 0 : index
    %c0_0 = arith.constant 0 : index
    %0 = vector.load %arg1[%c0, %c0_0] : memref<2x1440xbf16, #tpu.memory_space<vmem>>, vector<2x1440xbf16>
    %c0_1 = arith.constant 0 : index
    %c0_2 = arith.constant 0 : index
    %1 = vector.load %arg2[%c0_1, %c0_2] : memref<1440x720xbf16, #tpu.memory_space<vmem>>, vector<1440x720xbf16>
    %cst = arith.constant dense<0.000000e+00> : vector<2x720xf32>
    %2 = tpu.matmul %0, %1, %cst {dimension_numbers = #tpu.dot_dimension_numbers<[1], [0], [0], [1], [0, 0, 1, 1], [], []>} : vector<2x1440xbf16>, vector<1440x720xbf16>, vector<2x720xf32> -> vector<2x720xf32>
    %c0_3 = arith.constant 0 : index
    %c0_4 = arith.constant 0 : index
    %3 = vector.load %arg3[%c0_3, %c0_4] : memref<1x720xf32, #tpu.memory_space<vmem>>, vector<1x720xf32>
    %4 = vector.broadcast %3 : vector<1x720xf32> to vector<2x720xf32>
    %5 = arith.addf %2, %4 : vector<2x720xf32>
    %cst_5 = arith.constant 0.000000e+00 : f32
    %6 = vector.broadcast %cst_5 : f32 to vector<2x720xf32>
    %7 = arith.cmpf oge, %5, %6 : vector<2x720xf32>
    %cst_6 = arith.constant 2.000000e-01 : f32
    %8 = vector.broadcast %cst_6 : f32 to vector<2x720xf32>
    %9 = arith.mulf %8, %5 : vector<2x720xf32>
    %10 = arith.select %7, %5, %9 : vector<2x720xi1>, vector<2x720xf32>
    %11 = arith.truncf %10 : vector<2x720xf32> to vector<2x720xbf16>
    %c0_7 = arith.constant 0 : index
    %c0_8 = arith.constant 0 : index
    %12 = vector.load %arg4[%c0_7, %c0_8] : memref<720x360xbf16, #tpu.memory_space<vmem>>, vector<720x360xbf16>
    %cst_9 = arith.constant dense<0.000000e+00> : vector<2x360xf32>
    %13 = tpu.matmul %11, %12, %cst_9 {dimension_numbers = #tpu.dot_dimension_numbers<[1], [0], [0], [1], [0, 0, 1, 1], [], []>} : vector<2x720xbf16>, vector<720x360xbf16>, vector<2x360xf32> -> vector<2x360xf32>
    %c0_10 = arith.constant 0 : index
    %c0_11 = arith.constant 0 : index
    %14 = vector.load %arg5[%c0_10, %c0_11] : memref<1x360xf32, #tpu.memory_space<vmem>>, vector<1x360xf32>
    %15 = vector.broadcast %14 : vector<1x360xf32> to vector<2x360xf32>
    %16 = arith.addf %13, %15 : vector<2x360xf32>
    %cst_12 = arith.constant 0.000000e+00 : f32
    %17 = vector.broadcast %cst_12 : f32 to vector<2x360xf32>
    %18 = arith.cmpf oge, %16, %17 : vector<2x360xf32>
    %cst_13 = arith.constant 2.000000e-01 : f32
    %19 = vector.broadcast %cst_13 : f32 to vector<2x360xf32>
    %20 = arith.mulf %19, %16 : vector<2x360xf32>
    %21 = arith.select %18, %16, %20 : vector<2x360xi1>, vector<2x360xf32>
    %22 = arith.truncf %21 : vector<2x360xf32> to vector<2x360xbf16>
    %c0_14 = arith.constant 0 : index
    %c0_15 = arith.constant 0 : index
    %23 = vector.load %arg6[%c0_14, %c0_15] : memref<360x180xbf16, #tpu.memory_space<vmem>>, vector<360x180xbf16>
    %cst_16 = arith.constant dense<0.000000e+00> : vector<2x180xf32>
    %24 = tpu.matmul %22, %23, %cst_16 {dimension_numbers = #tpu.dot_dimension_numbers<[1], [0], [0], [1], [0, 0, 1, 1], [], []>} : vector<2x360xbf16>, vector<360x180xbf16>, vector<2x180xf32> -> vector<2x180xf32>
    %cst_17 = arith.constant 0.000000e+00 : f32
    %25 = vector.broadcast %cst_17 : f32 to vector<2x180xf32>
    %26 = arith.cmpf oge, %24, %25 : vector<2x180xf32>
    %cst_18 = arith.constant 2.000000e-01 : f32
    %27 = vector.broadcast %cst_18 : f32 to vector<2x180xf32>
    %28 = arith.mulf %27, %24 : vector<2x180xf32>
    %29 = arith.select %26, %24, %28 : vector<2x180xi1>, vector<2x180xf32>
    %30 = arith.truncf %29 : vector<2x180xf32> to vector<2x180xbf16>
    %c0_19 = arith.constant 0 : index
    %c0_20 = arith.constant 0 : index
    %31 = vector.load %arg7[%c0_19, %c0_20] : memref<180x90xbf16, #tpu.memory_space<vmem>>, vector<180x90xbf16>
    %cst_21 = arith.constant dense<0.000000e+00> : vector<2x90xf32>
    %32 = tpu.matmul %30, %31, %cst_21 {dimension_numbers = #tpu.dot_dimension_numbers<[1], [0], [0], [1], [0, 0, 1, 1], [], []>} : vector<2x180xbf16>, vector<180x90xbf16>, vector<2x90xf32> -> vector<2x90xf32>
    %cst_22 = arith.constant 0.000000e+00 : f32
    %33 = vector.broadcast %cst_22 : f32 to vector<2x90xf32>
    %34 = arith.cmpf oge, %32, %33 : vector<2x90xf32>
    %cst_23 = arith.constant 2.000000e-01 : f32
    %35 = vector.broadcast %cst_23 : f32 to vector<2x90xf32>
    %36 = arith.mulf %35, %32 : vector<2x90xf32>
    %37 = arith.select %34, %32, %36 : vector<2x90xi1>, vector<2x90xf32>
    %38 = arith.truncf %37 : vector<2x90xf32> to vector<2x90xbf16>
    %c0_24 = arith.constant 0 : index
    %c0_25 = arith.constant 0 : index
    %39 = vector.load %arg8[%c0_24, %c0_25] : memref<90x45xbf16, #tpu.memory_space<vmem>>, vector<90x45xbf16>
    %cst_26 = arith.constant dense<0.000000e+00> : vector<2x45xf32>
    %40 = tpu.matmul %38, %39, %cst_26 {dimension_numbers = #tpu.dot_dimension_numbers<[1], [0], [0], [1], [0, 0, 1, 1], [], []>} : vector<2x90xbf16>, vector<90x45xbf16>, vector<2x45xf32> -> vector<2x45xf32>
    %cst_27 = arith.constant 0.000000e+00 : f32
    %41 = vector.broadcast %cst_27 : f32 to vector<2x45xf32>
    %42 = arith.cmpf oge, %40, %41 : vector<2x45xf32>
    %cst_28 = arith.constant 2.000000e-01 : f32
    %43 = vector.broadcast %cst_28 : f32 to vector<2x45xf32>
    %44 = arith.mulf %43, %40 : vector<2x45xf32>
    %45 = arith.select %42, %40, %44 : vector<2x45xi1>, vector<2x45xf32>
    %46 = arith.truncf %45 : vector<2x45xf32> to vector<2x45xbf16>
    %c0_29 = arith.constant 0 : index
    %c0_30 = arith.constant 0 : index
    %47 = vector.load %arg9[%c0_29, %c0_30] : memref<45x4xbf16, #tpu.memory_space<vmem>>, vector<45x4xbf16>
    %cst_31 = arith.constant dense<0.000000e+00> : vector<2x4xf32>
    %48 = tpu.matmul %46, %47, %cst_31 {dimension_numbers = #tpu.dot_dimension_numbers<[1], [0], [0], [1], [0, 0, 1, 1], [], []>} : vector<2x45xbf16>, vector<45x4xbf16>, vector<2x4xf32> -> vector<2x4xf32>
    %cst_32 = arith.constant 0.000000e+00 : f32
    %49 = vector.broadcast %cst_32 : f32 to vector<2x4xf32>
    %50 = arith.subf %49, %48 : vector<2x4xf32>
    %51 = math.exp %50 : vector<2x4xf32>
    %cst_33 = arith.constant 1.000000e+00 : f32
    %52 = vector.broadcast %cst_33 : f32 to vector<2x4xf32>
    %53 = arith.addf %52, %51 : vector<2x4xf32>
    %cst_34 = arith.constant 1.000000e+00 : f32
    %54 = vector.broadcast %cst_34 : f32 to vector<2x4xf32>
    %55 = arith.divf %54, %53 : vector<2x4xf32>
    %c0_35 = arith.constant 0 : index
    %c0_36 = arith.constant 0 : index
    %56 = vector.load %arg10[%c0_35, %c0_36] : memref<2x4xf32, #tpu.memory_space<vmem>>, vector<2x4xf32>
    tpu.vector_store %arg10[%c0_35, %c0_36], %55 {strides = array<i32>} : memref<2x4xf32, #tpu.memory_space<vmem>>, vector<2x4xf32>,
    return
  }
  func.func @transform_0(%arg0: i32) -> (i32, i32) {
    %c0_i32 = arith.constant 0 : i32
    %c0_i32_0 = arith.constant 0 : i32
    return %arg0, %c0_i32 : i32, i32
  }
  func.func @transform_1(%arg0: i32) -> (i32, i32) {
    %c0_i32 = arith.constant 0 : i32
    %c0_i32_0 = arith.constant 0 : i32
    %c0_i32_1 = arith.constant 0 : i32
    return %c0_i32, %c0_i32_0 : i32, i32
  }
  func.func @transform_2(%arg0: i32) -> (i32, i32) {
    %c0_i32 = arith.constant 0 : i32
    %c0_i32_0 = arith.constant 0 : i32
    %c0_i32_1 = arith.constant 0 : i32
    return %c0_i32, %c0_i32_0 : i32, i32
  }
  func.func @transform_3(%arg0: i32) -> (i32, i32) {
    %c0_i32 = arith.constant 0 : i32
    %c0_i32_0 = arith.constant 0 : i32
    %c0_i32_1 = arith.constant 0 : i32
    return %c0_i32, %c0_i32_0 : i32, i32
  }
  func.func @transform_4(%arg0: i32) -> (i32, i32) {
    %c0_i32 = arith.constant 0 : i32
    %c0_i32_0 = arith.constant 0 : i32
    %c0_i32_1 = arith.constant 0 : i32
    return %c0_i32, %c0_i32_0 : i32, i32
  }
  func.func @transform_5(%arg0: i32) -> (i32, i32) {
    %c0_i32 = arith.constant 0 : i32
    %c0_i32_0 = arith.constant 0 : i32
    %c0_i32_1 = arith.constant 0 : i32
    return %c0_i32, %c0_i32_0 : i32, i32
  }
  func.func @transform_6(%arg0: i32) -> (i32, i32) {
    %c0_i32 = arith.constant 0 : i32
    %c0_i32_0 = arith.constant 0 : i32
    %c0_i32_1 = arith.constant 0 : i32
    return %c0_i32, %c0_i32_0 : i32, i32
  }
  func.func @transform_7(%arg0: i32) -> (i32, i32) {
    %c0_i32 = arith.constant 0 : i32
    %c0_i32_0 = arith.constant 0 : i32
    %c0_i32_1 = arith.constant 0 : i32
    return %c0_i32, %c0_i32_0 : i32, i32
  }
  func.func @transform_8(%arg0: i32) -> (i32, i32) {
    %c0_i32 = arith.constant 0 : i32
    %c0_i32_0 = arith.constant 0 : i32
    %c0_i32_1 = arith.constant 0 : i32
    return %c0_i32, %c0_i32_0 : i32, i32
  }
  func.func @transform_9(%arg0: i32) -> (i32, i32) {
    %c0_i32 = arith.constant 0 : i32
    %c0_i32_0 = arith.constant 0 : i32
    return %arg0, %c0_i32 : i32, i32
  }
}

</mosaic_0001>

<llo_original>
// kernel: penne_forward.2
$region0: #{penne_forward.2}
  #allocation0 [shape = 'u32[]', space=smem, size = 0x4, offset = 0x4, fixed_abs, tag = 'smem constant byte address 0x4 - core index']
  #allocation1 [shape = 'u32[144,128]{1,0:T(1,128)}', space=vmem, size = 0x12000, scoped, tag = 'internal scratch']
  %s0 = inlined_call_operand.vmem [shape: bf16[128,768], index: 0, kind: input, shape index: {}]
  %s1 = inlined_call_operand.vmem [shape: bf16[768,160], index: 1, kind: input, shape index: {}]
  %s2 = inlined_call_operand.vmem [shape: bf16[2,12,120], index: 2, kind: output, shape index: {}]
  %s3 = sld [smem:[#allocation0]]
  $region18: #{penne_forward.2} parent=0
    _
  %s5 = ssub.s32 1, %s3
  %s6 = scalar_select 0, %s5, %s3
  // Predicated region
  $region2: #{penne_forward.2} parent=0 // pred_check
    _
  $region3: #{penne_forward.2} parent=0 // pred_check_branch
    %8 = sbr.rel (0) target = $region5
  $region4: #{penne_forward.2} parent=0 // pred_region
    _
  $region5: #{penne_forward.2} parent=0 // pred_fallthru
    _
  // Predicated region
  $region6: #{penne_forward.2} parent=0 // pred_check
    _
  $region7: #{penne_forward.2} parent=0 // pred_check_branch
    %10 = sbr.rel (0) target = $region9
  $region8: #{penne_forward.2} parent=0 // pred_region
    _
  $region9: #{penne_forward.2} parent=0 // pred_fallthru
    _
  %v11 = vld [vmem:[%s0] sm:$0xff]
  %v12 = vld [vmem:[%s0 + $0x8] sm:$0xff]
  %v13 = vld [vmem:[%s0 + $0x10] sm:$0xff]
  %v14 = vld [vmem:[%s0 + $0x18] sm:$0xff]
  %v15 = vld [vmem:[%s0 + $0x20] sm:$0xff]
  %v16 = vld [vmem:[%s0 + $0x28] sm:$0xff]
  %v17 = vld [vmem:[%s0 + $0x30] sm:$0xff]
  %v18 = vld [vmem:[%s0 + $0x38] sm:$0xff]
  %v19 = vld [vmem:[%s0 + $0x40] sm:$0xff]
  %v20 = vld [vmem:[%s0 + $0x48] sm:$0xff]
  %v21 = vld [vmem:[%s0 + $0x50] sm:$0xff]
  %v22 = vld [vmem:[%s0 + $0x58] sm:$0xff]
  %v23 = vld [vmem:[%s0 + $0x60] sm:$0xff]
  %v24 = vld [vmem:[%s0 + $0x68] sm:$0xff]
  %v25 = vld [vmem:[%s0 + $0x70] sm:$0xff]
  %v26 = vld [vmem:[%s0 + $0x78] sm:$0xff]
  %v27 = vld [vmem:[%s0 + $0x80] sm:$0xff]
  %v28 = vld [vmem:[%s0 + $0x88] sm:$0xff]
  %v29 = vld [vmem:[%s0 + $0x90] sm:$0xff]
  %v30 = vld [vmem:[%s0 + $0x98] sm:$0xff]
  %v31 = vld [vmem:[%s0 + $0xa0] sm:$0xff]
  %v32 = vld [vmem:[%s0 + $0xa8] sm:$0xff]
  %v33 = vld [vmem:[%s0 + $0xb0] sm:$0xff]
  %v34 = vld [vmem:[%s0 + $0xb8] sm:$0xff]
  %v35 = vld [vmem:[%s0 + $0xc0] sm:$0xff]
  %v36 = vld [vmem:[%s0 + $0xc8] sm:$0xff]
  %v37 = vld [vmem:[%s0 + $0xd0] sm:$0xff]
  %v38 = vld [vmem:[%s0 + $0xd8] sm:$0xff]
  %v39 = vld [vmem:[%s0 + $0xe0] sm:$0xff]
  %v40 = vld [vmem:[%s0 + $0xe8] sm:$0xff]
  %v41 = vld [vmem:[%s0 + $0xf0] sm:$0xff]
  %v42 = vld [vmem:[%s0 + $0xf8] sm:$0xff]
  %v43 = vld [vmem:[%s0 + $0x100] sm:$0xff]
  %v44 = vld [vmem:[%s0 + $0x108] sm:$0xff]
  %v45 = vld [vmem:[%s0 + $0x110] sm:$0xff]
  %v46 = vld [vmem:[%s0 + $0x118] sm:$0xff]
  %v47 = vld [vmem:[%s0 + $0x120] sm:$0xff]
  %v48 = vld [vmem:[%s0 + $0x128] sm:$0xff]
  %v49 = vld [vmem:[%s0 + $0x130] sm:$0xff]
  %v50 = vld [vmem:[%s0 + $0x138] sm:$0xff]
  %v51 = vld [vmem:[%s0 + $0x140] sm:$0xff]
  %v52 = vld [vmem:[%s0 + $0x148] sm:$0xff]
  %v53 = vld [vmem:[%s0 + $0x150] sm:$0xff]
  %v54 = vld [vmem:[%s0 + $0x158] sm:$0xff]
  %v55 = vld [vmem:[%s0 + $0x160] sm:$0xff]
  %v56 = vld [vmem:[%s0 + $0x168] sm:$0xff]
  %v57 = vld [vmem:[%s0 + $0x170] sm:$0xff]
  %v58 = vld [vmem:[%s0 + $0x178] sm:$0xff]
  %v59 = vld [vmem:[%s1] sm:$0xff]
  %v60 = vld [vmem:[%s1 + $0x8] sm:$0xff]
  %v61 = vld [vmem:[%s1 + $0x10] sm:$0xff]
  %v62 = vld [vmem:[%s1 + $0x18] sm:$0xff]
  %v63 = vld [vmem:[%s1 + $0x20] sm:$0xff]
  %v64 = vld [vmem:[%s1 + $0x28] sm:$0xff]
  %v65 = vld [vmem:[%s1 + $0x30] sm:$0xff]
  %v66 = vld [vmem:[%s1 + $0x38] sm:$0xff]
  %v67 = vld [vmem:[%s1 + $0x40] sm:$0xff]
  %v68 = vld [vmem:[%s1 + $0x48] sm:$0xff]
  %v69 = vld [vmem:[%s1 + $0x50] sm:$0xff]
  %v70 = vld [vmem:[%s1 + $0x58] sm:$0xff]
  %v71 = vld [vmem:[%s1 + $0x60] sm:$0xff]
  %v72 = vld [vmem:[%s1 + $0x68] sm:$0xff]
  %v73 = vld [vmem:[%s1 + $0x70] sm:$0xff]
  %v74 = vld [vmem:[%s1 + $0x78] sm:$0xff]
  %v75 = vld [vmem:[%s1 + $0x80] sm:$0xff]
  %v76 = vld [vmem:[%s1 + $0x88] sm:$0xff]
  %v77 = vld [vmem:[%s1 + $0x90] sm:$0xff]
  %v78 = vld [vmem:[%s1 + $0x98] sm:$0xff]
  %v79 = vld [vmem:[%s1 + $0xa0] sm:$0xff]
  %v80 = vld [vmem:[%s1 + $0xa8] sm:$0xff]
  %v81 = vld [vmem:[%s1 + $0xb0] sm:$0xff]
  %v82 = vld [vmem:[%s1 + $0xb8] sm:$0xff]
  %v83 = vld [vmem:[%s1 + $0xc0] sm:$0xff]
  %v84 = vld [vmem:[%s1 + $0xc8] sm:$0xff]
  %v85 = vld [vmem:[%s1 + $0xd0] sm:$0xff]
  %v86 = vld [vmem:[%s1 + $0xd8] sm:$0xff]
  %v87 = vld [vmem:[%s1 + $0xe0] sm:$0xff]
  %v88 = vld [vmem:[%s1 + $0xe8] sm:$0xff]
  %v89 = vld [vmem:[%s1 + $0xf0] sm:$0xff]
  %v90 = vld [vmem:[%s1 + $0xf8] sm:$0xff]
  %v91 = vld [vmem:[%s1 + $0x100] sm:$0xff]
  %v92 = vld [vmem:[%s1 + $0x108] sm:$0xff]
  %v93 = vld [vmem:[%s1 + $0x110] sm:$0xff]
  %v94 = vld [vmem:[%s1 + $0x118] sm:$0xff]
  %v95 = vld [vmem:[%s1 + $0x120] sm:$0xff]
  %v96 = vld [vmem:[%s1 + $0x128] sm:$0xff]
  %v97 = vld [vmem:[%s1 + $0x130] sm:$0xff]
  %v98 = vld [vmem:[%s1 + $0x138] sm:$0xff]
  %v99 = vld [vmem:[%s1 + $0x140] sm:$0xff]
  %v100 = vld [vmem:[%s1 + $0x148] sm:$0xff]
  %v101 = vld [vmem:[%s1 + $0x150] sm:$0xff]
  %v102 = vld [vmem:[%s1 + $0x158] sm:$0xff]
  %v103 = vld [vmem:[%s1 + $0x160] sm:$0xff]
  %v104 = vld [vmem:[%s1 + $0x168] sm:$0xff]
  %v105 = vld [vmem:[%s1 + $0x170] sm:$0xff]
  %v106 = vld [vmem:[%s1 + $0x178] sm:$0xff]
  %v107 = vld [vmem:[%s1 + $0x180] sm:$0xff]
  %v108 = vld [vmem:[%s1 + $0x188] sm:$0xff]
  %v109 = vld [vmem:[%s1 + $0x190] sm:$0xff]
  %v110 = vld [vmem:[%s1 + $0x198] sm:$0xff]
  %v111 = vld [vmem:[%s1 + $0x1a0] sm:$0xff]
  %v112 = vld [vmem:[%s1 + $0x1a8] sm:$0xff]
  %v113 = vld [vmem:[%s1 + $0x1b0] sm:$0xff]
  %v114 = vld [vmem:[%s1 + $0x1b8] sm:$0xff]
  %v115 = vld [vmem:[%s1 + $0x1c0] sm:$0xff]
  %v116 = vld [vmem:[%s1 + $0x1c8] sm:$0xff]
  %v117 = vld [vmem:[%s1 + $0x1d0] sm:$0xff]
  %v118 = vld [vmem:[%s1 + $0x1d8] sm:$0xff]
  %v119 = vld [vmem:[%s1 + $0x1e0] sm:$0xff]
  %v120 = vld [vmem:[%s1 + $0x1e8] sm:$0xff]
  %v121 = vld [vmem:[%s1 + $0x1f0] sm:$0xff]
  %v122 = vld [vmem:[%s1 + $0x1f8] sm:$0xff]
  %v123 = vld [vmem:[%s1 + $0x200] sm:$0xff]
  %v124 = vld [vmem:[%s1 + $0x208] sm:$0xff]
  %v125 = vld [vmem:[%s1 + $0x210] sm:$0xff]
  %v126 = vld [vmem:[%s1 + $0x218] sm:$0xff]
  %v127 = vld [vmem:[%s1 + $0x220] sm:$0xff]
  %v128 = vld [vmem:[%s1 + $0x228] sm:$0xff]
  %v129 = vld [vmem:[%s1 + $0x230] sm:$0xff]
  %v130 = vld [vmem:[%s1 + $0x238] sm:$0xff]
  %v131 = vld [vmem:[%s1 + $0x240] sm:$0xff]
  %v132 = vld [vmem:[%s1 + $0x248] sm:$0xff]
  %v133 = vld [vmem:[%s1 + $0x250] sm:$0xff]
  %v134 = vld [vmem:[%s1 + $0x258] sm:$0xff]
  %v135 = vld [vmem:[%s1 + $0x260] sm:$0xff]
  %v136 = vld [vmem:[%s1 + $0x268] sm:$0xff]
  %v137 = vld [vmem:[%s1 + $0x270] sm:$0xff]
  %v138 = vld [vmem:[%s1 + $0x278] sm:$0xff]
  %v139 = vld [vmem:[%s1 + $0x280] sm:$0xff]
  %v140 = vld [vmem:[%s1 + $0x288] sm:$0xff]
  %v141 = vld [vmem:[%s1 + $0x290] sm:$0xff]
  %v142 = vld [vmem:[%s1 + $0x298] sm:$0xff]
  %v143 = vld [vmem:[%s1 + $0x2a0] sm:$0xff]
  %v144 = vld [vmem:[%s1 + $0x2a8] sm:$0xff]
  %v145 = vld [vmem:[%s1 + $0x2b0] sm:$0xff]
  %v146 = vld [vmem:[%s1 + $0x2b8] sm:$0xff]
  %v147 = vld [vmem:[%s1 + $0x2c0] sm:$0xff]
  %v148 = vld [vmem:[%s1 + $0x2c8] sm:$0xff]
  %v149 = vld [vmem:[%s1 + $0x2d0] sm:$0xff]
  %v150 = vld [vmem:[%s1 + $0x2d8] sm:$0xff]
  %v151 = vld [vmem:[%s1 + $0x2e0] sm:$0xff]
  %v152 = vld [vmem:[%s1 + $0x2e8] sm:$0xff]
  %v153 = vld [vmem:[%s1 + $0x2f0] sm:$0xff]
  %v154 = vld [vmem:[%s1 + $0x2f8] sm:$0xff]
  %v203 = vunpack.c.l.b16 %v11
  %v204 = vunpack.c.h.b16 %v11
  %v205 = vunpack.c.l.b16 %v12
  %v206 = vunpack.c.h.b16 %v12
  %v207 = vunpack.c.l.b16 %v13
  %v208 = vunpack.c.h.b16 %v13
  %v209 = vunpack.c.l.b16 %v14
  %v210 = vunpack.c.h.b16 %v14
  %v211 = vunpack.c.l.b16 %v15
  %v212 = vunpack.c.h.b16 %v15
  %v213 = vunpack.c.l.b16 %v16
  %v214 = vunpack.c.h.b16 %v16
  %v215 = vunpack.c.l.b16 %v17
  %v216 = vunpack.c.h.b16 %v17
  %v217 = vunpack.c.l.b16 %v18
  %v218 = vunpack.c.h.b16 %v18
  %v219 = vunpack.c.l.b16 %v19
  %v220 = vunpack.c.h.b16 %v19
  %v221 = vunpack.c.l.b16 %v20
  %v222 = vunpack.c.h.b16 %v20
  %v223 = vunpack.c.l.b16 %v21
  %v224 = vunpack.c.h.b16 %v21
  %v225 = vunpack.c.l.b16 %v22
  %v226 = vunpack.c.h.b16 %v22
  %v227 = vunpack.c.l.b16 %v23
  %v228 = vunpack.c.h.b16 %v23
  %v229 = vunpack.c.l.b16 %v24
  %v230 = vunpack.c.h.b16 %v24
  %v231 = vunpack.c.l.b16 %v25
  %v232 = vunpack.c.h.b16 %v25
  %v233 = vunpack.c.l.b16 %v26
  %v234 = vunpack.c.h.b16 %v26
  %v235 = vunpack.c.l.b16 %v27
  %v236 = vunpack.c.h.b16 %v27
  %v237 = vunpack.c.l.b16 %v28
  %v238 = vunpack.c.h.b16 %v28
  %v239 = vunpack.c.l.b16 %v29
  %v240 = vunpack.c.h.b16 %v29
  %v241 = vunpack.c.l.b16 %v30
  %v242 = vunpack.c.h.b16 %v30
  %v243 = vunpack.c.l.b16 %v31
  %v244 = vunpack.c.h.b16 %v31
  %v245 = vunpack.c.l.b16 %v32
  %v246 = vunpack.c.h.b16 %v32
  %v247 = vunpack.c.l.b16 %v33
  %v248 = vunpack.c.h.b16 %v33
  %v249 = vunpack.c.l.b16 %v34
  %v250 = vunpack.c.h.b16 %v34
  %v251 = vunpack.c.l.b16 %v35
  %v252 = vunpack.c.h.b16 %v35
  %v253 = vunpack.c.l.b16 %v36
  %v254 = vunpack.c.h.b16 %v36
  %v255 = vunpack.c.l.b16 %v37
  %v256 = vunpack.c.h.b16 %v37
  %v257 = vunpack.c.l.b16 %v38
  %v258 = vunpack.c.h.b16 %v38
  %v259 = vunpack.c.l.b16 %v39
  %v260 = vunpack.c.h.b16 %v39
  %v261 = vunpack.c.l.b16 %v40
  %v262 = vunpack.c.h.b16 %v40
  %v263 = vunpack.c.l.b16 %v41
  %v264 = vunpack.c.h.b16 %v41
  %v265 = vunpack.c.l.b16 %v42
  %v266 = vunpack.c.h.b16 %v42
  %v267 = vunpack.c.l.b16 %v43
  %v268 = vunpack.c.h.b16 %v43
  %v269 = vunpack.c.l.b16 %v44
  %v270 = vunpack.c.h.b16 %v44
  %v271 = vunpack.c.l.b16 %v45
  %v272 = vunpack.c.h.b16 %v45
  %v273 = vunpack.c.l.b16 %v46
  %v274 = vunpack.c.h.b16 %v46
  %v275 = vunpack.c.l.b16 %v47
  %v276 = vunpack.c.h.b16 %v47
  %v277 = vunpack.c.l.b16 %v48
  %v278 = vunpack.c.h.b16 %v48
  %v279 = vunpack.c.l.b16 %v49
  %v280 = vunpack.c.h.b16 %v49
  %v281 = vunpack.c.l.b16 %v50
  %v282 = vunpack.c.h.b16 %v50
  %v283 = vunpack.c.l.b16 %v51
  %v284 = vunpack.c.h.b16 %v51
  %v285 = vunpack.c.l.b16 %v52
  %v286 = vunpack.c.h.b16 %v52
  %v287 = vunpack.c.l.b16 %v53
  %v288 = vunpack.c.h.b16 %v53
  %v289 = vunpack.c.l.b16 %v54
  %v290 = vunpack.c.h.b16 %v54
  %v291 = vunpack.c.l.b16 %v55
  %v292 = vunpack.c.h.b16 %v55
  %v293 = vunpack.c.l.b16 %v56
  %v294 = vunpack.c.h.b16 %v56
  %v295 = vunpack.c.l.b16 %v57
  %v296 = vunpack.c.h.b16 %v57
  %v297 = vunpack.c.l.b16 %v58
  %v298 = vunpack.c.h.b16 %v58
  %v299 = vpack.c.b16 %v209, %v203
  %v300 = vpack.c.b16 %v210, %v204
  %v301 = vpack.c.b16 %v211, %v205
  %v302 = vpack.c.b16 %v212, %v206
  %v303 = vpack.c.b16 %v213, %v207
  %v304 = vpack.c.b16 %v214, %v208
  %v305 = vpack.c.b16 %v221, %v215
  %v306 = vpack.c.b16 %v222, %v216
  %v307 = vpack.c.b16 %v223, %v217
  %v308 = vpack.c.b16 %v224, %v218
  %v309 = vpack.c.b16 %v225, %v219
  %v310 = vpack.c.b16 %v226, %v220
  %v311 = vpack.c.b16 %v233, %v227
  %v312 = vpack.c.b16 %v234, %v228
  %v313 = vpack.c.b16 %v235, %v229
  %v314 = vpack.c.b16 %v236, %v230
  %v315 = vpack.c.b16 %v237, %v231
  %v316 = vpack.c.b16 %v238, %v232
  %v317 = vpack.c.b16 %v245, %v239
  %v318 = vpack.c.b16 %v246, %v240
  %v319 = vpack.c.b16 %v247, %v241
  %v320 = vpack.c.b16 %v248, %v242
  %v321 = vpack.c.b16 %v249, %v243
  %v322 = vpack.c.b16 %v250, %v244
  %v323 = vpack.c.b16 %v257, %v251
  %v324 = vpack.c.b16 %v258, %v252
  %v325 = vpack.c.b16 %v259, %v253
  %v326 = vpack.c.b16 %v260, %v254
  %v327 = vpack.c.b16 %v261, %v255
  %v328 = vpack.c.b16 %v262, %v256
  %v329 = vpack.c.b16 %v269, %v263
  %v330 = vpack.c.b16 %v270, %v264
  %v331 = vpack.c.b16 %v271, %v265
  %v332 = vpack.c.b16 %v272, %v266
  %v333 = vpack.c.b16 %v273, %v267
  %v334 = vpack.c.b16 %v274, %v268
  %v335 = vpack.c.b16 %v281, %v275
  %v336 = vpack.c.b16 %v282, %v276
  %v337 = vpack.c.b16 %v283, %v277
  %v338 = vpack.c.b16 %v284, %v278
  %v339 = vpack.c.b16 %v285, %v279
  %v340 = vpack.c.b16 %v286, %v280
  %v341 = vpack.c.b16 %v293, %v287
  %v342 = vpack.c.b16 %v294, %v288
  %v343 = vpack.c.b16 %v295, %v289
  %v344 = vpack.c.b16 %v296, %v290
  %v345 = vpack.c.b16 %v297, %v291
  %v346 = vpack.c.b16 %v298, %v292
  %v491 = vunpack.c.l.b16 %v59
  %v492 = vunpack.c.h.b16 %v59
  %v493 = vunpack.c.l.b16 %v60
  %v494 = vunpack.c.h.b16 %v60
  %v495 = vunpack.c.l.b16 %v61
  %v496 = vunpack.c.h.b16 %v61
  %v497 = vunpack.c.l.b16 %v62
  %v498 = vunpack.c.h.b16 %v62
  %v499 = vunpack.c.l.b16 %v63
  %v500 = vunpack.c.h.b16 %v63
  %v501 = vunpack.c.l.b16 %v64
  %v502 = vunpack.c.h.b16 %v64
  %v503 = vunpack.c.l.b16 %v65
  %v504 = vunpack.c.h.b16 %v65
  %v505 = vunpack.c.l.b16 %v66
  %v506 = vunpack.c.h.b16 %v66
  %v507 = vunpack.c.l.b16 %v67
  %v508 = vunpack.c.h.b16 %v67
  %v509 = vunpack.c.l.b16 %v68
  %v510 = vunpack.c.h.b16 %v68
  %v511 = vunpack.c.l.b16 %v69
  %v512 = vunpack.c.h.b16 %v69
  %v513 = vunpack.c.l.b16 %v70
  %v514 = vunpack.c.h.b16 %v70
  %v515 = vunpack.c.l.b16 %v71
  %v516 = vunpack.c.h.b16 %v71
  %v517 = vunpack.c.l.b16 %v72
  %v518 = vunpack.c.h.b16 %v72
  %v519 = vunpack.c.l.b16 %v73
  %v520 = vunpack.c.h.b16 %v73
  %v521 = vunpack.c.l.b16 %v74
  %v522 = vunpack.c.h.b16 %v74
  %v523 = vunpack.c.l.b16 %v75
  %v524 = vunpack.c.h.b16 %v75
  %v525 = vunpack.c.l.b16 %v76
  %v526 = vunpack.c.h.b16 %v76
  %v527 = vunpack.c.l.b16 %v77
  %v528 = vunpack.c.h.b16 %v77
  %v529 = vunpack.c.l.b16 %v78
  %v530 = vunpack.c.h.b16 %v78
  %v531 = vunpack.c.l.b16 %v79
  %v532 = vunpack.c.h.b16 %v79
  %v533 = vunpack.c.l.b16 %v80
  %v534 = vunpack.c.h.b16 %v80
  %v535 = vunpack.c.l.b16 %v81
  %v536 = vunpack.c.h.b16 %v81
  %v537 = vunpack.c.l.b16 %v82
  %v538 = vunpack.c.h.b16 %v82
  %v539 = vunpack.c.l.b16 %v83
  %v540 = vunpack.c.h.b16 %v83
  %v541 = vunpack.c.l.b16 %v84
  %v542 = vunpack.c.h.b16 %v84
  %v543 = vunpack.c.l.b16 %v85
  %v544 = vunpack.c.h.b16 %v85
  %v545 = vunpack.c.l.b16 %v86
  %v546 = vunpack.c.h.b16 %v86
  %v547 = vunpack.c.l.b16 %v87
  %v548 = vunpack.c.h.b16 %v87
  %v549 = vunpack.c.l.b16 %v88
  %v550 = vunpack.c.h.b16 %v88
  %v551 = vunpack.c.l.b16 %v89
  %v552 = vunpack.c.h.b16 %v89
  %v553 = vunpack.c.l.b16 %v90
  %v554 = vunpack.c.h.b16 %v90
  %v555 = vunpack.c.l.b16 %v91
  %v556 = vunpack.c.h.b16 %v91
  %v557 = vunpack.c.l.b16 %v92
  %v558 = vunpack.c.h.b16 %v92
  %v559 = vunpack.c.l.b16 %v93
  %v560 = vunpack.c.h.b16 %v93
  %v561 = vunpack.c.l.b16 %v94
  %v562 = vunpack.c.h.b16 %v94
  %v563 = vunpack.c.l.b16 %v95
  %v564 = vunpack.c.h.b16 %v95
  %v565 = vunpack.c.l.b16 %v96
  %v566 = vunpack.c.h.b16 %v96
  %v567 = vunpack.c.l.b16 %v97
  %v568 = vunpack.c.h.b16 %v97
  %v569 = vunpack.c.l.b16 %v98
  %v570 = vunpack.c.h.b16 %v98
  %v571 = vunpack.c.l.b16 %v99
  %v572 = vunpack.c.h.b16 %v99
  %v573 = vunpack.c.l.b16 %v100
  %v574 = vunpack.c.h.b16 %v100
  %v575 = vunpack.c.l.b16 %v101
  %v576 = vunpack.c.h.b16 %v101
  %v577 = vunpack.c.l.b16 %v102
  %v578 = vunpack.c.h.b16 %v102
  %v579 = vunpack.c.l.b16 %v103
  %v580 = vunpack.c.h.b16 %v103
  %v581 = vunpack.c.l.b16 %v104
  %v582 = vunpack.c.h.b16 %v104
  %v583 = vunpack.c.l.b16 %v105
  %v584 = vunpack.c.h.b16 %v105
  %v585 = vunpack.c.l.b16 %v106
  %v586 = vunpack.c.h.b16 %v106
  %v587 = vunpack.c.l.b16 %v107
  %v588 = vunpack.c.h.b16 %v107
  %v589 = vunpack.c.l.b16 %v108
  %v590 = vunpack.c.h.b16 %v108
  %v591 = vunpack.c.l.b16 %v109
  %v592 = vunpack.c.h.b16 %v109
  %v593 = vunpack.c.l.b16 %v110
  %v594 = vunpack.c.h.b16 %v110
  %v595 = vunpack.c.l.b16 %v111
  %v596 = vunpack.c.h.b16 %v111
  %v597 = vunpack.c.l.b16 %v112
  %v598 = vunpack.c.h.b16 %v112
  %v599 = vunpack.c.l.b16 %v113
  %v600 = vunpack.c.h.b16 %v113
  %v601 = vunpack.c.l.b16 %v114
  %v602 = vunpack.c.h.b16 %v114
  %v603 = vunpack.c.l.b16 %v115
  %v604 = vunpack.c.h.b16 %v115
  %v605 = vunpack.c.l.b16 %v116
  %v606 = vunpack.c.h.b16 %v116
  %v607 = vunpack.c.l.b16 %v117
  %v608 = vunpack.c.h.b16 %v117
  %v609 = vunpack.c.l.b16 %v118
  %v610 = vunpack.c.h.b16 %v118
  %v611 = vunpack.c.l.b16 %v119
  %v612 = vunpack.c.h.b16 %v119
  %v613 = vunpack.c.l.b16 %v120
  %v614 = vunpack.c.h.b16 %v120
  %v615 = vunpack.c.l.b16 %v121
  %v616 = vunpack.c.h.b16 %v121
  %v617 = vunpack.c.l.b16 %v122
  %v618 = vunpack.c.h.b16 %v122
  %v619 = vunpack.c.l.b16 %v123
  %v620 = vunpack.c.h.b16 %v123
  %v621 = vunpack.c.l.b16 %v124
  %v622 = vunpack.c.h.b16 %v124
  %v623 = vunpack.c.l.b16 %v125
  %v624 = vunpack.c.h.b16 %v125
  %v625 = vunpack.c.l.b16 %v126
  %v626 = vunpack.c.h.b16 %v126
  %v627 = vunpack.c.l.b16 %v127
  %v628 = vunpack.c.h.b16 %v127
  %v629 = vunpack.c.l.b16 %v128
  %v630 = vunpack.c.h.b16 %v128
  %v631 = vunpack.c.l.b16 %v129
  %v632 = vunpack.c.h.b16 %v129
  %v633 = vunpack.c.l.b16 %v130
  %v634 = vunpack.c.h.b16 %v130
  %v635 = vunpack.c.l.b16 %v131
  %v636 = vunpack.c.h.b16 %v131
  %v637 = vunpack.c.l.b16 %v132
  %v638 = vunpack.c.h.b16 %v132
  %v639 = vunpack.c.l.b16 %v133
  %v640 = vunpack.c.h.b16 %v133
  %v641 = vunpack.c.l.b16 %v134
  %v642 = vunpack.c.h.b16 %v134
  %v643 = vunpack.c.l.b16 %v135
  %v644 = vunpack.c.h.b16 %v135
  %v645 = vunpack.c.l.b16 %v136
  %v646 = vunpack.c.h.b16 %v136
  %v647 = vunpack.c.l.b16 %v137
  %v648 = vunpack.c.h.b16 %v137
  %v649 = vunpack.c.l.b16 %v138
  %v650 = vunpack.c.h.b16 %v138
  %v651 = vunpack.c.l.b16 %v139
  %v652 = vunpack.c.h.b16 %v139
  %v653 = vunpack.c.l.b16 %v140
  %v654 = vunpack.c.h.b16 %v140
  %v655 = vunpack.c.l.b16 %v141
  %v656 = vunpack.c.h.b16 %v141
  %v657 = vunpack.c.l.b16 %v142
  %v658 = vunpack.c.h.b16 %v142
  %v659 = vunpack.c.l.b16 %v143
  %v660 = vunpack.c.h.b16 %v143
  %v661 = vunpack.c.l.b16 %v144
  %v662 = vunpack.c.h.b16 %v144
  %v663 = vunpack.c.l.b16 %v145
  %v664 = vunpack.c.h.b16 %v145
  %v665 = vunpack.c.l.b16 %v146
  %v666 = vunpack.c.h.b16 %v146
  %v667 = vunpack.c.l.b16 %v147
  %v668 = vunpack.c.h.b16 %v147
  %v669 = vunpack.c.l.b16 %v148
  %v670 = vunpack.c.h.b16 %v148
  %v671 = vunpack.c.l.b16 %v149
  %v672 = vunpack.c.h.b16 %v149
  %v673 = vunpack.c.l.b16 %v150
  %v674 = vunpack.c.h.b16 %v150
  %v675 = vunpack.c.l.b16 %v151
  %v676 = vunpack.c.h.b16 %v151
  %v677 = vunpack.c.l.b16 %v152
  %v678 = vunpack.c.h.b16 %v152
  %v679 = vunpack.c.l.b16 %v153
  %v680 = vunpack.c.h.b16 %v153
  %v681 = vunpack.c.l.b16 %v154
  %v682 = vunpack.c.h.b16 %v154
  %v683 = vpack.c.b16 %v493, %v491
  %v684 = vpack.c.b16 %v494, %v492
  %v685 = vpack.c.b16 %v497, %v495
  %v686 = vpack.c.b16 %v498, %v496
  %v687 = vpack.c.b16 %v501, %v499
  %v688 = vpack.c.b16 %v502, %v500
  %v689 = vpack.c.b16 %v505, %v503
  %v690 = vpack.c.b16 %v506, %v504
  %v691 = vpack.c.b16 %v509, %v507
  %v692 = vpack.c.b16 %v510, %v508
  %v693 = vpack.c.b16 %v513, %v511
  %v694 = vpack.c.b16 %v514, %v512
  %v695 = vpack.c.b16 %v517, %v515
  %v696 = vpack.c.b16 %v518, %v516
  %v697 = vpack.c.b16 %v521, %v519
  %v698 = vpack.c.b16 %v522, %v520
  %v699 = vpack.c.b16 %v525, %v523
  %v700 = vpack.c.b16 %v526, %v524
  %v701 = vpack.c.b16 %v529, %v527
  %v702 = vpack.c.b16 %v530, %v528
  %v703 = vpack.c.b16 %v533, %v531
  %v704 = vpack.c.b16 %v534, %v532
  %v705 = vpack.c.b16 %v537, %v535
  %v706 = vpack.c.b16 %v538, %v536
  %v707 = vpack.c.b16 %v541, %v539
  %v708 = vpack.c.b16 %v542, %v540
  %v709 = vpack.c.b16 %v545, %v543
  %v710 = vpack.c.b16 %v546, %v544
  %v711 = vpack.c.b16 %v549, %v547
  %v712 = vpack.c.b16 %v550, %v548
  %v713 = vpack.c.b16 %v553, %v551
  %v714 = vpack.c.b16 %v554, %v552
  %v715 = vpack.c.b16 %v557, %v555
  %v716 = vpack.c.b16 %v558, %v556
  %v717 = vpack.c.b16 %v561, %v559
  %v718 = vpack.c.b16 %v562, %v560
  %v719 = vpack.c.b16 %v565, %v563
  %v720 = vpack.c.b16 %v566, %v564
  %v721 = vpack.c.b16 %v569, %v567
  %v722 = vpack.c.b16 %v570, %v568
  %v723 = vpack.c.b16 %v573, %v571
  %v724 = vpack.c.b16 %v574, %v572
  %v725 = vpack.c.b16 %v577, %v575
  %v726 = vpack.c.b16 %v578, %v576
  %v727 = vpack.c.b16 %v581, %v579
  %v728 = vpack.c.b16 %v582, %v580
  %v729 = vpack.c.b16 %v585, %v583
  %v730 = vpack.c.b16 %v586, %v584
  %v731 = vpack.c.b16 %v589, %v587
  %v732 = vpack.c.b16 %v590, %v588
  %v733 = vpack.c.b16 %v593, %v591
  %v734 = vpack.c.b16 %v594, %v592
  %v735 = vpack.c.b16 %v597, %v595
  %v736 = vpack.c.b16 %v598, %v596
  %v737 = vpack.c.b16 %v601, %v599
  %v738 = vpack.c.b16 %v602, %v600
  %v739 = vpack.c.b16 %v605, %v603
  %v740 = vpack.c.b16 %v606, %v604
  %v741 = vpack.c.b16 %v609, %v607
  %v742 = vpack.c.b16 %v610, %v608
  %v743 = vpack.c.b16 %v613, %v611
  %v744 = vpack.c.b16 %v614, %v612
  %v745 = vpack.c.b16 %v617, %v615
  %v746 = vpack.c.b16 %v618, %v616
  %v747 = vpack.c.b16 %v621, %v619
  %v748 = vpack.c.b16 %v622, %v620
  %v749 = vpack.c.b16 %v625, %v623
  %v750 = vpack.c.b16 %v626, %v624
  %v751 = vpack.c.b16 %v629, %v627
  %v752 = vpack.c.b16 %v630, %v628
  %v753 = vpack.c.b16 %v633, %v631
  %v754 = vpack.c.b16 %v634, %v632
  %v755 = vpack.c.b16 %v637, %v635
  %v756 = vpack.c.b16 %v638, %v636
  %v757 = vpack.c.b16 %v641, %v639
  %v758 = vpack.c.b16 %v642, %v640
  %v759 = vpack.c.b16 %v645, %v643
  %v760 = vpack.c.b16 %v646, %v644
  %v761 = vpack.c.b16 %v649, %v647
  %v762 = vpack.c.b16 %v650, %v648
  %v763 = vpack.c.b16 %v653, %v651
  %v764 = vpack.c.b16 %v654, %v652
  %v765 = vpack.c.b16 %v657, %v655
  %v766 = vpack.c.b16 %v658, %v656
  %v767 = vpack.c.b16 %v661, %v659
  %v768 = vpack.c.b16 %v662, %v660
  %v769 = vpack.c.b16 %v665, %v663
  %v770 = vpack.c.b16 %v666, %v664
  %v771 = vpack.c.b16 %v669, %v667
  %v772 = vpack.c.b16 %v670, %v668
  %v773 = vpack.c.b16 %v673, %v671
  %v774 = vpack.c.b16 %v674, %v672
  %v775 = vpack.c.b16 %v677, %v675
  %v776 = vpack.c.b16 %v678, %v676
  %v777 = vpack.c.b16 %v681, %v679
  %v778 = vpack.c.b16 %v682, %v680
  %875 = vmatprep.subr.bf16.mxu0 %v684
  %876 = vmatpush1.bf16.msra.mxu0 %v683
  %877 = vmatprep.subr.bf16.mxu0 %v686
  %878 = vmatpush1.bf16.msra.mxu0 %v685
  %879 = vmatprep.subr.bf16.mxu0 %v688
  %880 = vmatpush1.bf16.msra.mxu0 %v687
  %881 = vmatprep.subr.bf16.mxu0 %v690
  %882 = vmatpush1.bf16.msra.mxu0 %v689
  %883 = vmatprep.subr.bf16.mxu0 %v692
  %884 = vmatpush1.bf16.msra.mxu0 %v691
  %885 = vmatprep.subr.bf16.mxu0 %v694
  %886 = vmatpush1.bf16.msra.mxu0 %v693
  %887 = vmatprep.subr.bf16.mxu0 %v696
  %888 = vmatpush1.bf16.msra.mxu0 %v695
  %889 = vmatprep.subr.bf16.mxu0 %v698
  %890 = vmatpush1.bf16.msra.mxu0 %v697
  %891 = vmatprep.subr.bf16.mxu0 %v700
  %892 = vmatpush1.bf16.msra.mxu0 %v699
  %893 = vmatprep.subr.bf16.mxu0 %v702
  %894 = vmatpush1.bf16.msra.mxu0 %v701
  %895 = vmatprep.subr.bf16.mxu0 %v704
  %896 = vmatpush1.bf16.msra.mxu0 %v703
  %897 = vmatprep.subr.bf16.mxu0 %v706
  %898 = vmatpush1.bf16.msra.mxu0 %v705
  %899 = vmatprep.subr.bf16.mxu0 %v708
  %900 = vmatpush1.bf16.msra.mxu0 %v707
  %901 = vmatprep.subr.bf16.mxu0 %v710
  %902 = vmatpush1.bf16.msra.mxu0 %v709
  %903 = vmatprep.subr.bf16.mxu0 %v712
  %904 = vmatpush1.bf16.msra.mxu0 %v711
  %905 = vmatprep.subr.bf16.mxu0 %v714
  %906 = vmatpush1.bf16.msra.mxu0 %v713
  %907 = vmatprep.mubr.bf16.mxu0 %v300
  %908 = vmatmul.mubr.bf16.gmra.mrb[0].mxu0 %v299
  %v909 = vpop.f32.mrb[0].mxu0
  %v910 = vadd.f32 0.0, %v909
  %v911 = vpop.f32.mrb[0].mxu0
  %v912 = vadd.f32 0.0, %v911
  %v913 = vpop.f32.mrb[0].mxu0
  %v914 = vadd.f32 0.0, %v913
  %v915 = vpop.f32.mrb[0].mxu0
  %v916 = vadd.f32 0.0, %v915
  %917 = vmatprep.mubr.bf16.mxu0 %v306
  %918 = vmatmul.mubr.bf16.gmra.mrb[0].mxu0 %v305
  %v919 = vpop.f32.mrb[0].mxu0
  %v920 = vadd.f32 0.0, %v919
  %v921 = vpop.f32.mrb[0].mxu0
  %v922 = vadd.f32 0.0, %v921
  %v923 = vpop.f32.mrb[0].mxu0
  %v924 = vadd.f32 0.0, %v923
  %v925 = vpop.f32.mrb[0].mxu0
  %v926 = vadd.f32 0.0, %v925
  %927 = vmatprep.mubr.bf16.mxu0 %v312
  %928 = vmatmul.mubr.bf16.gmra.mrb[0].mxu0 %v311
  %v929 = vpop.f32.mrb[0].mxu0
  %v930 = vadd.f32 0.0, %v929
  %v931 = vpop.f32.mrb[0].mxu0
  %v932 = vadd.f32 0.0, %v931
  %v933 = vpop.f32.mrb[0].mxu0
  %v934 = vadd.f32 0.0, %v933
  %v935 = vpop.f32.mrb[0].mxu0
  %v936 = vadd.f32 0.0, %v935
  %937 = vmatprep.mubr.bf16.mxu0 %v318
  %938 = vmatmul.mubr.bf16.gmra.mrb[0].mxu0 %v317
  %v939 = vpop.f32.mrb[0].mxu0
  %v940 = vadd.f32 0.0, %v939
  %v941 = vpop.f32.mrb[0].mxu0
  %v942 = vadd.f32 0.0, %v941
  %v943 = vpop.f32.mrb[0].mxu0
  %v944 = vadd.f32 0.0, %v943
  %v945 = vpop.f32.mrb[0].mxu0
  %v946 = vadd.f32 0.0, %v945
  %947 = vmatprep.mubr.bf16.mxu0 %v324
  %948 = vmatmul.mubr.bf16.gmra.mrb[0].mxu0 %v323
  %v949 = vpop.f32.mrb[0].mxu0
  %v950 = vadd.f32 0.0, %v949
  %v951 = vpop.f32.mrb[0].mxu0
  %v952 = vadd.f32 0.0, %v951
  %v953 = vpop.f32.mrb[0].mxu0
  %v954 = vadd.f32 0.0, %v953
  %v955 = vpop.f32.mrb[0].mxu0
  %v956 = vadd.f32 0.0, %v955
  %957 = vmatprep.mubr.bf16.mxu0 %v330
  %958 = vmatmul.mubr.bf16.gmra.mrb[0].mxu0 %v329
  %v959 = vpop.f32.mrb[0].mxu0
  %v960 = vadd.f32 0.0, %v959
  %v961 = vpop.f32.mrb[0].mxu0
  %v962 = vadd.f32 0.0, %v961
  %v963 = vpop.f32.mrb[0].mxu0
  %v964 = vadd.f32 0.0, %v963
  %v965 = vpop.f32.mrb[0].mxu0
  %v966 = vadd.f32 0.0, %v965
  %967 = vmatprep.mubr.bf16.mxu0 %v336
  %968 = vmatmul.mubr.bf16.gmra.mrb[0].mxu0 %v335
  %v969 = vpop.f32.mrb[0].mxu0
  %v970 = vadd.f32 0.0, %v969
  %v971 = vpop.f32.mrb[0].mxu0
  %v972 = vadd.f32 0.0, %v971
  %v973 = vpop.f32.mrb[0].mxu0
  %v974 = vadd.f32 0.0, %v973
  %v975 = vpop.f32.mrb[0].mxu0
  %v976 = vadd.f32 0.0, %v975
  %977 = vmatprep.mubr.bf16.mxu0 %v342
  %978 = vmatmul.mubr.bf16.gmra.mrb[0].mxu0 %v341
  %v979 = vpop.f32.mrb[0].mxu0
  %v980 = vadd.f32 0.0, %v979
  %v981 = vpop.f32.mrb[0].mxu0
  %v982 = vadd.f32 0.0, %v981
  %v983 = vpop.f32.mrb[0].mxu0
  %v984 = vadd.f32 0.0, %v983
  %v985 = vpop.f32.mrb[0].mxu0
  %v986 = vadd.f32 0.0, %v985
  %987 = vdwg.mxu0
  %988 = vmatprep.subr.bf16.mxu0 %v716
  %989 = vmatpush1.bf16.msra.mxu0 %v715
  %990 = vmatprep.subr.bf16.mxu0 %v718
  %991 = vmatpush1.bf16.msra.mxu0 %v717
  %992 = vmatprep.subr.bf16.mxu0 %v720
  %993 = vmatpush1.bf16.msra.mxu0 %v719
  %994 = vmatprep.subr.bf16.mxu0 %v722
  %995 = vmatpush1.bf16.msra.mxu0 %v721
  %996 = vmatprep.subr.bf16.mxu0 %v724
  %997 = vmatpush1.bf16.msra.mxu0 %v723
  %998 = vmatprep.subr.bf16.mxu0 %v726
  %999 = vmatpush1.bf16.msra.mxu0 %v725
  %1000 = vmatprep.subr.bf16.mxu0 %v728
  %1001 = vmatpush1.bf16.msra.mxu0 %v727
  %1002 = vmatprep.subr.bf16.mxu0 %v730
  %1003 = vmatpush1.bf16.msra.mxu0 %v729
  %1004 = vmatprep.subr.bf16.mxu0 %v732
  %1005 = vmatpush1.bf16.msra.mxu0 %v731
  %1006 = vmatprep.subr.bf16.mxu0 %v734
  %1007 = vmatpush1.bf16.msra.mxu0 %v733
  %1008 = vmatprep.subr.bf16.mxu0 %v736
  %1009 = vmatpush1.bf16.msra.mxu0 %v735
  %1010 = vmatprep.subr.bf16.mxu0 %v738
  %1011 = vmatpush1.bf16.msra.mxu0 %v737
  %1012 = vmatprep.subr.bf16.mxu0 %v740
  %1013 = vmatpush1.bf16.msra.mxu0 %v739
  %1014 = vmatprep.subr.bf16.mxu0 %v742
  %1015 = vmatpush1.bf16.msra.mxu0 %v741
  %1016 = vmatprep.subr.bf16.mxu0 %v744
  %1017 = vmatpush1.bf16.msra.mxu0 %v743
  %1018 = vmatprep.subr.bf16.mxu0 %v746
  %1019 = vmatpush1.bf16.msra.mxu0 %v745
  %1020 = vmatprep.mubr.bf16.mxu0 %v302
  %1021 = vmatmul.mubr.bf16.gmra.mrb[0].mxu0 %v301
  %v1022 = vpop.f32.mrb[0].mxu0
  %v1023 = vadd.f32 %v910, %v1022
  %v1024 = vpop.f32.mrb[0].mxu0
  %v1025 = vadd.f32 %v912, %v1024
  %v1026 = vpop.f32.mrb[0].mxu0
  %v1027 = vadd.f32 %v914, %v1026
  %v1028 = vpop.f32.mrb[0].mxu0
  %v1029 = vadd.f32 %v916, %v1028
  %1030 = vmatprep.mubr.bf16.mxu0 %v308
  %1031 = vmatmul.mubr.bf16.gmra.mrb[0].mxu0 %v307
  %v1032 = vpop.f32.mrb[0].mxu0
  %v1033 = vadd.f32 %v920, %v1032
  %v1034 = vpop.f32.mrb[0].mxu0
  %v1035 = vadd.f32 %v922, %v1034
  %v1036 = vpop.f32.mrb[0].mxu0
  %v1037 = vadd.f32 %v924, %v1036
  %v1038 = vpop.f32.mrb[0].mxu0
  %v1039 = vadd.f32 %v926, %v1038
  %1040 = vmatprep.mubr.bf16.mxu0 %v314
  %1041 = vmatmul.mubr.bf16.gmra.mrb[0].mxu0 %v313
  %v1042 = vpop.f32.mrb[0].mxu0
  %v1043 = vadd.f32 %v930, %v1042
  %v1044 = vpop.f32.mrb[0].mxu0
  %v1045 = vadd.f32 %v932, %v1044
  %v1046 = vpop.f32.mrb[0].mxu0
  %v1047 = vadd.f32 %v934, %v1046
  %v1048 = vpop.f32.mrb[0].mxu0
  %v1049 = vadd.f32 %v936, %v1048
  %1050 = vmatprep.mubr.bf16.mxu0 %v320
  %1051 = vmatmul.mubr.bf16.gmra.mrb[0].mxu0 %v319
  %v1052 = vpop.f32.mrb[0].mxu0
  %v1053 = vadd.f32 %v940, %v1052
  %v1054 = vpop.f32.mrb[0].mxu0
  %v1055 = vadd.f32 %v942, %v1054
  %v1056 = vpop.f32.mrb[0].mxu0
  %v1057 = vadd.f32 %v944, %v1056
  %v1058 = vpop.f32.mrb[0].mxu0
  %v1059 = vadd.f32 %v946, %v1058
  %1060 = vmatprep.mubr.bf16.mxu0 %v326
  %1061 = vmatmul.mubr.bf16.gmra.mrb[0].mxu0 %v325
  %v1062 = vpop.f32.mrb[0].mxu0
  %v1063 = vadd.f32 %v950, %v1062
  %v1064 = vpop.f32.mrb[0].mxu0
  %v1065 = vadd.f32 %v952, %v1064
  %v1066 = vpop.f32.mrb[0].mxu0
  %v1067 = vadd.f32 %v954, %v1066
  %v1068 = vpop.f32.mrb[0].mxu0
  %v1069 = vadd.f32 %v956, %v1068
  %1070 = vmatprep.mubr.bf16.mxu0 %v332
  %1071 = vmatmul.mubr.bf16.gmra.mrb[0].mxu0 %v331
  %v1072 = vpop.f32.mrb[0].mxu0
  %v1073 = vadd.f32 %v960, %v1072
  %v1074 = vpop.f32.mrb[0].mxu0
  %v1075 = vadd.f32 %v962, %v1074
  %v1076 = vpop.f32.mrb[0].mxu0
  %v1077 = vadd.f32 %v964, %v1076
  %v1078 = vpop.f32.mrb[0].mxu0
  %v1079 = vadd.f32 %v966, %v1078
  %1080 = vmatprep.mubr.bf16.mxu0 %v338
  %1081 = vmatmul.mubr.bf16.gmra.mrb[0].mxu0 %v337
  %v1082 = vpop.f32.mrb[0].mxu0
  %v1083 = vadd.f32 %v970, %v1082
  %v1084 = vpop.f32.mrb[0].mxu0
  %v1085 = vadd.f32 %v972, %v1084
  %v1086 = vpop.f32.mrb[0].mxu0
  %v1087 = vadd.f32 %v974, %v1086
  %v1088 = vpop.f32.mrb[0].mxu0
  %v1089 = vadd.f32 %v976, %v1088
  %1090 = vmatprep.mubr.bf16.mxu0 %v344
  %1091 = vmatmul.mubr.bf16.gmra.mrb[0].mxu0 %v343
  %v1092 = vpop.f32.mrb[0].mxu0
  %v1093 = vadd.f32 %v980, %v1092
  %v1094 = vpop.f32.mrb[0].mxu0
  %v1095 = vadd.f32 %v982, %v1094
  %v1096 = vpop.f32.mrb[0].mxu0
  %v1097 = vadd.f32 %v984, %v1096
  %v1098 = vpop.f32.mrb[0].mxu0
  %v1099 = vadd.f32 %v986, %v1098
  %1100 = vdwg.mxu0
  %1101 = vmatprep.subr.bf16.mxu0 %v748
  %1102 = vmatpush1.bf16.msra.mxu0 %v747
  %1103 = vmatprep.subr.bf16.mxu0 %v750
  %1104 = vmatpush1.bf16.msra.mxu0 %v749
  %1105 = vmatprep.subr.bf16.mxu0 %v752
  %1106 = vmatpush1.bf16.msra.mxu0 %v751
  %1107 = vmatprep.subr.bf16.mxu0 %v754
  %1108 = vmatpush1.bf16.msra.mxu0 %v753
  %1109 = vmatprep.subr.bf16.mxu0 %v756
  %1110 = vmatpush1.bf16.msra.mxu0 %v755
  %1111 = vmatprep.subr.bf16.mxu0 %v758
  %1112 = vmatpush1.bf16.msra.mxu0 %v757
  %1113 = vmatprep.subr.bf16.mxu0 %v760
  %1114 = vmatpush1.bf16.msra.mxu0 %v759
  %1115 = vmatprep.subr.bf16.mxu0 %v762
  %1116 = vmatpush1.bf16.msra.mxu0 %v761
  %1117 = vmatprep.subr.bf16.mxu0 %v764
  %1118 = vmatpush1.bf16.msra.mxu0 %v763
  %1119 = vmatprep.subr.bf16.mxu0 %v766
  %1120 = vmatpush1.bf16.msra.mxu0 %v765
  %1121 = vmatprep.subr.bf16.mxu0 %v768
  %1122 = vmatpush1.bf16.msra.mxu0 %v767
  %1123 = vmatprep.subr.bf16.mxu0 %v770
  %1124 = vmatpush1.bf16.msra.mxu0 %v769
  %1125 = vmatprep.subr.bf16.mxu0 %v772
  %1126 = vmatpush1.bf16.msra.mxu0 %v771
  %1127 = vmatprep.subr.bf16.mxu0 %v774
  %1128 = vmatpush1.bf16.msra.mxu0 %v773
  %1129 = vmatprep.subr.bf16.mxu0 %v776
  %1130 = vmatpush1.bf16.msra.mxu0 %v775
  %1131 = vmatprep.subr.bf16.mxu0 %v778
  %1132 = vmatpush1.bf16.msra.mxu0 %v777
  %1133 = vmatprep.mubr.bf16.mxu0 %v304
  %1134 = vmatmul.mubr.bf16.gmra.mrb[0].mxu0 %v303
  %v1135 = vpop.f32.mrb[0].mxu0
  %v1136 = vadd.f32 %v1023, %v1135
  %v1137 = vpop.f32.mrb[0].mxu0
  %v1138 = vadd.f32 %v1025, %v1137
  %v1139 = vpop.f32.mrb[0].mxu0
  %v1140 = vadd.f32 %v1027, %v1139
  %v1141 = vpop.f32.mrb[0].mxu0
  %v1142 = vadd.f32 %v1029, %v1141
  %1143 = vmatprep.mubr.bf16.mxu0 %v310
  %1144 = vmatmul.mubr.bf16.gmra.mrb[0].mxu0 %v309
  %v1145 = vpop.f32.mrb[0].mxu0
  %v1146 = vadd.f32 %v1033, %v1145
  %v1147 = vpop.f32.mrb[0].mxu0
  %v1148 = vadd.f32 %v1035, %v1147
  %v1149 = vpop.f32.mrb[0].mxu0
  %v1150 = vadd.f32 %v1037, %v1149
  %v1151 = vpop.f32.mrb[0].mxu0
  %v1152 = vadd.f32 %v1039, %v1151
  %1153 = vmatprep.mubr.bf16.mxu0 %v316
  %1154 = vmatmul.mubr.bf16.gmra.mrb[0].mxu0 %v315
  %v1155 = vpop.f32.mrb[0].mxu0
  %v1156 = vadd.f32 %v1043, %v1155
  %v1157 = vpop.f32.mrb[0].mxu0
  %v1158 = vadd.f32 %v1045, %v1157
  %v1159 = vpop.f32.mrb[0].mxu0
  %v1160 = vadd.f32 %v1047, %v1159
  %v1161 = vpop.f32.mrb[0].mxu0
  %v1162 = vadd.f32 %v1049, %v1161
  %1163 = vmatprep.mubr.bf16.mxu0 %v322
  %1164 = vmatmul.mubr.bf16.gmra.mrb[0].mxu0 %v321
  %v1165 = vpop.f32.mrb[0].mxu0
  %v1166 = vadd.f32 %v1053, %v1165
  %v1167 = vpop.f32.mrb[0].mxu0
  %v1168 = vadd.f32 %v1055, %v1167
  %v1169 = vpop.f32.mrb[0].mxu0
  %v1170 = vadd.f32 %v1057, %v1169
  %v1171 = vpop.f32.mrb[0].mxu0
  %v1172 = vadd.f32 %v1059, %v1171
  %1173 = vmatprep.mubr.bf16.mxu0 %v328
  %1174 = vmatmul.mubr.bf16.gmra.mrb[0].mxu0 %v327
  %v1175 = vpop.f32.mrb[0].mxu0
  %v1176 = vadd.f32 %v1063, %v1175
  %v1177 = vpop.f32.mrb[0].mxu0
  %v1178 = vadd.f32 %v1065, %v1177
  %v1179 = vpop.f32.mrb[0].mxu0
  %v1180 = vadd.f32 %v1067, %v1179
  %v1181 = vpop.f32.mrb[0].mxu0
  %v1182 = vadd.f32 %v1069, %v1181
  %1183 = vmatprep.mubr.bf16.mxu0 %v334
  %1184 = vmatmul.mubr.bf16.gmra.mrb[0].mxu0 %v333
  %v1185 = vpop.f32.mrb[0].mxu0
  %v1186 = vadd.f32 %v1073, %v1185
  %v1187 = vpop.f32.mrb[0].mxu0
  %v1188 = vadd.f32 %v1075, %v1187
  %v1189 = vpop.f32.mrb[0].mxu0
  %v1190 = vadd.f32 %v1077, %v1189
  %v1191 = vpop.f32.mrb[0].mxu0
  %v1192 = vadd.f32 %v1079, %v1191
  %1193 = vmatprep.mubr.bf16.mxu0 %v340
  %1194 = vmatmul.mubr.bf16.gmra.mrb[0].mxu0 %v339
  %v1195 = vpop.f32.mrb[0].mxu0
  %v1196 = vadd.f32 %v1083, %v1195
  %v1197 = vpop.f32.mrb[0].mxu0
  %v1198 = vadd.f32 %v1085, %v1197
  %v1199 = vpop.f32.mrb[0].mxu0
  %v1200 = vadd.f32 %v1087, %v1199
  %v1201 = vpop.f32.mrb[0].mxu0
  %v1202 = vadd.f32 %v1089, %v1201
  %1203 = vmatprep.mubr.bf16.mxu0 %v346
  %1204 = vmatmul.mubr.bf16.gmra.mrb[0].mxu0 %v345
  %v1205 = vpop.f32.mrb[0].mxu0
  %v1206 = vadd.f32 %v1093, %v1205
  %v1207 = vpop.f32.mrb[0].mxu0
  %v1208 = vadd.f32 %v1095, %v1207
  %v1209 = vpop.f32.mrb[0].mxu0
  %v1210 = vadd.f32 %v1097, %v1209
  %v1211 = vpop.f32.mrb[0].mxu0
  %v1212 = vadd.f32 %v1099, %v1211
  %1213 = vdwg.mxu0
  %v1214 = vmax.f32 %v1136, %v1156
  %v1215 = vmax.f32 %v1138, %v1158
  %v1216 = vmax.f32 %v1140, %v1160
  %v1217 = vmax.f32 %v1142, %v1162
  %v1218 = vmax.f32 %v1146, %v1166
  %v1219 = vmax.f32 %v1148, %v1168
  %v1220 = vmax.f32 %v1150, %v1170
  %v1221 = vmax.f32 %v1152, %v1172
  %v1222 = vmax.f32 %v1176, %v1196
  %v1223 = vmax.f32 %v1178, %v1198
  %v1224 = vmax.f32 %v1180, %v1200
  %v1225 = vmax.f32 %v1182, %v1202
  %v1226 = vmax.f32 %v1186, %v1206
  %v1227 = vmax.f32 %v1188, %v1208
  %v1228 = vmax.f32 %v1190, %v1210
  %v1229 = vmax.f32 %v1192, %v1212
  %1246 = vrot.lane.b32.xlu0 %v1214, 118
  %v1247 = vpop.permute.xlu0 %1246
  %1248 = vrot.lane.b32.xlu0 %v1215, 118
  %v1249 = vpop.permute.xlu0 %1248
  %1250 = vrot.lane.b32.xlu0 %v1216, 118
  %v1251 = vpop.permute.xlu0 %1250
  %1252 = vrot.lane.b32.xlu0 %v1217, 118
  %v1253 = vpop.permute.xlu0 %1252
  %1254 = vrot.lane.b32.xlu0 %v1218, 118
  %v1255 = vpop.permute.xlu0 %1254
  %1256 = vrot.lane.b32.xlu0 %v1219, 118
  %v1257 = vpop.permute.xlu0 %1256
  %1258 = vrot.lane.b32.xlu0 %v1220, 118
  %v1259 = vpop.permute.xlu0 %1258
  %1260 = vrot.lane.b32.xlu0 %v1221, 118
  %v1261 = vpop.permute.xlu0 %1260
  %1262 = vrot.lane.b32.xlu0 %v1222, 118
  %v1263 = vpop.permute.xlu0 %1262
  %1264 = vrot.lane.b32.xlu0 %v1223, 118
  %v1265 = vpop.permute.xlu0 %1264
  %1266 = vrot.lane.b32.xlu0 %v1224, 118
  %v1267 = vpop.permute.xlu0 %1266
  %1268 = vrot.lane.b32.xlu0 %v1225, 118
  %v1269 = vpop.permute.xlu0 %1268
  %1270 = vrot.lane.b32.xlu0 %v1226, 118
  %v1271 = vpop.permute.xlu0 %1270
  %1272 = vrot.lane.b32.xlu0 %v1227, 118
  %v1273 = vpop.permute.xlu0 %1272
  %1274 = vrot.lane.b32.xlu0 %v1228, 118
  %v1275 = vpop.permute.xlu0 %1274
  %1276 = vrot.lane.b32.xlu0 %v1229, 118
  %v1277 = vpop.permute.xlu0 %1276
  %vm1278 = vcmask 965632
  %v1279 = vsel %vm1278, %v1247, %v1249
  %v1280 = vsel %vm1278, %v1251, %v1253
  %v1281 = vsel %vm1278, %v1255, %v1257
  %v1282 = vsel %vm1278, %v1259, %v1261
  %v1283 = vsel %vm1278, %v1263, %v1265
  %v1284 = vsel %vm1278, %v1267, %v1269
  %v1285 = vsel %vm1278, %v1271, %v1273
  %v1286 = vsel %vm1278, %v1275, %v1277
  %v1295 = vmax.f32 %v1214, %v1279
  %v1296 = vmax.f32 %v1216, %v1280
  %v1297 = vmax.f32 %v1218, %v1281
  %v1298 = vmax.f32 %v1220, %v1282
  %v1299 = vmax.f32 %v1222, %v1283
  %v1300 = vmax.f32 %v1224, %v1284
  %v1301 = vmax.f32 %v1226, %v1285
  %v1302 = vmax.f32 %v1228, %v1286
  %1303 = vrot.lane.b32.xlu0 %v1214, 108
  %v1304 = vpop.permute.xlu0 %1303
  %1305 = vrot.lane.b32.xlu0 %v1215, 108
  %v1306 = vpop.permute.xlu0 %1305
  %1307 = vrot.lane.b32.xlu0 %v1216, 108
  %v1308 = vpop.permute.xlu0 %1307
  %1309 = vrot.lane.b32.xlu0 %v1217, 108
  %v1310 = vpop.permute.xlu0 %1309
  %1311 = vrot.lane.b32.xlu0 %v1218, 108
  %v1312 = vpop.permute.xlu0 %1311
  %1313 = vrot.lane.b32.xlu0 %v1219, 108
  %v1314 = vpop.permute.xlu0 %1313
  %1315 = vrot.lane.b32.xlu0 %v1220, 108
  %v1316 = vpop.permute.xlu0 %1315
  %1317 = vrot.lane.b32.xlu0 %v1221, 108
  %v1318 = vpop.permute.xlu0 %1317
  %1319 = vrot.lane.b32.xlu0 %v1222, 108
  %v1320 = vpop.permute.xlu0 %1319
  %1321 = vrot.lane.b32.xlu0 %v1223, 108
  %v1322 = vpop.permute.xlu0 %1321
  %1323 = vrot.lane.b32.xlu0 %v1224, 108
  %v1324 = vpop.permute.xlu0 %1323
  %1325 = vrot.lane.b32.xlu0 %v1225, 108
  %v1326 = vpop.permute.xlu0 %1325
  %1327 = vrot.lane.b32.xlu0 %v1226, 108
  %v1328 = vpop.permute.xlu0 %1327
  %1329 = vrot.lane.b32.xlu0 %v1227, 108
  %v1330 = vpop.permute.xlu0 %1329
  %1331 = vrot.lane.b32.xlu0 %v1228, 108
  %v1332 = vpop.permute.xlu0 %1331
  %1333 = vrot.lane.b32.xlu0 %v1229, 108
  %v1334 = vpop.permute.xlu0 %1333
  %vm1335 = vcmask 883712
  %v1336 = vsel %vm1335, %v1304, %v1306
  %v1337 = vsel %vm1335, %v1308, %v1310
  %v1338 = vsel %vm1335, %v1312, %v1314
  %v1339 = vsel %vm1335, %v1316, %v1318
  %v1340 = vsel %vm1335, %v1320, %v1322
  %v1341 = vsel %vm1335, %v1324, %v1326
  %v1342 = vsel %vm1335, %v1328, %v1330
  %v1343 = vsel %vm1335, %v1332, %v1334
  %v1352 = vmax.f32 %v1295, %v1336
  %v1353 = vmax.f32 %v1296, %v1337
  %v1354 = vmax.f32 %v1297, %v1338
  %v1355 = vmax.f32 %v1298, %v1339
  %v1356 = vmax.f32 %v1299, %v1340
  %v1357 = vmax.f32 %v1300, %v1341
  %v1358 = vmax.f32 %v1301, %v1342
  %v1359 = vmax.f32 %v1302, %v1343
  %1360 = vrot.lane.b32.xlu0 %v1214, 98
  %v1361 = vpop.permute.xlu0 %1360
  %1362 = vrot.lane.b32.xlu0 %v1215, 98
  %v1363 = vpop.permute.xlu0 %1362
  %1364 = vrot.lane.b32.xlu0 %v1216, 98
  %v1365 = vpop.permute.xlu0 %1364
  %1366 = vrot.lane.b32.xlu0 %v1217, 98
  %v1367 = vpop.permute.xlu0 %1366
  %1368 = vrot.lane.b32.xlu0 %v1218, 98
  %v1369 = vpop.permute.xlu0 %1368
  %1370 = vrot.lane.b32.xlu0 %v1219, 98
  %v1371 = vpop.permute.xlu0 %1370
  %1372 = vrot.lane.b32.xlu0 %v1220, 98
  %v1373 = vpop.permute.xlu0 %1372
  %1374 = vrot.lane.b32.xlu0 %v1221, 98
  %v1375 = vpop.permute.xlu0 %1374
  %1376 = vrot.lane.b32.xlu0 %v1222, 98
  %v1377 = vpop.permute.xlu0 %1376
  %1378 = vrot.lane.b32.xlu0 %v1223, 98
  %v1379 = vpop.permute.xlu0 %1378
  %1380 = vrot.lane.b32.xlu0 %v1224, 98
  %v1381 = vpop.permute.xlu0 %1380
  %1382 = vrot.lane.b32.xlu0 %v1225, 98
  %v1383 = vpop.permute.xlu0 %1382
  %1384 = vrot.lane.b32.xlu0 %v1226, 98
  %v1385 = vpop.permute.xlu0 %1384
  %1386 = vrot.lane.b32.xlu0 %v1227, 98
  %v1387 = vpop.permute.xlu0 %1386
  %1388 = vrot.lane.b32.xlu0 %v1228, 98
  %v1389 = vpop.permute.xlu0 %1388
  %1390 = vrot.lane.b32.xlu0 %v1229, 98
  %v1391 = vpop.permute.xlu0 %1390
  %vm1392 = vcmask 801792
  %v1393 = vsel %vm1392, %v1361, %v1363
  %v1394 = vsel %vm1392, %v1365, %v1367
  %v1395 = vsel %vm1392, %v1369, %v1371
  %v1396 = vsel %vm1392, %v1373, %v1375
  %v1397 = vsel %vm1392, %v1377, %v1379
  %v1398 = vsel %vm1392, %v1381, %v1383
  %v1399 = vsel %vm1392, %v1385, %v1387
  %v1400 = vsel %vm1392, %v1389, %v1391
  %v1409 = vmax.f32 %v1352, %v1393
  %v1410 = vmax.f32 %v1353, %v1394
  %v1411 = vmax.f32 %v1354, %v1395
  %v1412 = vmax.f32 %v1355, %v1396
  %v1413 = vmax.f32 %v1356, %v1397
  %v1414 = vmax.f32 %v1357, %v1398
  %v1415 = vmax.f32 %v1358, %v1399
  %v1416 = vmax.f32 %v1359, %v1400
  %1417 = vrot.lane.b32.xlu0 %v1214, 88
  %v1418 = vpop.permute.xlu0 %1417
  %1419 = vrot.lane.b32.xlu0 %v1215, 88
  %v1420 = vpop.permute.xlu0 %1419
  %1421 = vrot.lane.b32.xlu0 %v1216, 88
  %v1422 = vpop.permute.xlu0 %1421
  %1423 = vrot.lane.b32.xlu0 %v1217, 88
  %v1424 = vpop.permute.xlu0 %1423
  %1425 = vrot.lane.b32.xlu0 %v1218, 88
  %v1426 = vpop.permute.xlu0 %1425
  %1427 = vrot.lane.b32.xlu0 %v1219, 88
  %v1428 = vpop.permute.xlu0 %1427
  %1429 = vrot.lane.b32.xlu0 %v1220, 88
  %v1430 = vpop.permute.xlu0 %1429
  %1431 = vrot.lane.b32.xlu0 %v1221, 88
  %v1432 = vpop.permute.xlu0 %1431
  %1433 = vrot.lane.b32.xlu0 %v1222, 88
  %v1434 = vpop.permute.xlu0 %1433
  %1435 = vrot.lane.b32.xlu0 %v1223, 88
  %v1436 = vpop.permute.xlu0 %1435
  %1437 = vrot.lane.b32.xlu0 %v1224, 88
  %v1438 = vpop.permute.xlu0 %1437
  %1439 = vrot.lane.b32.xlu0 %v1225, 88
  %v1440 = vpop.permute.xlu0 %1439
  %1441 = vrot.lane.b32.xlu0 %v1226, 88
  %v1442 = vpop.permute.xlu0 %1441
  %1443 = vrot.lane.b32.xlu0 %v1227, 88
  %v1444 = vpop.permute.xlu0 %1443
  %1445 = vrot.lane.b32.xlu0 %v1228, 88
  %v1446 = vpop.permute.xlu0 %1445
  %1447 = vrot.lane.b32.xlu0 %v1229, 88
  %v1448 = vpop.permute.xlu0 %1447
  %vm1449 = vcmask 719872
  %v1450 = vsel %vm1449, %v1418, %v1420
  %v1451 = vsel %vm1449, %v1422, %v1424
  %v1452 = vsel %vm1449, %v1426, %v1428
  %v1453 = vsel %vm1449, %v1430, %v1432
  %v1454 = vsel %vm1449, %v1434, %v1436
  %v1455 = vsel %vm1449, %v1438, %v1440
  %v1456 = vsel %vm1449, %v1442, %v1444
  %v1457 = vsel %vm1449, %v1446, %v1448
  %v1466 = vmax.f32 %v1409, %v1450
  %v1467 = vmax.f32 %v1410, %v1451
  %v1468 = vmax.f32 %v1411, %v1452
  %v1469 = vmax.f32 %v1412, %v1453
  %v1470 = vmax.f32 %v1413, %v1454
  %v1471 = vmax.f32 %v1414, %v1455
  %v1472 = vmax.f32 %v1415, %v1456
  %v1473 = vmax.f32 %v1416, %v1457
  %v1474 = vmax.f32 %v1466, %v1468
  %v1475 = vmax.f32 %v1467, %v1469
  %v1476 = vmax.f32 %v1470, %v1472
  %v1477 = vmax.f32 %v1471, %v1473
  %vm1482 = vcmask 1046528
  %v1483 = vrot.slane %v1474, 1
  %v1484 = vrot.slane %v1475, 1
  %v1485 = vsel %vm1482, %v1483, %v1484
  %v1486 = vrot.slane %v1476, 1
  %v1487 = vrot.slane %v1477, 1
  %v1488 = vsel %vm1482, %v1486, %v1487
  %v1493 = vmax.f32 %v1474, %v1485
  %v1494 = vmax.f32 %v1475, %v1484
  %v1495 = vmax.f32 %v1476, %v1488
  %v1496 = vmax.f32 %v1477, %v1487
  %vm1497 = vcmask 1045504
  %v1498 = vrot.slane %v1474, 2
  %v1499 = vrot.slane %v1475, 2
  %v1500 = vsel %vm1497, %v1498, %v1499
  %v1501 = vrot.slane %v1476, 2
  %v1502 = vrot.slane %v1477, 2
  %v1503 = vsel %vm1497, %v1501, %v1502
  %v1508 = vmax.f32 %v1493, %v1500
  %v1509 = vmax.f32 %v1494, %v1499
  %v1510 = vmax.f32 %v1495, %v1503
  %v1511 = vmax.f32 %v1496, %v1502
  %vm1512 = vcmask 1044480
  %v1513 = vrot.slane %v1474, 3
  %v1514 = vrot.slane %v1475, 3
  %v1515 = vsel %vm1512, %v1513, %v1514
  %v1516 = vrot.slane %v1476, 3
  %v1517 = vrot.slane %v1477, 3
  %v1518 = vsel %vm1512, %v1516, %v1517
  %v1523 = vmax.f32 %v1508, %v1515
  %v1524 = vmax.f32 %v1509, %v1514
  %v1525 = vmax.f32 %v1510, %v1518
  %v1526 = vmax.f32 %v1511, %v1517
  %vm1527 = vcmask 1043456
  %v1528 = vrot.slane %v1474, 4
  %v1529 = vrot.slane %v1475, 4
  %v1530 = vsel %vm1527, %v1528, %v1529
  %v1531 = vrot.slane %v1476, 4
  %v1532 = vrot.slane %v1477, 4
  %v1533 = vsel %vm1527, %v1531, %v1532
  %v1538 = vmax.f32 %v1523, %v1530
  %v1539 = vmax.f32 %v1524, %v1529
  %v1540 = vmax.f32 %v1525, %v1533
  %v1541 = vmax.f32 %v1526, %v1532
  %vm1542 = vcmp.ge.f32.partialorder %v1538, 0.0
  %vm1543 = vcmp.ge.f32.partialorder %v1539, 0.0
  %vm1544 = vcmp.ge.f32.partialorder %v1540, 0.0
  %vm1545 = vcmp.ge.f32.partialorder %v1541, 0.0
  %v1546 = vmul.f32 %v1538, 0.2
  %v1547 = vmul.f32 %v1539, 0.2
  %v1548 = vmul.f32 %v1540, 0.2
  %v1549 = vmul.f32 %v1541, 0.2
  %v1550 = vsel %vm1542, %v1538, %v1546
  %v1551 = vsel %vm1543, %v1539, %v1547
  %v1552 = vsel %vm1544, %v1540, %v1548
  %v1553 = vsel %vm1545, %v1541, %v1549
  %v1554 = vpack.c.bf16 %v1551, %v1550
  %v1555 = vpack.c.bf16 %v1553, %v1552
  %v1558 = vunpack.c.l.b16 %v1554
  %v1559 = vunpack.c.h.b16 %v1554
  %v1560 = vunpack.c.l.b16 %v1555
  %v1561 = vunpack.c.h.b16 %v1555
  %v1562 = vpack.c.b16 %v1558, %v1558
  %v1563 = vpack.c.b16 %v1559, %v1559
  %v1564 = vpack.c.b16 %v1560, %v1560
  %v1565 = vpack.c.b16 %v1561, %v1561
  %vm1570 = vcmask 977920
  %1571 = vst.msk [vmem:[%s2] sm:$0xf] %vm1570, %v1562
  %vm1572 = vcmask 975872
  %1573 = vst.msk [vmem:[%s2 + $0x4] sm:$0x3] %vm1572, %v1563
  %1574 = vst.msk [vmem:[%s2 + $0x8] sm:$0xf] %vm1570, %v1564
  %1575 = vst.msk [vmem:[%s2 + $0xc] sm:$0x3] %vm1572, %v1565
  // Predicated region
  $region10: #{penne_forward.2} parent=0 // pred_check
    _
  $region11: #{penne_forward.2} parent=0 // pred_check_branch
    %1577 = sbr.rel (0) target = $region13
  $region12: #{penne_forward.2} parent=0 // pred_region
    _
  $region13: #{penne_forward.2} parent=0 // pred_fallthru
    _
  // Predicated region
  $region14: #{penne_forward.2} parent=0 // pred_check
    _
  $region15: #{penne_forward.2} parent=0 // pred_check_branch
    %1579 = sbr.rel (0) target = $region17
  $region16: #{penne_forward.2} parent=0 // pred_region
    _
  $region17: #{penne_forward.2} parent=0 // pred_fallthru
    _

// kernel: penne_forward.3
$region0: #{penne_forward.3}
  #allocation0 [shape = 'u32[]', space=smem, size = 0x4, offset = 0x4, fixed_abs, tag = 'smem constant byte address 0x4 - core index']
  #allocation1 [shape = 'u32[144,128]{1,0:T(1,128)}', space=vmem, size = 0x12000, scoped, tag = 'internal scratch']
  %s0 = inlined_call_operand.vmem [shape: bf16[2,1440], index: 0, kind: input, shape index: {}]
  %s1 = inlined_call_operand.vmem [shape: bf16[1440,720], index: 1, kind: input, shape index: {}]
  %s2 = inlined_call_operand.vmem [shape: f32[1,720], index: 2, kind: input, shape index: {}]
  %s3 = inlined_call_operand.vmem [shape: bf16[720,360], index: 3, kind: input, shape index: {}]
  %s4 = inlined_call_operand.vmem [shape: f32[1,360], index: 4, kind: input, shape index: {}]
  %s5 = inlined_call_operand.vmem [shape: bf16[360,180], index: 5, kind: input, shape index: {}]
  %s6 = inlined_call_operand.vmem [shape: bf16[180,90], index: 6, kind: input, shape index: {}]
  %s7 = inlined_call_operand.vmem [shape: bf16[90,45], index: 7, kind: input, shape index: {}]
  %s8 = inlined_call_operand.vmem [shape: bf16[45,4], index: 8, kind: input, shape index: {}]
  %s9 = inlined_call_operand.hbm [shape: f32[2,4], index: 9, kind: output, shape index: {}]
  %s10 = sld [smem:[#allocation0]]
  $region46: #{penne_forward.3} parent=0
    _
  %s12 = ssub.s32 1, %s10
  %s13 = scalar_select 0, %s12, %s10
  $region1: #{penne_forward.3} parent=0
    #allocation2 [shape = 'u8[1024]{0}', space=vmem, size = 0x400, scoped, tag = 'output window, operand 0, single buffered']
    #allocation3 [shape = 's32[1]{0}', space=sflag, size = 0x4, scoped, tag = 'scoped memory for penne_forward.3']
    %14 = vsyncpa [#allocation3], 0
    // Predicated region
    $region2: #{penne_forward.3} parent=1 // pred_check
      _
    $region3: #{penne_forward.3} parent=1 // pred_check_branch
      %16 = sbr.rel (0) target = $region5
    $region4: #{penne_forward.3} parent=1 // pred_region
      _
    $region5: #{penne_forward.3} parent=1 // pred_fallthru
      _
    // Predicated region
    $region6: #{penne_forward.3} parent=1 // pred_check
      _
    $region7: #{penne_forward.3} parent=1 // pred_check_branch
      %18 = sbr.rel (0) target = $region9
    $region8: #{penne_forward.3} parent=1 // pred_region
      _
    $region9: #{penne_forward.3} parent=1 // pred_fallthru
      _
    // Predicated region
    $region10: #{penne_forward.3} parent=1 // pred_check
      _
    $region11: #{penne_forward.3} parent=1 // pred_check_branch
      %20 = sbr.rel (0) target = $region13
    $region12: #{penne_forward.3} parent=1 // pred_region
      _
    $region13: #{penne_forward.3} parent=1 // pred_fallthru
      _
    // Predicated region
    $region14: #{penne_forward.3} parent=1 // pred_check
      _
    $region15: #{penne_forward.3} parent=1 // pred_check_branch
      %22 = sbr.rel (0) target = $region17
    $region16: #{penne_forward.3} parent=1 // pred_region
      _
    $region17: #{penne_forward.3} parent=1 // pred_fallthru
      _
    // Predicated region
    $region18: #{penne_forward.3} parent=1 // pred_check
      _
    $region19: #{penne_forward.3} parent=1 // pred_check_branch
      %24 = sbr.rel (0) target = $region21
    $region20: #{penne_forward.3} parent=1 // pred_region
      _
    $region21: #{penne_forward.3} parent=1 // pred_fallthru
      _
    // Predicated region
    $region22: #{penne_forward.3} parent=1 // pred_check
      _
    $region23: #{penne_forward.3} parent=1 // pred_check_branch
      %26 = sbr.rel (0) target = $region25
    $region24: #{penne_forward.3} parent=1 // pred_region
      _
    $region25: #{penne_forward.3} parent=1 // pred_fallthru
      _
    // Predicated region
    $region26: #{penne_forward.3} parent=1 // pred_check
      _
    $region27: #{penne_forward.3} parent=1 // pred_check_branch
      %28 = sbr.rel (0) target = $region29
    $region28: #{penne_forward.3} parent=1 // pred_region
      _
    $region29: #{penne_forward.3} parent=1 // pred_fallthru
      _
    // Predicated region
    $region30: #{penne_forward.3} parent=1 // pred_check
      _
    $region31: #{penne_forward.3} parent=1 // pred_check_branch
      %30 = sbr.rel (0) target = $region33
    $region32: #{penne_forward.3} parent=1 // pred_region
      _
    $region33: #{penne_forward.3} parent=1 // pred_fallthru
      _
    // Predicated region
    $region34: #{penne_forward.3} parent=1 // pred_check
      _
    $region35: #{penne_forward.3} parent=1 // pred_check_branch
      %32 = sbr.rel (0) target = $region37
    $region36: #{penne_forward.3} parent=1 // pred_region
      _
    $region37: #{penne_forward.3} parent=1 // pred_fallthru
      _
    %v34 = vld [vmem:[%s0] sm:$0xff]
    %v35 = vld [vmem:[%s0 + $0x8] sm:$0xf]
    %v36 = vld [vmem:[%s1] sm:$0xff]
    %v37 = vld [vmem:[%s1 + $0x8] sm:$0xff]
    %v38 = vld [vmem:[%s1 + $0x10] sm:$0xff]
    %v39 = vld [vmem:[%s1 + $0x18] sm:$0xff]
    %v40 = vld [vmem:[%s1 + $0x20] sm:$0xff]
    %v41 = vld [vmem:[%s1 + $0x28] sm:$0xff]
    %v42 = vld [vmem:[%s1 + $0x30] sm:$0xff]
    %v43 = vld [vmem:[%s1 + $0x38] sm:$0xff]
    %v44 = vld [vmem:[%s1 + $0x40] sm:$0xff]
    %v45 = vld [vmem:[%s1 + $0x48] sm:$0xff]
    %v46 = vld [vmem:[%s1 + $0x50] sm:$0xff]
    %v47 = vld [vmem:[%s1 + $0x58] sm:$0xff]
    %v48 = vld [vmem:[%s1 + $0x60] sm:$0xff]
    %v49 = vld [vmem:[%s1 + $0x68] sm:$0xff]
    %v50 = vld [vmem:[%s1 + $0x70] sm:$0xff]
    %v51 = vld [vmem:[%s1 + $0x78] sm:$0xff]
    %v52 = vld [vmem:[%s1 + $0x80] sm:$0xff]
    %v53 = vld [vmem:[%s1 + $0x88] sm:$0xff]
    %v54 = vld [vmem:[%s1 + $0x90] sm:$0xff]
    %v55 = vld [vmem:[%s1 + $0x98] sm:$0xff]
    %v56 = vld [vmem:[%s1 + $0xa0] sm:$0xff]
    %v57 = vld [vmem:[%s1 + $0xa8] sm:$0xff]
    %v58 = vld [vmem:[%s1 + $0xb0] sm:$0xff]
    %v59 = vld [vmem:[%s1 + $0xb8] sm:$0xff]
    %v60 = vld [vmem:[%s1 + $0xc0] sm:$0xff]
    %v61 = vld [vmem:[%s1 + $0xc8] sm:$0xff]
    %v62 = vld [vmem:[%s1 + $0xd0] sm:$0xff]
    %v63 = vld [vmem:[%s1 + $0xd8] sm:$0xff]
    %v64 = vld [vmem:[%s1 + $0xe0] sm:$0xff]
    %v65 = vld [vmem:[%s1 + $0xe8] sm:$0xff]
    %v66 = vld [vmem:[%s1 + $0xf0] sm:$0xff]
    %v67 = vld [vmem:[%s1 + $0xf8] sm:$0xff]
    %v68 = vld [vmem:[%s1 + $0x100] sm:$0xff]
    %v69 = vld [vmem:[%s1 + $0x108] sm:$0xff]
    %v70 = vld [vmem:[%s1 + $0x110] sm:$0xff]
    %v71 = vld [vmem:[%s1 + $0x118] sm:$0xff]
    %v72 = vld [vmem:[%s1 + $0x120] sm:$0xff]
    %v73 = vld [vmem:[%s1 + $0x128] sm:$0xff]
    %v74 = vld [vmem:[%s1 + $0x130] sm:$0xff]
    %v75 = vld [vmem:[%s1 + $0x138] sm:$0xff]
    %v76 = vld [vmem:[%s1 + $0x140] sm:$0xff]
    %v77 = vld [vmem:[%s1 + $0x148] sm:$0xff]
    %v78 = vld [vmem:[%s1 + $0x150] sm:$0xff]
    %v79 = vld [vmem:[%s1 + $0x158] sm:$0xff]
    %v80 = vld [vmem:[%s1 + $0x160] sm:$0xff]
    %v81 = vld [vmem:[%s1 + $0x168] sm:$0xff]
    %v82 = vld [vmem:[%s1 + $0x170] sm:$0xff]
    %v83 = vld [vmem:[%s1 + $0x178] sm:$0xff]
    %v84 = vld [vmem:[%s1 + $0x180] sm:$0xff]
    %v85 = vld [vmem:[%s1 + $0x188] sm:$0xff]
    %v86 = vld [vmem:[%s1 + $0x190] sm:$0xff]
    %v87 = vld [vmem:[%s1 + $0x198] sm:$0xff]
    %v88 = vld [vmem:[%s1 + $0x1a0] sm:$0xff]
    %v89 = vld [vmem:[%s1 + $0x1a8] sm:$0xff]
    %v90 = vld [vmem:[%s1 + $0x1b0] sm:$0xff]
    %v91 = vld [vmem:[%s1 + $0x1b8] sm:$0xff]
    %v92 = vld [vmem:[%s1 + $0x1c0] sm:$0xff]
    %v93 = vld [vmem:[%s1 + $0x1c8] sm:$0xff]
    %v94 = vld [vmem:[%s1 + $0x1d0] sm:$0xff]
    %v95 = vld [vmem:[%s1 + $0x1d8] sm:$0xff]
    %v96 = vld [vmem:[%s1 + $0x1e0] sm:$0xff]
    %v97 = vld [vmem:[%s1 + $0x1e8] sm:$0xff]
    %v98 = vld [vmem:[%s1 + $0x1f0] sm:$0xff]
    %v99 = vld [vmem:[%s1 + $0x1f8] sm:$0xff]
    %v100 = vld [vmem:[%s1 + $0x200] sm:$0xff]
    %v101 = vld [vmem:[%s1 + $0x208] sm:$0xff]
    %v102 = vld [vmem:[%s1 + $0x210] sm:$0xff]
    %v103 = vld [vmem:[%s1 + $0x218] sm:$0xff]
    %v104 = vld [vmem:[%s1 + $0x220] sm:$0xff]
    %v105 = vld [vmem:[%s1 + $0x228] sm:$0xff]
    %v106 = vld [vmem:[%s1 + $0x230] sm:$0xff]
    %v107 = vld [vmem:[%s1 + $0x238] sm:$0xff]
    %v108 = vld [vmem:[%s1 + $0x240] sm:$0xff]
    %v109 = vld [vmem:[%s1 + $0x248] sm:$0xff]
    %v110 = vld [vmem:[%s1 + $0x250] sm:$0xff]
    %v111 = vld [vmem:[%s1 + $0x258] sm:$0xff]
    %v112 = vld [vmem:[%s1 + $0x260] sm:$0xff]
    %v113 = vld [vmem:[%s1 + $0x268] sm:$0xff]
    %v114 = vld [vmem:[%s1 + $0x270] sm:$0xff]
    %v115 = vld [vmem:[%s1 + $0x278] sm:$0xff]
    %v116 = vld [vmem:[%s1 + $0x280] sm:$0xff]
    %v117 = vld [vmem:[%s1 + $0x288] sm:$0xff]
    %v118 = vld [vmem:[%s1 + $0x290] sm:$0xff]
    %v119 = vld [vmem:[%s1 + $0x298] sm:$0xff]
    %v120 = vld [vmem:[%s1 + $0x2a0] sm:$0xff]
    %v121 = vld [vmem:[%s1 + $0x2a8] sm:$0xff]
    %v122 = vld [vmem:[%s1 + $0x2b0] sm:$0xff]
    %v123 = vld [vmem:[%s1 + $0x2b8] sm:$0xff]
    %v124 = vld [vmem:[%s1 + $0x2c0] sm:$0xff]
    %v125 = vld [vmem:[%s1 + $0x2c8] sm:$0xff]
    %v126 = vld [vmem:[%s1 + $0x2d0] sm:$0xff]
    %v127 = vld [vmem:[%s1 + $0x2d8] sm:$0xff]
    %v128 = vld [vmem:[%s1 + $0x2e0] sm:$0xff]
    %v129 = vld [vmem:[%s1 + $0x2e8] sm:$0xff]
    %v130 = vld [vmem:[%s1 + $0x2f0] sm:$0xff]
    %v131 = vld [vmem:[%s1 + $0x2f8] sm:$0xff]
    %v132 = vld [vmem:[%s1 + $0x300] sm:$0xff]
    %v133 = vld [vmem:[%s1 + $0x308] sm:$0xff]
    %v134 = vld [vmem:[%s1 + $0x310] sm:$0xff]
    %v135 = vld [vmem:[%s1 + $0x318] sm:$0xff]
    %v136 = vld [vmem:[%s1 + $0x320] sm:$0xff]
    %v137 = vld [vmem:[%s1 + $0x328] sm:$0xff]
    %v138 = vld [vmem:[%s1 + $0x330] sm:$0xff]
    %v139 = vld [vmem:[%s1 + $0x338] sm:$0xff]
    %v140 = vld [vmem:[%s1 + $0x340] sm:$0xff]
    %v141 = vld [vmem:[%s1 + $0x348] sm:$0xff]
    %v142 = vld [vmem:[%s1 + $0x350] sm:$0xff]
    %v143 = vld [vmem:[%s1 + $0x358] sm:$0xff]
    %v144 = vld [vmem:[%s1 + $0x360] sm:$0xff]
    %v145 = vld [vmem:[%s1 + $0x368] sm:$0xff]
    %v146 = vld [vmem:[%s1 + $0x370] sm:$0xff]
    %v147 = vld [vmem:[%s1 + $0x378] sm:$0xff]
    %v148 = vld [vmem:[%s1 + $0x380] sm:$0xff]
    %v149 = vld [vmem:[%s1 + $0x388] sm:$0xff]
    %v150 = vld [vmem:[%s1 + $0x390] sm:$0xff]
    %v151 = vld [vmem:[%s1 + $0x398] sm:$0xff]
    %v152 = vld [vmem:[%s1 + $0x3a0] sm:$0xff]
    %v153 = vld [vmem:[%s1 + $0x3a8] sm:$0xff]
    %v154 = vld [vmem:[%s1 + $0x3b0] sm:$0xff]
    %v155 = vld [vmem:[%s1 + $0x3b8] sm:$0xff]
    %v156 = vld [vmem:[%s1 + $0x3c0] sm:$0xff]
    %v157 = vld [vmem:[%s1 + $0x3c8] sm:$0xff]
    %v158 = vld [vmem:[%s1 + $0x3d0] sm:$0xff]
    %v159 = vld [vmem:[%s1 + $0x3d8] sm:$0xff]
    %v160 = vld [vmem:[%s1 + $0x3e0] sm:$0xff]
    %v161 = vld [vmem:[%s1 + $0x3e8] sm:$0xff]
    %v162 = vld [vmem:[%s1 + $0x3f0] sm:$0xff]
    %v163 = vld [vmem:[%s1 + $0x3f8] sm:$0xff]
    %v164 = vld [vmem:[%s1 + $0x400] sm:$0xff]
    %v165 = vld [vmem:[%s1 + $0x408] sm:$0xff]
    %v166 = vld [vmem:[%s1 + $0x410] sm:$0xff]
    %v167 = vld [vmem:[%s1 + $0x418] sm:$0xff]
    %v168 = vld [vmem:[%s1 + $0x420] sm:$0xff]
    %v169 = vld [vmem:[%s1 + $0x428] sm:$0xff]
    %v170 = vld [vmem:[%s1 + $0x430] sm:$0xff]
    %v171 = vld [vmem:[%s1 + $0x438] sm:$0xff]
    %v172 = vld [vmem:[%s1 + $0x440] sm:$0xff]
    %v173 = vld [vmem:[%s1 + $0x448] sm:$0xff]
    %v174 = vld [vmem:[%s1 + $0x450] sm:$0xff]
    %v175 = vld [vmem:[%s1 + $0x458] sm:$0xff]
    %v176 = vld [vmem:[%s1 + $0x460] sm:$0xff]
    %v177 = vld [vmem:[%s1 + $0x468] sm:$0xff]
    %v178 = vld [vmem:[%s1 + $0x470] sm:$0xff]
    %v179 = vld [vmem:[%s1 + $0x478] sm:$0xff]
    %v180 = vld [vmem:[%s1 + $0x480] sm:$0xff]
    %v181 = vld [vmem:[%s1 + $0x488] sm:$0xff]
    %v182 = vld [vmem:[%s1 + $0x490] sm:$0xff]
    %v183 = vld [vmem:[%s1 + $0x498] sm:$0xff]
    %v184 = vld [vmem:[%s1 + $0x4a0] sm:$0xff]
    %v185 = vld [vmem:[%s1 + $0x4a8] sm:$0xff]
    %v186 = vld [vmem:[%s1 + $0x4b0] sm:$0xff]
    %v187 = vld [vmem:[%s1 + $0x4b8] sm:$0xff]
    %v188 = vld [vmem:[%s1 + $0x4c0] sm:$0xff]
    %v189 = vld [vmem:[%s1 + $0x4c8] sm:$0xff]
    %v190 = vld [vmem:[%s1 + $0x4d0] sm:$0xff]
    %v191 = vld [vmem:[%s1 + $0x4d8] sm:$0xff]
    %v192 = vld [vmem:[%s1 + $0x4e0] sm:$0xff]
    %v193 = vld [vmem:[%s1 + $0x4e8] sm:$0xff]
    %v194 = vld [vmem:[%s1 + $0x4f0] sm:$0xff]
    %v195 = vld [vmem:[%s1 + $0x4f8] sm:$0xff]
    %v196 = vld [vmem:[%s1 + $0x500] sm:$0xff]
    %v197 = vld [vmem:[%s1 + $0x508] sm:$0xff]
    %v198 = vld [vmem:[%s1 + $0x510] sm:$0xff]
    %v199 = vld [vmem:[%s1 + $0x518] sm:$0xff]
    %v200 = vld [vmem:[%s1 + $0x520] sm:$0xff]
    %v201 = vld [vmem:[%s1 + $0x528] sm:$0xff]
    %v202 = vld [vmem:[%s1 + $0x530] sm:$0xff]
    %v203 = vld [vmem:[%s1 + $0x538] sm:$0xff]
    %v204 = vld [vmem:[%s1 + $0x540] sm:$0xff]
    %v205 = vld [vmem:[%s1 + $0x548] sm:$0xff]
    %v206 = vld [vmem:[%s1 + $0x550] sm:$0xff]
    %v207 = vld [vmem:[%s1 + $0x558] sm:$0xff]
    %v208 = vld [vmem:[%s1 + $0x560] sm:$0xff]
    %v209 = vld [vmem:[%s1 + $0x568] sm:$0xff]
    %v210 = vld [vmem:[%s1 + $0x570] sm:$0xff]
    %v211 = vld [vmem:[%s1 + $0x578] sm:$0xff]
    %v212 = vld [vmem:[%s1 + $0x580] sm:$0xff]
    %v213 = vld [vmem:[%s1 + $0x588] sm:$0xff]
    %v214 = vld [vmem:[%s1 + $0x590] sm:$0xff]
    %v215 = vld [vmem:[%s1 + $0x598] sm:$0xff]
    %v216 = vld [vmem:[%s1 + $0x5a0] sm:$0xff]
    %v217 = vld [vmem:[%s1 + $0x5a8] sm:$0xff]
    %v218 = vld [vmem:[%s1 + $0x5b0] sm:$0xff]
    %v219 = vld [vmem:[%s1 + $0x5b8] sm:$0xff]
    %v220 = vld [vmem:[%s1 + $0x5c0] sm:$0xff]
    %v221 = vld [vmem:[%s1 + $0x5c8] sm:$0xff]
    %v222 = vld [vmem:[%s1 + $0x5d0] sm:$0xff]
    %v223 = vld [vmem:[%s1 + $0x5d8] sm:$0xff]
    %v224 = vld [vmem:[%s1 + $0x5e0] sm:$0xff]
    %v225 = vld [vmem:[%s1 + $0x5e8] sm:$0xff]
    %v226 = vld [vmem:[%s1 + $0x5f0] sm:$0xff]
    %v227 = vld [vmem:[%s1 + $0x5f8] sm:$0xff]
    %v228 = vld [vmem:[%s1 + $0x600] sm:$0xff]
    %v229 = vld [vmem:[%s1 + $0x608] sm:$0xff]
    %v230 = vld [vmem:[%s1 + $0x610] sm:$0xff]
    %v231 = vld [vmem:[%s1 + $0x618] sm:$0xff]
    %v232 = vld [vmem:[%s1 + $0x620] sm:$0xff]
    %v233 = vld [vmem:[%s1 + $0x628] sm:$0xff]
    %v234 = vld [vmem:[%s1 + $0x630] sm:$0xff]
    %v235 = vld [vmem:[%s1 + $0x638] sm:$0xff]
    %v236 = vld [vmem:[%s1 + $0x640] sm:$0xff]
    %v237 = vld [vmem:[%s1 + $0x648] sm:$0xff]
    %v238 = vld [vmem:[%s1 + $0x650] sm:$0xff]
    %v239 = vld [vmem:[%s1 + $0x658] sm:$0xff]
    %v240 = vld [vmem:[%s1 + $0x660] sm:$0xff]
    %v241 = vld [vmem:[%s1 + $0x668] sm:$0xff]
    %v242 = vld [vmem:[%s1 + $0x670] sm:$0xff]
    %v243 = vld [vmem:[%s1 + $0x678] sm:$0xff]
    %v244 = vld [vmem:[%s1 + $0x680] sm:$0xff]
    %v245 = vld [vmem:[%s1 + $0x688] sm:$0xff]
    %v246 = vld [vmem:[%s1 + $0x690] sm:$0xff]
    %v247 = vld [vmem:[%s1 + $0x698] sm:$0xff]
    %v248 = vld [vmem:[%s1 + $0x6a0] sm:$0xff]
    %v249 = vld [vmem:[%s1 + $0x6a8] sm:$0xff]
    %v250 = vld [vmem:[%s1 + $0x6b0] sm:$0xff]
    %v251 = vld [vmem:[%s1 + $0x6b8] sm:$0xff]
    %v252 = vld [vmem:[%s1 + $0x6c0] sm:$0xff]
    %v253 = vld [vmem:[%s1 + $0x6c8] sm:$0xff]
    %v254 = vld [vmem:[%s1 + $0x6d0] sm:$0xff]
    %v255 = vld [vmem:[%s1 + $0x6d8] sm:$0xff]
    %v256 = vld [vmem:[%s1 + $0x6e0] sm:$0xff]
    %v257 = vld [vmem:[%s1 + $0x6e8] sm:$0xff]
    %v258 = vld [vmem:[%s1 + $0x6f0] sm:$0xff]
    %v259 = vld [vmem:[%s1 + $0x6f8] sm:$0xff]
    %v260 = vld [vmem:[%s1 + $0x700] sm:$0xff]
    %v261 = vld [vmem:[%s1 + $0x708] sm:$0xff]
    %v262 = vld [vmem:[%s1 + $0x710] sm:$0xff]
    %v263 = vld [vmem:[%s1 + $0x718] sm:$0xff]
    %v264 = vld [vmem:[%s1 + $0x720] sm:$0xff]
    %v265 = vld [vmem:[%s1 + $0x728] sm:$0xff]
    %v266 = vld [vmem:[%s1 + $0x730] sm:$0xff]
    %v267 = vld [vmem:[%s1 + $0x738] sm:$0xff]
    %v268 = vld [vmem:[%s1 + $0x740] sm:$0xff]
    %v269 = vld [vmem:[%s1 + $0x748] sm:$0xff]
    %v270 = vld [vmem:[%s1 + $0x750] sm:$0xff]
    %v271 = vld [vmem:[%s1 + $0x758] sm:$0xff]
    %v272 = vld [vmem:[%s1 + $0x760] sm:$0xff]
    %v273 = vld [vmem:[%s1 + $0x768] sm:$0xff]
    %v274 = vld [vmem:[%s1 + $0x770] sm:$0xff]
    %v275 = vld [vmem:[%s1 + $0x778] sm:$0xff]
    %v276 = vld [vmem:[%s1 + $0x780] sm:$0xff]
    %v277 = vld [vmem:[%s1 + $0x788] sm:$0xff]
    %v278 = vld [vmem:[%s1 + $0x790] sm:$0xff]
    %v279 = vld [vmem:[%s1 + $0x798] sm:$0xff]
    %v280 = vld [vmem:[%s1 + $0x7a0] sm:$0xff]
    %v281 = vld [vmem:[%s1 + $0x7a8] sm:$0xff]
    %v282 = vld [vmem:[%s1 + $0x7b0] sm:$0xff]
    %v283 = vld [vmem:[%s1 + $0x7b8] sm:$0xff]
    %v284 = vld [vmem:[%s1 + $0x7c0] sm:$0xff]
    %v285 = vld [vmem:[%s1 + $0x7c8] sm:$0xff]
    %v286 = vld [vmem:[%s1 + $0x7d0] sm:$0xff]
    %v287 = vld [vmem:[%s1 + $0x7d8] sm:$0xff]
    %v288 = vld [vmem:[%s1 + $0x7e0] sm:$0xff]
    %v289 = vld [vmem:[%s1 + $0x7e8] sm:$0xff]
    %v290 = vld [vmem:[%s1 + $0x7f0] sm:$0xff]
    %v291 = vld [vmem:[%s1 + $0x7f8] sm:$0xff]
    %v292 = vld [vmem:[%s1 + $0x800] sm:$0xff]
    %v293 = vld [vmem:[%s1 + $0x808] sm:$0xff]
    %v294 = vld [vmem:[%s1 + $0x810] sm:$0xff]
    %v295 = vld [vmem:[%s1 + $0x818] sm:$0xff]
    %v296 = vld [vmem:[%s1 + $0x820] sm:$0xff]
    %v297 = vld [vmem:[%s1 + $0x828] sm:$0xff]
    %v298 = vld [vmem:[%s1 + $0x830] sm:$0xff]
    %v299 = vld [vmem:[%s1 + $0x838] sm:$0xff]
    %v300 = vld [vmem:[%s1 + $0x840] sm:$0xff]
    %v301 = vld [vmem:[%s1 + $0x848] sm:$0xff]
    %v302 = vld [vmem:[%s1 + $0x850] sm:$0xff]
    %v303 = vld [vmem:[%s1 + $0x858] sm:$0xff]
    %v304 = vld [vmem:[%s1 + $0x860] sm:$0xff]
    %v305 = vld [vmem:[%s1 + $0x868] sm:$0xff]
    %v306 = vld [vmem:[%s1 + $0x870] sm:$0xff]
    %v307 = vld [vmem:[%s1 + $0x878] sm:$0xff]
    %v308 = vld [vmem:[%s1 + $0x880] sm:$0xff]
    %v309 = vld [vmem:[%s1 + $0x888] sm:$0xff]
    %v310 = vld [vmem:[%s1 + $0x890] sm:$0xff]
    %v311 = vld [vmem:[%s1 + $0x898] sm:$0xff]
    %v312 = vld [vmem:[%s1 + $0x8a0] sm:$0xff]
    %v313 = vld [vmem:[%s1 + $0x8a8] sm:$0xff]
    %v314 = vld [vmem:[%s1 + $0x8b0] sm:$0xff]
    %v315 = vld [vmem:[%s1 + $0x8b8] sm:$0xff]
    %v316 = vld [vmem:[%s1 + $0x8c0] sm:$0xff]
    %v317 = vld [vmem:[%s1 + $0x8c8] sm:$0xff]
    %v318 = vld [vmem:[%s1 + $0x8d0] sm:$0xff]
    %v319 = vld [vmem:[%s1 + $0x8d8] sm:$0xff]
    %v320 = vld [vmem:[%s1 + $0x8e0] sm:$0xff]
    %v321 = vld [vmem:[%s1 + $0x8e8] sm:$0xff]
    %v322 = vld [vmem:[%s1 + $0x8f0] sm:$0xff]
    %v323 = vld [vmem:[%s1 + $0x8f8] sm:$0xff]
    %v324 = vld [vmem:[%s1 + $0x900] sm:$0xff]
    %v325 = vld [vmem:[%s1 + $0x908] sm:$0xff]
    %v326 = vld [vmem:[%s1 + $0x910] sm:$0xff]
    %v327 = vld [vmem:[%s1 + $0x918] sm:$0xff]
    %v328 = vld [vmem:[%s1 + $0x920] sm:$0xff]
    %v329 = vld [vmem:[%s1 + $0x928] sm:$0xff]
    %v330 = vld [vmem:[%s1 + $0x930] sm:$0xff]
    %v331 = vld [vmem:[%s1 + $0x938] sm:$0xff]
    %v332 = vld [vmem:[%s1 + $0x940] sm:$0xff]
    %v333 = vld [vmem:[%s1 + $0x948] sm:$0xff]
    %v334 = vld [vmem:[%s1 + $0x950] sm:$0xff]
    %v335 = vld [vmem:[%s1 + $0x958] sm:$0xff]
    %v336 = vld [vmem:[%s1 + $0x960] sm:$0xff]
    %v337 = vld [vmem:[%s1 + $0x968] sm:$0xff]
    %v338 = vld [vmem:[%s1 + $0x970] sm:$0xff]
    %v339 = vld [vmem:[%s1 + $0x978] sm:$0xff]
    %v340 = vld [vmem:[%s1 + $0x980] sm:$0xff]
    %v341 = vld [vmem:[%s1 + $0x988] sm:$0xff]
    %v342 = vld [vmem:[%s1 + $0x990] sm:$0xff]
    %v343 = vld [vmem:[%s1 + $0x998] sm:$0xff]
    %v344 = vld [vmem:[%s1 + $0x9a0] sm:$0xff]
    %v345 = vld [vmem:[%s1 + $0x9a8] sm:$0xff]
    %v346 = vld [vmem:[%s1 + $0x9b0] sm:$0xff]
    %v347 = vld [vmem:[%s1 + $0x9b8] sm:$0xff]
    %v348 = vld [vmem:[%s1 + $0x9c0] sm:$0xff]
    %v349 = vld [vmem:[%s1 + $0x9c8] sm:$0xff]
    %v350 = vld [vmem:[%s1 + $0x9d0] sm:$0xff]
    %v351 = vld [vmem:[%s1 + $0x9d8] sm:$0xff]
    %v352 = vld [vmem:[%s1 + $0x9e0] sm:$0xff]
    %v353 = vld [vmem:[%s1 + $0x9e8] sm:$0xff]
    %v354 = vld [vmem:[%s1 + $0x9f0] sm:$0xff]
    %v355 = vld [vmem:[%s1 + $0x9f8] sm:$0xff]
    %v356 = vld [vmem:[%s1 + $0xa00] sm:$0xff]
    %v357 = vld [vmem:[%s1 + $0xa08] sm:$0xff]
    %v358 = vld [vmem:[%s1 + $0xa10] sm:$0xff]
    %v359 = vld [vmem:[%s1 + $0xa18] sm:$0xff]
    %v360 = vld [vmem:[%s1 + $0xa20] sm:$0xff]
    %v361 = vld [vmem:[%s1 + $0xa28] sm:$0xff]
    %v362 = vld [vmem:[%s1 + $0xa30] sm:$0xff]
    %v363 = vld [vmem:[%s1 + $0xa38] sm:$0xff]
    %v364 = vld [vmem:[%s1 + $0xa40] sm:$0xff]
    %v365 = vld [vmem:[%s1 + $0xa48] sm:$0xff]
    %v366 = vld [vmem:[%s1 + $0xa50] sm:$0xff]
    %v367 = vld [vmem:[%s1 + $0xa58] sm:$0xff]
    %v368 = vld [vmem:[%s1 + $0xa60] sm:$0xff]
    %v369 = vld [vmem:[%s1 + $0xa68] sm:$0xff]
    %v370 = vld [vmem:[%s1 + $0xa70] sm:$0xff]
    %v371 = vld [vmem:[%s1 + $0xa78] sm:$0xff]
    %v372 = vld [vmem:[%s1 + $0xa80] sm:$0xff]
    %v373 = vld [vmem:[%s1 + $0xa88] sm:$0xff]
    %v374 = vld [vmem:[%s1 + $0xa90] sm:$0xff]
    %v375 = vld [vmem:[%s1 + $0xa98] sm:$0xff]
    %v376 = vld [vmem:[%s1 + $0xaa0] sm:$0xff]
    %v377 = vld [vmem:[%s1 + $0xaa8] sm:$0xff]
    %v378 = vld [vmem:[%s1 + $0xab0] sm:$0xff]
    %v379 = vld [vmem:[%s1 + $0xab8] sm:$0xff]
    %v380 = vld [vmem:[%s1 + $0xac0] sm:$0xff]
    %v381 = vld [vmem:[%s1 + $0xac8] sm:$0xff]
    %v382 = vld [vmem:[%s1 + $0xad0] sm:$0xff]
    %v383 = vld [vmem:[%s1 + $0xad8] sm:$0xff]
    %v384 = vld [vmem:[%s1 + $0xae0] sm:$0xff]
    %v385 = vld [vmem:[%s1 + $0xae8] sm:$0xff]
    %v386 = vld [vmem:[%s1 + $0xaf0] sm:$0xff]
    %v387 = vld [vmem:[%s1 + $0xaf8] sm:$0xff]
    %v388 = vld [vmem:[%s1 + $0xb00] sm:$0xff]
    %v389 = vld [vmem:[%s1 + $0xb08] sm:$0xff]
    %v390 = vld [vmem:[%s1 + $0xb10] sm:$0xff]
    %v391 = vld [vmem:[%s1 + $0xb18] sm:$0xff]
    %v392 = vld [vmem:[%s1 + $0xb20] sm:$0xff]
    %v393 = vld [vmem:[%s1 + $0xb28] sm:$0xff]
    %v394 = vld [vmem:[%s1 + $0xb30] sm:$0xff]
    %v395 = vld [vmem:[%s1 + $0xb38] sm:$0xff]
    %v396 = vld [vmem:[%s1 + $0xb40] sm:$0xff]
    %v397 = vld [vmem:[%s1 + $0xb48] sm:$0xff]
    %v398 = vld [vmem:[%s1 + $0xb50] sm:$0xff]
    %v399 = vld [vmem:[%s1 + $0xb58] sm:$0xff]
    %v400 = vld [vmem:[%s1 + $0xb60] sm:$0xff]
    %v401 = vld [vmem:[%s1 + $0xb68] sm:$0xff]
    %v402 = vld [vmem:[%s1 + $0xb70] sm:$0xff]
    %v403 = vld [vmem:[%s1 + $0xb78] sm:$0xff]
    %v404 = vld [vmem:[%s1 + $0xb80] sm:$0xff]
    %v405 = vld [vmem:[%s1 + $0xb88] sm:$0xff]
    %v406 = vld [vmem:[%s1 + $0xb90] sm:$0xff]
    %v407 = vld [vmem:[%s1 + $0xb98] sm:$0xff]
    %v408 = vld [vmem:[%s1 + $0xba0] sm:$0xff]
    %v409 = vld [vmem:[%s1 + $0xba8] sm:$0xff]
    %v410 = vld [vmem:[%s1 + $0xbb0] sm:$0xff]
    %v411 = vld [vmem:[%s1 + $0xbb8] sm:$0xff]
    %v412 = vld [vmem:[%s1 + $0xbc0] sm:$0xff]
    %v413 = vld [vmem:[%s1 + $0xbc8] sm:$0xff]
    %v414 = vld [vmem:[%s1 + $0xbd0] sm:$0xff]
    %v415 = vld [vmem:[%s1 + $0xbd8] sm:$0xff]
    %v416 = vld [vmem:[%s1 + $0xbe0] sm:$0xff]
    %v417 = vld [vmem:[%s1 + $0xbe8] sm:$0xff]
    %v418 = vld [vmem:[%s1 + $0xbf0] sm:$0xff]
    %v419 = vld [vmem:[%s1 + $0xbf8] sm:$0xff]
    %v420 = vld [vmem:[%s1 + $0xc00] sm:$0xff]
    %v421 = vld [vmem:[%s1 + $0xc08] sm:$0xff]
    %v422 = vld [vmem:[%s1 + $0xc10] sm:$0xff]
    %v423 = vld [vmem:[%s1 + $0xc18] sm:$0xff]
    %v424 = vld [vmem:[%s1 + $0xc20] sm:$0xff]
    %v425 = vld [vmem:[%s1 + $0xc28] sm:$0xff]
    %v426 = vld [vmem:[%s1 + $0xc30] sm:$0xff]
    %v427 = vld [vmem:[%s1 + $0xc38] sm:$0xff]
    %v428 = vld [vmem:[%s1 + $0xc40] sm:$0xff]
    %v429 = vld [vmem:[%s1 + $0xc48] sm:$0xff]
    %v430 = vld [vmem:[%s1 + $0xc50] sm:$0xff]
    %v431 = vld [vmem:[%s1 + $0xc58] sm:$0xff]
    %v432 = vld [vmem:[%s1 + $0xc60] sm:$0xff]
    %v433 = vld [vmem:[%s1 + $0xc68] sm:$0xff]
    %v434 = vld [vmem:[%s1 + $0xc70] sm:$0xff]
    %v435 = vld [vmem:[%s1 + $0xc78] sm:$0xff]
    %v436 = vld [vmem:[%s1 + $0xc80] sm:$0xff]
    %v437 = vld [vmem:[%s1 + $0xc88] sm:$0xff]
    %v438 = vld [vmem:[%s1 + $0xc90] sm:$0xff]
    %v439 = vld [vmem:[%s1 + $0xc98] sm:$0xff]
    %v440 = vld [vmem:[%s1 + $0xca0] sm:$0xff]
    %v441 = vld [vmem:[%s1 + $0xca8] sm:$0xff]
    %v442 = vld [vmem:[%s1 + $0xcb0] sm:$0xff]
    %v443 = vld [vmem:[%s1 + $0xcb8] sm:$0xff]
    %v444 = vld [vmem:[%s1 + $0xcc0] sm:$0xff]
    %v445 = vld [vmem:[%s1 + $0xcc8] sm:$0xff]
    %v446 = vld [vmem:[%s1 + $0xcd0] sm:$0xff]
    %v447 = vld [vmem:[%s1 + $0xcd8] sm:$0xff]
    %v448 = vld [vmem:[%s1 + $0xce0] sm:$0xff]
    %v449 = vld [vmem:[%s1 + $0xce8] sm:$0xff]
    %v450 = vld [vmem:[%s1 + $0xcf0] sm:$0xff]
    %v451 = vld [vmem:[%s1 + $0xcf8] sm:$0xff]
    %v452 = vld [vmem:[%s1 + $0xd00] sm:$0xff]
    %v453 = vld [vmem:[%s1 + $0xd08] sm:$0xff]
    %v454 = vld [vmem:[%s1 + $0xd10] sm:$0xff]
    %v455 = vld [vmem:[%s1 + $0xd18] sm:$0xff]
    %v456 = vld [vmem:[%s1 + $0xd20] sm:$0xff]
    %v457 = vld [vmem:[%s1 + $0xd28] sm:$0xff]
    %v458 = vld [vmem:[%s1 + $0xd30] sm:$0xff]
    %v459 = vld [vmem:[%s1 + $0xd38] sm:$0xff]
    %v460 = vld [vmem:[%s1 + $0xd40] sm:$0xff]
    %v461 = vld [vmem:[%s1 + $0xd48] sm:$0xff]
    %v462 = vld [vmem:[%s1 + $0xd50] sm:$0xff]
    %v463 = vld [vmem:[%s1 + $0xd58] sm:$0xff]
    %v464 = vld [vmem:[%s1 + $0xd60] sm:$0xff]
    %v465 = vld [vmem:[%s1 + $0xd68] sm:$0xff]
    %v466 = vld [vmem:[%s1 + $0xd70] sm:$0xff]
    %v467 = vld [vmem:[%s1 + $0xd78] sm:$0xff]
    %v468 = vld [vmem:[%s1 + $0xd80] sm:$0xff]
    %v469 = vld [vmem:[%s1 + $0xd88] sm:$0xff]
    %v470 = vld [vmem:[%s1 + $0xd90] sm:$0xff]
    %v471 = vld [vmem:[%s1 + $0xd98] sm:$0xff]
    %v472 = vld [vmem:[%s1 + $0xda0] sm:$0xff]
    %v473 = vld [vmem:[%s1 + $0xda8] sm:$0xff]
    %v474 = vld [vmem:[%s1 + $0xdb0] sm:$0xff]
    %v475 = vld [vmem:[%s1 + $0xdb8] sm:$0xff]
    %v476 = vld [vmem:[%s1 + $0xdc0] sm:$0xff]
    %v477 = vld [vmem:[%s1 + $0xdc8] sm:$0xff]
    %v478 = vld [vmem:[%s1 + $0xdd0] sm:$0xff]
    %v479 = vld [vmem:[%s1 + $0xdd8] sm:$0xff]
    %v480 = vld [vmem:[%s1 + $0xde0] sm:$0xff]
    %v481 = vld [vmem:[%s1 + $0xde8] sm:$0xff]
    %v482 = vld [vmem:[%s1 + $0xdf0] sm:$0xff]
    %v483 = vld [vmem:[%s1 + $0xdf8] sm:$0xff]
    %v484 = vld [vmem:[%s1 + $0xe00] sm:$0xff]
    %v485 = vld [vmem:[%s1 + $0xe08] sm:$0xff]
    %v486 = vld [vmem:[%s1 + $0xe10] sm:$0xff]
    %v487 = vld [vmem:[%s1 + $0xe18] sm:$0xff]
    %v488 = vld [vmem:[%s1 + $0xe20] sm:$0xff]
    %v489 = vld [vmem:[%s1 + $0xe28] sm:$0xff]
    %v490 = vld [vmem:[%s1 + $0xe30] sm:$0xff]
    %v491 = vld [vmem:[%s1 + $0xe38] sm:$0xff]
    %v492 = vld [vmem:[%s1 + $0xe40] sm:$0xff]
    %v493 = vld [vmem:[%s1 + $0xe48] sm:$0xff]
    %v494 = vld [vmem:[%s1 + $0xe50] sm:$0xff]
    %v495 = vld [vmem:[%s1 + $0xe58] sm:$0xff]
    %v496 = vld [vmem:[%s1 + $0xe60] sm:$0xff]
    %v497 = vld [vmem:[%s1 + $0xe68] sm:$0xff]
    %v498 = vld [vmem:[%s1 + $0xe70] sm:$0xff]
    %v499 = vld [vmem:[%s1 + $0xe78] sm:$0xff]
    %v500 = vld [vmem:[%s1 + $0xe80] sm:$0xff]
    %v501 = vld [vmem:[%s1 + $0xe88] sm:$0xff]
    %v502 = vld [vmem:[%s1 + $0xe90] sm:$0xff]
    %v503 = vld [vmem:[%s1 + $0xe98] sm:$0xff]
    %v504 = vld [vmem:[%s1 + $0xea0] sm:$0xff]
    %v505 = vld [vmem:[%s1 + $0xea8] sm:$0xff]
    %v506 = vld [vmem:[%s1 + $0xeb0] sm:$0xff]
    %v507 = vld [vmem:[%s1 + $0xeb8] sm:$0xff]
    %v508 = vld [vmem:[%s1 + $0xec0] sm:$0xff]
    %v509 = vld [vmem:[%s1 + $0xec8] sm:$0xff]
    %v510 = vld [vmem:[%s1 + $0xed0] sm:$0xff]
    %v511 = vld [vmem:[%s1 + $0xed8] sm:$0xff]
    %v512 = vld [vmem:[%s1 + $0xee0] sm:$0xff]
    %v513 = vld [vmem:[%s1 + $0xee8] sm:$0xff]
    %v514 = vld [vmem:[%s1 + $0xef0] sm:$0xff]
    %v515 = vld [vmem:[%s1 + $0xef8] sm:$0xff]
    %v516 = vld [vmem:[%s1 + $0xf00] sm:$0xff]
    %v517 = vld [vmem:[%s1 + $0xf08] sm:$0xff]
    %v518 = vld [vmem:[%s1 + $0xf10] sm:$0xff]
    %v519 = vld [vmem:[%s1 + $0xf18] sm:$0xff]
    %v520 = vld [vmem:[%s1 + $0xf20] sm:$0xff]
    %v521 = vld [vmem:[%s1 + $0xf28] sm:$0xff]
    %v522 = vld [vmem:[%s1 + $0xf30] sm:$0xff]
    %v523 = vld [vmem:[%s1 + $0xf38] sm:$0xff]
    %v524 = vld [vmem:[%s1 + $0xf40] sm:$0xff]
    %v525 = vld [vmem:[%s1 + $0xf48] sm:$0xff]
    %v526 = vld [vmem:[%s1 + $0xf50] sm:$0xff]
    %v527 = vld [vmem:[%s1 + $0xf58] sm:$0xff]
    %v528 = vld [vmem:[%s1 + $0xf60] sm:$0xff]
    %v529 = vld [vmem:[%s1 + $0xf68] sm:$0xff]
    %v530 = vld [vmem:[%s1 + $0xf70] sm:$0xff]
    %v531 = vld [vmem:[%s1 + $0xf78] sm:$0xff]
    %v532 = vld [vmem:[%s1 + $0xf80] sm:$0xff]
    %v533 = vld [vmem:[%s1 + $0xf88] sm:$0xff]
    %v534 = vld [vmem:[%s1 + $0xf90] sm:$0xff]
    %v535 = vld [vmem:[%s1 + $0xf98] sm:$0xff]
    %v536 = vld [vmem:[%s1 + $0xfa0] sm:$0xff]
    %v537 = vld [vmem:[%s1 + $0xfa8] sm:$0xff]
    %v538 = vld [vmem:[%s1 + $0xfb0] sm:$0xff]
    %v539 = vld [vmem:[%s1 + $0xfb8] sm:$0xff]
    %v540 = vld [vmem:[%s1 + $0xfc0] sm:$0xff]
    %v541 = vld [vmem:[%s1 + $0xfc8] sm:$0xff]
    %v542 = vld [vmem:[%s1 + $0xfd0] sm:$0xff]
    %v543 = vld [vmem:[%s1 + $0xfd8] sm:$0xff]
    %v544 = vld [vmem:[%s1 + $0xfe0] sm:$0xff]
    %v545 = vld [vmem:[%s1 + $0xfe8] sm:$0xff]
    %v546 = vld [vmem:[%s1 + $0xff0] sm:$0xff]
    %v547 = vld [vmem:[%s1 + $0xff8] sm:$0xff]
    %v548 = vld [vmem:[%s1 + $0x1000] sm:$0xff]
    %v549 = vld [vmem:[%s1 + $0x1008] sm:$0xff]
    %v550 = vld [vmem:[%s1 + $0x1010] sm:$0xff]
    %v551 = vld [vmem:[%s1 + $0x1018] sm:$0xff]
    %v552 = vld [vmem:[%s1 + $0x1020] sm:$0xff]
    %v553 = vld [vmem:[%s1 + $0x1028] sm:$0xff]
    %v554 = vld [vmem:[%s1 + $0x1030] sm:$0xff]
    %v555 = vld [vmem:[%s1 + $0x1038] sm:$0xff]
    %v556 = vld [vmem:[%s1 + $0x1040] sm:$0xff]
    %v557 = vld [vmem:[%s1 + $0x1048] sm:$0xff]
    %v558 = vld [vmem:[%s1 + $0x1050] sm:$0xff]
    %v559 = vld [vmem:[%s1 + $0x1058] sm:$0xff]
    %v560 = vld [vmem:[%s1 + $0x1060] sm:$0xff]
    %v561 = vld [vmem:[%s1 + $0x1068] sm:$0xff]
    %v562 = vld [vmem:[%s1 + $0x1070] sm:$0xff]
    %v563 = vld [vmem:[%s1 + $0x1078] sm:$0xff]
    %v564 = vld [vmem:[%s1 + $0x1080] sm:$0xff]
    %v565 = vld [vmem:[%s1 + $0x1088] sm:$0xff]
    %v566 = vld [vmem:[%s1 + $0x1090] sm:$0xff]
    %v567 = vld [vmem:[%s1 + $0x1098] sm:$0xff]
    %v568 = vld [vmem:[%s1 + $0x10a0] sm:$0xff]
    %v569 = vld [vmem:[%s1 + $0x10a8] sm:$0xff]
    %v570 = vld [vmem:[%s1 + $0x10b0] sm:$0xff]
    %v571 = vld [vmem:[%s1 + $0x10b8] sm:$0xff]
    %v572 = vld [vmem:[%s1 + $0x10c0] sm:$0xff]
    %v573 = vld [vmem:[%s1 + $0x10c8] sm:$0xff]
    %v574 = vld [vmem:[%s1 + $0x10d0] sm:$0xff]
    %v575 = vld [vmem:[%s1 + $0x10d8] sm:$0xff]
    %v576 = vld [vmem:[%s2] sm:$0x3f]
    %v578 = vlaneseq
    %v579 = vshrl.u32 %v578, 7
    %v580 = vsub.s32 0, %v579
    %v581 = vrot.slane %v576, %v580
    %v582 = vlaneseq
    %v583 = vshrl.u32 %v582, 7
    %v584 = vsub.s32 1, %v583
    %v585 = vrot.slane %v576, %v584
    %v586 = vlaneseq
    %v587 = vshrl.u32 %v586, 7
    %v588 = vsub.s32 2, %v587
    %v589 = vrot.slane %v576, %v588
    %v590 = vlaneseq
    %v591 = vshrl.u32 %v590, 7
    %v592 = vsub.s32 3, %v591
    %v593 = vrot.slane %v576, %v592
    %v594 = vlaneseq
    %v595 = vshrl.u32 %v594, 7
    %v596 = vsub.s32 4, %v595
    %v597 = vrot.slane %v576, %v596
    %v598 = vlaneseq
    %v599 = vshrl.u32 %v598, 7
    %v600 = vsub.s32 5, %v599
    %v601 = vrot.slane %v576, %v600
    %v610 = vcombine.high %v34, %v34
    %v612 = vunpack.c.l.s4 1966171168
    %v613 = vunpack.c.0.s8 %v612
    %v614 = vlaneseq
    %v615 = vshrl.u32 %v614, 7
    %v616 = vsub.s32 %v613, %v615
    %v617 = vrot.slane %v34, %v616
    %v619 = vunpack.c.l.s4 1966171168
    %v620 = vunpack.c.0.s8 %v619
    %v621 = vlaneseq
    %v622 = vshrl.u32 %v621, 7
    %v623 = vsub.s32 %v620, %v622
    %v624 = vrot.slane %v610, %v623
    %v625 = vcombine.high %v617, %v617
    %v626 = vcombine.high %v624, %v624
    %v628 = vunpack.c.l.s4 1966171168
    %v629 = vunpack.c.0.s8 %v628
    %v630 = vlaneseq
    %v631 = vshrl.u32 %v630, 7
    %v632 = vsub.s32 %v629, %v631
    %v633 = vrot.slane %v617, %v632
    %v635 = vunpack.c.l.s4 1966171168
    %v636 = vunpack.c.0.s8 %v635
    %v637 = vlaneseq
    %v638 = vshrl.u32 %v637, 7
    %v639 = vsub.s32 %v636, %v638
    %v640 = vrot.slane %v624, %v639
    %v642 = vunpack.c.l.s4 1966171168
    %v643 = vunpack.c.0.s8 %v642
    %v644 = vlaneseq
    %v645 = vshrl.u32 %v644, 7
    %v646 = vsub.s32 %v643, %v645
    %v647 = vrot.slane %v625, %v646
    %v649 = vunpack.c.l.s4 1966171168
    %v650 = vunpack.c.0.s8 %v649
    %v651 = vlaneseq
    %v652 = vshrl.u32 %v651, 7
    %v653 = vsub.s32 %v650, %v652
    %v654 = vrot.slane %v626, %v653
    %v655 = vcombine.high %v633, %v633
    %v656 = vcombine.high %v640, %v640
    %v657 = vcombine.high %v647, %v647
    %v658 = vcombine.high %v654, %v654
    %v660 = vunpack.c.l.s4 1966171168
    %v661 = vunpack.c.0.s8 %v660
    %v662 = vlaneseq
    %v663 = vshrl.u32 %v662, 7
    %v664 = vsub.s32 %v661, %v663
    %v665 = vrot.slane %v35, %v664
    %v666 = vcombine.high %v665, %v665
    %v668 = vunpack.c.l.s4 1966171168
    %v669 = vunpack.c.0.s8 %v668
    %v670 = vlaneseq
    %v671 = vshrl.u32 %v670, 7
    %v672 = vsub.s32 %v669, %v671
    %v673 = vrot.slane %v665, %v672
    %v675 = vunpack.c.l.s4 1966171168
    %v676 = vunpack.c.0.s8 %v675
    %v677 = vlaneseq
    %v678 = vshrl.u32 %v677, 7
    %v679 = vsub.s32 %v676, %v678
    %v680 = vrot.slane %v666, %v679
    %v681 = vcombine.high %v673, %v673
    %v682 = vcombine.high %v680, %v680
    %v1234 = vunpack.c.l.b16 %v36
    %v1235 = vunpack.c.h.b16 %v36
    %v1236 = vunpack.c.l.b16 %v37
    %v1237 = vunpack.c.h.b16 %v37
    %v1238 = vunpack.c.l.b16 %v38
    %v1239 = vunpack.c.h.b16 %v38
    %v1240 = vunpack.c.l.b16 %v39
    %v1241 = vunpack.c.h.b16 %v39
    %v1242 = vunpack.c.l.b16 %v40
    %v1243 = vunpack.c.h.b16 %v40
    %v1244 = vunpack.c.l.b16 %v41
    %v1245 = vunpack.c.h.b16 %v41
    %v1246 = vunpack.c.l.b16 %v42
    %v1247 = vunpack.c.h.b16 %v42
    %v1248 = vunpack.c.l.b16 %v43
    %v1249 = vunpack.c.h.b16 %v43
    %v1250 = vunpack.c.l.b16 %v44
    %v1251 = vunpack.c.h.b16 %v44
    %v1252 = vunpack.c.l.b16 %v45
    %v1253 = vunpack.c.h.b16 %v45
    %v1254 = vunpack.c.l.b16 %v46
    %v1255 = vunpack.c.h.b16 %v46
    %v1256 = vunpack.c.l.b16 %v47
    %v1257 = vunpack.c.h.b16 %v47
    %v1258 = vunpack.c.l.b16 %v48
    %v1259 = vunpack.c.h.b16 %v48
    %v1260 = vunpack.c.l.b16 %v49
    %v1261 = vunpack.c.h.b16 %v49
    %v1262 = vunpack.c.l.b16 %v50
    %v1263 = vunpack.c.h.b16 %v50
    %v1264 = vunpack.c.l.b16 %v51
    %v1265 = vunpack.c.h.b16 %v51
    %v1266 = vunpack.c.l.b16 %v52
    %v1267 = vunpack.c.h.b16 %v52
    %v1268 = vunpack.c.l.b16 %v53
    %v1269 = vunpack.c.h.b16 %v53
    %v1270 = vunpack.c.l.b16 %v54
    %v1271 = vunpack.c.h.b16 %v54
    %v1272 = vunpack.c.l.b16 %v55
    %v1273 = vunpack.c.h.b16 %v55
    %v1274 = vunpack.c.l.b16 %v56
    %v1275 = vunpack.c.h.b16 %v56
    %v1276 = vunpack.c.l.b16 %v57
    %v1277 = vunpack.c.h.b16 %v57
    %v1278 = vunpack.c.l.b16 %v58
    %v1279 = vunpack.c.h.b16 %v58
    %v1280 = vunpack.c.l.b16 %v59
    %v1281 = vunpack.c.h.b16 %v59
    %v1282 = vunpack.c.l.b16 %v60
    %v1283 = vunpack.c.h.b16 %v60
    %v1284 = vunpack.c.l.b16 %v61
    %v1285 = vunpack.c.h.b16 %v61
    %v1286 = vunpack.c.l.b16 %v62
    %v1287 = vunpack.c.h.b16 %v62
    %v1288 = vunpack.c.l.b16 %v63
    %v1289 = vunpack.c.h.b16 %v63
    %v1290 = vunpack.c.l.b16 %v64
    %v1291 = vunpack.c.h.b16 %v64
    %v1292 = vunpack.c.l.b16 %v65
    %v1293 = vunpack.c.h.b16 %v65
    %v1294 = vunpack.c.l.b16 %v66
    %v1295 = vunpack.c.h.b16 %v66
    %v1296 = vunpack.c.l.b16 %v67
    %v1297 = vunpack.c.h.b16 %v67
    %v1298 = vunpack.c.l.b16 %v68
    %v1299 = vunpack.c.h.b16 %v68
    %v1300 = vunpack.c.l.b16 %v69
    %v1301 = vunpack.c.h.b16 %v69
    %v1302 = vunpack.c.l.b16 %v70
    %v1303 = vunpack.c.h.b16 %v70
    %v1304 = vunpack.c.l.b16 %v71
    %v1305 = vunpack.c.h.b16 %v71
    %v1306 = vunpack.c.l.b16 %v72
    %v1307 = vunpack.c.h.b16 %v72
    %v1308 = vunpack.c.l.b16 %v73
    %v1309 = vunpack.c.h.b16 %v73
    %v1310 = vunpack.c.l.b16 %v74
    %v1311 = vunpack.c.h.b16 %v74
    %v1312 = vunpack.c.l.b16 %v75
    %v1313 = vunpack.c.h.b16 %v75
    %v1314 = vunpack.c.l.b16 %v76
    %v1315 = vunpack.c.h.b16 %v76
    %v1316 = vunpack.c.l.b16 %v77
    %v1317 = vunpack.c.h.b16 %v77
    %v1318 = vunpack.c.l.b16 %v78
    %v1319 = vunpack.c.h.b16 %v78
    %v1320 = vunpack.c.l.b16 %v79
    %v1321 = vunpack.c.h.b16 %v79
    %v1322 = vunpack.c.l.b16 %v80
    %v1323 = vunpack.c.h.b16 %v80
    %v1324 = vunpack.c.l.b16 %v81
    %v1325 = vunpack.c.h.b16 %v81
    %v1326 = vunpack.c.l.b16 %v82
    %v1327 = vunpack.c.h.b16 %v82
    %v1328 = vunpack.c.l.b16 %v83
    %v1329 = vunpack.c.h.b16 %v83
    %v1330 = vunpack.c.l.b16 %v84
    %v1331 = vunpack.c.h.b16 %v84
    %v1332 = vunpack.c.l.b16 %v85
    %v1333 = vunpack.c.h.b16 %v85
    %v1334 = vunpack.c.l.b16 %v86
    %v1335 = vunpack.c.h.b16 %v86
    %v1336 = vunpack.c.l.b16 %v87
    %v1337 = vunpack.c.h.b16 %v87
    %v1338 = vunpack.c.l.b16 %v88
    %v1339 = vunpack.c.h.b16 %v88
    %v1340 = vunpack.c.l.b16 %v89
    %v1341 = vunpack.c.h.b16 %v89
    %v1342 = vunpack.c.l.b16 %v90
    %v1343 = vunpack.c.h.b16 %v90
    %v1344 = vunpack.c.l.b16 %v91
    %v1345 = vunpack.c.h.b16 %v91
    %v1346 = vunpack.c.l.b16 %v92
    %v1347 = vunpack.c.h.b16 %v92
    %v1348 = vunpack.c.l.b16 %v93
    %v1349 = vunpack.c.h.b16 %v93
    %v1350 = vunpack.c.l.b16 %v94
    %v1351 = vunpack.c.h.b16 %v94
    %v1352 = vunpack.c.l.b16 %v95
    %v1353 = vunpack.c.h.b16 %v95
    %v1354 = vunpack.c.l.b16 %v96
    %v1355 = vunpack.c.h.b16 %v96
    %v1356 = vunpack.c.l.b16 %v97
    %v1357 = vunpack.c.h.b16 %v97
    %v1358 = vunpack.c.l.b16 %v98
    %v1359 = vunpack.c.h.b16 %v98
    %v1360 = vunpack.c.l.b16 %v99
    %v1361 = vunpack.c.h.b16 %v99
    %v1362 = vunpack.c.l.b16 %v100
    %v1363 = vunpack.c.h.b16 %v100
    %v1364 = vunpack.c.l.b16 %v101
    %v1365 = vunpack.c.h.b16 %v101
    %v1366 = vunpack.c.l.b16 %v102
    %v1367 = vunpack.c.h.b16 %v102
    %v1368 = vunpack.c.l.b16 %v103
    %v1369 = vunpack.c.h.b16 %v103
    %v1370 = vunpack.c.l.b16 %v104
    %v1371 = vunpack.c.h.b16 %v104
    %v1372 = vunpack.c.l.b16 %v105
    %v1373 = vunpack.c.h.b16 %v105
    %v1374 = vunpack.c.l.b16 %v106
    %v1375 = vunpack.c.h.b16 %v106
    %v1376 = vunpack.c.l.b16 %v107
    %v1377 = vunpack.c.h.b16 %v107
    %v1378 = vunpack.c.l.b16 %v108
    %v1379 = vunpack.c.h.b16 %v108
    %v1380 = vunpack.c.l.b16 %v109
    %v1381 = vunpack.c.h.b16 %v109
    %v1382 = vunpack.c.l.b16 %v110
    %v1383 = vunpack.c.h.b16 %v110
    %v1384 = vunpack.c.l.b16 %v111
    %v1385 = vunpack.c.h.b16 %v111
    %v1386 = vunpack.c.l.b16 %v112
    %v1387 = vunpack.c.h.b16 %v112
    %v1388 = vunpack.c.l.b16 %v113
    %v1389 = vunpack.c.h.b16 %v113
    %v1390 = vunpack.c.l.b16 %v114
    %v1391 = vunpack.c.h.b16 %v114
    %v1392 = vunpack.c.l.b16 %v115
    %v1393 = vunpack.c.h.b16 %v115
    %v1394 = vunpack.c.l.b16 %v116
    %v1395 = vunpack.c.h.b16 %v116
    %v1396 = vunpack.c.l.b16 %v117
    %v1397 = vunpack.c.h.b16 %v117
    %v1398 = vunpack.c.l.b16 %v118
    %v1399 = vunpack.c.h.b16 %v118
    %v1400 = vunpack.c.l.b16 %v119
    %v1401 = vunpack.c.h.b16 %v119
    %v1402 = vunpack.c.l.b16 %v120
    %v1403 = vunpack.c.h.b16 %v120
    %v1404 = vunpack.c.l.b16 %v121
    %v1405 = vunpack.c.h.b16 %v121
    %v1406 = vunpack.c.l.b16 %v122
    %v1407 = vunpack.c.h.b16 %v122
    %v1408 = vunpack.c.l.b16 %v123
    %v1409 = vunpack.c.h.b16 %v123
    %v1410 = vunpack.c.l.b16 %v124
    %v1411 = vunpack.c.h.b16 %v124
    %v1412 = vunpack.c.l.b16 %v125
    %v1413 = vunpack.c.h.b16 %v125
    %v1414 = vunpack.c.l.b16 %v126
    %v1415 = vunpack.c.h.b16 %v126
    %v1416 = vunpack.c.l.b16 %v127
    %v1417 = vunpack.c.h.b16 %v127
    %v1418 = vunpack.c.l.b16 %v128
    %v1419 = vunpack.c.h.b16 %v128
    %v1420 = vunpack.c.l.b16 %v129
    %v1421 = vunpack.c.h.b16 %v129
    %v1422 = vunpack.c.l.b16 %v130
    %v1423 = vunpack.c.h.b16 %v130
    %v1424 = vunpack.c.l.b16 %v131
    %v1425 = vunpack.c.h.b16 %v131
    %v1426 = vunpack.c.l.b16 %v132
    %v1427 = vunpack.c.h.b16 %v132
    %v1428 = vunpack.c.l.b16 %v133
    %v1429 = vunpack.c.h.b16 %v133
    %v1430 = vunpack.c.l.b16 %v134
    %v1431 = vunpack.c.h.b16 %v134
    %v1432 = vunpack.c.l.b16 %v135
    %v1433 = vunpack.c.h.b16 %v135
    %v1434 = vunpack.c.l.b16 %v136
    %v1435 = vunpack.c.h.b16 %v136
    %v1436 = vunpack.c.l.b16 %v137
    %v1437 = vunpack.c.h.b16 %v137
    %v1438 = vunpack.c.l.b16 %v138
    %v1439 = vunpack.c.h.b16 %v138
    %v1440 = vunpack.c.l.b16 %v139
    %v1441 = vunpack.c.h.b16 %v139
    %v1442 = vunpack.c.l.b16 %v140
    %v1443 = vunpack.c.h.b16 %v140
    %v1444 = vunpack.c.l.b16 %v141
    %v1445 = vunpack.c.h.b16 %v141
    %v1446 = vunpack.c.l.b16 %v142
    %v1447 = vunpack.c.h.b16 %v142
    %v1448 = vunpack.c.l.b16 %v143
    %v1449 = vunpack.c.h.b16 %v143
    %v1450 = vunpack.c.l.b16 %v144
    %v1451 = vunpack.c.h.b16 %v144
    %v1452 = vunpack.c.l.b16 %v145
    %v1453 = vunpack.c.h.b16 %v145
    %v1454 = vunpack.c.l.b16 %v146
    %v1455 = vunpack.c.h.b16 %v146
    %v1456 = vunpack.c.l.b16 %v147
    %v1457 = vunpack.c.h.b16 %v147
    %v1458 = vunpack.c.l.b16 %v148
    %v1459 = vunpack.c.h.b16 %v148
    %v1460 = vunpack.c.l.b16 %v149
    %v1461 = vunpack.c.h.b16 %v149
    %v1462 = vunpack.c.l.b16 %v150
    %v1463 = vunpack.c.h.b16 %v150
    %v1464 = vunpack.c.l.b16 %v151
    %v1465 = vunpack.c.h.b16 %v151
    %v1466 = vunpack.c.l.b16 %v152
    %v1467 = vunpack.c.h.b16 %v152
    %v1468 = vunpack.c.l.b16 %v153
    %v1469 = vunpack.c.h.b16 %v153
    %v1470 = vunpack.c.l.b16 %v154
    %v1471 = vunpack.c.h.b16 %v154
    %v1472 = vunpack.c.l.b16 %v155
    %v1473 = vunpack.c.h.b16 %v155
    %v1474 = vunpack.c.l.b16 %v156
    %v1475 = vunpack.c.h.b16 %v156
    %v1476 = vunpack.c.l.b16 %v157
    %v1477 = vunpack.c.h.b16 %v157
    %v1478 = vunpack.c.l.b16 %v158
    %v1479 = vunpack.c.h.b16 %v158
    %v1480 = vunpack.c.l.b16 %v159
    %v1481 = vunpack.c.h.b16 %v159
    %v1482 = vunpack.c.l.b16 %v160
    %v1483 = vunpack.c.h.b16 %v160
    %v1484 = vunpack.c.l.b16 %v161
    %v1485 = vunpack.c.h.b16 %v161
    %v1486 = vunpack.c.l.b16 %v162
    %v1487 = vunpack.c.h.b16 %v162
    %v1488 = vunpack.c.l.b16 %v163
    %v1489 = vunpack.c.h.b16 %v163
    %v1490 = vunpack.c.l.b16 %v164
    %v1491 = vunpack.c.h.b16 %v164
    %v1492 = vunpack.c.l.b16 %v165
    %v1493 = vunpack.c.h.b16 %v165
    %v1494 = vunpack.c.l.b16 %v166
    %v1495 = vunpack.c.h.b16 %v166
    %v1496 = vunpack.c.l.b16 %v167
    %v1497 = vunpack.c.h.b16 %v167
    %v1498 = vunpack.c.l.b16 %v168
    %v1499 = vunpack.c.h.b16 %v168
    %v1500 = vunpack.c.l.b16 %v169
    %v1501 = vunpack.c.h.b16 %v169
    %v1502 = vunpack.c.l.b16 %v170
    %v1503 = vunpack.c.h.b16 %v170
    %v1504 = vunpack.c.l.b16 %v171
    %v1505 = vunpack.c.h.b16 %v171
    %v1506 = vunpack.c.l.b16 %v172
    %v1507 = vunpack.c.h.b16 %v172
    %v1508 = vunpack.c.l.b16 %v173
    %v1509 = vunpack.c.h.b16 %v173
    %v1510 = vunpack.c.l.b16 %v174
    %v1511 = vunpack.c.h.b16 %v174
    %v1512 = vunpack.c.l.b16 %v175
    %v1513 = vunpack.c.h.b16 %v175
    %v1514 = vunpack.c.l.b16 %v176
    %v1515 = vunpack.c.h.b16 %v176
    %v1516 = vunpack.c.l.b16 %v177
    %v1517 = vunpack.c.h.b16 %v177
    %v1518 = vunpack.c.l.b16 %v178
    %v1519 = vunpack.c.h.b16 %v178
    %v1520 = vunpack.c.l.b16 %v179
    %v1521 = vunpack.c.h.b16 %v179
    %v1522 = vunpack.c.l.b16 %v180
    %v1523 = vunpack.c.h.b16 %v180
    %v1524 = vunpack.c.l.b16 %v181
    %v1525 = vunpack.c.h.b16 %v181
    %v1526 = vunpack.c.l.b16 %v182
    %v1527 = vunpack.c.h.b16 %v182
    %v1528 = vunpack.c.l.b16 %v183
    %v1529 = vunpack.c.h.b16 %v183
    %v1530 = vunpack.c.l.b16 %v184
    %v1531 = vunpack.c.h.b16 %v184
    %v1532 = vunpack.c.l.b16 %v185
    %v1533 = vunpack.c.h.b16 %v185
    %v1534 = vunpack.c.l.b16 %v186
    %v1535 = vunpack.c.h.b16 %v186
    %v1536 = vunpack.c.l.b16 %v187
    %v1537 = vunpack.c.h.b16 %v187
    %v1538 = vunpack.c.l.b16 %v188
    %v1539 = vunpack.c.h.b16 %v188
    %v1540 = vunpack.c.l.b16 %v189
    %v1541 = vunpack.c.h.b16 %v189
    %v1542 = vunpack.c.l.b16 %v190
    %v1543 = vunpack.c.h.b16 %v190
    %v1544 = vunpack.c.l.b16 %v191
    %v1545 = vunpack.c.h.b16 %v191
    %v1546 = vunpack.c.l.b16 %v192
    %v1547 = vunpack.c.h.b16 %v192
    %v1548 = vunpack.c.l.b16 %v193
    %v1549 = vunpack.c.h.b16 %v193
    %v1550 = vunpack.c.l.b16 %v194
    %v1551 = vunpack.c.h.b16 %v194
    %v1552 = vunpack.c.l.b16 %v195
    %v1553 = vunpack.c.h.b16 %v195
    %v1554 = vunpack.c.l.b16 %v196
    %v1555 = vunpack.c.h.b16 %v196
    %v1556 = vunpack.c.l.b16 %v197
    %v1557 = vunpack.c.h.b16 %v197
    %v1558 = vunpack.c.l.b16 %v198
    %v1559 = vunpack.c.h.b16 %v198
    %v1560 = vunpack.c.l.b16 %v199
    %v1561 = vunpack.c.h.b16 %v199
    %v1562 = vunpack.c.l.b16 %v200
    %v1563 = vunpack.c.h.b16 %v200
    %v1564 = vunpack.c.l.b16 %v201
    %v1565 = vunpack.c.h.b16 %v201
    %v1566 = vunpack.c.l.b16 %v202
    %v1567 = vunpack.c.h.b16 %v202
    %v1568 = vunpack.c.l.b16 %v203
    %v1569 = vunpack.c.h.b16 %v203
    %v1570 = vunpack.c.l.b16 %v204
    %v1571 = vunpack.c.h.b16 %v204
    %v1572 = vunpack.c.l.b16 %v205
    %v1573 = vunpack.c.h.b16 %v205
    %v1574 = vunpack.c.l.b16 %v206
    %v1575 = vunpack.c.h.b16 %v206
    %v1576 = vunpack.c.l.b16 %v207
    %v1577 = vunpack.c.h.b16 %v207
    %v1578 = vunpack.c.l.b16 %v208
    %v1579 = vunpack.c.h.b16 %v208
    %v1580 = vunpack.c.l.b16 %v209
    %v1581 = vunpack.c.h.b16 %v209
    %v1582 = vunpack.c.l.b16 %v210
    %v1583 = vunpack.c.h.b16 %v210
    %v1584 = vunpack.c.l.b16 %v211
    %v1585 = vunpack.c.h.b16 %v211
    %v1586 = vunpack.c.l.b16 %v212
    %v1587 = vunpack.c.h.b16 %v212
    %v1588 = vunpack.c.l.b16 %v213
    %v1589 = vunpack.c.h.b16 %v213
    %v1590 = vunpack.c.l.b16 %v214
    %v1591 = vunpack.c.h.b16 %v214
    %v1592 = vunpack.c.l.b16 %v215
    %v1593 = vunpack.c.h.b16 %v215
    %v1594 = vunpack.c.l.b16 %v216
    %v1595 = vunpack.c.h.b16 %v216
    %v1596 = vunpack.c.l.b16 %v217
    %v1597 = vunpack.c.h.b16 %v217
    %v1598 = vunpack.c.l.b16 %v218
    %v1599 = vunpack.c.h.b16 %v218
    %v1600 = vunpack.c.l.b16 %v219
    %v1601 = vunpack.c.h.b16 %v219
    %v1602 = vunpack.c.l.b16 %v220
    %v1603 = vunpack.c.h.b16 %v220
    %v1604 = vunpack.c.l.b16 %v221
    %v1605 = vunpack.c.h.b16 %v221
    %v1606 = vunpack.c.l.b16 %v222
    %v1607 = vunpack.c.h.b16 %v222
    %v1608 = vunpack.c.l.b16 %v223
    %v1609 = vunpack.c.h.b16 %v223
    %v1610 = vunpack.c.l.b16 %v224
    %v1611 = vunpack.c.h.b16 %v224
    %v1612 = vunpack.c.l.b16 %v225
    %v1613 = vunpack.c.h.b16 %v225
    %v1614 = vunpack.c.l.b16 %v226
    %v1615 = vunpack.c.h.b16 %v226
    %v1616 = vunpack.c.l.b16 %v227
    %v1617 = vunpack.c.h.b16 %v227
    %v1618 = vunpack.c.l.b16 %v228
    %v1619 = vunpack.c.h.b16 %v228
    %v1620 = vunpack.c.l.b16 %v229
    %v1621 = vunpack.c.h.b16 %v229
    %v1622 = vunpack.c.l.b16 %v230
    %v1623 = vunpack.c.h.b16 %v230
    %v1624 = vunpack.c.l.b16 %v231
    %v1625 = vunpack.c.h.b16 %v231
    %v1626 = vunpack.c.l.b16 %v232
    %v1627 = vunpack.c.h.b16 %v232
    %v1628 = vunpack.c.l.b16 %v233
    %v1629 = vunpack.c.h.b16 %v233
    %v1630 = vunpack.c.l.b16 %v234
    %v1631 = vunpack.c.h.b16 %v234
    %v1632 = vunpack.c.l.b16 %v235
    %v1633 = vunpack.c.h.b16 %v235
    %v1634 = vunpack.c.l.b16 %v236
    %v1635 = vunpack.c.h.b16 %v236
    %v1636 = vunpack.c.l.b16 %v237
    %v1637 = vunpack.c.h.b16 %v237
    %v1638 = vunpack.c.l.b16 %v238
    %v1639 = vunpack.c.h.b16 %v238
    %v1640 = vunpack.c.l.b16 %v239
    %v1641 = vunpack.c.h.b16 %v239
    %v1642 = vunpack.c.l.b16 %v240
    %v1643 = vunpack.c.h.b16 %v240
    %v1644 = vunpack.c.l.b16 %v241
    %v1645 = vunpack.c.h.b16 %v241
    %v1646 = vunpack.c.l.b16 %v242
    %v1647 = vunpack.c.h.b16 %v242
    %v1648 = vunpack.c.l.b16 %v243
    %v1649 = vunpack.c.h.b16 %v243
    %v1650 = vunpack.c.l.b16 %v244
    %v1651 = vunpack.c.h.b16 %v244
    %v1652 = vunpack.c.l.b16 %v245
    %v1653 = vunpack.c.h.b16 %v245
    %v1654 = vunpack.c.l.b16 %v246
    %v1655 = vunpack.c.h.b16 %v246
    %v1656 = vunpack.c.l.b16 %v247
    %v1657 = vunpack.c.h.b16 %v247
    %v1658 = vunpack.c.l.b16 %v248
    %v1659 = vunpack.c.h.b16 %v248
    %v1660 = vunpack.c.l.b16 %v249
    %v1661 = vunpack.c.h.b16 %v249
    %v1662 = vunpack.c.l.b16 %v250
    %v1663 = vunpack.c.h.b16 %v250
    %v1664 = vunpack.c.l.b16 %v251
    %v1665 = vunpack.c.h.b16 %v251
    %v1666 = vunpack.c.l.b16 %v252
    %v1667 = vunpack.c.h.b16 %v252
    %v1668 = vunpack.c.l.b16 %v253
    %v1669 = vunpack.c.h.b16 %v253
    %v1670 = vunpack.c.l.b16 %v254
    %v1671 = vunpack.c.h.b16 %v254
    %v1672 = vunpack.c.l.b16 %v255
    %v1673 = vunpack.c.h.b16 %v255
    %v1674 = vunpack.c.l.b16 %v256
    %v1675 = vunpack.c.h.b16 %v256
    %v1676 = vunpack.c.l.b16 %v257
    %v1677 = vunpack.c.h.b16 %v257
    %v1678 = vunpack.c.l.b16 %v258
    %v1679 = vunpack.c.h.b16 %v258
    %v1680 = vunpack.c.l.b16 %v259
    %v1681 = vunpack.c.h.b16 %v259
    %v1682 = vunpack.c.l.b16 %v260
    %v1683 = vunpack.c.h.b16 %v260
    %v1684 = vunpack.c.l.b16 %v261
    %v1685 = vunpack.c.h.b16 %v261
    %v1686 = vunpack.c.l.b16 %v262
    %v1687 = vunpack.c.h.b16 %v262
    %v1688 = vunpack.c.l.b16 %v263
    %v1689 = vunpack.c.h.b16 %v263
    %v1690 = vunpack.c.l.b16 %v264
    %v1691 = vunpack.c.h.b16 %v264
    %v1692 = vunpack.c.l.b16 %v265
    %v1693 = vunpack.c.h.b16 %v265
    %v1694 = vunpack.c.l.b16 %v266
    %v1695 = vunpack.c.h.b16 %v266
    %v1696 = vunpack.c.l.b16 %v267
    %v1697 = vunpack.c.h.b16 %v267
    %v1698 = vunpack.c.l.b16 %v268
    %v1699 = vunpack.c.h.b16 %v268
    %v1700 = vunpack.c.l.b16 %v269
    %v1701 = vunpack.c.h.b16 %v269
    %v1702 = vunpack.c.l.b16 %v270
    %v1703 = vunpack.c.h.b16 %v270
    %v1704 = vunpack.c.l.b16 %v271
    %v1705 = vunpack.c.h.b16 %v271
    %v1706 = vunpack.c.l.b16 %v272
    %v1707 = vunpack.c.h.b16 %v272
    %v1708 = vunpack.c.l.b16 %v273
    %v1709 = vunpack.c.h.b16 %v273
    %v1710 = vunpack.c.l.b16 %v274
    %v1711 = vunpack.c.h.b16 %v274
    %v1712 = vunpack.c.l.b16 %v275
    %v1713 = vunpack.c.h.b16 %v275
    %v1714 = vunpack.c.l.b16 %v276
    %v1715 = vunpack.c.h.b16 %v276
    %v1716 = vunpack.c.l.b16 %v277
    %v1717 = vunpack.c.h.b16 %v277
    %v1718 = vunpack.c.l.b16 %v278
    %v1719 = vunpack.c.h.b16 %v278
    %v1720 = vunpack.c.l.b16 %v279
    %v1721 = vunpack.c.h.b16 %v279
    %v1722 = vunpack.c.l.b16 %v280
    %v1723 = vunpack.c.h.b16 %v280
    %v1724 = vunpack.c.l.b16 %v281
    %v1725 = vunpack.c.h.b16 %v281
    %v1726 = vunpack.c.l.b16 %v282
    %v1727 = vunpack.c.h.b16 %v282
    %v1728 = vunpack.c.l.b16 %v283
    %v1729 = vunpack.c.h.b16 %v283
    %v1730 = vunpack.c.l.b16 %v284
    %v1731 = vunpack.c.h.b16 %v284
    %v1732 = vunpack.c.l.b16 %v285
    %v1733 = vunpack.c.h.b16 %v285
    %v1734 = vunpack.c.l.b16 %v286
    %v1735 = vunpack.c.h.b16 %v286
    %v1736 = vunpack.c.l.b16 %v287
    %v1737 = vunpack.c.h.b16 %v287
    %v1738 = vunpack.c.l.b16 %v288
    %v1739 = vunpack.c.h.b16 %v288
    %v1740 = vunpack.c.l.b16 %v289
    %v1741 = vunpack.c.h.b16 %v289
    %v1742 = vunpack.c.l.b16 %v290
    %v1743 = vunpack.c.h.b16 %v290
    %v1744 = vunpack.c.l.b16 %v291
    %v1745 = vunpack.c.h.b16 %v291
    %v1746 = vunpack.c.l.b16 %v292
    %v1747 = vunpack.c.h.b16 %v292
    %v1748 = vunpack.c.l.b16 %v293
    %v1749 = vunpack.c.h.b16 %v293
    %v1750 = vunpack.c.l.b16 %v294
    %v1751 = vunpack.c.h.b16 %v294
    %v1752 = vunpack.c.l.b16 %v295
    %v1753 = vunpack.c.h.b16 %v295
    %v1754 = vunpack.c.l.b16 %v296
    %v1755 = vunpack.c.h.b16 %v296
    %v1756 = vunpack.c.l.b16 %v297
    %v1757 = vunpack.c.h.b16 %v297
    %v1758 = vunpack.c.l.b16 %v298
    %v1759 = vunpack.c.h.b16 %v298
    %v1760 = vunpack.c.l.b16 %v299
    %v1761 = vunpack.c.h.b16 %v299
    %v1762 = vunpack.c.l.b16 %v300
    %v1763 = vunpack.c.h.b16 %v300
    %v1764 = vunpack.c.l.b16 %v301
    %v1765 = vunpack.c.h.b16 %v301
    %v1766 = vunpack.c.l.b16 %v302
    %v1767 = vunpack.c.h.b16 %v302
    %v1768 = vunpack.c.l.b16 %v303
    %v1769 = vunpack.c.h.b16 %v303
    %v1770 = vunpack.c.l.b16 %v304
    %v1771 = vunpack.c.h.b16 %v304
    %v1772 = vunpack.c.l.b16 %v305
    %v1773 = vunpack.c.h.b16 %v305
    %v1774 = vunpack.c.l.b16 %v306
    %v1775 = vunpack.c.h.b16 %v306
    %v1776 = vunpack.c.l.b16 %v307
    %v1777 = vunpack.c.h.b16 %v307
    %v1778 = vunpack.c.l.b16 %v308
    %v1779 = vunpack.c.h.b16 %v308
    %v1780 = vunpack.c.l.b16 %v309
    %v1781 = vunpack.c.h.b16 %v309
    %v1782 = vunpack.c.l.b16 %v310
    %v1783 = vunpack.c.h.b16 %v310
    %v1784 = vunpack.c.l.b16 %v311
    %v1785 = vunpack.c.h.b16 %v311
    %v1786 = vunpack.c.l.b16 %v312
    %v1787 = vunpack.c.h.b16 %v312
    %v1788 = vunpack.c.l.b16 %v313
    %v1789 = vunpack.c.h.b16 %v313
    %v1790 = vunpack.c.l.b16 %v314
    %v1791 = vunpack.c.h.b16 %v314
    %v1792 = vunpack.c.l.b16 %v315
    %v1793 = vunpack.c.h.b16 %v315
    %v1794 = vunpack.c.l.b16 %v316
    %v1795 = vunpack.c.h.b16 %v316
    %v1796 = vunpack.c.l.b16 %v317
    %v1797 = vunpack.c.h.b16 %v317
    %v1798 = vunpack.c.l.b16 %v318
    %v1799 = vunpack.c.h.b16 %v318
    %v1800 = vunpack.c.l.b16 %v319
    %v1801 = vunpack.c.h.b16 %v319
    %v1802 = vunpack.c.l.b16 %v320
    %v1803 = vunpack.c.h.b16 %v320
    %v1804 = vunpack.c.l.b16 %v321
    %v1805 = vunpack.c.h.b16 %v321
    %v1806 = vunpack.c.l.b16 %v322
    %v1807 = vunpack.c.h.b16 %v322
    %v1808 = vunpack.c.l.b16 %v323
    %v1809 = vunpack.c.h.b16 %v323
    %v1810 = vunpack.c.l.b16 %v324
    %v1811 = vunpack.c.h.b16 %v324
    %v1812 = vunpack.c.l.b16 %v325
    %v1813 = vunpack.c.h.b16 %v325
    %v1814 = vunpack.c.l.b16 %v326
    %v1815 = vunpack.c.h.b16 %v326
    %v1816 = vunpack.c.l.b16 %v327
    %v1817 = vunpack.c.h.b16 %v327
    %v1818 = vunpack.c.l.b16 %v328
    %v1819 = vunpack.c.h.b16 %v328
    %v1820 = vunpack.c.l.b16 %v329
    %v1821 = vunpack.c.h.b16 %v329
    %v1822 = vunpack.c.l.b16 %v330
    %v1823 = vunpack.c.h.b16 %v330
    %v1824 = vunpack.c.l.b16 %v331
    %v1825 = vunpack.c.h.b16 %v331
    %v1826 = vunpack.c.l.b16 %v332
    %v1827 = vunpack.c.h.b16 %v332
    %v1828 = vunpack.c.l.b16 %v333
    %v1829 = vunpack.c.h.b16 %v333
    %v1830 = vunpack.c.l.b16 %v334
    %v1831 = vunpack.c.h.b16 %v334
    %v1832 = vunpack.c.l.b16 %v335
    %v1833 = vunpack.c.h.b16 %v335
    %v1834 = vunpack.c.l.b16 %v336
    %v1835 = vunpack.c.h.b16 %v336
    %v1836 = vunpack.c.l.b16 %v337
    %v1837 = vunpack.c.h.b16 %v337
    %v1838 = vunpack.c.l.b16 %v338
    %v1839 = vunpack.c.h.b16 %v338
    %v1840 = vunpack.c.l.b16 %v339
    %v1841 = vunpack.c.h.b16 %v339
    %v1842 = vunpack.c.l.b16 %v340
    %v1843 = vunpack.c.h.b16 %v340
    %v1844 = vunpack.c.l.b16 %v341
    %v1845 = vunpack.c.h.b16 %v341
    %v1846 = vunpack.c.l.b16 %v342
    %v1847 = vunpack.c.h.b16 %v342
    %v1848 = vunpack.c.l.b16 %v343
    %v1849 = vunpack.c.h.b16 %v343
    %v1850 = vunpack.c.l.b16 %v344
    %v1851 = vunpack.c.h.b16 %v344
    %v1852 = vunpack.c.l.b16 %v345
    %v1853 = vunpack.c.h.b16 %v345
    %v1854 = vunpack.c.l.b16 %v346
    %v1855 = vunpack.c.h.b16 %v346
    %v1856 = vunpack.c.l.b16 %v347
    %v1857 = vunpack.c.h.b16 %v347
    %v1858 = vunpack.c.l.b16 %v348
    %v1859 = vunpack.c.h.b16 %v348
    %v1860 = vunpack.c.l.b16 %v349
    %v1861 = vunpack.c.h.b16 %v349
    %v1862 = vunpack.c.l.b16 %v350
    %v1863 = vunpack.c.h.b16 %v350
    %v1864 = vunpack.c.l.b16 %v351
    %v1865 = vunpack.c.h.b16 %v351
    %v1866 = vunpack.c.l.b16 %v352
    %v1867 = vunpack.c.h.b16 %v352
    %v1868 = vunpack.c.l.b16 %v353
    %v1869 = vunpack.c.h.b16 %v353
    %v1870 = vunpack.c.l.b16 %v354
    %v1871 = vunpack.c.h.b16 %v354
    %v1872 = vunpack.c.l.b16 %v355
    %v1873 = vunpack.c.h.b16 %v355
    %v1874 = vunpack.c.l.b16 %v356
    %v1875 = vunpack.c.h.b16 %v356
    %v1876 = vunpack.c.l.b16 %v357
    %v1877 = vunpack.c.h.b16 %v357
    %v1878 = vunpack.c.l.b16 %v358
    %v1879 = vunpack.c.h.b16 %v358
    %v1880 = vunpack.c.l.b16 %v359
    %v1881 = vunpack.c.h.b16 %v359
    %v1882 = vunpack.c.l.b16 %v360
    %v1883 = vunpack.c.h.b16 %v360
    %v1884 = vunpack.c.l.b16 %v361
    %v1885 = vunpack.c.h.b16 %v361
    %v1886 = vunpack.c.l.b16 %v362
    %v1887 = vunpack.c.h.b16 %v362
    %v1888 = vunpack.c.l.b16 %v363
    %v1889 = vunpack.c.h.b16 %v363
    %v1890 = vunpack.c.l.b16 %v364
    %v1891 = vunpack.c.h.b16 %v364
    %v1892 = vunpack.c.l.b16 %v365
    %v1893 = vunpack.c.h.b16 %v365
    %v1894 = vunpack.c.l.b16 %v366
    %v1895 = vunpack.c.h.b16 %v366
    %v1896 = vunpack.c.l.b16 %v367
    %v1897 = vunpack.c.h.b16 %v367
    %v1898 = vunpack.c.l.b16 %v368
    %v1899 = vunpack.c.h.b16 %v368
    %v1900 = vunpack.c.l.b16 %v369
    %v1901 = vunpack.c.h.b16 %v369
    %v1902 = vunpack.c.l.b16 %v370
    %v1903 = vunpack.c.h.b16 %v370
    %v1904 = vunpack.c.l.b16 %v371
    %v1905 = vunpack.c.h.b16 %v371
    %v1906 = vunpack.c.l.b16 %v372
    %v1907 = vunpack.c.h.b16 %v372
    %v1908 = vunpack.c.l.b16 %v373
    %v1909 = vunpack.c.h.b16 %v373
    %v1910 = vunpack.c.l.b16 %v374
    %v1911 = vunpack.c.h.b16 %v374
    %v1912 = vunpack.c.l.b16 %v375
    %v1913 = vunpack.c.h.b16 %v375
    %v1914 = vunpack.c.l.b16 %v376
    %v1915 = vunpack.c.h.b16 %v376
    %v1916 = vunpack.c.l.b16 %v377
    %v1917 = vunpack.c.h.b16 %v377
    %v1918 = vunpack.c.l.b16 %v378
    %v1919 = vunpack.c.h.b16 %v378
    %v1920 = vunpack.c.l.b16 %v379
    %v1921 = vunpack.c.h.b16 %v379
    %v1922 = vunpack.c.l.b16 %v380
    %v1923 = vunpack.c.h.b16 %v380
    %v1924 = vunpack.c.l.b16 %v381
    %v1925 = vunpack.c.h.b16 %v381
    %v1926 = vunpack.c.l.b16 %v382
    %v1927 = vunpack.c.h.b16 %v382
    %v1928 = vunpack.c.l.b16 %v383
    %v1929 = vunpack.c.h.b16 %v383
    %v1930 = vunpack.c.l.b16 %v384
    %v1931 = vunpack.c.h.b16 %v384
    %v1932 = vunpack.c.l.b16 %v385
    %v1933 = vunpack.c.h.b16 %v385
    %v1934 = vunpack.c.l.b16 %v386
    %v1935 = vunpack.c.h.b16 %v386
    %v1936 = vunpack.c.l.b16 %v387
    %v1937 = vunpack.c.h.b16 %v387
    %v1938 = vunpack.c.l.b16 %v388
    %v1939 = vunpack.c.h.b16 %v388
    %v1940 = vunpack.c.l.b16 %v389
    %v1941 = vunpack.c.h.b16 %v389
    %v1942 = vunpack.c.l.b16 %v390
    %v1943 = vunpack.c.h.b16 %v390
    %v1944 = vunpack.c.l.b16 %v391
    %v1945 = vunpack.c.h.b16 %v391
    %v1946 = vunpack.c.l.b16 %v392
    %v1947 = vunpack.c.h.b16 %v392
    %v1948 = vunpack.c.l.b16 %v393
    %v1949 = vunpack.c.h.b16 %v393
    %v1950 = vunpack.c.l.b16 %v394
    %v1951 = vunpack.c.h.b16 %v394
    %v1952 = vunpack.c.l.b16 %v395
    %v1953 = vunpack.c.h.b16 %v395
    %v1954 = vunpack.c.l.b16 %v396
    %v1955 = vunpack.c.h.b16 %v396
    %v1956 = vunpack.c.l.b16 %v397
    %v1957 = vunpack.c.h.b16 %v397
    %v1958 = vunpack.c.l.b16 %v398
    %v1959 = vunpack.c.h.b16 %v398
    %v1960 = vunpack.c.l.b16 %v399
    %v1961 = vunpack.c.h.b16 %v399
    %v1962 = vunpack.c.l.b16 %v400
    %v1963 = vunpack.c.h.b16 %v400
    %v1964 = vunpack.c.l.b16 %v401
    %v1965 = vunpack.c.h.b16 %v401
    %v1966 = vunpack.c.l.b16 %v402
    %v1967 = vunpack.c.h.b16 %v402
    %v1968 = vunpack.c.l.b16 %v403
    %v1969 = vunpack.c.h.b16 %v403
    %v1970 = vunpack.c.l.b16 %v404
    %v1971 = vunpack.c.h.b16 %v404
    %v1972 = vunpack.c.l.b16 %v405
    %v1973 = vunpack.c.h.b16 %v405
    %v1974 = vunpack.c.l.b16 %v406
    %v1975 = vunpack.c.h.b16 %v406
    %v1976 = vunpack.c.l.b16 %v407
    %v1977 = vunpack.c.h.b16 %v407
    %v1978 = vunpack.c.l.b16 %v408
    %v1979 = vunpack.c.h.b16 %v408
    %v1980 = vunpack.c.l.b16 %v409
    %v1981 = vunpack.c.h.b16 %v409
    %v1982 = vunpack.c.l.b16 %v410
    %v1983 = vunpack.c.h.b16 %v410
    %v1984 = vunpack.c.l.b16 %v411
    %v1985 = vunpack.c.h.b16 %v411
    %v1986 = vunpack.c.l.b16 %v412
    %v1987 = vunpack.c.h.b16 %v412
    %v1988 = vunpack.c.l.b16 %v413
    %v1989 = vunpack.c.h.b16 %v413
    %v1990 = vunpack.c.l.b16 %v414
    %v1991 = vunpack.c.h.b16 %v414
    %v1992 = vunpack.c.l.b16 %v415
    %v1993 = vunpack.c.h.b16 %v415
    %v1994 = vunpack.c.l.b16 %v416
    %v1995 = vunpack.c.h.b16 %v416
    %v1996 = vunpack.c.l.b16 %v417
    %v1997 = vunpack.c.h.b16 %v417
    %v1998 = vunpack.c.l.b16 %v418
    %v1999 = vunpack.c.h.b16 %v418
    %v2000 = vunpack.c.l.b16 %v419
    %v2001 = vunpack.c.h.b16 %v419
    %v2002 = vunpack.c.l.b16 %v420
    %v2003 = vunpack.c.h.b16 %v420
    %v2004 = vunpack.c.l.b16 %v421
    %v2005 = vunpack.c.h.b16 %v421
    %v2006 = vunpack.c.l.b16 %v422
    %v2007 = vunpack.c.h.b16 %v422
    %v2008 = vunpack.c.l.b16 %v423
    %v2009 = vunpack.c.h.b16 %v423
    %v2010 = vunpack.c.l.b16 %v424
    %v2011 = vunpack.c.h.b16 %v424
    %v2012 = vunpack.c.l.b16 %v425
    %v2013 = vunpack.c.h.b16 %v425
    %v2014 = vunpack.c.l.b16 %v426
    %v2015 = vunpack.c.h.b16 %v426
    %v2016 = vunpack.c.l.b16 %v427
    %v2017 = vunpack.c.h.b16 %v427
    %v2018 = vunpack.c.l.b16 %v428
    %v2019 = vunpack.c.h.b16 %v428
    %v2020 = vunpack.c.l.b16 %v429
    %v2021 = vunpack.c.h.b16 %v429
    %v2022 = vunpack.c.l.b16 %v430
    %v2023 = vunpack.c.h.b16 %v430
    %v2024 = vunpack.c.l.b16 %v431
    %v2025 = vunpack.c.h.b16 %v431
    %v2026 = vunpack.c.l.b16 %v432
    %v2027 = vunpack.c.h.b16 %v432
    %v2028 = vunpack.c.l.b16 %v433
    %v2029 = vunpack.c.h.b16 %v433
    %v2030 = vunpack.c.l.b16 %v434
    %v2031 = vunpack.c.h.b16 %v434
    %v2032 = vunpack.c.l.b16 %v435
    %v2033 = vunpack.c.h.b16 %v435
    %v2034 = vunpack.c.l.b16 %v436
    %v2035 = vunpack.c.h.b16 %v436
    %v2036 = vunpack.c.l.b16 %v437
    %v2037 = vunpack.c.h.b16 %v437
    %v2038 = vunpack.c.l.b16 %v438
    %v2039 = vunpack.c.h.b16 %v438
    %v2040 = vunpack.c.l.b16 %v439
    %v2041 = vunpack.c.h.b16 %v439
    %v2042 = vunpack.c.l.b16 %v440
    %v2043 = vunpack.c.h.b16 %v440
    %v2044 = vunpack.c.l.b16 %v441
    %v2045 = vunpack.c.h.b16 %v441
    %v2046 = vunpack.c.l.b16 %v442
    %v2047 = vunpack.c.h.b16 %v442
    %v2048 = vunpack.c.l.b16 %v443
    %v2049 = vunpack.c.h.b16 %v443
    %v2050 = vunpack.c.l.b16 %v444
    %v2051 = vunpack.c.h.b16 %v444
    %v2052 = vunpack.c.l.b16 %v445
    %v2053 = vunpack.c.h.b16 %v445
    %v2054 = vunpack.c.l.b16 %v446
    %v2055 = vunpack.c.h.b16 %v446
    %v2056 = vunpack.c.l.b16 %v447
    %v2057 = vunpack.c.h.b16 %v447
    %v2058 = vunpack.c.l.b16 %v448
    %v2059 = vunpack.c.h.b16 %v448
    %v2060 = vunpack.c.l.b16 %v449
    %v2061 = vunpack.c.h.b16 %v449
    %v2062 = vunpack.c.l.b16 %v450
    %v2063 = vunpack.c.h.b16 %v450
    %v2064 = vunpack.c.l.b16 %v451
    %v2065 = vunpack.c.h.b16 %v451
    %v2066 = vunpack.c.l.b16 %v452
    %v2067 = vunpack.c.h.b16 %v452
    %v2068 = vunpack.c.l.b16 %v453
    %v2069 = vunpack.c.h.b16 %v453
    %v2070 = vunpack.c.l.b16 %v454
    %v2071 = vunpack.c.h.b16 %v454
    %v2072 = vunpack.c.l.b16 %v455
    %v2073 = vunpack.c.h.b16 %v455
    %v2074 = vunpack.c.l.b16 %v456
    %v2075 = vunpack.c.h.b16 %v456
    %v2076 = vunpack.c.l.b16 %v457
    %v2077 = vunpack.c.h.b16 %v457
    %v2078 = vunpack.c.l.b16 %v458
    %v2079 = vunpack.c.h.b16 %v458
    %v2080 = vunpack.c.l.b16 %v459
    %v2081 = vunpack.c.h.b16 %v459
    %v2082 = vunpack.c.l.b16 %v460
    %v2083 = vunpack.c.h.b16 %v460
    %v2084 = vunpack.c.l.b16 %v461
    %v2085 = vunpack.c.h.b16 %v461
    %v2086 = vunpack.c.l.b16 %v462
    %v2087 = vunpack.c.h.b16 %v462
    %v2088 = vunpack.c.l.b16 %v463
    %v2089 = vunpack.c.h.b16 %v463
    %v2090 = vunpack.c.l.b16 %v464
    %v2091 = vunpack.c.h.b16 %v464
    %v2092 = vunpack.c.l.b16 %v465
    %v2093 = vunpack.c.h.b16 %v465
    %v2094 = vunpack.c.l.b16 %v466
    %v2095 = vunpack.c.h.b16 %v466
    %v2096 = vunpack.c.l.b16 %v467
    %v2097 = vunpack.c.h.b16 %v467
    %v2098 = vunpack.c.l.b16 %v468
    %v2099 = vunpack.c.h.b16 %v468
    %v2100 = vunpack.c.l.b16 %v469
    %v2101 = vunpack.c.h.b16 %v469
    %v2102 = vunpack.c.l.b16 %v470
    %v2103 = vunpack.c.h.b16 %v470
    %v2104 = vunpack.c.l.b16 %v471
    %v2105 = vunpack.c.h.b16 %v471
    %v2106 = vunpack.c.l.b16 %v472
    %v2107 = vunpack.c.h.b16 %v472
    %v2108 = vunpack.c.l.b16 %v473
    %v2109 = vunpack.c.h.b16 %v473
    %v2110 = vunpack.c.l.b16 %v474
    %v2111 = vunpack.c.h.b16 %v474
    %v2112 = vunpack.c.l.b16 %v475
    %v2113 = vunpack.c.h.b16 %v475
    %v2114 = vunpack.c.l.b16 %v476
    %v2115 = vunpack.c.h.b16 %v476
    %v2116 = vunpack.c.l.b16 %v477
    %v2117 = vunpack.c.h.b16 %v477
    %v2118 = vunpack.c.l.b16 %v478
    %v2119 = vunpack.c.h.b16 %v478
    %v2120 = vunpack.c.l.b16 %v479
    %v2121 = vunpack.c.h.b16 %v479
    %v2122 = vunpack.c.l.b16 %v480
    %v2123 = vunpack.c.h.b16 %v480
    %v2124 = vunpack.c.l.b16 %v481
    %v2125 = vunpack.c.h.b16 %v481
    %v2126 = vunpack.c.l.b16 %v482
    %v2127 = vunpack.c.h.b16 %v482
    %v2128 = vunpack.c.l.b16 %v483
    %v2129 = vunpack.c.h.b16 %v483
    %v2130 = vunpack.c.l.b16 %v484
    %v2131 = vunpack.c.h.b16 %v484
    %v2132 = vunpack.c.l.b16 %v485
    %v2133 = vunpack.c.h.b16 %v485
    %v2134 = vunpack.c.l.b16 %v486
    %v2135 = vunpack.c.h.b16 %v486
    %v2136 = vunpack.c.l.b16 %v487
    %v2137 = vunpack.c.h.b16 %v487
    %v2138 = vunpack.c.l.b16 %v488
    %v2139 = vunpack.c.h.b16 %v488
    %v2140 = vunpack.c.l.b16 %v489
    %v2141 = vunpack.c.h.b16 %v489
    %v2142 = vunpack.c.l.b16 %v490
    %v2143 = vunpack.c.h.b16 %v490
    %v2144 = vunpack.c.l.b16 %v491
    %v2145 = vunpack.c.h.b16 %v491
    %v2146 = vunpack.c.l.b16 %v492
    %v2147 = vunpack.c.h.b16 %v492
    %v2148 = vunpack.c.l.b16 %v493
    %v2149 = vunpack.c.h.b16 %v493
    %v2150 = vunpack.c.l.b16 %v494
    %v2151 = vunpack.c.h.b16 %v494
    %v2152 = vunpack.c.l.b16 %v495
    %v2153 = vunpack.c.h.b16 %v495
    %v2154 = vunpack.c.l.b16 %v496
    %v2155 = vunpack.c.h.b16 %v496
    %v2156 = vunpack.c.l.b16 %v497
    %v2157 = vunpack.c.h.b16 %v497
    %v2158 = vunpack.c.l.b16 %v498
    %v2159 = vunpack.c.h.b16 %v498
    %v2160 = vunpack.c.l.b16 %v499
    %v2161 = vunpack.c.h.b16 %v499
    %v2162 = vunpack.c.l.b16 %v500
    %v2163 = vunpack.c.h.b16 %v500
    %v2164 = vunpack.c.l.b16 %v501
    %v2165 = vunpack.c.h.b16 %v501
    %v2166 = vunpack.c.l.b16 %v502
    %v2167 = vunpack.c.h.b16 %v502
    %v2168 = vunpack.c.l.b16 %v503
    %v2169 = vunpack.c.h.b16 %v503
    %v2170 = vunpack.c.l.b16 %v504
    %v2171 = vunpack.c.h.b16 %v504
    %v2172 = vunpack.c.l.b16 %v505
    %v2173 = vunpack.c.h.b16 %v505
    %v2174 = vunpack.c.l.b16 %v506
    %v2175 = vunpack.c.h.b16 %v506
    %v2176 = vunpack.c.l.b16 %v507
    %v2177 = vunpack.c.h.b16 %v507
    %v2178 = vunpack.c.l.b16 %v508
    %v2179 = vunpack.c.h.b16 %v508
    %v2180 = vunpack.c.l.b16 %v509
    %v2181 = vunpack.c.h.b16 %v509
    %v2182 = vunpack.c.l.b16 %v510
    %v2183 = vunpack.c.h.b16 %v510
    %v2184 = vunpack.c.l.b16 %v511
    %v2185 = vunpack.c.h.b16 %v511
    %v2186 = vunpack.c.l.b16 %v512
    %v2187 = vunpack.c.h.b16 %v512
    %v2188 = vunpack.c.l.b16 %v513
    %v2189 = vunpack.c.h.b16 %v513
    %v2190 = vunpack.c.l.b16 %v514
    %v2191 = vunpack.c.h.b16 %v514
    %v2192 = vunpack.c.l.b16 %v515
    %v2193 = vunpack.c.h.b16 %v515
    %v2194 = vunpack.c.l.b16 %v516
    %v2195 = vunpack.c.h.b16 %v516
    %v2196 = vunpack.c.l.b16 %v517
    %v2197 = vunpack.c.h.b16 %v517
    %v2198 = vunpack.c.l.b16 %v518
    %v2199 = vunpack.c.h.b16 %v518
    %v2200 = vunpack.c.l.b16 %v519
    %v2201 = vunpack.c.h.b16 %v519
    %v2202 = vunpack.c.l.b16 %v520
    %v2203 = vunpack.c.h.b16 %v520
    %v2204 = vunpack.c.l.b16 %v521
    %v2205 = vunpack.c.h.b16 %v521
    %v2206 = vunpack.c.l.b16 %v522
    %v2207 = vunpack.c.h.b16 %v522
    %v2208 = vunpack.c.l.b16 %v523
    %v2209 = vunpack.c.h.b16 %v523
    %v2210 = vunpack.c.l.b16 %v524
    %v2211 = vunpack.c.h.b16 %v524
    %v2212 = vunpack.c.l.b16 %v525
    %v2213 = vunpack.c.h.b16 %v525
    %v2214 = vunpack.c.l.b16 %v526
    %v2215 = vunpack.c.h.b16 %v526
    %v2216 = vunpack.c.l.b16 %v527
    %v2217 = vunpack.c.h.b16 %v527
    %v2218 = vunpack.c.l.b16 %v528
    %v2219 = vunpack.c.h.b16 %v528
    %v2220 = vunpack.c.l.b16 %v529
    %v2221 = vunpack.c.h.b16 %v529
    %v2222 = vunpack.c.l.b16 %v530
    %v2223 = vunpack.c.h.b16 %v530
    %v2224 = vunpack.c.l.b16 %v531
    %v2225 = vunpack.c.h.b16 %v531
    %v2226 = vunpack.c.l.b16 %v532
    %v2227 = vunpack.c.h.b16 %v532
    %v2228 = vunpack.c.l.b16 %v533
    %v2229 = vunpack.c.h.b16 %v533
    %v2230 = vunpack.c.l.b16 %v534
    %v2231 = vunpack.c.h.b16 %v534
    %v2232 = vunpack.c.l.b16 %v535
    %v2233 = vunpack.c.h.b16 %v535
    %v2234 = vunpack.c.l.b16 %v536
    %v2235 = vunpack.c.h.b16 %v536
    %v2236 = vunpack.c.l.b16 %v537
    %v2237 = vunpack.c.h.b16 %v537
    %v2238 = vunpack.c.l.b16 %v538
    %v2239 = vunpack.c.h.b16 %v538
    %v2240 = vunpack.c.l.b16 %v539
    %v2241 = vunpack.c.h.b16 %v539
    %v2242 = vunpack.c.l.b16 %v540
    %v2243 = vunpack.c.h.b16 %v540
    %v2244 = vunpack.c.l.b16 %v541
    %v2245 = vunpack.c.h.b16 %v541
    %v2246 = vunpack.c.l.b16 %v542
    %v2247 = vunpack.c.h.b16 %v542
    %v2248 = vunpack.c.l.b16 %v543
    %v2249 = vunpack.c.h.b16 %v543
    %v2250 = vunpack.c.l.b16 %v544
    %v2251 = vunpack.c.h.b16 %v544
    %v2252 = vunpack.c.l.b16 %v545
    %v2253 = vunpack.c.h.b16 %v545
    %v2254 = vunpack.c.l.b16 %v546
    %v2255 = vunpack.c.h.b16 %v546
    %v2256 = vunpack.c.l.b16 %v547
    %v2257 = vunpack.c.h.b16 %v547
    %v2258 = vunpack.c.l.b16 %v548
    %v2259 = vunpack.c.h.b16 %v548
    %v2260 = vunpack.c.l.b16 %v549
    %v2261 = vunpack.c.h.b16 %v549
    %v2262 = vunpack.c.l.b16 %v550
    %v2263 = vunpack.c.h.b16 %v550
    %v2264 = vunpack.c.l.b16 %v551
    %v2265 = vunpack.c.h.b16 %v551
    %v2266 = vunpack.c.l.b16 %v552
    %v2267 = vunpack.c.h.b16 %v552
    %v2268 = vunpack.c.l.b16 %v553
    %v2269 = vunpack.c.h.b16 %v553
    %v2270 = vunpack.c.l.b16 %v554
    %v2271 = vunpack.c.h.b16 %v554
    %v2272 = vunpack.c.l.b16 %v555
    %v2273 = vunpack.c.h.b16 %v555
    %v2274 = vunpack.c.l.b16 %v556
    %v2275 = vunpack.c.h.b16 %v556
    %v2276 = vunpack.c.l.b16 %v557
    %v2277 = vunpack.c.h.b16 %v557
    %v2278 = vunpack.c.l.b16 %v558
    %v2279 = vunpack.c.h.b16 %v558
    %v2280 = vunpack.c.l.b16 %v559
    %v2281 = vunpack.c.h.b16 %v559
    %v2282 = vunpack.c.l.b16 %v560
    %v2283 = vunpack.c.h.b16 %v560
    %v2284 = vunpack.c.l.b16 %v561
    %v2285 = vunpack.c.h.b16 %v561
    %v2286 = vunpack.c.l.b16 %v562
    %v2287 = vunpack.c.h.b16 %v562
    %v2288 = vunpack.c.l.b16 %v563
    %v2289 = vunpack.c.h.b16 %v563
    %v2290 = vunpack.c.l.b16 %v564
    %v2291 = vunpack.c.h.b16 %v564
    %v2292 = vunpack.c.l.b16 %v565
    %v2293 = vunpack.c.h.b16 %v565
    %v2294 = vunpack.c.l.b16 %v566
    %v2295 = vunpack.c.h.b16 %v566
    %v2296 = vunpack.c.l.b16 %v567
    %v2297 = vunpack.c.h.b16 %v567
    %v2298 = vunpack.c.l.b16 %v568
    %v2299 = vunpack.c.h.b16 %v568
    %v2300 = vunpack.c.l.b16 %v569
    %v2301 = vunpack.c.h.b16 %v569
    %v2302 = vunpack.c.l.b16 %v570
    %v2303 = vunpack.c.h.b16 %v570
    %v2304 = vunpack.c.l.b16 %v571
    %v2305 = vunpack.c.h.b16 %v571
    %v2306 = vunpack.c.l.b16 %v572
    %v2307 = vunpack.c.h.b16 %v572
    %v2308 = vunpack.c.l.b16 %v573
    %v2309 = vunpack.c.h.b16 %v573
    %v2310 = vunpack.c.l.b16 %v574
    %v2311 = vunpack.c.h.b16 %v574
    %v2312 = vunpack.c.l.b16 %v575
    %v2313 = vunpack.c.h.b16 %v575
    %v2314 = vpack.c.b16 %v1240, %v1234
    %v2315 = vpack.c.b16 %v1241, %v1235
    %v2316 = vpack.c.b16 %v1242, %v1236
    %v2317 = vpack.c.b16 %v1243, %v1237
    %v2318 = vpack.c.b16 %v1244, %v1238
    %v2319 = vpack.c.b16 %v1245, %v1239
    %v2320 = vpack.c.b16 %v1252, %v1246
    %v2321 = vpack.c.b16 %v1253, %v1247
    %v2322 = vpack.c.b16 %v1254, %v1248
    %v2323 = vpack.c.b16 %v1255, %v1249
    %v2324 = vpack.c.b16 %v1256, %v1250
    %v2325 = vpack.c.b16 %v1257, %v1251
    %v2326 = vpack.c.b16 %v1264, %v1258
    %v2327 = vpack.c.b16 %v1265, %v1259
    %v2328 = vpack.c.b16 %v1266, %v1260
    %v2329 = vpack.c.b16 %v1267, %v1261
    %v2330 = vpack.c.b16 %v1268, %v1262
    %v2331 = vpack.c.b16 %v1269, %v1263
    %v2332 = vpack.c.b16 %v1276, %v1270
    %v2333 = vpack.c.b16 %v1277, %v1271
    %v2334 = vpack.c.b16 %v1278, %v1272
    %v2335 = vpack.c.b16 %v1279, %v1273
    %v2336 = vpack.c.b16 %v1280, %v1274
    %v2337 = vpack.c.b16 %v1281, %v1275
    %v2338 = vpack.c.b16 %v1288, %v1282
    %v2339 = vpack.c.b16 %v1289, %v1283
    %v2340 = vpack.c.b16 %v1290, %v1284
    %v2341 = vpack.c.b16 %v1291, %v1285
    %v2342 = vpack.c.b16 %v1292, %v1286
    %v2343 = vpack.c.b16 %v1293, %v1287
    %v2344 = vpack.c.b16 %v1300, %v1294
    %v2345 = vpack.c.b16 %v1301, %v1295
    %v2346 = vpack.c.b16 %v1302, %v1296
    %v2347 = vpack.c.b16 %v1303, %v1297
    %v2348 = vpack.c.b16 %v1304, %v1298
    %v2349 = vpack.c.b16 %v1305, %v1299
    %v2350 = vpack.c.b16 %v1312, %v1306
    %v2351 = vpack.c.b16 %v1313, %v1307
    %v2352 = vpack.c.b16 %v1314, %v1308
    %v2353 = vpack.c.b16 %v1315, %v1309
    %v2354 = vpack.c.b16 %v1316, %v1310
    %v2355 = vpack.c.b16 %v1317, %v1311
    %v2356 = vpack.c.b16 %v1324, %v1318
    %v2357 = vpack.c.b16 %v1325, %v1319
    %v2358 = vpack.c.b16 %v1326, %v1320
    %v2359 = vpack.c.b16 %v1327, %v1321
    %v2360 = vpack.c.b16 %v1328, %v1322
    %v2361 = vpack.c.b16 %v1329, %v1323
    %v2362 = vpack.c.b16 %v1336, %v1330
    %v2363 = vpack.c.b16 %v1337, %v1331
    %v2364 = vpack.c.b16 %v1338, %v1332
    %v2365 = vpack.c.b16 %v1339, %v1333
    %v2366 = vpack.c.b16 %v1340, %v1334
    %v2367 = vpack.c.b16 %v1341, %v1335
    %v2368 = vpack.c.b16 %v1348, %v1342
    %v2369 = vpack.c.b16 %v1349, %v1343
    %v2370 = vpack.c.b16 %v1350, %v1344
    %v2371 = vpack.c.b16 %v1351, %v1345
    %v2372 = vpack.c.b16 %v1352, %v1346
    %v2373 = vpack.c.b16 %v1353, %v1347
    %v2374 = vpack.c.b16 %v1360, %v1354
    %v2375 = vpack.c.b16 %v1361, %v1355
    %v2376 = vpack.c.b16 %v1362, %v1356
    %v2377 = vpack.c.b16 %v1363, %v1357
    %v2378 = vpack.c.b16 %v1364, %v1358
    %v2379 = vpack.c.b16 %v1365, %v1359
    %v2380 = vpack.c.b16 %v1372, %v1366
    %v2381 = vpack.c.b16 %v1373, %v1367
    %v2382 = vpack.c.b16 %v1374, %v1368
    %v2383 = vpack.c.b16 %v1375, %v1369
    %v2384 = vpack.c.b16 %v1376, %v1370
    %v2385 = vpack.c.b16 %v1377, %v1371
    %v2386 = vpack.c.b16 %v1384, %v1378
    %v2387 = vpack.c.b16 %v1385, %v1379
    %v2388 = vpack.c.b16 %v1386, %v1380
    %v2389 = vpack.c.b16 %v1387, %v1381
    %v2390 = vpack.c.b16 %v1388, %v1382
    %v2391 = vpack.c.b16 %v1389, %v1383
    %v2392 = vpack.c.b16 %v1396, %v1390
    %v2393 = vpack.c.b16 %v1397, %v1391
    %v2394 = vpack.c.b16 %v1398, %v1392
    %v2395 = vpack.c.b16 %v1399, %v1393
    %v2396 = vpack.c.b16 %v1400, %v1394
    %v2397 = vpack.c.b16 %v1401, %v1395
    %v2398 = vpack.c.b16 %v1408, %v1402
    %v2399 = vpack.c.b16 %v1409, %v1403
    %v2400 = vpack.c.b16 %v1410, %v1404
    %v2401 = vpack.c.b16 %v1411, %v1405
    %v2402 = vpack.c.b16 %v1412, %v1406
    %v2403 = vpack.c.b16 %v1413, %v1407
    %v2404 = vpack.c.b16 %v1420, %v1414
    %v2405 = vpack.c.b16 %v1421, %v1415
    %v2406 = vpack.c.b16 %v1422, %v1416
    %v2407 = vpack.c.b16 %v1423, %v1417
    %v2408 = vpack.c.b16 %v1424, %v1418
    %v2409 = vpack.c.b16 %v1425, %v1419
    %v2410 = vpack.c.b16 %v1432, %v1426
    %v2411 = vpack.c.b16 %v1433, %v1427
    %v2412 = vpack.c.b16 %v1434, %v1428
    %v2413 = vpack.c.b16 %v1435, %v1429
    %v2414 = vpack.c.b16 %v1436, %v1430
    %v2415 = vpack.c.b16 %v1437, %v1431
    %v2416 = vpack.c.b16 %v1444, %v1438
    %v2417 = vpack.c.b16 %v1445, %v1439
    %v2418 = vpack.c.b16 %v1446, %v1440
    %v2419 = vpack.c.b16 %v1447, %v1441
    %v2420 = vpack.c.b16 %v1448, %v1442
    %v2421 = vpack.c.b16 %v1449, %v1443
    %v2422 = vpack.c.b16 %v1456, %v1450
    %v2423 = vpack.c.b16 %v1457, %v1451
    %v2424 = vpack.c.b16 %v1458, %v1452
    %v2425 = vpack.c.b16 %v1459, %v1453
    %v2426 = vpack.c.b16 %v1460, %v1454
    %v2427 = vpack.c.b16 %v1461, %v1455
    %v2428 = vpack.c.b16 %v1468, %v1462
    %v2429 = vpack.c.b16 %v1469, %v1463
    %v2430 = vpack.c.b16 %v1470, %v1464
    %v2431 = vpack.c.b16 %v1471, %v1465
    %v2432 = vpack.c.b16 %v1472, %v1466
    %v2433 = vpack.c.b16 %v1473, %v1467
    %v2434 = vpack.c.b16 %v1480, %v1474
    %v2435 = vpack.c.b16 %v1481, %v1475
    %v2436 = vpack.c.b16 %v1482, %v1476
    %v2437 = vpack.c.b16 %v1483, %v1477
    %v2438 = vpack.c.b16 %v1484, %v1478
    %v2439 = vpack.c.b16 %v1485, %v1479
    %v2440 = vpack.c.b16 %v1492, %v1486
    %v2441 = vpack.c.b16 %v1493, %v1487
    %v2442 = vpack.c.b16 %v1494, %v1488
    %v2443 = vpack.c.b16 %v1495, %v1489
    %v2444 = vpack.c.b16 %v1496, %v1490
    %v2445 = vpack.c.b16 %v1497, %v1491
    %v2446 = vpack.c.b16 %v1504, %v1498
    %v2447 = vpack.c.b16 %v1505, %v1499
    %v2448 = vpack.c.b16 %v1506, %v1500
    %v2449 = vpack.c.b16 %v1507, %v1501
    %v2450 = vpack.c.b16 %v1508, %v1502
    %v2451 = vpack.c.b16 %v1509, %v1503
    %v2452 = vpack.c.b16 %v1516, %v1510
    %v2453 = vpack.c.b16 %v1517, %v1511
    %v2454 = vpack.c.b16 %v1518, %v1512
    %v2455 = vpack.c.b16 %v1519, %v1513
    %v2456 = vpack.c.b16 %v1520, %v1514
    %v2457 = vpack.c.b16 %v1521, %v1515
    %v2458 = vpack.c.b16 %v1528, %v1522
    %v2459 = vpack.c.b16 %v1529, %v1523
    %v2460 = vpack.c.b16 %v1530, %v1524
    %v2461 = vpack.c.b16 %v1531, %v1525
    %v2462 = vpack.c.b16 %v1532, %v1526
    %v2463 = vpack.c.b16 %v1533, %v1527
    %v2464 = vpack.c.b16 %v1540, %v1534
    %v2465 = vpack.c.b16 %v1541, %v1535
    %v2466 = vpack.c.b16 %v1542, %v1536
    %v2467 = vpack.c.b16 %v1543, %v1537
    %v2468 = vpack.c.b16 %v1544, %v1538
    %v2469 = vpack.c.b16 %v1545, %v1539
    %v2470 = vpack.c.b16 %v1552, %v1546
    %v2471 = vpack.c.b16 %v1553, %v1547
    %v2472 = vpack.c.b16 %v1554, %v1548
    %v2473 = vpack.c.b16 %v1555, %v1549
    %v2474 = vpack.c.b16 %v1556, %v1550
    %v2475 = vpack.c.b16 %v1557, %v1551
    %v2476 = vpack.c.b16 %v1564, %v1558
    %v2477 = vpack.c.b16 %v1565, %v1559
    %v2478 = vpack.c.b16 %v1566, %v1560
    %v2479 = vpack.c.b16 %v1567, %v1561
    %v2480 = vpack.c.b16 %v1568, %v1562
    %v2481 = vpack.c.b16 %v1569, %v1563
    %v2482 = vpack.c.b16 %v1576, %v1570
    %v2483 = vpack.c.b16 %v1577, %v1571
    %v2484 = vpack.c.b16 %v1578, %v1572
    %v2485 = vpack.c.b16 %v1579, %v1573
    %v2486 = vpack.c.b16 %v1580, %v1574
    %v2487 = vpack.c.b16 %v1581, %v1575
    %v2488 = vpack.c.b16 %v1588, %v1582
    %v2489 = vpack.c.b16 %v1589, %v1583
    %v2490 = vpack.c.b16 %v1590, %v1584
    %v2491 = vpack.c.b16 %v1591, %v1585
    %v2492 = vpack.c.b16 %v1592, %v1586
    %v2493 = vpack.c.b16 %v1593, %v1587
    %v2494 = vpack.c.b16 %v1600, %v1594
    %v2495 = vpack.c.b16 %v1601, %v1595
    %v2496 = vpack.c.b16 %v1602, %v1596
    %v2497 = vpack.c.b16 %v1603, %v1597
    %v2498 = vpack.c.b16 %v1604, %v1598
    %v2499 = vpack.c.b16 %v1605, %v1599
    %v2500 = vpack.c.b16 %v1612, %v1606
    %v2501 = vpack.c.b16 %v1613, %v1607
    %v2502 = vpack.c.b16 %v1614, %v1608
    %v2503 = vpack.c.b16 %v1615, %v1609
    %v2504 = vpack.c.b16 %v1616, %v1610
    %v2505 = vpack.c.b16 %v1617, %v1611
    %v2506 = vpack.c.b16 %v1624, %v1618
    %v2507 = vpack.c.b16 %v1625, %v1619
    %v2508 = vpack.c.b16 %v1626, %v1620
    %v2509 = vpack.c.b16 %v1627, %v1621
    %v2510 = vpack.c.b16 %v1628, %v1622
    %v2511 = vpack.c.b16 %v1629, %v1623
    %v2512 = vpack.c.b16 %v1636, %v1630
    %v2513 = vpack.c.b16 %v1637, %v1631
    %v2514 = vpack.c.b16 %v1638, %v1632
    %v2515 = vpack.c.b16 %v1639, %v1633
    %v2516 = vpack.c.b16 %v1640, %v1634
    %v2517 = vpack.c.b16 %v1641, %v1635
    %v2518 = vpack.c.b16 %v1648, %v1642
    %v2519 = vpack.c.b16 %v1649, %v1643
    %v2520 = vpack.c.b16 %v1650, %v1644
    %v2521 = vpack.c.b16 %v1651, %v1645
    %v2522 = vpack.c.b16 %v1652, %v1646
    %v2523 = vpack.c.b16 %v1653, %v1647
    %v2524 = vpack.c.b16 %v1660, %v1654
    %v2525 = vpack.c.b16 %v1661, %v1655
    %v2526 = vpack.c.b16 %v1662, %v1656
    %v2527 = vpack.c.b16 %v1663, %v1657
    %v2528 = vpack.c.b16 %v1664, %v1658
    %v2529 = vpack.c.b16 %v1665, %v1659
    %v2530 = vpack.c.b16 %v1672, %v1666
    %v2531 = vpack.c.b16 %v1673, %v1667
    %v2532 = vpack.c.b16 %v1674, %v1668
    %v2533 = vpack.c.b16 %v1675, %v1669
    %v2534 = vpack.c.b16 %v1676, %v1670
    %v2535 = vpack.c.b16 %v1677, %v1671
    %v2536 = vpack.c.b16 %v1684, %v1678
    %v2537 = vpack.c.b16 %v1685, %v1679
    %v2538 = vpack.c.b16 %v1686, %v1680
    %v2539 = vpack.c.b16 %v1687, %v1681
    %v2540 = vpack.c.b16 %v1688, %v1682
    %v2541 = vpack.c.b16 %v1689, %v1683
    %v2542 = vpack.c.b16 %v1696, %v1690
    %v2543 = vpack.c.b16 %v1697, %v1691
    %v2544 = vpack.c.b16 %v1698, %v1692
    %v2545 = vpack.c.b16 %v1699, %v1693
    %v2546 = vpack.c.b16 %v1700, %v1694
    %v2547 = vpack.c.b16 %v1701, %v1695
    %v2548 = vpack.c.b16 %v1708, %v1702
    %v2549 = vpack.c.b16 %v1709, %v1703
    %v2550 = vpack.c.b16 %v1710, %v1704
    %v2551 = vpack.c.b16 %v1711, %v1705
    %v2552 = vpack.c.b16 %v1712, %v1706
    %v2553 = vpack.c.b16 %v1713, %v1707
    %v2554 = vpack.c.b16 %v1720, %v1714
    %v2555 = vpack.c.b16 %v1721, %v1715
    %v2556 = vpack.c.b16 %v1722, %v1716
    %v2557 = vpack.c.b16 %v1723, %v1717
    %v2558 = vpack.c.b16 %v1724, %v1718
    %v2559 = vpack.c.b16 %v1725, %v1719
    %v2560 = vpack.c.b16 %v1732, %v1726
    %v2561 = vpack.c.b16 %v1733, %v1727
    %v2562 = vpack.c.b16 %v1734, %v1728
    %v2563 = vpack.c.b16 %v1735, %v1729
    %v2564 = vpack.c.b16 %v1736, %v1730
    %v2565 = vpack.c.b16 %v1737, %v1731
    %v2566 = vpack.c.b16 %v1744, %v1738
    %v2567 = vpack.c.b16 %v1745, %v1739
    %v2568 = vpack.c.b16 %v1746, %v1740
    %v2569 = vpack.c.b16 %v1747, %v1741
    %v2570 = vpack.c.b16 %v1748, %v1742
    %v2571 = vpack.c.b16 %v1749, %v1743
    %v2572 = vpack.c.b16 %v1756, %v1750
    %v2573 = vpack.c.b16 %v1757, %v1751
    %v2574 = vpack.c.b16 %v1758, %v1752
    %v2575 = vpack.c.b16 %v1759, %v1753
    %v2576 = vpack.c.b16 %v1760, %v1754
    %v2577 = vpack.c.b16 %v1761, %v1755
    %v2578 = vpack.c.b16 %v1768, %v1762
    %v2579 = vpack.c.b16 %v1769, %v1763
    %v2580 = vpack.c.b16 %v1770, %v1764
    %v2581 = vpack.c.b16 %v1771, %v1765
    %v2582 = vpack.c.b16 %v1772, %v1766
    %v2583 = vpack.c.b16 %v1773, %v1767
    %v2584 = vpack.c.b16 %v1780, %v1774
    %v2585 = vpack.c.b16 %v1781, %v1775
    %v2586 = vpack.c.b16 %v1782, %v1776
    %v2587 = vpack.c.b16 %v1783, %v1777
    %v2588 = vpack.c.b16 %v1784, %v1778
    %v2589 = vpack.c.b16 %v1785, %v1779
    %v2590 = vpack.c.b16 %v1792, %v1786
    %v2591 = vpack.c.b16 %v1793, %v1787
    %v2592 = vpack.c.b16 %v1794, %v1788
    %v2593 = vpack.c.b16 %v1795, %v1789
    %v2594 = vpack.c.b16 %v1796, %v1790
    %v2595 = vpack.c.b16 %v1797, %v1791
    %v2596 = vpack.c.b16 %v1804, %v1798
    %v2597 = vpack.c.b16 %v1805, %v1799
    %v2598 = vpack.c.b16 %v1806, %v1800
    %v2599 = vpack.c.b16 %v1807, %v1801
    %v2600 = vpack.c.b16 %v1808, %v1802
    %v2601 = vpack.c.b16 %v1809, %v1803
    %v2602 = vpack.c.b16 %v1816, %v1810
    %v2603 = vpack.c.b16 %v1817, %v1811
    %v2604 = vpack.c.b16 %v1818, %v1812
    %v2605 = vpack.c.b16 %v1819, %v1813
    %v2606 = vpack.c.b16 %v1820, %v1814
    %v2607 = vpack.c.b16 %v1821, %v1815
    %v2608 = vpack.c.b16 %v1828, %v1822
    %v2609 = vpack.c.b16 %v1829, %v1823
    %v2610 = vpack.c.b16 %v1830, %v1824
    %v2611 = vpack.c.b16 %v1831, %v1825
    %v2612 = vpack.c.b16 %v1832, %v1826
    %v2613 = vpack.c.b16 %v1833, %v1827
    %v2614 = vpack.c.b16 %v1840, %v1834
    %v2615 = vpack.c.b16 %v1841, %v1835
    %v2616 = vpack.c.b16 %v1842, %v1836
    %v2617 = vpack.c.b16 %v1843, %v1837
    %v2618 = vpack.c.b16 %v1844, %v1838
    %v2619 = vpack.c.b16 %v1845, %v1839
    %v2620 = vpack.c.b16 %v1852, %v1846
    %v2621 = vpack.c.b16 %v1853, %v1847
    %v2622 = vpack.c.b16 %v1854, %v1848
    %v2623 = vpack.c.b16 %v1855, %v1849
    %v2624 = vpack.c.b16 %v1856, %v1850
    %v2625 = vpack.c.b16 %v1857, %v1851
    %v2626 = vpack.c.b16 %v1864, %v1858
    %v2627 = vpack.c.b16 %v1865, %v1859
    %v2628 = vpack.c.b16 %v1866, %v1860
    %v2629 = vpack.c.b16 %v1867, %v1861
    %v2630 = vpack.c.b16 %v1868, %v1862
    %v2631 = vpack.c.b16 %v1869, %v1863
    %v2632 = vpack.c.b16 %v1876, %v1870
    %v2633 = vpack.c.b16 %v1877, %v1871
    %v2634 = vpack.c.b16 %v1878, %v1872
    %v2635 = vpack.c.b16 %v1879, %v1873
    %v2636 = vpack.c.b16 %v1880, %v1874
    %v2637 = vpack.c.b16 %v1881, %v1875
    %v2638 = vpack.c.b16 %v1888, %v1882
    %v2639 = vpack.c.b16 %v1889, %v1883
    %v2640 = vpack.c.b16 %v1890, %v1884
    %v2641 = vpack.c.b16 %v1891, %v1885
    %v2642 = vpack.c.b16 %v1892, %v1886
    %v2643 = vpack.c.b16 %v1893, %v1887
    %v2644 = vpack.c.b16 %v1900, %v1894
    %v2645 = vpack.c.b16 %v1901, %v1895
    %v2646 = vpack.c.b16 %v1902, %v1896
    %v2647 = vpack.c.b16 %v1903, %v1897
    %v2648 = vpack.c.b16 %v1904, %v1898
    %v2649 = vpack.c.b16 %v1905, %v1899
    %v2650 = vpack.c.b16 %v1912, %v1906
    %v2651 = vpack.c.b16 %v1913, %v1907
    %v2652 = vpack.c.b16 %v1914, %v1908
    %v2653 = vpack.c.b16 %v1915, %v1909
    %v2654 = vpack.c.b16 %v1916, %v1910
    %v2655 = vpack.c.b16 %v1917, %v1911
    %v2656 = vpack.c.b16 %v1924, %v1918
    %v2657 = vpack.c.b16 %v1925, %v1919
    %v2658 = vpack.c.b16 %v1926, %v1920
    %v2659 = vpack.c.b16 %v1927, %v1921
    %v2660 = vpack.c.b16 %v1928, %v1922
    %v2661 = vpack.c.b16 %v1929, %v1923
    %v2662 = vpack.c.b16 %v1936, %v1930
    %v2663 = vpack.c.b16 %v1937, %v1931
    %v2664 = vpack.c.b16 %v1938, %v1932
    %v2665 = vpack.c.b16 %v1939, %v1933
    %v2666 = vpack.c.b16 %v1940, %v1934
    %v2667 = vpack.c.b16 %v1941, %v1935
    %v2668 = vpack.c.b16 %v1948, %v1942
    %v2669 = vpack.c.b16 %v1949, %v1943
    %v2670 = vpack.c.b16 %v1950, %v1944
    %v2671 = vpack.c.b16 %v1951, %v1945
    %v2672 = vpack.c.b16 %v1952, %v1946
    %v2673 = vpack.c.b16 %v1953, %v1947
    %v2674 = vpack.c.b16 %v1960, %v1954
    %v2675 = vpack.c.b16 %v1961, %v1955
    %v2676 = vpack.c.b16 %v1962, %v1956
    %v2677 = vpack.c.b16 %v1963, %v1957
    %v2678 = vpack.c.b16 %v1964, %v1958
    %v2679 = vpack.c.b16 %v1965, %v1959
    %v2680 = vpack.c.b16 %v1972, %v1966
    %v2681 = vpack.c.b16 %v1973, %v1967
    %v2682 = vpack.c.b16 %v1974, %v1968
    %v2683 = vpack.c.b16 %v1975, %v1969
    %v2684 = vpack.c.b16 %v1976, %v1970
    %v2685 = vpack.c.b16 %v1977, %v1971
    %v2686 = vpack.c.b16 %v1984, %v1978
    %v2687 = vpack.c.b16 %v1985, %v1979
    %v2688 = vpack.c.b16 %v1986, %v1980
    %v2689 = vpack.c.b16 %v1987, %v1981
    %v2690 = vpack.c.b16 %v1988, %v1982
    %v2691 = vpack.c.b16 %v1989, %v1983
    %v2692 = vpack.c.b16 %v1996, %v1990
    %v2693 = vpack.c.b16 %v1997, %v1991
    %v2694 = vpack.c.b16 %v1998, %v1992
    %v2695 = vpack.c.b16 %v1999, %v1993
    %v2696 = vpack.c.b16 %v2000, %v1994
    %v2697 = vpack.c.b16 %v2001, %v1995
    %v2698 = vpack.c.b16 %v2008, %v2002
    %v2699 = vpack.c.b16 %v2009, %v2003
    %v2700 = vpack.c.b16 %v2010, %v2004
    %v2701 = vpack.c.b16 %v2011, %v2005
    %v2702 = vpack.c.b16 %v2012, %v2006
    %v2703 = vpack.c.b16 %v2013, %v2007
    %v2704 = vpack.c.b16 %v2020, %v2014
    %v2705 = vpack.c.b16 %v2021, %v2015
    %v2706 = vpack.c.b16 %v2022, %v2016
    %v2707 = vpack.c.b16 %v2023, %v2017
    %v2708 = vpack.c.b16 %v2024, %v2018
    %v2709 = vpack.c.b16 %v2025, %v2019
    %v2710 = vpack.c.b16 %v2032, %v2026
    %v2711 = vpack.c.b16 %v2033, %v2027
    %v2712 = vpack.c.b16 %v2034, %v2028
    %v2713 = vpack.c.b16 %v2035, %v2029
    %v2714 = vpack.c.b16 %v2036, %v2030
    %v2715 = vpack.c.b16 %v2037, %v2031
    %v2716 = vpack.c.b16 %v2044, %v2038
    %v2717 = vpack.c.b16 %v2045, %v2039
    %v2718 = vpack.c.b16 %v2046, %v2040
    %v2719 = vpack.c.b16 %v2047, %v2041
    %v2720 = vpack.c.b16 %v2048, %v2042
    %v2721 = vpack.c.b16 %v2049, %v2043
    %v2722 = vpack.c.b16 %v2056, %v2050
    %v2723 = vpack.c.b16 %v2057, %v2051
    %v2724 = vpack.c.b16 %v2058, %v2052
    %v2725 = vpack.c.b16 %v2059, %v2053
    %v2726 = vpack.c.b16 %v2060, %v2054
    %v2727 = vpack.c.b16 %v2061, %v2055
    %v2728 = vpack.c.b16 %v2068, %v2062
    %v2729 = vpack.c.b16 %v2069, %v2063
    %v2730 = vpack.c.b16 %v2070, %v2064
    %v2731 = vpack.c.b16 %v2071, %v2065
    %v2732 = vpack.c.b16 %v2072, %v2066
    %v2733 = vpack.c.b16 %v2073, %v2067
    %v2734 = vpack.c.b16 %v2080, %v2074
    %v2735 = vpack.c.b16 %v2081, %v2075
    %v2736 = vpack.c.b16 %v2082, %v2076
    %v2737 = vpack.c.b16 %v2083, %v2077
    %v2738 = vpack.c.b16 %v2084, %v2078
    %v2739 = vpack.c.b16 %v2085, %v2079
    %v2740 = vpack.c.b16 %v2092, %v2086
    %v2741 = vpack.c.b16 %v2093, %v2087
    %v2742 = vpack.c.b16 %v2094, %v2088
    %v2743 = vpack.c.b16 %v2095, %v2089
    %v2744 = vpack.c.b16 %v2096, %v2090
    %v2745 = vpack.c.b16 %v2097, %v2091
    %v2746 = vpack.c.b16 %v2104, %v2098
    %v2747 = vpack.c.b16 %v2105, %v2099
    %v2748 = vpack.c.b16 %v2106, %v2100
    %v2749 = vpack.c.b16 %v2107, %v2101
    %v2750 = vpack.c.b16 %v2108, %v2102
    %v2751 = vpack.c.b16 %v2109, %v2103
    %v2752 = vpack.c.b16 %v2116, %v2110
    %v2753 = vpack.c.b16 %v2117, %v2111
    %v2754 = vpack.c.b16 %v2118, %v2112
    %v2755 = vpack.c.b16 %v2119, %v2113
    %v2756 = vpack.c.b16 %v2120, %v2114
    %v2757 = vpack.c.b16 %v2121, %v2115
    %v2758 = vpack.c.b16 %v2128, %v2122
    %v2759 = vpack.c.b16 %v2129, %v2123
    %v2760 = vpack.c.b16 %v2130, %v2124
    %v2761 = vpack.c.b16 %v2131, %v2125
    %v2762 = vpack.c.b16 %v2132, %v2126
    %v2763 = vpack.c.b16 %v2133, %v2127
    %v2764 = vpack.c.b16 %v2140, %v2134
    %v2765 = vpack.c.b16 %v2141, %v2135
    %v2766 = vpack.c.b16 %v2142, %v2136
    %v2767 = vpack.c.b16 %v2143, %v2137
    %v2768 = vpack.c.b16 %v2144, %v2138
    %v2769 = vpack.c.b16 %v2145, %v2139
    %v2770 = vpack.c.b16 %v2152, %v2146
    %v2771 = vpack.c.b16 %v2153, %v2147
    %v2772 = vpack.c.b16 %v2154, %v2148
    %v2773 = vpack.c.b16 %v2155, %v2149
    %v2774 = vpack.c.b16 %v2156, %v2150
    %v2775 = vpack.c.b16 %v2157, %v2151
    %v2776 = vpack.c.b16 %v2164, %v2158
    %v2777 = vpack.c.b16 %v2165, %v2159
    %v2778 = vpack.c.b16 %v2166, %v2160
    %v2779 = vpack.c.b16 %v2167, %v2161
    %v2780 = vpack.c.b16 %v2168, %v2162
    %v2781 = vpack.c.b16 %v2169, %v2163
    %v2782 = vpack.c.b16 %v2176, %v2170
    %v2783 = vpack.c.b16 %v2177, %v2171
    %v2784 = vpack.c.b16 %v2178, %v2172
    %v2785 = vpack.c.b16 %v2179, %v2173
    %v2786 = vpack.c.b16 %v2180, %v2174
    %v2787 = vpack.c.b16 %v2181, %v2175
    %v2788 = vpack.c.b16 %v2188, %v2182
    %v2789 = vpack.c.b16 %v2189, %v2183
    %v2790 = vpack.c.b16 %v2190, %v2184
    %v2791 = vpack.c.b16 %v2191, %v2185
    %v2792 = vpack.c.b16 %v2192, %v2186
    %v2793 = vpack.c.b16 %v2193, %v2187
    %v2794 = vpack.c.b16 %v2200, %v2194
    %v2795 = vpack.c.b16 %v2201, %v2195
    %v2796 = vpack.c.b16 %v2202, %v2196
    %v2797 = vpack.c.b16 %v2203, %v2197
    %v2798 = vpack.c.b16 %v2204, %v2198
    %v2799 = vpack.c.b16 %v2205, %v2199
    %v2800 = vpack.c.b16 %v2212, %v2206
    %v2801 = vpack.c.b16 %v2213, %v2207
    %v2802 = vpack.c.b16 %v2214, %v2208
    %v2803 = vpack.c.b16 %v2215, %v2209
    %v2804 = vpack.c.b16 %v2216, %v2210
    %v2805 = vpack.c.b16 %v2217, %v2211
    %v2806 = vpack.c.b16 %v2224, %v2218
    %v2807 = vpack.c.b16 %v2225, %v2219
    %v2808 = vpack.c.b16 %v2226, %v2220
    %v2809 = vpack.c.b16 %v2227, %v2221
    %v2810 = vpack.c.b16 %v2228, %v2222
    %v2811 = vpack.c.b16 %v2229, %v2223
    %v2812 = vpack.c.b16 %v2236, %v2230
    %v2813 = vpack.c.b16 %v2237, %v2231
    %v2814 = vpack.c.b16 %v2238, %v2232
    %v2815 = vpack.c.b16 %v2239, %v2233
    %v2816 = vpack.c.b16 %v2240, %v2234
    %v2817 = vpack.c.b16 %v2241, %v2235
    %v2818 = vpack.c.b16 %v2248, %v2242
    %v2819 = vpack.c.b16 %v2249, %v2243
    %v2820 = vpack.c.b16 %v2250, %v2244
    %v2821 = vpack.c.b16 %v2251, %v2245
    %v2822 = vpack.c.b16 %v2252, %v2246
    %v2823 = vpack.c.b16 %v2253, %v2247
    %v2824 = vpack.c.b16 %v2260, %v2254
    %v2825 = vpack.c.b16 %v2261, %v2255
    %v2826 = vpack.c.b16 %v2262, %v2256
    %v2827 = vpack.c.b16 %v2263, %v2257
    %v2828 = vpack.c.b16 %v2264, %v2258
    %v2829 = vpack.c.b16 %v2265, %v2259
    %v2830 = vpack.c.b16 %v2272, %v2266
    %v2831 = vpack.c.b16 %v2273, %v2267
    %v2832 = vpack.c.b16 %v2274, %v2268
    %v2833 = vpack.c.b16 %v2275, %v2269
    %v2834 = vpack.c.b16 %v2276, %v2270
    %v2835 = vpack.c.b16 %v2277, %v2271
    %v2836 = vpack.c.b16 %v2284, %v2278
    %v2837 = vpack.c.b16 %v2285, %v2279
    %v2838 = vpack.c.b16 %v2286, %v2280
    %v2839 = vpack.c.b16 %v2287, %v2281
    %v2840 = vpack.c.b16 %v2288, %v2282
    %v2841 = vpack.c.b16 %v2289, %v2283
    %v2842 = vpack.c.b16 %v2296, %v2290
    %v2843 = vpack.c.b16 %v2297, %v2291
    %v2844 = vpack.c.b16 %v2298, %v2292
    %v2845 = vpack.c.b16 %v2299, %v2293
    %v2846 = vpack.c.b16 %v2300, %v2294
    %v2847 = vpack.c.b16 %v2301, %v2295
    %v2848 = vpack.c.b16 %v2308, %v2302
    %v2849 = vpack.c.b16 %v2309, %v2303
    %v2850 = vpack.c.b16 %v2310, %v2304
    %v2851 = vpack.c.b16 %v2311, %v2305
    %v2852 = vpack.c.b16 %v2312, %v2306
    %v2853 = vpack.c.b16 %v2313, %v2307
    %vm3394 = vcmask 261120
    %v3396 = vsel %vm3394, %v682, 0
    %3398 = vmatprep.subr.bf16.mxu0 %v2315
    %3399 = vmatpush1.bf16.msra.mxu0 %v2314
    %3400 = vmatprep.subr.bf16.mxu0 %v2321
    %3401 = vmatpush1.bf16.msra.mxu0 %v2320
    %3402 = vmatprep.subr.bf16.mxu0 %v2327
    %3403 = vmatpush1.bf16.msra.mxu0 %v2326
    %3404 = vmatprep.subr.bf16.mxu0 %v2333
    %3405 = vmatpush1.bf16.msra.mxu0 %v2332
    %3406 = vmatprep.subr.bf16.mxu0 %v2339
    %3407 = vmatpush1.bf16.msra.mxu0 %v2338
    %3408 = vmatprep.subr.bf16.mxu0 %v2345
    %3409 = vmatpush1.bf16.msra.mxu0 %v2344
    %3410 = vmatprep.subr.bf16.mxu0 %v2351
    %3411 = vmatpush1.bf16.msra.mxu0 %v2350
    %3412 = vmatprep.subr.bf16.mxu0 %v2357
    %3413 = vmatpush1.bf16.msra.mxu0 %v2356
    %3414 = vmatprep.subr.bf16.mxu0 %v2363
    %3415 = vmatpush1.bf16.msra.mxu0 %v2362
    %3416 = vmatprep.subr.bf16.mxu0 %v2369
    %3417 = vmatpush1.bf16.msra.mxu0 %v2368
    %3418 = vmatprep.subr.bf16.mxu0 %v2375
    %3419 = vmatpush1.bf16.msra.mxu0 %v2374
    %3420 = vmatprep.subr.bf16.mxu0 %v2381
    %3421 = vmatpush1.bf16.msra.mxu0 %v2380
    %3422 = vmatprep.subr.bf16.mxu0 %v2387
    %3423 = vmatpush1.bf16.msra.mxu0 %v2386
    %3424 = vmatprep.subr.bf16.mxu0 %v2393
    %3425 = vmatpush1.bf16.msra.mxu0 %v2392
    %3426 = vmatprep.subr.bf16.mxu0 %v2399
    %3427 = vmatpush1.bf16.msra.mxu0 %v2398
    %3428 = vmatprep.subr.bf16.mxu0 %v2405
    %3429 = vmatpush1.bf16.msra.mxu0 %v2404
    %3430 = vmatprep.mubr.bf16.mxu0 %v647
    %3431 = vmatmul.mubr.bf16.gmra.mrb[0].mxu0 %v633
    %v3432 = vpop.f32.mrb[0].mxu0
    %v3433 = vadd.f32 %v581, %v3432
    %v3434 = vpop.f32.mrb[0].mxu0
    %v3435 = vadd.f32 %v585, %v3434
    %v3436 = vpop.f32.mrb[0].mxu0
    %v3437 = vpop.f32.mrb[0].mxu0
    %3438 = vdwg.mxu0
    %3439 = vmatprep.subr.bf16.mxu0 %v2411
    %3440 = vmatpush1.bf16.msra.mxu0 %v2410
    %3441 = vmatprep.subr.bf16.mxu0 %v2417
    %3442 = vmatpush1.bf16.msra.mxu0 %v2416
    %3443 = vmatprep.subr.bf16.mxu0 %v2423
    %3444 = vmatpush1.bf16.msra.mxu0 %v2422
    %3445 = vmatprep.subr.bf16.mxu0 %v2429
    %3446 = vmatpush1.bf16.msra.mxu0 %v2428
    %3447 = vmatprep.subr.bf16.mxu0 %v2435
    %3448 = vmatpush1.bf16.msra.mxu0 %v2434
    %3449 = vmatprep.subr.bf16.mxu0 %v2441
    %3450 = vmatpush1.bf16.msra.mxu0 %v2440
    %3451 = vmatprep.subr.bf16.mxu0 %v2447
    %3452 = vmatpush1.bf16.msra.mxu0 %v2446
    %3453 = vmatprep.subr.bf16.mxu0 %v2453
    %3454 = vmatpush1.bf16.msra.mxu0 %v2452
    %3455 = vmatprep.subr.bf16.mxu0 %v2459
    %3456 = vmatpush1.bf16.msra.mxu0 %v2458
    %3457 = vmatprep.subr.bf16.mxu0 %v2465
    %3458 = vmatpush1.bf16.msra.mxu0 %v2464
    %3459 = vmatprep.subr.bf16.mxu0 %v2471
    %3460 = vmatpush1.bf16.msra.mxu0 %v2470
    %3461 = vmatprep.subr.bf16.mxu0 %v2477
    %3462 = vmatpush1.bf16.msra.mxu0 %v2476
    %3463 = vmatprep.subr.bf16.mxu0 %v2483
    %3464 = vmatpush1.bf16.msra.mxu0 %v2482
    %3465 = vmatprep.subr.bf16.mxu0 %v2489
    %3466 = vmatpush1.bf16.msra.mxu0 %v2488
    %3467 = vmatprep.subr.bf16.mxu0 %v2495
    %3468 = vmatpush1.bf16.msra.mxu0 %v2494
    %3469 = vmatprep.subr.bf16.mxu0 %v2501
    %3470 = vmatpush1.bf16.msra.mxu0 %v2500
    %3471 = vmatprep.mubr.bf16.mxu0 %v657
    %3472 = vmatmul.mubr.bf16.gmra.mrb[0].mxu0 %v655
    %v3473 = vpop.f32.mrb[0].mxu0
    %v3474 = vadd.f32 %v3433, %v3473
    %v3475 = vpop.f32.mrb[0].mxu0
    %v3476 = vadd.f32 %v3435, %v3475
    %v3477 = vpop.f32.mrb[0].mxu0
    %v3478 = vpop.f32.mrb[0].mxu0
    %3479 = vdwg.mxu0
    %3480 = vmatprep.subr.bf16.mxu0 %v2507
    %3481 = vmatpush1.bf16.msra.mxu0 %v2506
    %3482 = vmatprep.subr.bf16.mxu0 %v2513
    %3483 = vmatpush1.bf16.msra.mxu0 %v2512
    %3484 = vmatprep.subr.bf16.mxu0 %v2519
    %3485 = vmatpush1.bf16.msra.mxu0 %v2518
    %3486 = vmatprep.subr.bf16.mxu0 %v2525
    %3487 = vmatpush1.bf16.msra.mxu0 %v2524
    %3488 = vmatprep.subr.bf16.mxu0 %v2531
    %3489 = vmatpush1.bf16.msra.mxu0 %v2530
    %3490 = vmatprep.subr.bf16.mxu0 %v2537
    %3491 = vmatpush1.bf16.msra.mxu0 %v2536
    %3492 = vmatprep.subr.bf16.mxu0 %v2543
    %3493 = vmatpush1.bf16.msra.mxu0 %v2542
    %3494 = vmatprep.subr.bf16.mxu0 %v2549
    %3495 = vmatpush1.bf16.msra.mxu0 %v2548
    %3496 = vmatprep.subr.bf16.mxu0 %v2555
    %3497 = vmatpush1.bf16.msra.mxu0 %v2554
    %3498 = vmatprep.subr.bf16.mxu0 %v2561
    %3499 = vmatpush1.bf16.msra.mxu0 %v2560
    %3500 = vmatprep.subr.bf16.mxu0 %v2567
    %3501 = vmatpush1.bf16.msra.mxu0 %v2566
    %3502 = vmatprep.subr.bf16.mxu0 %v2573
    %3503 = vmatpush1.bf16.msra.mxu0 %v2572
    %3504 = vmatprep.subr.bf16.mxu0 %v2579
    %3505 = vmatpush1.bf16.msra.mxu0 %v2578
    %3506 = vmatprep.subr.bf16.mxu0 %v2585
    %3507 = vmatpush1.bf16.msra.mxu0 %v2584
    %3508 = vmatprep.subr.bf16.mxu0 %v2591
    %3509 = vmatpush1.bf16.msra.mxu0 %v2590
    %3510 = vmatprep.subr.bf16.mxu0 %v2597
    %3511 = vmatpush1.bf16.msra.mxu0 %v2596
    %3512 = vmatprep.mubr.bf16.mxu0 %v654
    %3513 = vmatmul.mubr.bf16.gmra.mrb[0].mxu0 %v640
    %v3514 = vpop.f32.mrb[0].mxu0
    %v3515 = vadd.f32 %v3474, %v3514
    %v3516 = vpop.f32.mrb[0].mxu0
    %v3517 = vadd.f32 %v3476, %v3516
    %v3518 = vpop.f32.mrb[0].mxu0
    %v3519 = vpop.f32.mrb[0].mxu0
    %3520 = vdwg.mxu0
    %3521 = vmatprep.subr.bf16.mxu0 %v2603
    %3522 = vmatpush1.bf16.msra.mxu0 %v2602
    %3523 = vmatprep.subr.bf16.mxu0 %v2609
    %3524 = vmatpush1.bf16.msra.mxu0 %v2608
    %3525 = vmatprep.subr.bf16.mxu0 %v2615
    %3526 = vmatpush1.bf16.msra.mxu0 %v2614
    %3527 = vmatprep.subr.bf16.mxu0 %v2621
    %3528 = vmatpush1.bf16.msra.mxu0 %v2620
    %3529 = vmatprep.subr.bf16.mxu0 %v2627
    %3530 = vmatpush1.bf16.msra.mxu0 %v2626
    %3531 = vmatprep.subr.bf16.mxu0 %v2633
    %3532 = vmatpush1.bf16.msra.mxu0 %v2632
    %3533 = vmatprep.subr.bf16.mxu0 %v2639
    %3534 = vmatpush1.bf16.msra.mxu0 %v2638
    %3535 = vmatprep.subr.bf16.mxu0 %v2645
    %3536 = vmatpush1.bf16.msra.mxu0 %v2644
    %3537 = vmatprep.subr.bf16.mxu0 %v2651
    %3538 = vmatpush1.bf16.msra.mxu0 %v2650
    %3539 = vmatprep.subr.bf16.mxu0 %v2657
    %3540 = vmatpush1.bf16.msra.mxu0 %v2656
    %3541 = vmatprep.subr.bf16.mxu0 %v2663
    %3542 = vmatpush1.bf16.msra.mxu0 %v2662
    %3543 = vmatprep.subr.bf16.mxu0 %v2669
    %3544 = vmatpush1.bf16.msra.mxu0 %v2668
    %3545 = vmatprep.subr.bf16.mxu0 %v2675
    %3546 = vmatpush1.bf16.msra.mxu0 %v2674
    %3547 = vmatprep.subr.bf16.mxu0 %v2681
    %3548 = vmatpush1.bf16.msra.mxu0 %v2680
    %3549 = vmatprep.subr.bf16.mxu0 %v2687
    %3550 = vmatpush1.bf16.msra.mxu0 %v2686
    %3551 = vmatprep.subr.bf16.mxu0 %v2693
    %3552 = vmatpush1.bf16.msra.mxu0 %v2692
    %3553 = vmatprep.mubr.bf16.mxu0 %v658
    %3554 = vmatmul.mubr.bf16.gmra.mrb[0].mxu0 %v656
    %v3555 = vpop.f32.mrb[0].mxu0
    %v3556 = vadd.f32 %v3515, %v3555
    %v3557 = vpop.f32.mrb[0].mxu0
    %v3558 = vadd.f32 %v3517, %v3557
    %v3559 = vpop.f32.mrb[0].mxu0
    %v3560 = vpop.f32.mrb[0].mxu0
    %3561 = vdwg.mxu0
    %3562 = vmatprep.subr.bf16.mxu0 %v2699
    %3563 = vmatpush1.bf16.msra.mxu0 %v2698
    %3564 = vmatprep.subr.bf16.mxu0 %v2705
    %3565 = vmatpush1.bf16.msra.mxu0 %v2704
    %3566 = vmatprep.subr.bf16.mxu0 %v2711
    %3567 = vmatpush1.bf16.msra.mxu0 %v2710
    %3568 = vmatprep.subr.bf16.mxu0 %v2717
    %3569 = vmatpush1.bf16.msra.mxu0 %v2716
    %3570 = vmatprep.subr.bf16.mxu0 %v2723
    %3571 = vmatpush1.bf16.msra.mxu0 %v2722
    %3572 = vmatprep.subr.bf16.mxu0 %v2729
    %3573 = vmatpush1.bf16.msra.mxu0 %v2728
    %3574 = vmatprep.subr.bf16.mxu0 %v2735
    %3575 = vmatpush1.bf16.msra.mxu0 %v2734
    %3576 = vmatprep.subr.bf16.mxu0 %v2741
    %3577 = vmatpush1.bf16.msra.mxu0 %v2740
    %3578 = vmatprep.subr.bf16.mxu0 %v2747
    %3579 = vmatpush1.bf16.msra.mxu0 %v2746
    %3580 = vmatprep.subr.bf16.mxu0 %v2753
    %3581 = vmatpush1.bf16.msra.mxu0 %v2752
    %3582 = vmatprep.subr.bf16.mxu0 %v2759
    %3583 = vmatpush1.bf16.msra.mxu0 %v2758
    %3584 = vmatprep.subr.bf16.mxu0 %v2765
    %3585 = vmatpush1.bf16.msra.mxu0 %v2764
    %3586 = vmatprep.subr.bf16.mxu0 %v2771
    %3587 = vmatpush1.bf16.msra.mxu0 %v2770
    %3588 = vmatprep.subr.bf16.mxu0 %v2777
    %3589 = vmatpush1.bf16.msra.mxu0 %v2776
    %3590 = vmatprep.subr.bf16.mxu0 %v2783
    %3591 = vmatpush1.bf16.msra.mxu0 %v2782
    %3592 = vmatprep.subr.bf16.mxu0 %v2789
    %3593 = vmatpush1.bf16.msra.mxu0 %v2788
    %3594 = vmatprep.mubr.bf16.mxu0 %v680
    %3595 = vmatmul.mubr.bf16.gmra.mrb[0].mxu0 %v673
    %v3596 = vpop.f32.mrb[0].mxu0
    %v3597 = vadd.f32 %v3556, %v3596
    %v3598 = vpop.f32.mrb[0].mxu0
    %v3599 = vadd.f32 %v3558, %v3598
    %v3600 = vpop.f32.mrb[0].mxu0
    %v3601 = vpop.f32.mrb[0].mxu0
    %3602 = vdwg.mxu0
    %3603 = vmatprep.subr.bf16.mxu0 %v2795
    %3604 = vmatpush1.bf16.msra.mxu0 %v2794
    %3605 = vmatprep.subr.bf16.mxu0 %v2801
    %3606 = vmatpush1.bf16.msra.mxu0 %v2800
    %3607 = vmatprep.subr.bf16.mxu0 %v2807
    %3608 = vmatpush1.bf16.msra.mxu0 %v2806
    %3609 = vmatprep.subr.bf16.mxu0 %v2813
    %3610 = vmatpush1.bf16.msra.mxu0 %v2812
    %3611 = vmatprep.subr.bf16.mxu0 %v2819
    %3612 = vmatpush1.bf16.msra.mxu0 %v2818
    %3613 = vmatprep.subr.bf16.mxu0 %v2825
    %3614 = vmatpush1.bf16.msra.mxu0 %v2824
    %3615 = vmatprep.subr.bf16.mxu0 %v2831
    %3616 = vmatpush1.bf16.msra.mxu0 %v2830
    %3617 = vmatprep.subr.bf16.mxu0 %v2837
    %3618 = vmatpush1.bf16.msra.mxu0 %v2836
    %3619 = vmatprep.subr.bf16.mxu0 %v2843
    %3620 = vmatpush1.bf16.msra.mxu0 %v2842
    %3621 = vmatprep.subr.bf16.mxu0 %v2849
    %3622 = vmatpush1.bf16.msra.mxu0 %v2848
    %3623 = vmatprep.subr.bf16.mxu0 0
    %3624 = vmatpush1.bf16.msra.mxu0 0
    %3625 = vmatprep.subr.bf16.mxu0 0
    %3626 = vmatpush1.bf16.msra.mxu0 0
    %3627 = vmatprep.subr.bf16.mxu0 0
    %3628 = vmatpush1.bf16.msra.mxu0 0
    %3629 = vmatprep.subr.bf16.mxu0 0
    %3630 = vmatpush1.bf16.msra.mxu0 0
    %3631 = vmatprep.subr.bf16.mxu0 0
    %3632 = vmatpush1.bf16.msra.mxu0 0
    %3633 = vmatprep.subr.bf16.mxu0 0
    %3634 = vmatpush1.bf16.msra.mxu0 0
    %3635 = vmatprep.mubr.bf16.mxu0 %v3396
    %3636 = vmatmul.mubr.bf16.gmra.mrb[0].mxu0 %v681
    %v3637 = vpop.f32.mrb[0].mxu0
    %v3638 = vadd.f32 %v3597, %v3637
    %v3639 = vpop.f32.mrb[0].mxu0
    %v3640 = vadd.f32 %v3599, %v3639
    %v3641 = vpop.f32.mrb[0].mxu0
    %v3642 = vpop.f32.mrb[0].mxu0
    %3643 = vdwg.mxu0
    %3644 = vmatprep.subr.bf16.mxu0 %v2317
    %3645 = vmatpush1.bf16.msra.mxu0 %v2316
    %3646 = vmatprep.subr.bf16.mxu0 %v2323
    %3647 = vmatpush1.bf16.msra.mxu0 %v2322
    %3648 = vmatprep.subr.bf16.mxu0 %v2329
    %3649 = vmatpush1.bf16.msra.mxu0 %v2328
    %3650 = vmatprep.subr.bf16.mxu0 %v2335
    %3651 = vmatpush1.bf16.msra.mxu0 %v2334
    %3652 = vmatprep.subr.bf16.mxu0 %v2341
    %3653 = vmatpush1.bf16.msra.mxu0 %v2340
    %3654 = vmatprep.subr.bf16.mxu0 %v2347
    %3655 = vmatpush1.bf16.msra.mxu0 %v2346
    %3656 = vmatprep.subr.bf16.mxu0 %v2353
    %3657 = vmatpush1.bf16.msra.mxu0 %v2352
    %3658 = vmatprep.subr.bf16.mxu0 %v2359
    %3659 = vmatpush1.bf16.msra.mxu0 %v2358
    %3660 = vmatprep.subr.bf16.mxu0 %v2365
    %3661 = vmatpush1.bf16.msra.mxu0 %v2364
    %3662 = vmatprep.subr.bf16.mxu0 %v2371
    %3663 = vmatpush1.bf16.msra.mxu0 %v2370
    %3664 = vmatprep.subr.bf16.mxu0 %v2377
    %3665 = vmatpush1.bf16.msra.mxu0 %v2376
    %3666 = vmatprep.subr.bf16.mxu0 %v2383
    %3667 = vmatpush1.bf16.msra.mxu0 %v2382
    %3668 = vmatprep.subr.bf16.mxu0 %v2389
    %3669 = vmatpush1.bf16.msra.mxu0 %v2388
    %3670 = vmatprep.subr.bf16.mxu0 %v2395
    %3671 = vmatpush1.bf16.msra.mxu0 %v2394
    %3672 = vmatprep.subr.bf16.mxu0 %v2401
    %3673 = vmatpush1.bf16.msra.mxu0 %v2400
    %3674 = vmatprep.subr.bf16.mxu0 %v2407
    %3675 = vmatpush1.bf16.msra.mxu0 %v2406
    %3676 = vmatprep.mubr.bf16.mxu0 %v647
    %3677 = vmatmul.mubr.bf16.gmra.mrb[0].mxu0 %v633
    %v3678 = vpop.f32.mrb[0].mxu0
    %v3679 = vadd.f32 %v589, %v3678
    %v3680 = vpop.f32.mrb[0].mxu0
    %v3681 = vadd.f32 %v593, %v3680
    %v3682 = vpop.f32.mrb[0].mxu0
    %v3683 = vpop.f32.mrb[0].mxu0
    %3684 = vdwg.mxu0
    %3685 = vmatprep.subr.bf16.mxu0 %v2413
    %3686 = vmatpush1.bf16.msra.mxu0 %v2412
    %3687 = vmatprep.subr.bf16.mxu0 %v2419
    %3688 = vmatpush1.bf16.msra.mxu0 %v2418
    %3689 = vmatprep.subr.bf16.mxu0 %v2425
    %3690 = vmatpush1.bf16.msra.mxu0 %v2424
    %3691 = vmatprep.subr.bf16.mxu0 %v2431
    %3692 = vmatpush1.bf16.msra.mxu0 %v2430
    %3693 = vmatprep.subr.bf16.mxu0 %v2437
    %3694 = vmatpush1.bf16.msra.mxu0 %v2436
    %3695 = vmatprep.subr.bf16.mxu0 %v2443
    %3696 = vmatpush1.bf16.msra.mxu0 %v2442
    %3697 = vmatprep.subr.bf16.mxu0 %v2449
    %3698 = vmatpush1.bf16.msra.mxu0 %v2448
    %3699 = vmatprep.subr.bf16.mxu0 %v2455
    %3700 = vmatpush1.bf16.msra.mxu0 %v2454
    %3701 = vmatprep.subr.bf16.mxu0 %v2461
    %3702 = vmatpush1.bf16.msra.mxu0 %v2460
    %3703 = vmatprep.subr.bf16.mxu0 %v2467
    %3704 = vmatpush1.bf16.msra.mxu0 %v2466
    %3705 = vmatprep.subr.bf16.mxu0 %v2473
    %3706 = vmatpush1.bf16.msra.mxu0 %v2472
    %3707 = vmatprep.subr.bf16.mxu0 %v2479
    %3708 = vmatpush1.bf16.msra.mxu0 %v2478
    %3709 = vmatprep.subr.bf16.mxu0 %v2485
    %3710 = vmatpush1.bf16.msra.mxu0 %v2484
    %3711 = vmatprep.subr.bf16.mxu0 %v2491
    %3712 = vmatpush1.bf16.msra.mxu0 %v2490
    %3713 = vmatprep.subr.bf16.mxu0 %v2497
    %3714 = vmatpush1.bf16.msra.mxu0 %v2496
    %3715 = vmatprep.subr.bf16.mxu0 %v2503
    %3716 = vmatpush1.bf16.msra.mxu0 %v2502
    %3717 = vmatprep.mubr.bf16.mxu0 %v657
    %3718 = vmatmul.mubr.bf16.gmra.mrb[0].mxu0 %v655
    %v3719 = vpop.f32.mrb[0].mxu0
    %v3720 = vadd.f32 %v3679, %v3719
    %v3721 = vpop.f32.mrb[0].mxu0
    %v3722 = vadd.f32 %v3681, %v3721
    %v3723 = vpop.f32.mrb[0].mxu0
    %v3724 = vpop.f32.mrb[0].mxu0
    %3725 = vdwg.mxu0
    %3726 = vmatprep.subr.bf16.mxu0 %v2509
    %3727 = vmatpush1.bf16.msra.mxu0 %v2508
    %3728 = vmatprep.subr.bf16.mxu0 %v2515
    %3729 = vmatpush1.bf16.msra.mxu0 %v2514
    %3730 = vmatprep.subr.bf16.mxu0 %v2521
    %3731 = vmatpush1.bf16.msra.mxu0 %v2520
    %3732 = vmatprep.subr.bf16.mxu0 %v2527
    %3733 = vmatpush1.bf16.msra.mxu0 %v2526
    %3734 = vmatprep.subr.bf16.mxu0 %v2533
    %3735 = vmatpush1.bf16.msra.mxu0 %v2532
    %3736 = vmatprep.subr.bf16.mxu0 %v2539
    %3737 = vmatpush1.bf16.msra.mxu0 %v2538
    %3738 = vmatprep.subr.bf16.mxu0 %v2545
    %3739 = vmatpush1.bf16.msra.mxu0 %v2544
    %3740 = vmatprep.subr.bf16.mxu0 %v2551
    %3741 = vmatpush1.bf16.msra.mxu0 %v2550
    %3742 = vmatprep.subr.bf16.mxu0 %v2557
    %3743 = vmatpush1.bf16.msra.mxu0 %v2556
    %3744 = vmatprep.subr.bf16.mxu0 %v2563
    %3745 = vmatpush1.bf16.msra.mxu0 %v2562
    %3746 = vmatprep.subr.bf16.mxu0 %v2569
    %3747 = vmatpush1.bf16.msra.mxu0 %v2568
    %3748 = vmatprep.subr.bf16.mxu0 %v2575
    %3749 = vmatpush1.bf16.msra.mxu0 %v2574
    %3750 = vmatprep.subr.bf16.mxu0 %v2581
    %3751 = vmatpush1.bf16.msra.mxu0 %v2580
    %3752 = vmatprep.subr.bf16.mxu0 %v2587
    %3753 = vmatpush1.bf16.msra.mxu0 %v2586
    %3754 = vmatprep.subr.bf16.mxu0 %v2593
    %3755 = vmatpush1.bf16.msra.mxu0 %v2592
    %3756 = vmatprep.subr.bf16.mxu0 %v2599
    %3757 = vmatpush1.bf16.msra.mxu0 %v2598
    %3758 = vmatprep.mubr.bf16.mxu0 %v654
    %3759 = vmatmul.mubr.bf16.gmra.mrb[0].mxu0 %v640
    %v3760 = vpop.f32.mrb[0].mxu0
    %v3761 = vadd.f32 %v3720, %v3760
    %v3762 = vpop.f32.mrb[0].mxu0
    %v3763 = vadd.f32 %v3722, %v3762
    %v3764 = vpop.f32.mrb[0].mxu0
    %v3765 = vpop.f32.mrb[0].mxu0
    %3766 = vdwg.mxu0
    %3767 = vmatprep.subr.bf16.mxu0 %v2605
    %3768 = vmatpush1.bf16.msra.mxu0 %v2604
    %3769 = vmatprep.subr.bf16.mxu0 %v2611
    %3770 = vmatpush1.bf16.msra.mxu0 %v2610
    %3771 = vmatprep.subr.bf16.mxu0 %v2617
    %3772 = vmatpush1.bf16.msra.mxu0 %v2616
    %3773 = vmatprep.subr.bf16.mxu0 %v2623
    %3774 = vmatpush1.bf16.msra.mxu0 %v2622
    %3775 = vmatprep.subr.bf16.mxu0 %v2629
    %3776 = vmatpush1.bf16.msra.mxu0 %v2628
    %3777 = vmatprep.subr.bf16.mxu0 %v2635
    %3778 = vmatpush1.bf16.msra.mxu0 %v2634
    %3779 = vmatprep.subr.bf16.mxu0 %v2641
    %3780 = vmatpush1.bf16.msra.mxu0 %v2640
    %3781 = vmatprep.subr.bf16.mxu0 %v2647
    %3782 = vmatpush1.bf16.msra.mxu0 %v2646
    %3783 = vmatprep.subr.bf16.mxu0 %v2653
    %3784 = vmatpush1.bf16.msra.mxu0 %v2652
    %3785 = vmatprep.subr.bf16.mxu0 %v2659
    %3786 = vmatpush1.bf16.msra.mxu0 %v2658
    %3787 = vmatprep.subr.bf16.mxu0 %v2665
    %3788 = vmatpush1.bf16.msra.mxu0 %v2664
    %3789 = vmatprep.subr.bf16.mxu0 %v2671
    %3790 = vmatpush1.bf16.msra.mxu0 %v2670
    %3791 = vmatprep.subr.bf16.mxu0 %v2677
    %3792 = vmatpush1.bf16.msra.mxu0 %v2676
    %3793 = vmatprep.subr.bf16.mxu0 %v2683
    %3794 = vmatpush1.bf16.msra.mxu0 %v2682
    %3795 = vmatprep.subr.bf16.mxu0 %v2689
    %3796 = vmatpush1.bf16.msra.mxu0 %v2688
    %3797 = vmatprep.subr.bf16.mxu0 %v2695
    %3798 = vmatpush1.bf16.msra.mxu0 %v2694
    %3799 = vmatprep.mubr.bf16.mxu0 %v658
    %3800 = vmatmul.mubr.bf16.gmra.mrb[0].mxu0 %v656
    %v3801 = vpop.f32.mrb[0].mxu0
    %v3802 = vadd.f32 %v3761, %v3801
    %v3803 = vpop.f32.mrb[0].mxu0
    %v3804 = vadd.f32 %v3763, %v3803
    %v3805 = vpop.f32.mrb[0].mxu0
    %v3806 = vpop.f32.mrb[0].mxu0
    %3807 = vdwg.mxu0
    %3808 = vmatprep.subr.bf16.mxu0 %v2701
    %3809 = vmatpush1.bf16.msra.mxu0 %v2700
    %3810 = vmatprep.subr.bf16.mxu0 %v2707
    %3811 = vmatpush1.bf16.msra.mxu0 %v2706
    %3812 = vmatprep.subr.bf16.mxu0 %v2713
    %3813 = vmatpush1.bf16.msra.mxu0 %v2712
    %3814 = vmatprep.subr.bf16.mxu0 %v2719
    %3815 = vmatpush1.bf16.msra.mxu0 %v2718
    %3816 = vmatprep.subr.bf16.mxu0 %v2725
    %3817 = vmatpush1.bf16.msra.mxu0 %v2724
    %3818 = vmatprep.subr.bf16.mxu0 %v2731
    %3819 = vmatpush1.bf16.msra.mxu0 %v2730
    %3820 = vmatprep.subr.bf16.mxu0 %v2737
    %3821 = vmatpush1.bf16.msra.mxu0 %v2736
    %3822 = vmatprep.subr.bf16.mxu0 %v2743
    %3823 = vmatpush1.bf16.msra.mxu0 %v2742
    %3824 = vmatprep.subr.bf16.mxu0 %v2749
    %3825 = vmatpush1.bf16.msra.mxu0 %v2748
    %3826 = vmatprep.subr.bf16.mxu0 %v2755
    %3827 = vmatpush1.bf16.msra.mxu0 %v2754
    %3828 = vmatprep.subr.bf16.mxu0 %v2761
    %3829 = vmatpush1.bf16.msra.mxu0 %v2760
    %3830 = vmatprep.subr.bf16.mxu0 %v2767
    %3831 = vmatpush1.bf16.msra.mxu0 %v2766
    %3832 = vmatprep.subr.bf16.mxu0 %v2773
    %3833 = vmatpush1.bf16.msra.mxu0 %v2772
    %3834 = vmatprep.subr.bf16.mxu0 %v2779
    %3835 = vmatpush1.bf16.msra.mxu0 %v2778
    %3836 = vmatprep.subr.bf16.mxu0 %v2785
    %3837 = vmatpush1.bf16.msra.mxu0 %v2784
    %3838 = vmatprep.subr.bf16.mxu0 %v2791
    %3839 = vmatpush1.bf16.msra.mxu0 %v2790
    %3840 = vmatprep.mubr.bf16.mxu0 %v680
    %3841 = vmatmul.mubr.bf16.gmra.mrb[0].mxu0 %v673
    %v3842 = vpop.f32.mrb[0].mxu0
    %v3843 = vadd.f32 %v3802, %v3842
    %v3844 = vpop.f32.mrb[0].mxu0
    %v3845 = vadd.f32 %v3804, %v3844
    %v3846 = vpop.f32.mrb[0].mxu0
    %v3847 = vpop.f32.mrb[0].mxu0
    %3848 = vdwg.mxu0
    %3849 = vmatprep.subr.bf16.mxu0 %v2797
    %3850 = vmatpush1.bf16.msra.mxu0 %v2796
    %3851 = vmatprep.subr.bf16.mxu0 %v2803
    %3852 = vmatpush1.bf16.msra.mxu0 %v2802
    %3853 = vmatprep.subr.bf16.mxu0 %v2809
    %3854 = vmatpush1.bf16.msra.mxu0 %v2808
    %3855 = vmatprep.subr.bf16.mxu0 %v2815
    %3856 = vmatpush1.bf16.msra.mxu0 %v2814
    %3857 = vmatprep.subr.bf16.mxu0 %v2821
    %3858 = vmatpush1.bf16.msra.mxu0 %v2820
    %3859 = vmatprep.subr.bf16.mxu0 %v2827
    %3860 = vmatpush1.bf16.msra.mxu0 %v2826
    %3861 = vmatprep.subr.bf16.mxu0 %v2833
    %3862 = vmatpush1.bf16.msra.mxu0 %v2832
    %3863 = vmatprep.subr.bf16.mxu0 %v2839
    %3864 = vmatpush1.bf16.msra.mxu0 %v2838
    %3865 = vmatprep.subr.bf16.mxu0 %v2845
    %3866 = vmatpush1.bf16.msra.mxu0 %v2844
    %3867 = vmatprep.subr.bf16.mxu0 %v2851
    %3868 = vmatpush1.bf16.msra.mxu0 %v2850
    %3869 = vmatprep.subr.bf16.mxu0 0
    %3870 = vmatpush1.bf16.msra.mxu0 0
    %3871 = vmatprep.subr.bf16.mxu0 0
    %3872 = vmatpush1.bf16.msra.mxu0 0
    %3873 = vmatprep.subr.bf16.mxu0 0
    %3874 = vmatpush1.bf16.msra.mxu0 0
    %3875 = vmatprep.subr.bf16.mxu0 0
    %3876 = vmatpush1.bf16.msra.mxu0 0
    %3877 = vmatprep.subr.bf16.mxu0 0
    %3878 = vmatpush1.bf16.msra.mxu0 0
    %3879 = vmatprep.subr.bf16.mxu0 0
    %3880 = vmatpush1.bf16.msra.mxu0 0
    %3881 = vmatprep.mubr.bf16.mxu0 %v3396
    %3882 = vmatmul.mubr.bf16.gmra.mrb[0].mxu0 %v681
    %v3883 = vpop.f32.mrb[0].mxu0
    %v3884 = vadd.f32 %v3843, %v3883
    %v3885 = vpop.f32.mrb[0].mxu0
    %v3886 = vadd.f32 %v3845, %v3885
    %v3887 = vpop.f32.mrb[0].mxu0
    %v3888 = vpop.f32.mrb[0].mxu0
    %3889 = vdwg.mxu0
    %3890 = vmatprep.subr.bf16.mxu0 %v2319
    %3891 = vmatpush1.bf16.msra.mxu0 %v2318
    %3892 = vmatprep.subr.bf16.mxu0 %v2325
    %3893 = vmatpush1.bf16.msra.mxu0 %v2324
    %3894 = vmatprep.subr.bf16.mxu0 %v2331
    %3895 = vmatpush1.bf16.msra.mxu0 %v2330
    %3896 = vmatprep.subr.bf16.mxu0 %v2337
    %3897 = vmatpush1.bf16.msra.mxu0 %v2336
    %3898 = vmatprep.subr.bf16.mxu0 %v2343
    %3899 = vmatpush1.bf16.msra.mxu0 %v2342
    %3900 = vmatprep.subr.bf16.mxu0 %v2349
    %3901 = vmatpush1.bf16.msra.mxu0 %v2348
    %3902 = vmatprep.subr.bf16.mxu0 %v2355
    %3903 = vmatpush1.bf16.msra.mxu0 %v2354
    %3904 = vmatprep.subr.bf16.mxu0 %v2361
    %3905 = vmatpush1.bf16.msra.mxu0 %v2360
    %3906 = vmatprep.subr.bf16.mxu0 %v2367
    %3907 = vmatpush1.bf16.msra.mxu0 %v2366
    %3908 = vmatprep.subr.bf16.mxu0 %v2373
    %3909 = vmatpush1.bf16.msra.mxu0 %v2372
    %3910 = vmatprep.subr.bf16.mxu0 %v2379
    %3911 = vmatpush1.bf16.msra.mxu0 %v2378
    %3912 = vmatprep.subr.bf16.mxu0 %v2385
    %3913 = vmatpush1.bf16.msra.mxu0 %v2384
    %3914 = vmatprep.subr.bf16.mxu0 %v2391
    %3915 = vmatpush1.bf16.msra.mxu0 %v2390
    %3916 = vmatprep.subr.bf16.mxu0 %v2397
    %3917 = vmatpush1.bf16.msra.mxu0 %v2396
    %3918 = vmatprep.subr.bf16.mxu0 %v2403
    %3919 = vmatpush1.bf16.msra.mxu0 %v2402
    %3920 = vmatprep.subr.bf16.mxu0 %v2409
    %3921 = vmatpush1.bf16.msra.mxu0 %v2408
    %3922 = vmatprep.mubr.bf16.mxu0 %v647
    %3923 = vmatmul.mubr.bf16.gmra.mrb[0].mxu0 %v633
    %v3924 = vpop.f32.mrb[0].mxu0
    %v3925 = vadd.f32 %v597, %v3924
    %v3926 = vpop.f32.mrb[0].mxu0
    %v3927 = vadd.f32 %v601, %v3926
    %v3928 = vpop.f32.mrb[0].mxu0
    %v3929 = vpop.f32.mrb[0].mxu0
    %3930 = vdwg.mxu0
    %3931 = vmatprep.subr.bf16.mxu0 %v2415
    %3932 = vmatpush1.bf16.msra.mxu0 %v2414
    %3933 = vmatprep.subr.bf16.mxu0 %v2421
    %3934 = vmatpush1.bf16.msra.mxu0 %v2420
    %3935 = vmatprep.subr.bf16.mxu0 %v2427
    %3936 = vmatpush1.bf16.msra.mxu0 %v2426
    %3937 = vmatprep.subr.bf16.mxu0 %v2433
    %3938 = vmatpush1.bf16.msra.mxu0 %v2432
    %3939 = vmatprep.subr.bf16.mxu0 %v2439
    %3940 = vmatpush1.bf16.msra.mxu0 %v2438
    %3941 = vmatprep.subr.bf16.mxu0 %v2445
    %3942 = vmatpush1.bf16.msra.mxu0 %v2444
    %3943 = vmatprep.subr.bf16.mxu0 %v2451
    %3944 = vmatpush1.bf16.msra.mxu0 %v2450
    %3945 = vmatprep.subr.bf16.mxu0 %v2457
    %3946 = vmatpush1.bf16.msra.mxu0 %v2456
    %3947 = vmatprep.subr.bf16.mxu0 %v2463
    %3948 = vmatpush1.bf16.msra.mxu0 %v2462
    %3949 = vmatprep.subr.bf16.mxu0 %v2469
    %3950 = vmatpush1.bf16.msra.mxu0 %v2468
    %3951 = vmatprep.subr.bf16.mxu0 %v2475
    %3952 = vmatpush1.bf16.msra.mxu0 %v2474
    %3953 = vmatprep.subr.bf16.mxu0 %v2481
    %3954 = vmatpush1.bf16.msra.mxu0 %v2480
    %3955 = vmatprep.subr.bf16.mxu0 %v2487
    %3956 = vmatpush1.bf16.msra.mxu0 %v2486
    %3957 = vmatprep.subr.bf16.mxu0 %v2493
    %3958 = vmatpush1.bf16.msra.mxu0 %v2492
    %3959 = vmatprep.subr.bf16.mxu0 %v2499
    %3960 = vmatpush1.bf16.msra.mxu0 %v2498
    %3961 = vmatprep.subr.bf16.mxu0 %v2505
    %3962 = vmatpush1.bf16.msra.mxu0 %v2504
    %3963 = vmatprep.mubr.bf16.mxu0 %v657
    %3964 = vmatmul.mubr.bf16.gmra.mrb[0].mxu0 %v655
    %v3965 = vpop.f32.mrb[0].mxu0
    %v3966 = vadd.f32 %v3925, %v3965
    %v3967 = vpop.f32.mrb[0].mxu0
    %v3968 = vadd.f32 %v3927, %v3967
    %v3969 = vpop.f32.mrb[0].mxu0
    %v3970 = vpop.f32.mrb[0].mxu0
    %3971 = vdwg.mxu0
    %3972 = vmatprep.subr.bf16.mxu0 %v2511
    %3973 = vmatpush1.bf16.msra.mxu0 %v2510
    %3974 = vmatprep.subr.bf16.mxu0 %v2517
    %3975 = vmatpush1.bf16.msra.mxu0 %v2516
    %3976 = vmatprep.subr.bf16.mxu0 %v2523
    %3977 = vmatpush1.bf16.msra.mxu0 %v2522
    %3978 = vmatprep.subr.bf16.mxu0 %v2529
    %3979 = vmatpush1.bf16.msra.mxu0 %v2528
    %3980 = vmatprep.subr.bf16.mxu0 %v2535
    %3981 = vmatpush1.bf16.msra.mxu0 %v2534
    %3982 = vmatprep.subr.bf16.mxu0 %v2541
    %3983 = vmatpush1.bf16.msra.mxu0 %v2540
    %3984 = vmatprep.subr.bf16.mxu0 %v2547
    %3985 = vmatpush1.bf16.msra.mxu0 %v2546
    %3986 = vmatprep.subr.bf16.mxu0 %v2553
    %3987 = vmatpush1.bf16.msra.mxu0 %v2552
    %3988 = vmatprep.subr.bf16.mxu0 %v2559
    %3989 = vmatpush1.bf16.msra.mxu0 %v2558
    %3990 = vmatprep.subr.bf16.mxu0 %v2565
    %3991 = vmatpush1.bf16.msra.mxu0 %v2564
    %3992 = vmatprep.subr.bf16.mxu0 %v2571
    %3993 = vmatpush1.bf16.msra.mxu0 %v2570
    %3994 = vmatprep.subr.bf16.mxu0 %v2577
    %3995 = vmatpush1.bf16.msra.mxu0 %v2576
    %3996 = vmatprep.subr.bf16.mxu0 %v2583
    %3997 = vmatpush1.bf16.msra.mxu0 %v2582
    %3998 = vmatprep.subr.bf16.mxu0 %v2589
    %3999 = vmatpush1.bf16.msra.mxu0 %v2588
    %4000 = vmatprep.subr.bf16.mxu0 %v2595
    %4001 = vmatpush1.bf16.msra.mxu0 %v2594
    %4002 = vmatprep.subr.bf16.mxu0 %v2601
    %4003 = vmatpush1.bf16.msra.mxu0 %v2600
    %4004 = vmatprep.mubr.bf16.mxu0 %v654
    %4005 = vmatmul.mubr.bf16.gmra.mrb[0].mxu0 %v640
    %v4006 = vpop.f32.mrb[0].mxu0
    %v4007 = vadd.f32 %v3966, %v4006
    %v4008 = vpop.f32.mrb[0].mxu0
    %v4009 = vadd.f32 %v3968, %v4008
    %v4010 = vpop.f32.mrb[0].mxu0
    %v4011 = vpop.f32.mrb[0].mxu0
    %4012 = vdwg.mxu0
    %4013 = vmatprep.subr.bf16.mxu0 %v2607
    %4014 = vmatpush1.bf16.msra.mxu0 %v2606
    %4015 = vmatprep.subr.bf16.mxu0 %v2613
    %4016 = vmatpush1.bf16.msra.mxu0 %v2612
    %4017 = vmatprep.subr.bf16.mxu0 %v2619
    %4018 = vmatpush1.bf16.msra.mxu0 %v2618
    %4019 = vmatprep.subr.bf16.mxu0 %v2625
    %4020 = vmatpush1.bf16.msra.mxu0 %v2624
    %4021 = vmatprep.subr.bf16.mxu0 %v2631
    %4022 = vmatpush1.bf16.msra.mxu0 %v2630
    %4023 = vmatprep.subr.bf16.mxu0 %v2637
    %4024 = vmatpush1.bf16.msra.mxu0 %v2636
    %4025 = vmatprep.subr.bf16.mxu0 %v2643
    %4026 = vmatpush1.bf16.msra.mxu0 %v2642
    %4027 = vmatprep.subr.bf16.mxu0 %v2649
    %4028 = vmatpush1.bf16.msra.mxu0 %v2648
    %4029 = vmatprep.subr.bf16.mxu0 %v2655
    %4030 = vmatpush1.bf16.msra.mxu0 %v2654
    %4031 = vmatprep.subr.bf16.mxu0 %v2661
    %4032 = vmatpush1.bf16.msra.mxu0 %v2660
    %4033 = vmatprep.subr.bf16.mxu0 %v2667
    %4034 = vmatpush1.bf16.msra.mxu0 %v2666
    %4035 = vmatprep.subr.bf16.mxu0 %v2673
    %4036 = vmatpush1.bf16.msra.mxu0 %v2672
    %4037 = vmatprep.subr.bf16.mxu0 %v2679
    %4038 = vmatpush1.bf16.msra.mxu0 %v2678
    %4039 = vmatprep.subr.bf16.mxu0 %v2685
    %4040 = vmatpush1.bf16.msra.mxu0 %v2684
    %4041 = vmatprep.subr.bf16.mxu0 %v2691
    %4042 = vmatpush1.bf16.msra.mxu0 %v2690
    %4043 = vmatprep.subr.bf16.mxu0 %v2697
    %4044 = vmatpush1.bf16.msra.mxu0 %v2696
    %4045 = vmatprep.mubr.bf16.mxu0 %v658
    %4046 = vmatmul.mubr.bf16.gmra.mrb[0].mxu0 %v656
    %v4047 = vpop.f32.mrb[0].mxu0
    %v4048 = vadd.f32 %v4007, %v4047
    %v4049 = vpop.f32.mrb[0].mxu0
    %v4050 = vadd.f32 %v4009, %v4049
    %v4051 = vpop.f32.mrb[0].mxu0
    %v4052 = vpop.f32.mrb[0].mxu0
    %4053 = vdwg.mxu0
    %4054 = vmatprep.subr.bf16.mxu0 %v2703
    %4055 = vmatpush1.bf16.msra.mxu0 %v2702
    %4056 = vmatprep.subr.bf16.mxu0 %v2709
    %4057 = vmatpush1.bf16.msra.mxu0 %v2708
    %4058 = vmatprep.subr.bf16.mxu0 %v2715
    %4059 = vmatpush1.bf16.msra.mxu0 %v2714
    %4060 = vmatprep.subr.bf16.mxu0 %v2721
    %4061 = vmatpush1.bf16.msra.mxu0 %v2720
    %4062 = vmatprep.subr.bf16.mxu0 %v2727
    %4063 = vmatpush1.bf16.msra.mxu0 %v2726
    %4064 = vmatprep.subr.bf16.mxu0 %v2733
    %4065 = vmatpush1.bf16.msra.mxu0 %v2732
    %4066 = vmatprep.subr.bf16.mxu0 %v2739
    %4067 = vmatpush1.bf16.msra.mxu0 %v2738
    %4068 = vmatprep.subr.bf16.mxu0 %v2745
    %4069 = vmatpush1.bf16.msra.mxu0 %v2744
    %4070 = vmatprep.subr.bf16.mxu0 %v2751
    %4071 = vmatpush1.bf16.msra.mxu0 %v2750
    %4072 = vmatprep.subr.bf16.mxu0 %v2757
    %4073 = vmatpush1.bf16.msra.mxu0 %v2756
    %4074 = vmatprep.subr.bf16.mxu0 %v2763
    %4075 = vmatpush1.bf16.msra.mxu0 %v2762
    %4076 = vmatprep.subr.bf16.mxu0 %v2769
    %4077 = vmatpush1.bf16.msra.mxu0 %v2768
    %4078 = vmatprep.subr.bf16.mxu0 %v2775
    %4079 = vmatpush1.bf16.msra.mxu0 %v2774
    %4080 = vmatprep.subr.bf16.mxu0 %v2781
    %4081 = vmatpush1.bf16.msra.mxu0 %v2780
    %4082 = vmatprep.subr.bf16.mxu0 %v2787
    %4083 = vmatpush1.bf16.msra.mxu0 %v2786
    %4084 = vmatprep.subr.bf16.mxu0 %v2793
    %4085 = vmatpush1.bf16.msra.mxu0 %v2792
    %4086 = vmatprep.mubr.bf16.mxu0 %v680
    %4087 = vmatmul.mubr.bf16.gmra.mrb[0].mxu0 %v673
    %v4088 = vpop.f32.mrb[0].mxu0
    %v4089 = vadd.f32 %v4048, %v4088
    %v4090 = vpop.f32.mrb[0].mxu0
    %v4091 = vadd.f32 %v4050, %v4090
    %v4092 = vpop.f32.mrb[0].mxu0
    %v4093 = vpop.f32.mrb[0].mxu0
    %4094 = vdwg.mxu0
    %4095 = vmatprep.subr.bf16.mxu0 %v2799
    %4096 = vmatpush1.bf16.msra.mxu0 %v2798
    %4097 = vmatprep.subr.bf16.mxu0 %v2805
    %4098 = vmatpush1.bf16.msra.mxu0 %v2804
    %4099 = vmatprep.subr.bf16.mxu0 %v2811
    %4100 = vmatpush1.bf16.msra.mxu0 %v2810
    %4101 = vmatprep.subr.bf16.mxu0 %v2817
    %4102 = vmatpush1.bf16.msra.mxu0 %v2816
    %4103 = vmatprep.subr.bf16.mxu0 %v2823
    %4104 = vmatpush1.bf16.msra.mxu0 %v2822
    %4105 = vmatprep.subr.bf16.mxu0 %v2829
    %4106 = vmatpush1.bf16.msra.mxu0 %v2828
    %4107 = vmatprep.subr.bf16.mxu0 %v2835
    %4108 = vmatpush1.bf16.msra.mxu0 %v2834
    %4109 = vmatprep.subr.bf16.mxu0 %v2841
    %4110 = vmatpush1.bf16.msra.mxu0 %v2840
    %4111 = vmatprep.subr.bf16.mxu0 %v2847
    %4112 = vmatpush1.bf16.msra.mxu0 %v2846
    %4113 = vmatprep.subr.bf16.mxu0 %v2853
    %4114 = vmatpush1.bf16.msra.mxu0 %v2852
    %4115 = vmatprep.subr.bf16.mxu0 0
    %4116 = vmatpush1.bf16.msra.mxu0 0
    %4117 = vmatprep.subr.bf16.mxu0 0
    %4118 = vmatpush1.bf16.msra.mxu0 0
    %4119 = vmatprep.subr.bf16.mxu0 0
    %4120 = vmatpush1.bf16.msra.mxu0 0
    %4121 = vmatprep.subr.bf16.mxu0 0
    %4122 = vmatpush1.bf16.msra.mxu0 0
    %4123 = vmatprep.subr.bf16.mxu0 0
    %4124 = vmatpush1.bf16.msra.mxu0 0
    %4125 = vmatprep.subr.bf16.mxu0 0
    %4126 = vmatpush1.bf16.msra.mxu0 0
    %4127 = vmatprep.mubr.bf16.mxu0 %v3396
    %4128 = vmatmul.mubr.bf16.gmra.mrb[0].mxu0 %v681
    %v4129 = vpop.f32.mrb[0].mxu0
    %v4130 = vadd.f32 %v4089, %v4129
    %v4131 = vpop.f32.mrb[0].mxu0
    %v4132 = vadd.f32 %v4091, %v4131
    %v4133 = vpop.f32.mrb[0].mxu0
    %v4134 = vpop.f32.mrb[0].mxu0
    %4135 = vdwg.mxu0
    %vm4136 = vcmp.ge.f32.partialorder %v3638, 0.0
    %vm4137 = vcmp.ge.f32.partialorder %v3640, 0.0
    %vm4138 = vcmp.ge.f32.partialorder %v3884, 0.0
    %vm4139 = vcmp.ge.f32.partialorder %v3886, 0.0
    %vm4140 = vcmp.ge.f32.partialorder %v4130, 0.0
    %vm4141 = vcmp.ge.f32.partialorder %v4132, 0.0
    %v4142 = vmul.f32 %v3638, 0.2
    %v4143 = vmul.f32 %v3640, 0.2
    %v4144 = vmul.f32 %v3884, 0.2
    %v4145 = vmul.f32 %v3886, 0.2
    %v4146 = vmul.f32 %v4130, 0.2
    %v4147 = vmul.f32 %v4132, 0.2
    %v4148 = vsel %vm4136, %v3638, %v4142
    %v4149 = vsel %vm4137, %v3640, %v4143
    %v4150 = vsel %vm4138, %v3884, %v4144
    %v4151 = vsel %vm4139, %v3886, %v4145
    %v4152 = vsel %vm4140, %v4130, %v4146
    %v4153 = vsel %vm4141, %v4132, %v4147
    %v4154 = vpack.c.bf16 %v4148, %v4148
    %v4155 = vpack.c.bf16 %v4149, %v4149
    %v4156 = vpack.c.bf16 %v4150, %v4150
    %v4157 = vpack.c.bf16 %v4151, %v4151
    %v4158 = vpack.c.bf16 %v4152, %v4152
    %v4159 = vpack.c.bf16 %v4153, %v4153
    %v4160 = vld [vmem:[%s3] sm:$0xff]
    %v4161 = vld [vmem:[%s3 + $0x8] sm:$0xf]
    %v4162 = vld [vmem:[%s3 + $0xc] sm:$0xff]
    %v4163 = vld [vmem:[%s3 + $0x14] sm:$0xf]
    %v4164 = vld [vmem:[%s3 + $0x18] sm:$0xff]
    %v4165 = vld [vmem:[%s3 + $0x20] sm:$0xf]
    %v4166 = vld [vmem:[%s3 + $0x24] sm:$0xff]
    %v4167 = vld [vmem:[%s3 + $0x2c] sm:$0xf]
    %v4168 = vld [vmem:[%s3 + $0x30] sm:$0xff]
    %v4169 = vld [vmem:[%s3 + $0x38] sm:$0xf]
    %v4170 = vld [vmem:[%s3 + $0x3c] sm:$0xff]
    %v4171 = vld [vmem:[%s3 + $0x44] sm:$0xf]
    %v4172 = vld [vmem:[%s3 + $0x48] sm:$0xff]
    %v4173 = vld [vmem:[%s3 + $0x50] sm:$0xf]
    %v4174 = vld [vmem:[%s3 + $0x54] sm:$0xff]
    %v4175 = vld [vmem:[%s3 + $0x5c] sm:$0xf]
    %v4176 = vld [vmem:[%s3 + $0x60] sm:$0xff]
    %v4177 = vld [vmem:[%s3 + $0x68] sm:$0xf]
    %v4178 = vld [vmem:[%s3 + $0x6c] sm:$0xff]
    %v4179 = vld [vmem:[%s3 + $0x74] sm:$0xf]
    %v4180 = vld [vmem:[%s3 + $0x78] sm:$0xff]
    %v4181 = vld [vmem:[%s3 + $0x80] sm:$0xf]
    %v4182 = vld [vmem:[%s3 + $0x84] sm:$0xff]
    %v4183 = vld [vmem:[%s3 + $0x8c] sm:$0xf]
    %v4184 = vld [vmem:[%s3 + $0x90] sm:$0xff]
    %v4185 = vld [vmem:[%s3 + $0x98] sm:$0xf]
    %v4186 = vld [vmem:[%s3 + $0x9c] sm:$0xff]
    %v4187 = vld [vmem:[%s3 + $0xa4] sm:$0xf]
    %v4188 = vld [vmem:[%s3 + $0xa8] sm:$0xff]
    %v4189 = vld [vmem:[%s3 + $0xb0] sm:$0xf]
    %v4190 = vld [vmem:[%s3 + $0xb4] sm:$0xff]
    %v4191 = vld [vmem:[%s3 + $0xbc] sm:$0xf]
    %v4192 = vld [vmem:[%s3 + $0xc0] sm:$0xff]
    %v4193 = vld [vmem:[%s3 + $0xc8] sm:$0xf]
    %v4194 = vld [vmem:[%s3 + $0xcc] sm:$0xff]
    %v4195 = vld [vmem:[%s3 + $0xd4] sm:$0xf]
    %v4196 = vld [vmem:[%s3 + $0xd8] sm:$0xff]
    %v4197 = vld [vmem:[%s3 + $0xe0] sm:$0xf]
    %v4198 = vld [vmem:[%s3 + $0xe4] sm:$0xff]
    %v4199 = vld [vmem:[%s3 + $0xec] sm:$0xf]
    %v4200 = vld [vmem:[%s3 + $0xf0] sm:$0xff]
    %v4201 = vld [vmem:[%s3 + $0xf8] sm:$0xf]
    %v4202 = vld [vmem:[%s3 + $0xfc] sm:$0xff]
    %v4203 = vld [vmem:[%s3 + $0x104] sm:$0xf]
    %v4204 = vld [vmem:[%s3 + $0x108] sm:$0xff]
    %v4205 = vld [vmem:[%s3 + $0x110] sm:$0xf]
    %v4206 = vld [vmem:[%s3 + $0x114] sm:$0xff]
    %v4207 = vld [vmem:[%s3 + $0x11c] sm:$0xf]
    %v4208 = vld [vmem:[%s3 + $0x120] sm:$0xff]
    %v4209 = vld [vmem:[%s3 + $0x128] sm:$0xf]
    %v4210 = vld [vmem:[%s3 + $0x12c] sm:$0xff]
    %v4211 = vld [vmem:[%s3 + $0x134] sm:$0xf]
    %v4212 = vld [vmem:[%s3 + $0x138] sm:$0xff]
    %v4213 = vld [vmem:[%s3 + $0x140] sm:$0xf]
    %v4214 = vld [vmem:[%s3 + $0x144] sm:$0xff]
    %v4215 = vld [vmem:[%s3 + $0x14c] sm:$0xf]
    %v4216 = vld [vmem:[%s3 + $0x150] sm:$0xff]
    %v4217 = vld [vmem:[%s3 + $0x158] sm:$0xf]
    %v4218 = vld [vmem:[%s3 + $0x15c] sm:$0xff]
    %v4219 = vld [vmem:[%s3 + $0x164] sm:$0xf]
    %v4220 = vld [vmem:[%s3 + $0x168] sm:$0xff]
    %v4221 = vld [vmem:[%s3 + $0x170] sm:$0xf]
    %v4222 = vld [vmem:[%s3 + $0x174] sm:$0xff]
    %v4223 = vld [vmem:[%s3 + $0x17c] sm:$0xf]
    %v4224 = vld [vmem:[%s3 + $0x180] sm:$0xff]
    %v4225 = vld [vmem:[%s3 + $0x188] sm:$0xf]
    %v4226 = vld [vmem:[%s3 + $0x18c] sm:$0xff]
    %v4227 = vld [vmem:[%s3 + $0x194] sm:$0xf]
    %v4228 = vld [vmem:[%s3 + $0x198] sm:$0xff]
    %v4229 = vld [vmem:[%s3 + $0x1a0] sm:$0xf]
    %v4230 = vld [vmem:[%s3 + $0x1a4] sm:$0xff]
    %v4231 = vld [vmem:[%s3 + $0x1ac] sm:$0xf]
    %v4232 = vld [vmem:[%s3 + $0x1b0] sm:$0xff]
    %v4233 = vld [vmem:[%s3 + $0x1b8] sm:$0xf]
    %v4234 = vld [vmem:[%s3 + $0x1bc] sm:$0xff]
    %v4235 = vld [vmem:[%s3 + $0x1c4] sm:$0xf]
    %v4236 = vld [vmem:[%s3 + $0x1c8] sm:$0xff]
    %v4237 = vld [vmem:[%s3 + $0x1d0] sm:$0xf]
    %v4238 = vld [vmem:[%s3 + $0x1d4] sm:$0xff]
    %v4239 = vld [vmem:[%s3 + $0x1dc] sm:$0xf]
    %v4240 = vld [vmem:[%s3 + $0x1e0] sm:$0xff]
    %v4241 = vld [vmem:[%s3 + $0x1e8] sm:$0xf]
    %v4242 = vld [vmem:[%s3 + $0x1ec] sm:$0xff]
    %v4243 = vld [vmem:[%s3 + $0x1f4] sm:$0xf]
    %v4244 = vld [vmem:[%s3 + $0x1f8] sm:$0xff]
    %v4245 = vld [vmem:[%s3 + $0x200] sm:$0xf]
    %v4246 = vld [vmem:[%s3 + $0x204] sm:$0xff]
    %v4247 = vld [vmem:[%s3 + $0x20c] sm:$0xf]
    %v4248 = vld [vmem:[%s3 + $0x210] sm:$0xff]
    %v4249 = vld [vmem:[%s3 + $0x218] sm:$0xf]
    %v4250 = vld [vmem:[%s3 + $0x21c] sm:$0xff]
    %v4251 = vld [vmem:[%s3 + $0x224] sm:$0xf]
    %v4252 = vld [vmem:[%s3 + $0x228] sm:$0xff]
    %v4253 = vld [vmem:[%s3 + $0x230] sm:$0xf]
    %v4254 = vld [vmem:[%s3 + $0x234] sm:$0xff]
    %v4255 = vld [vmem:[%s3 + $0x23c] sm:$0xf]
    %v4256 = vld [vmem:[%s3 + $0x240] sm:$0xff]
    %v4257 = vld [vmem:[%s3 + $0x248] sm:$0xf]
    %v4258 = vld [vmem:[%s3 + $0x24c] sm:$0xff]
    %v4259 = vld [vmem:[%s3 + $0x254] sm:$0xf]
    %v4260 = vld [vmem:[%s3 + $0x258] sm:$0xff]
    %v4261 = vld [vmem:[%s3 + $0x260] sm:$0xf]
    %v4262 = vld [vmem:[%s3 + $0x264] sm:$0xff]
    %v4263 = vld [vmem:[%s3 + $0x26c] sm:$0xf]
    %v4264 = vld [vmem:[%s3 + $0x270] sm:$0xff]
    %v4265 = vld [vmem:[%s3 + $0x278] sm:$0xf]
    %v4266 = vld [vmem:[%s3 + $0x27c] sm:$0xff]
    %v4267 = vld [vmem:[%s3 + $0x284] sm:$0xf]
    %v4268 = vld [vmem:[%s3 + $0x288] sm:$0xff]
    %v4269 = vld [vmem:[%s3 + $0x290] sm:$0xf]
    %v4270 = vld [vmem:[%s3 + $0x294] sm:$0xff]
    %v4271 = vld [vmem:[%s3 + $0x29c] sm:$0xf]
    %v4272 = vld [vmem:[%s3 + $0x2a0] sm:$0xff]
    %v4273 = vld [vmem:[%s3 + $0x2a8] sm:$0xf]
    %v4274 = vld [vmem:[%s3 + $0x2ac] sm:$0xff]
    %v4275 = vld [vmem:[%s3 + $0x2b4] sm:$0xf]
    %v4276 = vld [vmem:[%s3 + $0x2b8] sm:$0xff]
    %v4277 = vld [vmem:[%s3 + $0x2c0] sm:$0xf]
    %v4278 = vld [vmem:[%s3 + $0x2c4] sm:$0xff]
    %v4279 = vld [vmem:[%s3 + $0x2cc] sm:$0xf]
    %v4280 = vld [vmem:[%s3 + $0x2d0] sm:$0xff]
    %v4281 = vld [vmem:[%s3 + $0x2d8] sm:$0xf]
    %v4282 = vld [vmem:[%s3 + $0x2dc] sm:$0xff]
    %v4283 = vld [vmem:[%s3 + $0x2e4] sm:$0xf]
    %v4284 = vld [vmem:[%s3 + $0x2e8] sm:$0xff]
    %v4285 = vld [vmem:[%s3 + $0x2f0] sm:$0xf]
    %v4286 = vld [vmem:[%s3 + $0x2f4] sm:$0xff]
    %v4287 = vld [vmem:[%s3 + $0x2fc] sm:$0xf]
    %v4288 = vld [vmem:[%s3 + $0x300] sm:$0xff]
    %v4289 = vld [vmem:[%s3 + $0x308] sm:$0xf]
    %v4290 = vld [vmem:[%s3 + $0x30c] sm:$0xff]
    %v4291 = vld [vmem:[%s3 + $0x314] sm:$0xf]
    %v4292 = vld [vmem:[%s3 + $0x318] sm:$0xff]
    %v4293 = vld [vmem:[%s3 + $0x320] sm:$0xf]
    %v4294 = vld [vmem:[%s3 + $0x324] sm:$0xff]
    %v4295 = vld [vmem:[%s3 + $0x32c] sm:$0xf]
    %v4296 = vld [vmem:[%s3 + $0x330] sm:$0xff]
    %v4297 = vld [vmem:[%s3 + $0x338] sm:$0xf]
    %v4298 = vld [vmem:[%s3 + $0x33c] sm:$0xff]
    %v4299 = vld [vmem:[%s3 + $0x344] sm:$0xf]
    %v4300 = vld [vmem:[%s3 + $0x348] sm:$0xff]
    %v4301 = vld [vmem:[%s3 + $0x350] sm:$0xf]
    %v4302 = vld [vmem:[%s3 + $0x354] sm:$0xff]
    %v4303 = vld [vmem:[%s3 + $0x35c] sm:$0xf]
    %v4304 = vld [vmem:[%s3 + $0x360] sm:$0xff]
    %v4305 = vld [vmem:[%s3 + $0x368] sm:$0xf]
    %v4306 = vld [vmem:[%s3 + $0x36c] sm:$0xff]
    %v4307 = vld [vmem:[%s3 + $0x374] sm:$0xf]
    %v4308 = vld [vmem:[%s3 + $0x378] sm:$0xff]
    %v4309 = vld [vmem:[%s3 + $0x380] sm:$0xf]
    %v4310 = vld [vmem:[%s3 + $0x384] sm:$0xff]
    %v4311 = vld [vmem:[%s3 + $0x38c] sm:$0xf]
    %v4312 = vld [vmem:[%s3 + $0x390] sm:$0xff]
    %v4313 = vld [vmem:[%s3 + $0x398] sm:$0xf]
    %v4314 = vld [vmem:[%s3 + $0x39c] sm:$0xff]
    %v4315 = vld [vmem:[%s3 + $0x3a4] sm:$0xf]
    %v4316 = vld [vmem:[%s3 + $0x3a8] sm:$0xff]
    %v4317 = vld [vmem:[%s3 + $0x3b0] sm:$0xf]
    %v4318 = vld [vmem:[%s3 + $0x3b4] sm:$0xff]
    %v4319 = vld [vmem:[%s3 + $0x3bc] sm:$0xf]
    %v4320 = vld [vmem:[%s3 + $0x3c0] sm:$0xff]
    %v4321 = vld [vmem:[%s3 + $0x3c8] sm:$0xf]
    %v4322 = vld [vmem:[%s3 + $0x3cc] sm:$0xff]
    %v4323 = vld [vmem:[%s3 + $0x3d4] sm:$0xf]
    %v4324 = vld [vmem:[%s3 + $0x3d8] sm:$0xff]
    %v4325 = vld [vmem:[%s3 + $0x3e0] sm:$0xf]
    %v4326 = vld [vmem:[%s3 + $0x3e4] sm:$0xff]
    %v4327 = vld [vmem:[%s3 + $0x3ec] sm:$0xf]
    %v4328 = vld [vmem:[%s3 + $0x3f0] sm:$0xff]
    %v4329 = vld [vmem:[%s3 + $0x3f8] sm:$0xf]
    %v4330 = vld [vmem:[%s3 + $0x3fc] sm:$0xff]
    %v4331 = vld [vmem:[%s3 + $0x404] sm:$0xf]
    %v4332 = vld [vmem:[%s3 + $0x408] sm:$0xff]
    %v4333 = vld [vmem:[%s3 + $0x410] sm:$0xf]
    %v4334 = vld [vmem:[%s3 + $0x414] sm:$0xff]
    %v4335 = vld [vmem:[%s3 + $0x41c] sm:$0xf]
    %v4336 = vld [vmem:[%s3 + $0x420] sm:$0xff]
    %v4337 = vld [vmem:[%s3 + $0x428] sm:$0xf]
    %v4338 = vld [vmem:[%s3 + $0x42c] sm:$0xff]
    %v4339 = vld [vmem:[%s3 + $0x434] sm:$0xf]
    %v4340 = vld [vmem:[%s4] sm:$0x7]
    %v4342 = vlaneseq
    %v4343 = vshrl.u32 %v4342, 7
    %v4344 = vsub.s32 0, %v4343
    %v4345 = vrot.slane %v4340, %v4344
    %v4346 = vlaneseq
    %v4347 = vshrl.u32 %v4346, 7
    %v4348 = vsub.s32 1, %v4347
    %v4349 = vrot.slane %v4340, %v4348
    %v4350 = vlaneseq
    %v4351 = vshrl.u32 %v4350, 7
    %v4352 = vsub.s32 2, %v4351
    %v4353 = vrot.slane %v4340, %v4352
    %v4537 = vunpack.c.l.b16 %v4160
    %v4538 = vunpack.c.h.b16 %v4160
    %v4539 = vunpack.c.l.b16 %v4161
    %v4540 = vunpack.c.l.b16 %v4162
    %v4541 = vunpack.c.h.b16 %v4162
    %v4542 = vunpack.c.l.b16 %v4163
    %v4543 = vunpack.c.l.b16 %v4164
    %v4544 = vunpack.c.h.b16 %v4164
    %v4545 = vunpack.c.l.b16 %v4165
    %v4546 = vunpack.c.l.b16 %v4166
    %v4547 = vunpack.c.h.b16 %v4166
    %v4548 = vunpack.c.l.b16 %v4167
    %v4549 = vunpack.c.l.b16 %v4168
    %v4550 = vunpack.c.h.b16 %v4168
    %v4551 = vunpack.c.l.b16 %v4169
    %v4552 = vunpack.c.l.b16 %v4170
    %v4553 = vunpack.c.h.b16 %v4170
    %v4554 = vunpack.c.l.b16 %v4171
    %v4555 = vunpack.c.l.b16 %v4172
    %v4556 = vunpack.c.h.b16 %v4172
    %v4557 = vunpack.c.l.b16 %v4173
    %v4558 = vunpack.c.l.b16 %v4174
    %v4559 = vunpack.c.h.b16 %v4174
    %v4560 = vunpack.c.l.b16 %v4175
    %v4561 = vunpack.c.l.b16 %v4176
    %v4562 = vunpack.c.h.b16 %v4176
    %v4563 = vunpack.c.l.b16 %v4177
    %v4564 = vunpack.c.l.b16 %v4178
    %v4565 = vunpack.c.h.b16 %v4178
    %v4566 = vunpack.c.l.b16 %v4179
    %v4567 = vunpack.c.l.b16 %v4180
    %v4568 = vunpack.c.h.b16 %v4180
    %v4569 = vunpack.c.l.b16 %v4181
    %v4570 = vunpack.c.l.b16 %v4182
    %v4571 = vunpack.c.h.b16 %v4182
    %v4572 = vunpack.c.l.b16 %v4183
    %v4573 = vunpack.c.l.b16 %v4184
    %v4574 = vunpack.c.h.b16 %v4184
    %v4575 = vunpack.c.l.b16 %v4185
    %v4576 = vunpack.c.l.b16 %v4186
    %v4577 = vunpack.c.h.b16 %v4186
    %v4578 = vunpack.c.l.b16 %v4187
    %v4579 = vunpack.c.l.b16 %v4188
    %v4580 = vunpack.c.h.b16 %v4188
    %v4581 = vunpack.c.l.b16 %v4189
    %v4582 = vunpack.c.l.b16 %v4190
    %v4583 = vunpack.c.h.b16 %v4190
    %v4584 = vunpack.c.l.b16 %v4191
    %v4585 = vunpack.c.l.b16 %v4192
    %v4586 = vunpack.c.h.b16 %v4192
    %v4587 = vunpack.c.l.b16 %v4193
    %v4588 = vunpack.c.l.b16 %v4194
    %v4589 = vunpack.c.h.b16 %v4194
    %v4590 = vunpack.c.l.b16 %v4195
    %v4591 = vunpack.c.l.b16 %v4196
    %v4592 = vunpack.c.h.b16 %v4196
    %v4593 = vunpack.c.l.b16 %v4197
    %v4594 = vunpack.c.l.b16 %v4198
    %v4595 = vunpack.c.h.b16 %v4198
    %v4596 = vunpack.c.l.b16 %v4199
    %v4597 = vunpack.c.l.b16 %v4200
    %v4598 = vunpack.c.h.b16 %v4200
    %v4599 = vunpack.c.l.b16 %v4201
    %v4600 = vunpack.c.l.b16 %v4202
    %v4601 = vunpack.c.h.b16 %v4202
    %v4602 = vunpack.c.l.b16 %v4203
    %v4603 = vunpack.c.l.b16 %v4204
    %v4604 = vunpack.c.h.b16 %v4204
    %v4605 = vunpack.c.l.b16 %v4205
    %v4606 = vunpack.c.l.b16 %v4206
    %v4607 = vunpack.c.h.b16 %v4206
    %v4608 = vunpack.c.l.b16 %v4207
    %v4609 = vunpack.c.l.b16 %v4208
    %v4610 = vunpack.c.h.b16 %v4208
    %v4611 = vunpack.c.l.b16 %v4209
    %v4612 = vunpack.c.l.b16 %v4210
    %v4613 = vunpack.c.h.b16 %v4210
    %v4614 = vunpack.c.l.b16 %v4211
    %v4615 = vunpack.c.l.b16 %v4212
    %v4616 = vunpack.c.h.b16 %v4212
    %v4617 = vunpack.c.l.b16 %v4213
    %v4618 = vunpack.c.l.b16 %v4214
    %v4619 = vunpack.c.h.b16 %v4214
    %v4620 = vunpack.c.l.b16 %v4215
    %v4621 = vunpack.c.l.b16 %v4216
    %v4622 = vunpack.c.h.b16 %v4216
    %v4623 = vunpack.c.l.b16 %v4217
    %v4624 = vunpack.c.l.b16 %v4218
    %v4625 = vunpack.c.h.b16 %v4218
    %v4626 = vunpack.c.l.b16 %v4219
    %v4627 = vunpack.c.l.b16 %v4220
    %v4628 = vunpack.c.h.b16 %v4220
    %v4629 = vunpack.c.l.b16 %v4221
    %v4630 = vunpack.c.l.b16 %v4222
    %v4631 = vunpack.c.h.b16 %v4222
    %v4632 = vunpack.c.l.b16 %v4223
    %v4633 = vunpack.c.l.b16 %v4224
    %v4634 = vunpack.c.h.b16 %v4224
    %v4635 = vunpack.c.l.b16 %v4225
    %v4636 = vunpack.c.l.b16 %v4226
    %v4637 = vunpack.c.h.b16 %v4226
    %v4638 = vunpack.c.l.b16 %v4227
    %v4639 = vunpack.c.l.b16 %v4228
    %v4640 = vunpack.c.h.b16 %v4228
    %v4641 = vunpack.c.l.b16 %v4229
    %v4642 = vunpack.c.l.b16 %v4230
    %v4643 = vunpack.c.h.b16 %v4230
    %v4644 = vunpack.c.l.b16 %v4231
    %v4645 = vunpack.c.l.b16 %v4232
    %v4646 = vunpack.c.h.b16 %v4232
    %v4647 = vunpack.c.l.b16 %v4233
    %v4648 = vunpack.c.l.b16 %v4234
    %v4649 = vunpack.c.h.b16 %v4234
    %v4650 = vunpack.c.l.b16 %v4235
    %v4651 = vunpack.c.l.b16 %v4236
    %v4652 = vunpack.c.h.b16 %v4236
    %v4653 = vunpack.c.l.b16 %v4237
    %v4654 = vunpack.c.l.b16 %v4238
    %v4655 = vunpack.c.h.b16 %v4238
    %v4656 = vunpack.c.l.b16 %v4239
    %v4657 = vunpack.c.l.b16 %v4240
    %v4658 = vunpack.c.h.b16 %v4240
    %v4659 = vunpack.c.l.b16 %v4241
    %v4660 = vunpack.c.l.b16 %v4242
    %v4661 = vunpack.c.h.b16 %v4242
    %v4662 = vunpack.c.l.b16 %v4243
    %v4663 = vunpack.c.l.b16 %v4244
    %v4664 = vunpack.c.h.b16 %v4244
    %v4665 = vunpack.c.l.b16 %v4245
    %v4666 = vunpack.c.l.b16 %v4246
    %v4667 = vunpack.c.h.b16 %v4246
    %v4668 = vunpack.c.l.b16 %v4247
    %v4669 = vunpack.c.l.b16 %v4248
    %v4670 = vunpack.c.h.b16 %v4248
    %v4671 = vunpack.c.l.b16 %v4249
    %v4672 = vunpack.c.l.b16 %v4250
    %v4673 = vunpack.c.h.b16 %v4250
    %v4674 = vunpack.c.l.b16 %v4251
    %v4675 = vunpack.c.l.b16 %v4252
    %v4676 = vunpack.c.h.b16 %v4252
    %v4677 = vunpack.c.l.b16 %v4253
    %v4678 = vunpack.c.l.b16 %v4254
    %v4679 = vunpack.c.h.b16 %v4254
    %v4680 = vunpack.c.l.b16 %v4255
    %v4681 = vunpack.c.l.b16 %v4256
    %v4682 = vunpack.c.h.b16 %v4256
    %v4683 = vunpack.c.l.b16 %v4257
    %v4684 = vunpack.c.l.b16 %v4258
    %v4685 = vunpack.c.h.b16 %v4258
    %v4686 = vunpack.c.l.b16 %v4259
    %v4687 = vunpack.c.l.b16 %v4260
    %v4688 = vunpack.c.h.b16 %v4260
    %v4689 = vunpack.c.l.b16 %v4261
    %v4690 = vunpack.c.l.b16 %v4262
    %v4691 = vunpack.c.h.b16 %v4262
    %v4692 = vunpack.c.l.b16 %v4263
    %v4693 = vunpack.c.l.b16 %v4264
    %v4694 = vunpack.c.h.b16 %v4264
    %v4695 = vunpack.c.l.b16 %v4265
    %v4696 = vunpack.c.l.b16 %v4266
    %v4697 = vunpack.c.h.b16 %v4266
    %v4698 = vunpack.c.l.b16 %v4267
    %v4699 = vunpack.c.l.b16 %v4268
    %v4700 = vunpack.c.h.b16 %v4268
    %v4701 = vunpack.c.l.b16 %v4269
    %v4702 = vunpack.c.l.b16 %v4270
    %v4703 = vunpack.c.h.b16 %v4270
    %v4704 = vunpack.c.l.b16 %v4271
    %v4705 = vunpack.c.l.b16 %v4272
    %v4706 = vunpack.c.h.b16 %v4272
    %v4707 = vunpack.c.l.b16 %v4273
    %v4708 = vunpack.c.l.b16 %v4274
    %v4709 = vunpack.c.h.b16 %v4274
    %v4710 = vunpack.c.l.b16 %v4275
    %v4711 = vunpack.c.l.b16 %v4276
    %v4712 = vunpack.c.h.b16 %v4276
    %v4713 = vunpack.c.l.b16 %v4277
    %v4714 = vunpack.c.l.b16 %v4278
    %v4715 = vunpack.c.h.b16 %v4278
    %v4716 = vunpack.c.l.b16 %v4279
    %v4717 = vunpack.c.l.b16 %v4280
    %v4718 = vunpack.c.h.b16 %v4280
    %v4719 = vunpack.c.l.b16 %v4281
    %v4720 = vunpack.c.l.b16 %v4282
    %v4721 = vunpack.c.h.b16 %v4282
    %v4722 = vunpack.c.l.b16 %v4283
    %v4723 = vunpack.c.l.b16 %v4284
    %v4724 = vunpack.c.h.b16 %v4284
    %v4725 = vunpack.c.l.b16 %v4285
    %v4726 = vunpack.c.l.b16 %v4286
    %v4727 = vunpack.c.h.b16 %v4286
    %v4728 = vunpack.c.l.b16 %v4287
    %v4729 = vunpack.c.l.b16 %v4288
    %v4730 = vunpack.c.h.b16 %v4288
    %v4731 = vunpack.c.l.b16 %v4289
    %v4732 = vunpack.c.l.b16 %v4290
    %v4733 = vunpack.c.h.b16 %v4290
    %v4734 = vunpack.c.l.b16 %v4291
    %v4735 = vunpack.c.l.b16 %v4292
    %v4736 = vunpack.c.h.b16 %v4292
    %v4737 = vunpack.c.l.b16 %v4293
    %v4738 = vunpack.c.l.b16 %v4294
    %v4739 = vunpack.c.h.b16 %v4294
    %v4740 = vunpack.c.l.b16 %v4295
    %v4741 = vunpack.c.l.b16 %v4296
    %v4742 = vunpack.c.h.b16 %v4296
    %v4743 = vunpack.c.l.b16 %v4297
    %v4744 = vunpack.c.l.b16 %v4298
    %v4745 = vunpack.c.h.b16 %v4298
    %v4746 = vunpack.c.l.b16 %v4299
    %v4747 = vunpack.c.l.b16 %v4300
    %v4748 = vunpack.c.h.b16 %v4300
    %v4749 = vunpack.c.l.b16 %v4301
    %v4750 = vunpack.c.l.b16 %v4302
    %v4751 = vunpack.c.h.b16 %v4302
    %v4752 = vunpack.c.l.b16 %v4303
    %v4753 = vunpack.c.l.b16 %v4304
    %v4754 = vunpack.c.h.b16 %v4304
    %v4755 = vunpack.c.l.b16 %v4305
    %v4756 = vunpack.c.l.b16 %v4306
    %v4757 = vunpack.c.h.b16 %v4306
    %v4758 = vunpack.c.l.b16 %v4307
    %v4759 = vunpack.c.l.b16 %v4308
    %v4760 = vunpack.c.h.b16 %v4308
    %v4761 = vunpack.c.l.b16 %v4309
    %v4762 = vunpack.c.l.b16 %v4310
    %v4763 = vunpack.c.h.b16 %v4310
    %v4764 = vunpack.c.l.b16 %v4311
    %v4765 = vunpack.c.l.b16 %v4312
    %v4766 = vunpack.c.h.b16 %v4312
    %v4767 = vunpack.c.l.b16 %v4313
    %v4768 = vunpack.c.l.b16 %v4314
    %v4769 = vunpack.c.h.b16 %v4314
    %v4770 = vunpack.c.l.b16 %v4315
    %v4771 = vunpack.c.l.b16 %v4316
    %v4772 = vunpack.c.h.b16 %v4316
    %v4773 = vunpack.c.l.b16 %v4317
    %v4774 = vunpack.c.l.b16 %v4318
    %v4775 = vunpack.c.h.b16 %v4318
    %v4776 = vunpack.c.l.b16 %v4319
    %v4777 = vunpack.c.l.b16 %v4320
    %v4778 = vunpack.c.h.b16 %v4320
    %v4779 = vunpack.c.l.b16 %v4321
    %v4780 = vunpack.c.l.b16 %v4322
    %v4781 = vunpack.c.h.b16 %v4322
    %v4782 = vunpack.c.l.b16 %v4323
    %v4783 = vunpack.c.l.b16 %v4324
    %v4784 = vunpack.c.h.b16 %v4324
    %v4785 = vunpack.c.l.b16 %v4325
    %v4786 = vunpack.c.l.b16 %v4326
    %v4787 = vunpack.c.h.b16 %v4326
    %v4788 = vunpack.c.l.b16 %v4327
    %v4789 = vunpack.c.l.b16 %v4328
    %v4790 = vunpack.c.h.b16 %v4328
    %v4791 = vunpack.c.l.b16 %v4329
    %v4792 = vunpack.c.l.b16 %v4330
    %v4793 = vunpack.c.h.b16 %v4330
    %v4794 = vunpack.c.l.b16 %v4331
    %v4795 = vunpack.c.l.b16 %v4332
    %v4796 = vunpack.c.h.b16 %v4332
    %v4797 = vunpack.c.l.b16 %v4333
    %v4798 = vunpack.c.l.b16 %v4334
    %v4799 = vunpack.c.h.b16 %v4334
    %v4800 = vunpack.c.l.b16 %v4335
    %v4801 = vunpack.c.l.b16 %v4336
    %v4802 = vunpack.c.h.b16 %v4336
    %v4803 = vunpack.c.l.b16 %v4337
    %v4804 = vunpack.c.l.b16 %v4338
    %v4805 = vunpack.c.h.b16 %v4338
    %v4806 = vunpack.c.l.b16 %v4339
    %v4807 = vpack.c.b16 %v4540, %v4537
    %v4808 = vpack.c.b16 %v4541, %v4538
    %v4809 = vpack.c.b16 %v4542, %v4539
    %v4810 = vpack.c.b16 %v4546, %v4543
    %v4811 = vpack.c.b16 %v4547, %v4544
    %v4812 = vpack.c.b16 %v4548, %v4545
    %v4813 = vpack.c.b16 %v4552, %v4549
    %v4814 = vpack.c.b16 %v4553, %v4550
    %v4815 = vpack.c.b16 %v4554, %v4551
    %v4816 = vpack.c.b16 %v4558, %v4555
    %v4817 = vpack.c.b16 %v4559, %v4556
    %v4818 = vpack.c.b16 %v4560, %v4557
    %v4819 = vpack.c.b16 %v4564, %v4561
    %v4820 = vpack.c.b16 %v4565, %v4562
    %v4821 = vpack.c.b16 %v4566, %v4563
    %v4822 = vpack.c.b16 %v4570, %v4567
    %v4823 = vpack.c.b16 %v4571, %v4568
    %v4824 = vpack.c.b16 %v4572, %v4569
    %v4825 = vpack.c.b16 %v4576, %v4573
    %v4826 = vpack.c.b16 %v4577, %v4574
    %v4827 = vpack.c.b16 %v4578, %v4575
    %v4828 = vpack.c.b16 %v4582, %v4579
    %v4829 = vpack.c.b16 %v4583, %v4580
    %v4830 = vpack.c.b16 %v4584, %v4581
    %v4831 = vpack.c.b16 %v4588, %v4585
    %v4832 = vpack.c.b16 %v4589, %v4586
    %v4833 = vpack.c.b16 %v4590, %v4587
    %v4834 = vpack.c.b16 %v4594, %v4591
    %v4835 = vpack.c.b16 %v4595, %v4592
    %v4836 = vpack.c.b16 %v4596, %v4593
    %v4837 = vpack.c.b16 %v4600, %v4597
    %v4838 = vpack.c.b16 %v4601, %v4598
    %v4839 = vpack.c.b16 %v4602, %v4599
    %v4840 = vpack.c.b16 %v4606, %v4603
    %v4841 = vpack.c.b16 %v4607, %v4604
    %v4842 = vpack.c.b16 %v4608, %v4605
    %v4843 = vpack.c.b16 %v4612, %v4609
    %v4844 = vpack.c.b16 %v4613, %v4610
    %v4845 = vpack.c.b16 %v4614, %v4611
    %v4846 = vpack.c.b16 %v4618, %v4615
    %v4847 = vpack.c.b16 %v4619, %v4616
    %v4848 = vpack.c.b16 %v4620, %v4617
    %v4849 = vpack.c.b16 %v4624, %v4621
    %v4850 = vpack.c.b16 %v4625, %v4622
    %v4851 = vpack.c.b16 %v4626, %v4623
    %v4852 = vpack.c.b16 %v4630, %v4627
    %v4853 = vpack.c.b16 %v4631, %v4628
    %v4854 = vpack.c.b16 %v4632, %v4629
    %v4855 = vpack.c.b16 %v4636, %v4633
    %v4856 = vpack.c.b16 %v4637, %v4634
    %v4857 = vpack.c.b16 %v4638, %v4635
    %v4858 = vpack.c.b16 %v4642, %v4639
    %v4859 = vpack.c.b16 %v4643, %v4640
    %v4860 = vpack.c.b16 %v4644, %v4641
    %v4861 = vpack.c.b16 %v4648, %v4645
    %v4862 = vpack.c.b16 %v4649, %v4646
    %v4863 = vpack.c.b16 %v4650, %v4647
    %v4864 = vpack.c.b16 %v4654, %v4651
    %v4865 = vpack.c.b16 %v4655, %v4652
    %v4866 = vpack.c.b16 %v4656, %v4653
    %v4867 = vpack.c.b16 %v4660, %v4657
    %v4868 = vpack.c.b16 %v4661, %v4658
    %v4869 = vpack.c.b16 %v4662, %v4659
    %v4870 = vpack.c.b16 %v4666, %v4663
    %v4871 = vpack.c.b16 %v4667, %v4664
    %v4872 = vpack.c.b16 %v4668, %v4665
    %v4873 = vpack.c.b16 %v4672, %v4669
    %v4874 = vpack.c.b16 %v4673, %v4670
    %v4875 = vpack.c.b16 %v4674, %v4671
    %v4876 = vpack.c.b16 %v4678, %v4675
    %v4877 = vpack.c.b16 %v4679, %v4676
    %v4878 = vpack.c.b16 %v4680, %v4677
    %v4879 = vpack.c.b16 %v4684, %v4681
    %v4880 = vpack.c.b16 %v4685, %v4682
    %v4881 = vpack.c.b16 %v4686, %v4683
    %v4882 = vpack.c.b16 %v4690, %v4687
    %v4883 = vpack.c.b16 %v4691, %v4688
    %v4884 = vpack.c.b16 %v4692, %v4689
    %v4885 = vpack.c.b16 %v4696, %v4693
    %v4886 = vpack.c.b16 %v4697, %v4694
    %v4887 = vpack.c.b16 %v4698, %v4695
    %v4888 = vpack.c.b16 %v4702, %v4699
    %v4889 = vpack.c.b16 %v4703, %v4700
    %v4890 = vpack.c.b16 %v4704, %v4701
    %v4891 = vpack.c.b16 %v4708, %v4705
    %v4892 = vpack.c.b16 %v4709, %v4706
    %v4893 = vpack.c.b16 %v4710, %v4707
    %v4894 = vpack.c.b16 %v4714, %v4711
    %v4895 = vpack.c.b16 %v4715, %v4712
    %v4896 = vpack.c.b16 %v4716, %v4713
    %v4897 = vpack.c.b16 %v4720, %v4717
    %v4898 = vpack.c.b16 %v4721, %v4718
    %v4899 = vpack.c.b16 %v4722, %v4719
    %v4900 = vpack.c.b16 %v4726, %v4723
    %v4901 = vpack.c.b16 %v4727, %v4724
    %v4902 = vpack.c.b16 %v4728, %v4725
    %v4903 = vpack.c.b16 %v4732, %v4729
    %v4904 = vpack.c.b16 %v4733, %v4730
    %v4905 = vpack.c.b16 %v4734, %v4731
    %v4906 = vpack.c.b16 %v4738, %v4735
    %v4907 = vpack.c.b16 %v4739, %v4736
    %v4908 = vpack.c.b16 %v4740, %v4737
    %v4909 = vpack.c.b16 %v4744, %v4741
    %v4910 = vpack.c.b16 %v4745, %v4742
    %v4911 = vpack.c.b16 %v4746, %v4743
    %v4912 = vpack.c.b16 %v4750, %v4747
    %v4913 = vpack.c.b16 %v4751, %v4748
    %v4914 = vpack.c.b16 %v4752, %v4749
    %v4915 = vpack.c.b16 %v4756, %v4753
    %v4916 = vpack.c.b16 %v4757, %v4754
    %v4917 = vpack.c.b16 %v4758, %v4755
    %v4918 = vpack.c.b16 %v4762, %v4759
    %v4919 = vpack.c.b16 %v4763, %v4760
    %v4920 = vpack.c.b16 %v4764, %v4761
    %v4921 = vpack.c.b16 %v4768, %v4765
    %v4922 = vpack.c.b16 %v4769, %v4766
    %v4923 = vpack.c.b16 %v4770, %v4767
    %v4924 = vpack.c.b16 %v4774, %v4771
    %v4925 = vpack.c.b16 %v4775, %v4772
    %v4926 = vpack.c.b16 %v4776, %v4773
    %v4927 = vpack.c.b16 %v4780, %v4777
    %v4928 = vpack.c.b16 %v4781, %v4778
    %v4929 = vpack.c.b16 %v4782, %v4779
    %v4930 = vpack.c.b16 %v4786, %v4783
    %v4931 = vpack.c.b16 %v4787, %v4784
    %v4932 = vpack.c.b16 %v4788, %v4785
    %v4933 = vpack.c.b16 %v4792, %v4789
    %v4934 = vpack.c.b16 %v4793, %v4790
    %v4935 = vpack.c.b16 %v4794, %v4791
    %v4936 = vpack.c.b16 %v4798, %v4795
    %v4937 = vpack.c.b16 %v4799, %v4796
    %v4938 = vpack.c.b16 %v4800, %v4797
    %v4939 = vpack.c.b16 %v4804, %v4801
    %v4940 = vpack.c.b16 %v4805, %v4802
    %v4941 = vpack.c.b16 %v4806, %v4803
    %vm5077 = vcmask 654336
    %v5079 = vsel %vm5077, %v4159, 0
    %5081 = vmatprep.subr.bf16.mxu0 %v4808
    %5082 = vmatpush1.bf16.msra.mxu0 %v4807
    %5083 = vmatprep.subr.bf16.mxu0 %v4811
    %5084 = vmatpush1.bf16.msra.mxu0 %v4810
    %5085 = vmatprep.subr.bf16.mxu0 %v4814
    %5086 = vmatpush1.bf16.msra.mxu0 %v4813
    %5087 = vmatprep.subr.bf16.mxu0 %v4817
    %5088 = vmatpush1.bf16.msra.mxu0 %v4816
    %5089 = vmatprep.subr.bf16.mxu0 %v4820
    %5090 = vmatpush1.bf16.msra.mxu0 %v4819
    %5091 = vmatprep.subr.bf16.mxu0 %v4823
    %5092 = vmatpush1.bf16.msra.mxu0 %v4822
    %5093 = vmatprep.subr.bf16.mxu0 %v4826
    %5094 = vmatpush1.bf16.msra.mxu0 %v4825
    %5095 = vmatprep.subr.bf16.mxu0 %v4829
    %5096 = vmatpush1.bf16.msra.mxu0 %v4828
    %5097 = vmatprep.subr.bf16.mxu0 %v4832
    %5098 = vmatpush1.bf16.msra.mxu0 %v4831
    %5099 = vmatprep.subr.bf16.mxu0 %v4835
    %5100 = vmatpush1.bf16.msra.mxu0 %v4834
    %5101 = vmatprep.subr.bf16.mxu0 %v4838
    %5102 = vmatpush1.bf16.msra.mxu0 %v4837
    %5103 = vmatprep.subr.bf16.mxu0 %v4841
    %5104 = vmatpush1.bf16.msra.mxu0 %v4840
    %5105 = vmatprep.subr.bf16.mxu0 %v4844
    %5106 = vmatpush1.bf16.msra.mxu0 %v4843
    %5107 = vmatprep.subr.bf16.mxu0 %v4847
    %5108 = vmatpush1.bf16.msra.mxu0 %v4846
    %5109 = vmatprep.subr.bf16.mxu0 %v4850
    %5110 = vmatpush1.bf16.msra.mxu0 %v4849
    %5111 = vmatprep.subr.bf16.mxu0 %v4853
    %5112 = vmatpush1.bf16.msra.mxu0 %v4852
    %5113 = vmatprep.mubr.bf16.mxu0 %v4155
    %5114 = vmatmul.mubr.bf16.gmra.mrb[0].mxu0 %v4154
    %v5115 = vpop.f32.mrb[0].mxu0
    %v5116 = vadd.f32 %v4345, %v5115
    %v5117 = vpop.f32.mrb[0].mxu0
    %v5118 = vadd.f32 %v4349, %v5117
    %v5119 = vpop.f32.mrb[0].mxu0
    %v5120 = vpop.f32.mrb[0].mxu0
    %5121 = vdwg.mxu0
    %5122 = vmatprep.subr.bf16.mxu0 %v4856
    %5123 = vmatpush1.bf16.msra.mxu0 %v4855
    %5124 = vmatprep.subr.bf16.mxu0 %v4859
    %5125 = vmatpush1.bf16.msra.mxu0 %v4858
    %5126 = vmatprep.subr.bf16.mxu0 %v4862
    %5127 = vmatpush1.bf16.msra.mxu0 %v4861
    %5128 = vmatprep.subr.bf16.mxu0 %v4865
    %5129 = vmatpush1.bf16.msra.mxu0 %v4864
    %5130 = vmatprep.subr.bf16.mxu0 %v4868
    %5131 = vmatpush1.bf16.msra.mxu0 %v4867
    %5132 = vmatprep.subr.bf16.mxu0 %v4871
    %5133 = vmatpush1.bf16.msra.mxu0 %v4870
    %5134 = vmatprep.subr.bf16.mxu0 %v4874
    %5135 = vmatpush1.bf16.msra.mxu0 %v4873
    %5136 = vmatprep.subr.bf16.mxu0 %v4877
    %5137 = vmatpush1.bf16.msra.mxu0 %v4876
    %5138 = vmatprep.subr.bf16.mxu0 %v4880
    %5139 = vmatpush1.bf16.msra.mxu0 %v4879
    %5140 = vmatprep.subr.bf16.mxu0 %v4883
    %5141 = vmatpush1.bf16.msra.mxu0 %v4882
    %5142 = vmatprep.subr.bf16.mxu0 %v4886
    %5143 = vmatpush1.bf16.msra.mxu0 %v4885
    %5144 = vmatprep.subr.bf16.mxu0 %v4889
    %5145 = vmatpush1.bf16.msra.mxu0 %v4888
    %5146 = vmatprep.subr.bf16.mxu0 %v4892
    %5147 = vmatpush1.bf16.msra.mxu0 %v4891
    %5148 = vmatprep.subr.bf16.mxu0 %v4895
    %5149 = vmatpush1.bf16.msra.mxu0 %v4894
    %5150 = vmatprep.subr.bf16.mxu0 %v4898
    %5151 = vmatpush1.bf16.msra.mxu0 %v4897
    %5152 = vmatprep.subr.bf16.mxu0 %v4901
    %5153 = vmatpush1.bf16.msra.mxu0 %v4900
    %5154 = vmatprep.mubr.bf16.mxu0 %v4157
    %5155 = vmatmul.mubr.bf16.gmra.mrb[0].mxu0 %v4156
    %v5156 = vpop.f32.mrb[0].mxu0
    %v5157 = vadd.f32 %v5116, %v5156
    %v5158 = vpop.f32.mrb[0].mxu0
    %v5159 = vadd.f32 %v5118, %v5158
    %v5160 = vpop.f32.mrb[0].mxu0
    %v5161 = vpop.f32.mrb[0].mxu0
    %5162 = vdwg.mxu0
    %5163 = vmatprep.subr.bf16.mxu0 %v4904
    %5164 = vmatpush1.bf16.msra.mxu0 %v4903
    %5165 = vmatprep.subr.bf16.mxu0 %v4907
    %5166 = vmatpush1.bf16.msra.mxu0 %v4906
    %5167 = vmatprep.subr.bf16.mxu0 %v4910
    %5168 = vmatpush1.bf16.msra.mxu0 %v4909
    %5169 = vmatprep.subr.bf16.mxu0 %v4913
    %5170 = vmatpush1.bf16.msra.mxu0 %v4912
    %5171 = vmatprep.subr.bf16.mxu0 %v4916
    %5172 = vmatpush1.bf16.msra.mxu0 %v4915
    %5173 = vmatprep.subr.bf16.mxu0 %v4919
    %5174 = vmatpush1.bf16.msra.mxu0 %v4918
    %5175 = vmatprep.subr.bf16.mxu0 %v4922
    %5176 = vmatpush1.bf16.msra.mxu0 %v4921
    %5177 = vmatprep.subr.bf16.mxu0 %v4925
    %5178 = vmatpush1.bf16.msra.mxu0 %v4924
    %5179 = vmatprep.subr.bf16.mxu0 %v4928
    %5180 = vmatpush1.bf16.msra.mxu0 %v4927
    %5181 = vmatprep.subr.bf16.mxu0 %v4931
    %5182 = vmatpush1.bf16.msra.mxu0 %v4930
    %5183 = vmatprep.subr.bf16.mxu0 %v4934
    %5184 = vmatpush1.bf16.msra.mxu0 %v4933
    %5185 = vmatprep.subr.bf16.mxu0 %v4937
    %5186 = vmatpush1.bf16.msra.mxu0 %v4936
    %5187 = vmatprep.subr.bf16.mxu0 %v4940
    %5188 = vmatpush1.bf16.msra.mxu0 %v4939
    %5189 = vmatprep.subr.bf16.mxu0 0
    %5190 = vmatpush1.bf16.msra.mxu0 0
    %5191 = vmatprep.subr.bf16.mxu0 0
    %5192 = vmatpush1.bf16.msra.mxu0 0
    %5193 = vmatprep.subr.bf16.mxu0 0
    %5194 = vmatpush1.bf16.msra.mxu0 0
    %5195 = vmatprep.mubr.bf16.mxu0 %v5079
    %5196 = vmatmul.mubr.bf16.gmra.mrb[0].mxu0 %v4158
    %v5197 = vpop.f32.mrb[0].mxu0
    %v5198 = vadd.f32 %v5157, %v5197
    %v5199 = vpop.f32.mrb[0].mxu0
    %v5200 = vadd.f32 %v5159, %v5199
    %v5201 = vpop.f32.mrb[0].mxu0
    %v5202 = vpop.f32.mrb[0].mxu0
    %5203 = vdwg.mxu0
    %5204 = vmatprep.subr.bf16.mxu0 0
    %5205 = vmatpush1.bf16.msra.mxu0 %v4809
    %5206 = vmatprep.subr.bf16.mxu0 0
    %5207 = vmatpush1.bf16.msra.mxu0 %v4812
    %5208 = vmatprep.subr.bf16.mxu0 0
    %5209 = vmatpush1.bf16.msra.mxu0 %v4815
    %5210 = vmatprep.subr.bf16.mxu0 0
    %5211 = vmatpush1.bf16.msra.mxu0 %v4818
    %5212 = vmatprep.subr.bf16.mxu0 0
    %5213 = vmatpush1.bf16.msra.mxu0 %v4821
    %5214 = vmatprep.subr.bf16.mxu0 0
    %5215 = vmatpush1.bf16.msra.mxu0 %v4824
    %5216 = vmatprep.subr.bf16.mxu0 0
    %5217 = vmatpush1.bf16.msra.mxu0 %v4827
    %5218 = vmatprep.subr.bf16.mxu0 0
    %5219 = vmatpush1.bf16.msra.mxu0 %v4830
    %5220 = vmatprep.subr.bf16.mxu0 0
    %5221 = vmatpush1.bf16.msra.mxu0 %v4833
    %5222 = vmatprep.subr.bf16.mxu0 0
    %5223 = vmatpush1.bf16.msra.mxu0 %v4836
    %5224 = vmatprep.subr.bf16.mxu0 0
    %5225 = vmatpush1.bf16.msra.mxu0 %v4839
    %5226 = vmatprep.subr.bf16.mxu0 0
    %5227 = vmatpush1.bf16.msra.mxu0 %v4842
    %5228 = vmatprep.subr.bf16.mxu0 0
    %5229 = vmatpush1.bf16.msra.mxu0 %v4845
    %5230 = vmatprep.subr.bf16.mxu0 0
    %5231 = vmatpush1.bf16.msra.mxu0 %v4848
    %5232 = vmatprep.subr.bf16.mxu0 0
    %5233 = vmatpush1.bf16.msra.mxu0 %v4851
    %5234 = vmatprep.subr.bf16.mxu0 0
    %5235 = vmatpush1.bf16.msra.mxu0 %v4854
    %5236 = vmatprep.mubr.bf16.mxu0 %v4155
    %5237 = vmatmul.mubr.bf16.gmra.mrb[0].mxu0 %v4154
    %v5238 = vpop.f32.mrb[0].mxu0
    %v5239 = vadd.f32 %v4353, %v5238
    %v5240 = vpop.f32.mrb[0].mxu0
    %v5241 = vpop.f32.mrb[0].mxu0
    %v5242 = vpop.f32.mrb[0].mxu0
    %5243 = vdwg.mxu0
    %5244 = vmatprep.subr.bf16.mxu0 0
    %5245 = vmatpush1.bf16.msra.mxu0 %v4857
    %5246 = vmatprep.subr.bf16.mxu0 0
    %5247 = vmatpush1.bf16.msra.mxu0 %v4860
    %5248 = vmatprep.subr.bf16.mxu0 0
    %5249 = vmatpush1.bf16.msra.mxu0 %v4863
    %5250 = vmatprep.subr.bf16.mxu0 0
    %5251 = vmatpush1.bf16.msra.mxu0 %v4866
    %5252 = vmatprep.subr.bf16.mxu0 0
    %5253 = vmatpush1.bf16.msra.mxu0 %v4869
    %5254 = vmatprep.subr.bf16.mxu0 0
    %5255 = vmatpush1.bf16.msra.mxu0 %v4872
    %5256 = vmatprep.subr.bf16.mxu0 0
    %5257 = vmatpush1.bf16.msra.mxu0 %v4875
    %5258 = vmatprep.subr.bf16.mxu0 0
    %5259 = vmatpush1.bf16.msra.mxu0 %v4878
    %5260 = vmatprep.subr.bf16.mxu0 0
    %5261 = vmatpush1.bf16.msra.mxu0 %v4881
    %5262 = vmatprep.subr.bf16.mxu0 0
    %5263 = vmatpush1.bf16.msra.mxu0 %v4884
    %5264 = vmatprep.subr.bf16.mxu0 0
    %5265 = vmatpush1.bf16.msra.mxu0 %v4887
    %5266 = vmatprep.subr.bf16.mxu0 0
    %5267 = vmatpush1.bf16.msra.mxu0 %v4890
    %5268 = vmatprep.subr.bf16.mxu0 0
    %5269 = vmatpush1.bf16.msra.mxu0 %v4893
    %5270 = vmatprep.subr.bf16.mxu0 0
    %5271 = vmatpush1.bf16.msra.mxu0 %v4896
    %5272 = vmatprep.subr.bf16.mxu0 0
    %5273 = vmatpush1.bf16.msra.mxu0 %v4899
    %5274 = vmatprep.subr.bf16.mxu0 0
    %5275 = vmatpush1.bf16.msra.mxu0 %v4902
    %5276 = vmatprep.mubr.bf16.mxu0 %v4157
    %5277 = vmatmul.mubr.bf16.gmra.mrb[0].mxu0 %v4156
    %v5278 = vpop.f32.mrb[0].mxu0
    %v5279 = vadd.f32 %v5239, %v5278
    %v5280 = vpop.f32.mrb[0].mxu0
    %v5281 = vpop.f32.mrb[0].mxu0
    %v5282 = vpop.f32.mrb[0].mxu0
    %5283 = vdwg.mxu0
    %5284 = vmatprep.subr.bf16.mxu0 0
    %5285 = vmatpush1.bf16.msra.mxu0 %v4905
    %5286 = vmatprep.subr.bf16.mxu0 0
    %5287 = vmatpush1.bf16.msra.mxu0 %v4908
    %5288 = vmatprep.subr.bf16.mxu0 0
    %5289 = vmatpush1.bf16.msra.mxu0 %v4911
    %5290 = vmatprep.subr.bf16.mxu0 0
    %5291 = vmatpush1.bf16.msra.mxu0 %v4914
    %5292 = vmatprep.subr.bf16.mxu0 0
    %5293 = vmatpush1.bf16.msra.mxu0 %v4917
    %5294 = vmatprep.subr.bf16.mxu0 0
    %5295 = vmatpush1.bf16.msra.mxu0 %v4920
    %5296 = vmatprep.subr.bf16.mxu0 0
    %5297 = vmatpush1.bf16.msra.mxu0 %v4923
    %5298 = vmatprep.subr.bf16.mxu0 0
    %5299 = vmatpush1.bf16.msra.mxu0 %v4926
    %5300 = vmatprep.subr.bf16.mxu0 0
    %5301 = vmatpush1.bf16.msra.mxu0 %v4929
    %5302 = vmatprep.subr.bf16.mxu0 0
    %5303 = vmatpush1.bf16.msra.mxu0 %v4932
    %5304 = vmatprep.subr.bf16.mxu0 0
    %5305 = vmatpush1.bf16.msra.mxu0 %v4935
    %5306 = vmatprep.subr.bf16.mxu0 0
    %5307 = vmatpush1.bf16.msra.mxu0 %v4938
    %5308 = vmatprep.subr.bf16.mxu0 0
    %5309 = vmatpush1.bf16.msra.mxu0 %v4941
    %5310 = vmatprep.subr.bf16.mxu0 0
    %5311 = vmatpush1.bf16.msra.mxu0 0
    %5312 = vmatprep.subr.bf16.mxu0 0
    %5313 = vmatpush1.bf16.msra.mxu0 0
    %5314 = vmatprep.subr.bf16.mxu0 0
    %5315 = vmatpush1.bf16.msra.mxu0 0
    %5316 = vmatprep.mubr.bf16.mxu0 %v5079
    %5317 = vmatmul.mubr.bf16.gmra.mrb[0].mxu0 %v4158
    %v5318 = vpop.f32.mrb[0].mxu0
    %v5319 = vadd.f32 %v5279, %v5318
    %v5320 = vpop.f32.mrb[0].mxu0
    %v5321 = vpop.f32.mrb[0].mxu0
    %v5322 = vpop.f32.mrb[0].mxu0
    %5323 = vdwg.mxu0
    %vm5324 = vcmp.ge.f32.partialorder %v5198, 0.0
    %vm5325 = vcmp.ge.f32.partialorder %v5200, 0.0
    %vm5326 = vcmp.ge.f32.partialorder %v5319, 0.0
    %v5327 = vmul.f32 %v5198, 0.2
    %v5328 = vmul.f32 %v5200, 0.2
    %v5329 = vmul.f32 %v5319, 0.2
    %v5330 = vsel %vm5324, %v5198, %v5327
    %v5331 = vsel %vm5325, %v5200, %v5328
    %v5332 = vsel %vm5326, %v5319, %v5329
    %v5333 = vpack.c.bf16 %v5330, %v5330
    %v5334 = vpack.c.bf16 %v5331, %v5331
    %v5335 = vpack.c.bf16 %v5332, %v5332
    %v5336 = vld [vmem:[%s5] sm:$0xff]
    %v5337 = vld [vmem:[%s5 + $0x8] sm:$0xff]
    %v5338 = vld [vmem:[%s5 + $0x10] sm:$0xff]
    %v5339 = vld [vmem:[%s5 + $0x18] sm:$0xff]
    %v5340 = vld [vmem:[%s5 + $0x20] sm:$0xff]
    %v5341 = vld [vmem:[%s5 + $0x28] sm:$0xff]
    %v5342 = vld [vmem:[%s5 + $0x30] sm:$0xff]
    %v5343 = vld [vmem:[%s5 + $0x38] sm:$0xff]
    %v5344 = vld [vmem:[%s5 + $0x40] sm:$0xff]
    %v5345 = vld [vmem:[%s5 + $0x48] sm:$0xff]
    %v5346 = vld [vmem:[%s5 + $0x50] sm:$0xff]
    %v5347 = vld [vmem:[%s5 + $0x58] sm:$0xff]
    %v5348 = vld [vmem:[%s5 + $0x60] sm:$0xff]
    %v5349 = vld [vmem:[%s5 + $0x68] sm:$0xff]
    %v5350 = vld [vmem:[%s5 + $0x70] sm:$0xff]
    %v5351 = vld [vmem:[%s5 + $0x78] sm:$0xff]
    %v5352 = vld [vmem:[%s5 + $0x80] sm:$0xff]
    %v5353 = vld [vmem:[%s5 + $0x88] sm:$0xff]
    %v5354 = vld [vmem:[%s5 + $0x90] sm:$0xff]
    %v5355 = vld [vmem:[%s5 + $0x98] sm:$0xff]
    %v5356 = vld [vmem:[%s5 + $0xa0] sm:$0xff]
    %v5357 = vld [vmem:[%s5 + $0xa8] sm:$0xff]
    %v5358 = vld [vmem:[%s5 + $0xb0] sm:$0xff]
    %v5359 = vld [vmem:[%s5 + $0xb8] sm:$0xff]
    %v5360 = vld [vmem:[%s5 + $0xc0] sm:$0xff]
    %v5361 = vld [vmem:[%s5 + $0xc8] sm:$0xff]
    %v5362 = vld [vmem:[%s5 + $0xd0] sm:$0xff]
    %v5363 = vld [vmem:[%s5 + $0xd8] sm:$0xff]
    %v5364 = vld [vmem:[%s5 + $0xe0] sm:$0xff]
    %v5365 = vld [vmem:[%s5 + $0xe8] sm:$0xff]
    %v5366 = vld [vmem:[%s5 + $0xf0] sm:$0xff]
    %v5367 = vld [vmem:[%s5 + $0xf8] sm:$0xff]
    %v5368 = vld [vmem:[%s5 + $0x100] sm:$0xff]
    %v5369 = vld [vmem:[%s5 + $0x108] sm:$0xff]
    %v5370 = vld [vmem:[%s5 + $0x110] sm:$0xff]
    %v5371 = vld [vmem:[%s5 + $0x118] sm:$0xff]
    %v5372 = vld [vmem:[%s5 + $0x120] sm:$0xff]
    %v5373 = vld [vmem:[%s5 + $0x128] sm:$0xff]
    %v5374 = vld [vmem:[%s5 + $0x130] sm:$0xff]
    %v5375 = vld [vmem:[%s5 + $0x138] sm:$0xff]
    %v5376 = vld [vmem:[%s5 + $0x140] sm:$0xff]
    %v5377 = vld [vmem:[%s5 + $0x148] sm:$0xff]
    %v5378 = vld [vmem:[%s5 + $0x150] sm:$0xff]
    %v5379 = vld [vmem:[%s5 + $0x158] sm:$0xff]
    %v5380 = vld [vmem:[%s5 + $0x160] sm:$0xff]
    %v5426 = vunpack.c.l.b16 %v5336
    %v5427 = vunpack.c.h.b16 %v5336
    %v5428 = vunpack.c.l.b16 %v5337
    %v5429 = vunpack.c.h.b16 %v5337
    %v5430 = vunpack.c.l.b16 %v5338
    %v5431 = vunpack.c.h.b16 %v5338
    %v5432 = vunpack.c.l.b16 %v5339
    %v5433 = vunpack.c.h.b16 %v5339
    %v5434 = vunpack.c.l.b16 %v5340
    %v5435 = vunpack.c.h.b16 %v5340
    %v5436 = vunpack.c.l.b16 %v5341
    %v5437 = vunpack.c.h.b16 %v5341
    %v5438 = vunpack.c.l.b16 %v5342
    %v5439 = vunpack.c.h.b16 %v5342
    %v5440 = vunpack.c.l.b16 %v5343
    %v5441 = vunpack.c.h.b16 %v5343
    %v5442 = vunpack.c.l.b16 %v5344
    %v5443 = vunpack.c.h.b16 %v5344
    %v5444 = vunpack.c.l.b16 %v5345
    %v5445 = vunpack.c.h.b16 %v5345
    %v5446 = vunpack.c.l.b16 %v5346
    %v5447 = vunpack.c.h.b16 %v5346
    %v5448 = vunpack.c.l.b16 %v5347
    %v5449 = vunpack.c.h.b16 %v5347
    %v5450 = vunpack.c.l.b16 %v5348
    %v5451 = vunpack.c.h.b16 %v5348
    %v5452 = vunpack.c.l.b16 %v5349
    %v5453 = vunpack.c.h.b16 %v5349
    %v5454 = vunpack.c.l.b16 %v5350
    %v5455 = vunpack.c.h.b16 %v5350
    %v5456 = vunpack.c.l.b16 %v5351
    %v5457 = vunpack.c.h.b16 %v5351
    %v5458 = vunpack.c.l.b16 %v5352
    %v5459 = vunpack.c.h.b16 %v5352
    %v5460 = vunpack.c.l.b16 %v5353
    %v5461 = vunpack.c.h.b16 %v5353
    %v5462 = vunpack.c.l.b16 %v5354
    %v5463 = vunpack.c.h.b16 %v5354
    %v5464 = vunpack.c.l.b16 %v5355
    %v5465 = vunpack.c.h.b16 %v5355
    %v5466 = vunpack.c.l.b16 %v5356
    %v5467 = vunpack.c.h.b16 %v5356
    %v5468 = vunpack.c.l.b16 %v5357
    %v5469 = vunpack.c.h.b16 %v5357
    %v5470 = vunpack.c.l.b16 %v5358
    %v5471 = vunpack.c.h.b16 %v5358
    %v5472 = vunpack.c.l.b16 %v5359
    %v5473 = vunpack.c.h.b16 %v5359
    %v5474 = vunpack.c.l.b16 %v5360
    %v5475 = vunpack.c.h.b16 %v5360
    %v5476 = vunpack.c.l.b16 %v5361
    %v5477 = vunpack.c.h.b16 %v5361
    %v5478 = vunpack.c.l.b16 %v5362
    %v5479 = vunpack.c.h.b16 %v5362
    %v5480 = vunpack.c.l.b16 %v5363
    %v5481 = vunpack.c.h.b16 %v5363
    %v5482 = vunpack.c.l.b16 %v5364
    %v5483 = vunpack.c.h.b16 %v5364
    %v5484 = vunpack.c.l.b16 %v5365
    %v5485 = vunpack.c.h.b16 %v5365
    %v5486 = vunpack.c.l.b16 %v5366
    %v5487 = vunpack.c.h.b16 %v5366
    %v5488 = vunpack.c.l.b16 %v5367
    %v5489 = vunpack.c.h.b16 %v5367
    %v5490 = vunpack.c.l.b16 %v5368
    %v5491 = vunpack.c.h.b16 %v5368
    %v5492 = vunpack.c.l.b16 %v5369
    %v5493 = vunpack.c.h.b16 %v5369
    %v5494 = vunpack.c.l.b16 %v5370
    %v5495 = vunpack.c.h.b16 %v5370
    %v5496 = vunpack.c.l.b16 %v5371
    %v5497 = vunpack.c.h.b16 %v5371
    %v5498 = vunpack.c.l.b16 %v5372
    %v5499 = vunpack.c.h.b16 %v5372
    %v5500 = vunpack.c.l.b16 %v5373
    %v5501 = vunpack.c.h.b16 %v5373
    %v5502 = vunpack.c.l.b16 %v5374
    %v5503 = vunpack.c.h.b16 %v5374
    %v5504 = vunpack.c.l.b16 %v5375
    %v5505 = vunpack.c.h.b16 %v5375
    %v5506 = vunpack.c.l.b16 %v5376
    %v5507 = vunpack.c.h.b16 %v5376
    %v5508 = vunpack.c.l.b16 %v5377
    %v5509 = vunpack.c.h.b16 %v5377
    %v5510 = vunpack.c.l.b16 %v5378
    %v5511 = vunpack.c.h.b16 %v5378
    %v5512 = vunpack.c.l.b16 %v5379
    %v5513 = vunpack.c.h.b16 %v5379
    %v5514 = vunpack.c.l.b16 %v5380
    %v5515 = vunpack.c.h.b16 %v5380
    %v5516 = vpack.c.b16 %v5428, %v5426
    %v5517 = vpack.c.b16 %v5429, %v5427
    %v5518 = vpack.c.b16 %v5432, %v5430
    %v5519 = vpack.c.b16 %v5433, %v5431
    %v5520 = vpack.c.b16 %v5436, %v5434
    %v5521 = vpack.c.b16 %v5437, %v5435
    %v5522 = vpack.c.b16 %v5440, %v5438
    %v5523 = vpack.c.b16 %v5441, %v5439
    %v5524 = vpack.c.b16 %v5444, %v5442
    %v5525 = vpack.c.b16 %v5445, %v5443
    %v5526 = vpack.c.b16 %v5448, %v5446
    %v5527 = vpack.c.b16 %v5449, %v5447
    %v5528 = vpack.c.b16 %v5452, %v5450
    %v5529 = vpack.c.b16 %v5453, %v5451
    %v5530 = vpack.c.b16 %v5456, %v5454
    %v5531 = vpack.c.b16 %v5457, %v5455
    %v5532 = vpack.c.b16 %v5460, %v5458
    %v5533 = vpack.c.b16 %v5461, %v5459
    %v5534 = vpack.c.b16 %v5464, %v5462
    %v5535 = vpack.c.b16 %v5465, %v5463
    %v5536 = vpack.c.b16 %v5468, %v5466
    %v5537 = vpack.c.b16 %v5469, %v5467
    %v5538 = vpack.c.b16 %v5472, %v5470
    %v5539 = vpack.c.b16 %v5473, %v5471
    %v5540 = vpack.c.b16 %v5476, %v5474
    %v5541 = vpack.c.b16 %v5477, %v5475
    %v5542 = vpack.c.b16 %v5480, %v5478
    %v5543 = vpack.c.b16 %v5481, %v5479
    %v5544 = vpack.c.b16 %v5484, %v5482
    %v5545 = vpack.c.b16 %v5485, %v5483
    %v5546 = vpack.c.b16 %v5488, %v5486
    %v5547 = vpack.c.b16 %v5489, %v5487
    %v5548 = vpack.c.b16 %v5492, %v5490
    %v5549 = vpack.c.b16 %v5493, %v5491
    %v5550 = vpack.c.b16 %v5496, %v5494
    %v5551 = vpack.c.b16 %v5497, %v5495
    %v5552 = vpack.c.b16 %v5500, %v5498
    %v5553 = vpack.c.b16 %v5501, %v5499
    %v5554 = vpack.c.b16 %v5504, %v5502
    %v5555 = vpack.c.b16 %v5505, %v5503
    %v5556 = vpack.c.b16 %v5508, %v5506
    %v5557 = vpack.c.b16 %v5509, %v5507
    %v5558 = vpack.c.b16 %v5512, %v5510
    %v5559 = vpack.c.b16 %v5513, %v5511
    %v5560 = vpack.c.b16 %v5514, %v5514
    %v5561 = vpack.c.b16 %v5515, %v5515
    %vm5606 = vcmask 850944
    %v5608 = vsel %vm5606, %v5335, 0
    %vm5610 = vcmask 1043456
    %v5612 = vsel %vm5610, %v5560, 0
    %v5615 = vsel %vm5610, %v5561, 0
    %5617 = vmatprep.subr.bf16.mxu0 %v5517
    %5618 = vmatpush1.bf16.msra.mxu0 %v5516
    %5619 = vmatprep.subr.bf16.mxu0 %v5519
    %5620 = vmatpush1.bf16.msra.mxu0 %v5518
    %5621 = vmatprep.subr.bf16.mxu0 %v5521
    %5622 = vmatpush1.bf16.msra.mxu0 %v5520
    %5623 = vmatprep.subr.bf16.mxu0 %v5523
    %5624 = vmatpush1.bf16.msra.mxu0 %v5522
    %5625 = vmatprep.subr.bf16.mxu0 %v5525
    %5626 = vmatpush1.bf16.msra.mxu0 %v5524
    %5627 = vmatprep.subr.bf16.mxu0 %v5527
    %5628 = vmatpush1.bf16.msra.mxu0 %v5526
    %5629 = vmatprep.subr.bf16.mxu0 %v5529
    %5630 = vmatpush1.bf16.msra.mxu0 %v5528
    %5631 = vmatprep.subr.bf16.mxu0 %v5531
    %5632 = vmatpush1.bf16.msra.mxu0 %v5530
    %5633 = vmatprep.subr.bf16.mxu0 %v5533
    %5634 = vmatpush1.bf16.msra.mxu0 %v5532
    %5635 = vmatprep.subr.bf16.mxu0 %v5535
    %5636 = vmatpush1.bf16.msra.mxu0 %v5534
    %5637 = vmatprep.subr.bf16.mxu0 %v5537
    %5638 = vmatpush1.bf16.msra.mxu0 %v5536
    %5639 = vmatprep.subr.bf16.mxu0 %v5539
    %5640 = vmatpush1.bf16.msra.mxu0 %v5538
    %5641 = vmatprep.subr.bf16.mxu0 %v5541
    %5642 = vmatpush1.bf16.msra.mxu0 %v5540
    %5643 = vmatprep.subr.bf16.mxu0 %v5543
    %5644 = vmatpush1.bf16.msra.mxu0 %v5542
    %5645 = vmatprep.subr.bf16.mxu0 %v5545
    %5646 = vmatpush1.bf16.msra.mxu0 %v5544
    %5647 = vmatprep.subr.bf16.mxu0 %v5547
    %5648 = vmatpush1.bf16.msra.mxu0 %v5546
    %5649 = vmatprep.mubr.bf16.mxu0 %v5334
    %5650 = vmatmul.mubr.bf16.gmra.mrb[0].mxu0 %v5333
    %v5651 = vpop.f32.mrb[0].mxu0
    %v5652 = vadd.f32 0.0, %v5651
    %v5653 = vpop.f32.mrb[0].mxu0
    %v5654 = vadd.f32 0.0, %v5653
    %v5655 = vpop.f32.mrb[0].mxu0
    %v5656 = vpop.f32.mrb[0].mxu0
    %5657 = vdwg.mxu0
    %5658 = vmatprep.subr.bf16.mxu0 %v5549
    %5659 = vmatpush1.bf16.msra.mxu0 %v5548
    %5660 = vmatprep.subr.bf16.mxu0 %v5551
    %5661 = vmatpush1.bf16.msra.mxu0 %v5550
    %5662 = vmatprep.subr.bf16.mxu0 %v5553
    %5663 = vmatpush1.bf16.msra.mxu0 %v5552
    %5664 = vmatprep.subr.bf16.mxu0 %v5555
    %5665 = vmatpush1.bf16.msra.mxu0 %v5554
    %5666 = vmatprep.subr.bf16.mxu0 %v5557
    %5667 = vmatpush1.bf16.msra.mxu0 %v5556
    %5668 = vmatprep.subr.bf16.mxu0 %v5559
    %5669 = vmatpush1.bf16.msra.mxu0 %v5558
    %5670 = vmatprep.subr.bf16.mxu0 %v5615
    %5671 = vmatpush1.bf16.msra.mxu0 %v5612
    %5672 = vmatprep.subr.bf16.mxu0 0
    %5673 = vmatpush1.bf16.msra.mxu0 0
    %5674 = vmatprep.subr.bf16.mxu0 0
    %5675 = vmatpush1.bf16.msra.mxu0 0
    %5676 = vmatprep.subr.bf16.mxu0 0
    %5677 = vmatpush1.bf16.msra.mxu0 0
    %5678 = vmatprep.subr.bf16.mxu0 0
    %5679 = vmatpush1.bf16.msra.mxu0 0
    %5680 = vmatprep.subr.bf16.mxu0 0
    %5681 = vmatpush1.bf16.msra.mxu0 0
    %5682 = vmatprep.subr.bf16.mxu0 0
    %5683 = vmatpush1.bf16.msra.mxu0 0
    %5684 = vmatprep.subr.bf16.mxu0 0
    %5685 = vmatpush1.bf16.msra.mxu0 0
    %5686 = vmatprep.subr.bf16.mxu0 0
    %5687 = vmatpush1.bf16.msra.mxu0 0
    %5688 = vmatprep.subr.bf16.mxu0 0
    %5689 = vmatpush1.bf16.msra.mxu0 0
    %5690 = vmatprep.mubr.bf16.mxu0 0
    %5691 = vmatmul.mubr.bf16.gmra.mrb[0].mxu0 %v5608
    %v5692 = vpop.f32.mrb[0].mxu0
    %v5693 = vadd.f32 %v5652, %v5692
    %v5694 = vpop.f32.mrb[0].mxu0
    %v5695 = vadd.f32 %v5654, %v5694
    %v5696 = vpop.f32.mrb[0].mxu0
    %v5697 = vpop.f32.mrb[0].mxu0
    %5698 = vdwg.mxu0
    %vm5699 = vcmp.ge.f32.partialorder %v5693, 0.0
    %vm5700 = vcmp.ge.f32.partialorder %v5695, 0.0
    %v5701 = vmul.f32 %v5693, 0.2
    %v5702 = vmul.f32 %v5695, 0.2
    %v5703 = vsel %vm5699, %v5693, %v5701
    %v5704 = vsel %vm5700, %v5695, %v5702
    %v5705 = vpack.c.bf16 %v5703, %v5703
    %v5706 = vpack.c.bf16 %v5704, %v5704
    %v5707 = vld [vmem:[%s6] sm:$0xf]
    %v5708 = vld [vmem:[%s6 + $0x4] sm:$0xf]
    %v5709 = vld [vmem:[%s6 + $0x8] sm:$0xf]
    %v5710 = vld [vmem:[%s6 + $0xc] sm:$0xf]
    %v5711 = vld [vmem:[%s6 + $0x10] sm:$0xf]
    %v5712 = vld [vmem:[%s6 + $0x14] sm:$0xf]
    %v5713 = vld [vmem:[%s6 + $0x18] sm:$0xf]
    %v5714 = vld [vmem:[%s6 + $0x1c] sm:$0xf]
    %v5715 = vld [vmem:[%s6 + $0x20] sm:$0xf]
    %v5716 = vld [vmem:[%s6 + $0x24] sm:$0xf]
    %v5717 = vld [vmem:[%s6 + $0x28] sm:$0xf]
    %v5718 = vld [vmem:[%s6 + $0x2c] sm:$0xf]
    %v5719 = vld [vmem:[%s6 + $0x30] sm:$0xf]
    %v5720 = vld [vmem:[%s6 + $0x34] sm:$0xf]
    %v5721 = vld [vmem:[%s6 + $0x38] sm:$0xf]
    %v5722 = vld [vmem:[%s6 + $0x3c] sm:$0xf]
    %v5723 = vld [vmem:[%s6 + $0x40] sm:$0xf]
    %v5724 = vld [vmem:[%s6 + $0x44] sm:$0xf]
    %v5725 = vld [vmem:[%s6 + $0x48] sm:$0xf]
    %v5726 = vld [vmem:[%s6 + $0x4c] sm:$0xf]
    %v5727 = vld [vmem:[%s6 + $0x50] sm:$0xf]
    %v5728 = vld [vmem:[%s6 + $0x54] sm:$0xf]
    %v5729 = vld [vmem:[%s6 + $0x58] sm:$0x3]
    %v5753 = vunpack.c.l.b16 %v5707
    %v5754 = vunpack.c.l.b16 %v5708
    %v5755 = vunpack.c.l.b16 %v5709
    %v5756 = vunpack.c.l.b16 %v5710
    %v5757 = vunpack.c.l.b16 %v5711
    %v5758 = vunpack.c.l.b16 %v5712
    %v5759 = vunpack.c.l.b16 %v5713
    %v5760 = vunpack.c.l.b16 %v5714
    %v5761 = vunpack.c.l.b16 %v5715
    %v5762 = vunpack.c.l.b16 %v5716
    %v5763 = vunpack.c.l.b16 %v5717
    %v5764 = vunpack.c.l.b16 %v5718
    %v5765 = vunpack.c.l.b16 %v5719
    %v5766 = vunpack.c.l.b16 %v5720
    %v5767 = vunpack.c.l.b16 %v5721
    %v5768 = vunpack.c.l.b16 %v5722
    %v5769 = vunpack.c.l.b16 %v5723
    %v5770 = vunpack.c.l.b16 %v5724
    %v5771 = vunpack.c.l.b16 %v5725
    %v5772 = vunpack.c.l.b16 %v5726
    %v5773 = vunpack.c.l.b16 %v5727
    %v5774 = vunpack.c.l.b16 %v5728
    %v5775 = vunpack.c.l.b16 %v5729
    %v5776 = vpack.c.b16 %v5754, %v5753
    %v5777 = vpack.c.b16 %v5756, %v5755
    %v5778 = vpack.c.b16 %v5758, %v5757
    %v5779 = vpack.c.b16 %v5760, %v5759
    %v5780 = vpack.c.b16 %v5762, %v5761
    %v5781 = vpack.c.b16 %v5764, %v5763
    %v5782 = vpack.c.b16 %v5766, %v5765
    %v5783 = vpack.c.b16 %v5768, %v5767
    %v5784 = vpack.c.b16 %v5770, %v5769
    %v5785 = vpack.c.b16 %v5772, %v5771
    %v5786 = vpack.c.b16 %v5774, %v5773
    %v5787 = vpack.c.b16 %v5775, %v5775
    %vm5799 = vcmask 424960
    %v5801 = vsel %vm5799, %v5706, 0
    %vm5803 = vcmask 1041408
    %v5805 = vsel %vm5803, %v5787, 0
    %5807 = vmatprep.subr.bf16.mxu0 0
    %5808 = vmatpush1.bf16.msra.mxu0 %v5776
    %5809 = vmatprep.subr.bf16.mxu0 0
    %5810 = vmatpush1.bf16.msra.mxu0 %v5777
    %5811 = vmatprep.subr.bf16.mxu0 0
    %5812 = vmatpush1.bf16.msra.mxu0 %v5778
    %5813 = vmatprep.subr.bf16.mxu0 0
    %5814 = vmatpush1.bf16.msra.mxu0 %v5779
    %5815 = vmatprep.subr.bf16.mxu0 0
    %5816 = vmatpush1.bf16.msra.mxu0 %v5780
    %5817 = vmatprep.subr.bf16.mxu0 0
    %5818 = vmatpush1.bf16.msra.mxu0 %v5781
    %5819 = vmatprep.subr.bf16.mxu0 0
    %5820 = vmatpush1.bf16.msra.mxu0 %v5782
    %5821 = vmatprep.subr.bf16.mxu0 0
    %5822 = vmatpush1.bf16.msra.mxu0 %v5783
    %5823 = vmatprep.subr.bf16.mxu0 0
    %5824 = vmatpush1.bf16.msra.mxu0 %v5784
    %5825 = vmatprep.subr.bf16.mxu0 0
    %5826 = vmatpush1.bf16.msra.mxu0 %v5785
    %5827 = vmatprep.subr.bf16.mxu0 0
    %5828 = vmatpush1.bf16.msra.mxu0 %v5786
    %5829 = vmatprep.subr.bf16.mxu0 0
    %5830 = vmatpush1.bf16.msra.mxu0 %v5805
    %5831 = vmatprep.subr.bf16.mxu0 0
    %5832 = vmatpush1.bf16.msra.mxu0 0
    %5833 = vmatprep.subr.bf16.mxu0 0
    %5834 = vmatpush1.bf16.msra.mxu0 0
    %5835 = vmatprep.subr.bf16.mxu0 0
    %5836 = vmatpush1.bf16.msra.mxu0 0
    %5837 = vmatprep.subr.bf16.mxu0 0
    %5838 = vmatpush1.bf16.msra.mxu0 0
    %5839 = vmatprep.mubr.bf16.mxu0 %v5801
    %5840 = vmatmul.mubr.bf16.gmra.mrb[0].mxu0 %v5705
    %v5841 = vpop.f32.mrb[0].mxu0
    %v5842 = vadd.f32 0.0, %v5841
    %v5843 = vpop.f32.mrb[0].mxu0
    %v5844 = vpop.f32.mrb[0].mxu0
    %v5845 = vpop.f32.mrb[0].mxu0
    %5846 = vdwg.mxu0
    %vm5847 = vcmp.ge.f32.partialorder %v5842, 0.0
    %v5848 = vmul.f32 %v5842, 0.2
    %v5849 = vsel %vm5847, %v5842, %v5848
    %v5850 = vpack.c.bf16 %v5849, %v5849
    %v5851 = vld [vmem:[%s7] sm:$0xf]
    %v5852 = vld [vmem:[%s7 + $0x4] sm:$0xf]
    %v5853 = vld [vmem:[%s7 + $0x8] sm:$0xf]
    %v5854 = vld [vmem:[%s7 + $0xc] sm:$0xf]
    %v5855 = vld [vmem:[%s7 + $0x10] sm:$0xf]
    %v5856 = vld [vmem:[%s7 + $0x14] sm:$0xf]
    %v5857 = vld [vmem:[%s7 + $0x18] sm:$0xf]
    %v5858 = vld [vmem:[%s7 + $0x1c] sm:$0xf]
    %v5859 = vld [vmem:[%s7 + $0x20] sm:$0xf]
    %v5860 = vld [vmem:[%s7 + $0x24] sm:$0xf]
    %v5861 = vld [vmem:[%s7 + $0x28] sm:$0xf]
    %v5862 = vld [vmem:[%s7 + $0x2c] sm:$0x1]
    %v5875 = vunpack.c.l.b16 %v5851
    %v5876 = vunpack.c.l.b16 %v5852
    %v5877 = vunpack.c.l.b16 %v5853
    %v5878 = vunpack.c.l.b16 %v5854
    %v5879 = vunpack.c.l.b16 %v5855
    %v5880 = vunpack.c.l.b16 %v5856
    %v5881 = vunpack.c.l.b16 %v5857
    %v5882 = vunpack.c.l.b16 %v5858
    %v5883 = vunpack.c.l.b16 %v5859
    %v5884 = vunpack.c.l.b16 %v5860
    %v5885 = vunpack.c.l.b16 %v5861
    %v5886 = vunpack.c.l.b16 %v5862
    %v5887 = vpack.c.b16 %v5876, %v5875
    %v5888 = vpack.c.b16 %v5878, %v5877
    %v5889 = vpack.c.b16 %v5880, %v5879
    %v5890 = vpack.c.b16 %v5882, %v5881
    %v5891 = vpack.c.b16 %v5884, %v5883
    %v5892 = vpack.c.b16 %v5886, %v5885
    %vm5898 = vcmask 736256
    %v5900 = vsel %vm5898, %v5850, 0
    %vm5902 = vcmask 1044480
    %v5904 = vsel %vm5902, %v5892, 0
    %5906 = vmatprep.subr.bf16.mxu0 0
    %5907 = vmatpush1.bf16.msra.mxu0 %v5887
    %5908 = vmatprep.subr.bf16.mxu0 0
    %5909 = vmatpush1.bf16.msra.mxu0 %v5888
    %5910 = vmatprep.subr.bf16.mxu0 0
    %5911 = vmatpush1.bf16.msra.mxu0 %v5889
    %5912 = vmatprep.subr.bf16.mxu0 0
    %5913 = vmatpush1.bf16.msra.mxu0 %v5890
    %5914 = vmatprep.subr.bf16.mxu0 0
    %5915 = vmatpush1.bf16.msra.mxu0 %v5891
    %5916 = vmatprep.subr.bf16.mxu0 0
    %5917 = vmatpush1.bf16.msra.mxu0 %v5904
    %5918 = vmatprep.subr.bf16.mxu0 0
    %5919 = vmatpush1.bf16.msra.mxu0 0
    %5920 = vmatprep.subr.bf16.mxu0 0
    %5921 = vmatpush1.bf16.msra.mxu0 0
    %5922 = vmatprep.subr.bf16.mxu0 0
    %5923 = vmatpush1.bf16.msra.mxu0 0
    %5924 = vmatprep.subr.bf16.mxu0 0
    %5925 = vmatpush1.bf16.msra.mxu0 0
    %5926 = vmatprep.subr.bf16.mxu0 0
    %5927 = vmatpush1.bf16.msra.mxu0 0
    %5928 = vmatprep.subr.bf16.mxu0 0
    %5929 = vmatpush1.bf16.msra.mxu0 0
    %5930 = vmatprep.subr.bf16.mxu0 0
    %5931 = vmatpush1.bf16.msra.mxu0 0
    %5932 = vmatprep.subr.bf16.mxu0 0
    %5933 = vmatpush1.bf16.msra.mxu0 0
    %5934 = vmatprep.subr.bf16.mxu0 0
    %5935 = vmatpush1.bf16.msra.mxu0 0
    %5936 = vmatprep.subr.bf16.mxu0 0
    %5937 = vmatpush1.bf16.msra.mxu0 0
    %5938 = vmatprep.mubr.bf16.mxu0 0
    %5939 = vmatmul.mubr.bf16.gmra.mrb[0].mxu0 %v5900
    %v5940 = vpop.f32.mrb[0].mxu0
    %v5941 = vadd.f32 0.0, %v5940
    %v5942 = vpop.f32.mrb[0].mxu0
    %v5943 = vpop.f32.mrb[0].mxu0
    %v5944 = vpop.f32.mrb[0].mxu0
    %5945 = vdwg.mxu0
    %vm5946 = vcmp.ge.f32.partialorder %v5941, 0.0
    %v5947 = vmul.f32 %v5941, 0.2
    %v5948 = vsel %vm5946, %v5941, %v5947
    %v5949 = vpack.c.bf16 %v5948, %v5948
    %v5950 = vld [vmem:[%s8] sm:$0xf]
    %v5951 = vld [vmem:[%s8 + $0x4] sm:$0xf]
    %v5952 = vld [vmem:[%s8 + $0x8] sm:$0xf]
    %v5953 = vld [vmem:[%s8 + $0xc] sm:$0xf]
    %v5954 = vld [vmem:[%s8 + $0x10] sm:$0xf]
    %v5955 = vld [vmem:[%s8 + $0x14] sm:$0x7]
    %v5962 = vunpack.c.l.b16 %v5950
    %v5963 = vunpack.c.l.b16 %v5951
    %v5964 = vunpack.c.l.b16 %v5952
    %v5965 = vunpack.c.l.b16 %v5953
    %v5966 = vunpack.c.l.b16 %v5954
    %v5967 = vunpack.c.l.b16 %v5955
    %v5968 = vpack.c.b16 %v5963, %v5962
    %v5969 = vpack.c.b16 %v5965, %v5964
    %v5970 = vpack.c.b16 %v5967, %v5966
    %vm5973 = vcmask 367616
    %v5975 = vsel %vm5973, %v5949, 0
    %vm5977 = vcmask 1045504
    %vm5978 = vcmask 1046528
    %v5979 = vsel %vm5977, 4294967295, 65535
    %v5980 = vsel %vm5978, %v5979, 0
    %v5982 = vand.u32 %v5970, %v5980
    %5984 = vmatprep.subr.bf16.mxu0 0
    %5985 = vmatpush1.bf16.msra.mxu0 %v5968
    %5986 = vmatprep.subr.bf16.mxu0 0
    %5987 = vmatpush1.bf16.msra.mxu0 %v5969
    %5988 = vmatprep.subr.bf16.mxu0 0
    %5989 = vmatpush1.bf16.msra.mxu0 %v5982
    %5990 = vmatprep.subr.bf16.mxu0 0
    %5991 = vmatpush1.bf16.msra.mxu0 0
    %5992 = vmatprep.subr.bf16.mxu0 0
    %5993 = vmatpush1.bf16.msra.mxu0 0
    %5994 = vmatprep.subr.bf16.mxu0 0
    %5995 = vmatpush1.bf16.msra.mxu0 0
    %5996 = vmatprep.subr.bf16.mxu0 0
    %5997 = vmatpush1.bf16.msra.mxu0 0
    %5998 = vmatprep.subr.bf16.mxu0 0
    %5999 = vmatpush1.bf16.msra.mxu0 0
    %6000 = vmatprep.subr.bf16.mxu0 0
    %6001 = vmatpush1.bf16.msra.mxu0 0
    %6002 = vmatprep.subr.bf16.mxu0 0
    %6003 = vmatpush1.bf16.msra.mxu0 0
    %6004 = vmatprep.subr.bf16.mxu0 0
    %6005 = vmatpush1.bf16.msra.mxu0 0
    %6006 = vmatprep.subr.bf16.mxu0 0
    %6007 = vmatpush1.bf16.msra.mxu0 0
    %6008 = vmatprep.subr.bf16.mxu0 0
    %6009 = vmatpush1.bf16.msra.mxu0 0
    %6010 = vmatprep.subr.bf16.mxu0 0
    %6011 = vmatpush1.bf16.msra.mxu0 0
    %6012 = vmatprep.subr.bf16.mxu0 0
    %6013 = vmatpush1.bf16.msra.mxu0 0
    %6014 = vmatprep.subr.bf16.mxu0 0
    %6015 = vmatpush1.bf16.msra.mxu0 0
    %6016 = vmatprep.mubr.bf16.mxu0 0
    %6017 = vmatmul.mubr.bf16.gmra.mrb[0].mxu0 %v5975
    %v6018 = vpop.f32.mrb[0].mxu0
    %v6019 = vadd.f32 0.0, %v6018
    %v6020 = vpop.f32.mrb[0].mxu0
    %v6021 = vpop.f32.mrb[0].mxu0
    %v6022 = vpop.f32.mrb[0].mxu0
    %6023 = vdwg.mxu0
    %v6024 = vsub.f32 0.0, %v6019
    %v6025 = vmul.f32 %v6024, 1.442695
    %v6026 = vpow.pop %v6025
    %v6027 = vadd.f32 %v6026, 1.0
    %v6028 = vrcp.pop %v6027
    %v6029 = vmul.f32 1.0, %v6028
    %vm6030 = vcmask 25600
    %6031 = vst.msk [vmem:[#allocation2] sm:$0x3] %vm6030, %v6029
    // Predicated region
    $region38: #{penne_forward.3} parent=1 // pred_check
      _
    $region39: #{penne_forward.3} parent=1 // pred_check_branch
      %6033 = sbr.rel (0) target = $region41
    $region40: #{penne_forward.3} parent=1 // pred_region
      %s6035 = ssub.s32 32, 32
      %6036 = vsyncadd [#allocation3], %s6035
      %s6038 = sshll.u32 [#allocation2], 4
      %s6039 = int_to_ptr.vmem [resolvable:$true] %s6038
      %6041 = dma.vmem_to_hbm [thread:$0]  %s6039, 32, %s9, [#allocation3]
    $region41: #{penne_forward.3} parent=1 // pred_fallthru
      _
    // Predicated region
    $region42: #{penne_forward.3} parent=1 // pred_check
      _
    $region43: #{penne_forward.3} parent=1 // pred_check_branch
      %6043 = sbr.rel (0) target = $region45
    $region44: #{penne_forward.3} parent=1 // pred_region
      %6044 = dma.done [#allocation3], 32
    $region45: #{penne_forward.3} parent=1 // pred_fallthru
      _
    %6045 = vsyncpa [#allocation3], 1

</llo_original>
